<compile_context>
chip_gen: v6e
topology: v6e:2x2x1
jax: 0.10.0
libtpu: 0.0.40
codegen_flags: <defaults>
</compile_context>

<pallas_src>
import functools
import numpy as np
import jax
import jax.numpy as jnp
from jax.experimental import pallas as pl
from jax.experimental.pallas import tpu as pltpu

KSIZE, STRIDE, PAD, LEAK = 26, 4, 11, 0.2
Q = -(-KSIZE // STRIDE)            # 7 stride-phase groups (taps 26,27 are zero-padded)
TAPS = Q * STRIDE                  # 28 padded taps
PAD_R = TAPS - STRIDE - PAD        # 13 right-pad rows (extras only hit zero taps)


def _lrelu(y):
    return jnp.where(y >= 0.0, y, LEAK * y)


def _pad_rolled(h, shift):
    """PhaseShift (circular roll along length, static shift) fused with the zero padding
    required by the next stride-4 conv, as one sublane concat (no separate roll pass)."""
    l, c = h.shape
    s = shift % l
    zl = jnp.zeros((PAD, c), h.dtype)
    zr = jnp.zeros((PAD_R, c), h.dtype)
    if s == 0:
        parts = (zl, h, zr)
    else:                       # jnp.roll(h, s) == concat([h[l-s:], h[:l-s]])
        parts = (zl, h[l - s:, :], h[:l - s, :], zr)
    return jnp.concatenate(parts, axis=0)


def _conv_lrelu(pad_ref, w_ref, b_ref):
    """Stride-4 conv + bias + LeakyReLU from the zero-padded channels-last activation
    held in VMEM scratch.  pad_ref: (4*(l_out+Q-1), c_in); w_ref: (TAPS*c_in, c_out)."""
    g = pad_ref.shape[0] // STRIDE            # l_out + Q - 1
    l_out = g - (Q - 1)
    # phase-merge via stride-4 sublane reads: compact[t, r*c_in + ci] = pad[4t + r, ci]
    compact = jnp.concatenate(
        [pad_ref[pl.ds(r, g, stride=STRIDE), :] for r in range(STRIDE)], axis=-1)
    # fat im2col: one MXU matmul, contraction = TAPS*c_in (896/1792/3584).
    # (7 accumulating K=4*c_in dots are an alternative on v5e; same copy traffic.)
    patches = jnp.concatenate([compact[q:q + l_out, :] for q in range(Q)], axis=-1)
    y = jnp.dot(patches.astype(w_ref.dtype), w_ref[...],
                preferred_element_type=jnp.float32) + b_ref[...]
    return _lrelu(y)


def disc_kernel(x1_ref, w1_ref, b1_ref, w2_ref, b2_ref, w3_ref, b3_ref,
                w4_ref, b4_ref, fcw_ref, fcb_ref, o_ref,
                pad1_ref, pad2_ref, pad3_ref, *, shifts):
    # layer 1: pre-im2col'd input, single (1024,28)x(28,32) bf16 matmul, f32 accumulate
    h1 = _lrelu(jnp.dot(x1_ref[0], w1_ref[...],
                        preferred_element_type=jnp.float32) + b1_ref[...])   # (1024,32)
    pad1_ref[...] = _pad_rolled(h1, shifts[0])
    # layer 2
    h2 = _conv_lrelu(pad1_ref, w2_ref, b2_ref)                               # (256,64)
    pad2_ref[...] = _pad_rolled(h2, shifts[1])
    # layer 3
    h3 = _conv_lrelu(pad2_ref, w3_ref, b3_ref)                               # (64,128)
    pad3_ref[...] = _pad_rolled(h3, shifts[2])
    # layer 4 (no PhaseShift after it)
    h4 = _conv_lrelu(pad3_ref, w4_ref, b4_ref)                               # (16,256)
    # fused FC head: fcw_ref is the fc weight pre-permuted to this channels-last layout
    s = jnp.sum(h4 * fcw_ref[...], axis=0, keepdims=True)                    # (1,256)
    s = jnp.sum(s, axis=1, keepdims=True) + fcb_ref[...]                     # (1,1)
    o_ref[0] = s


def prepare_params(conv_params, fc_w, fc_b, compute_dtype=jnp.bfloat16):
    """One-time weight repacking (hoisted out of the forward).
    conv weights (C_out, C_in, 26) -> im2col (28*C_in, C_out) bf16; fc weight permuted
    from PyTorch's C-major flatten to the kernel's channels-last (L=16, C=256) layout."""
    packed = []
    for w, b in conv_params:
        c_out, c_in, k = w.shape
        w_p = jnp.pad(w, ((0, 0), (0, 0), (0, TAPS - k)))     # zero taps 26,27
        # W_im[(4q+r)*c_in + ci, co] = W[co, ci, 4q+r]
        w_im = jnp.transpose(w_p, (2, 1, 0)).reshape(TAPS * c_in, c_out)
        packed.append((jnp.asarray(w_im, compute_dtype),
                       jnp.asarray(b, jnp.float32).reshape(1, c_out)))
    c_last = conv_params[-1][0].shape[0]                      # 256
    l_last = fc_w.shape[1] // c_last                          # 16
    fcw2d = jnp.transpose(jnp.asarray(fc_w, jnp.float32).reshape(c_last, l_last), (1, 0))
    fcb = jnp.asarray(fc_b, jnp.float32).reshape(1, 1)
    return tuple(packed), fcw2d, fcb


@functools.partial(jax.jit, static_argnames=("shifts",))
def discriminator_forward(x_ncl, packed, fcw2d, fcb, shifts):
    """x_ncl: (N, 1, L) PyTorch layout; packed/fcw2d/fcb from prepare_params;
    shifts: static tuple of 3 ints (PhaseShift draws)."""
    (w1, b1), (w2, b2), (w3, b3), (w4, b4) = packed
    n, _, l_in = x_ncl.shape
    l1 = l_in // STRIDE                                       # 1024
    l2, l3, l4 = l1 // STRIDE, l1 // STRIDE ** 2, l1 // STRIDE ** 3   # 256, 64, 16

    # Layer-1 im2col: one small XLA fusion on the raw input (pad -> phase-merge ->
    # 7-slice concat -> bf16).  Everything downstream is a single pallas_call.
    x_pad = jnp.pad(x_ncl[:, 0, :], ((0, 0), (PAD, PAD_R)))   # (N, 4120)
    x_pm = x_pad.reshape(n, l1 + Q - 1, STRIDE)               # (N, 1030, 4)
    x1p = jnp.concatenate([x_pm[:, q:q + l1, :] for q in range(Q)],
                          axis=-1).astype(w1.dtype)           # (N, 1024, 28)

    full = lambda a: pl.BlockSpec(a.shape, lambda i, _n=a.ndim: (0,) * _n)
    out = pl.pallas_call(
        functools.partial(disc_kernel, shifts=shifts),
        out_shape=jax.ShapeDtypeStruct((n, 1, 1), jnp.float32),
        grid=(n,),
        in_specs=[
            pl.BlockSpec((1, l1, TAPS), lambda i: (i, 0, 0)),
            full(w1), full(b1), full(w2), full(b2),
            full(w3), full(b3), full(w4), full(b4),
            full(fcw2d), full(fcb),
        ],
        out_specs=pl.BlockSpec((1, 1, 1), lambda i: (i, 0, 0)),
        scratch_shapes=[
            pltpu.VMEM((STRIDE * (l2 + Q - 1), w1.shape[1]), jnp.float32),  # (1048, 32)
            pltpu.VMEM((STRIDE * (l3 + Q - 1), w2.shape[1]), jnp.float32),  # (280, 64)
            pltpu.VMEM((STRIDE * (l4 + Q - 1), w3.shape[1]), jnp.float32),  # (88, 128)
        ],
        compiler_params=pltpu.CompilerParams(
            dimension_semantics=("parallel",),
            vmem_limit_bytes=48 * 1024 * 1024),
    )(x1p, w1, b1, w2, b2, w3, b3, w4, b4, fcw2d, fcb)
    return out.reshape(n, 1)


def ref_forward(x, conv_params, fc_w, fc_b, shifts):
    """float64 numpy reference with exact module semantics (torch.roll == circular)."""
    h = np.asarray(x, np.float64)
    for i, (w, b) in enumerate(conv_params):
        w = np.asarray(w, np.float64); b = np.asarray(b, np.float64)
        n, c_in, l_in = h.shape
        c_out = w.shape[0]
        l_out = (l_in + 2 * PAD - KSIZE) // STRIDE + 1
        hp = np.pad(h, ((0, 0), (0, 0), (PAD, PAD)))
        y = np.zeros((n, c_out, l_out))
        for t in range(l_out):
            seg = hp[:, :, t * STRIDE:t * STRIDE + KSIZE]      # (N, C_in, K)
            y[:, :, t] = np.einsum("nck,ock->no", seg, w)
        y += b[None, :, None]
        h = np.where(y >= 0, y, LEAK * y)
        if i < len(shifts):
            h = np.roll(h, shifts[i], axis=2)
    feat = h.reshape(h.shape[0], -1)
    return feat @ np.asarray(fc_w, np.float64).T + np.asarray(fc_b, np.float64)


if __name__ == "__main__":
    N, L_IN = 2, 4096                       # fc(256*16 -> 1) pins the input length to 4096
    chans = [(1, 32), (32, 64), (64, 128), (128, 256)]

    key = jax.random.PRNGKey(0)
    key, kx = jax.random.split(key)
    x = jax.random.normal(kx, (N, 1, L_IN), jnp.float32)

    conv_params = []
    for c_in, c_out in chans:
        key, kw, kb = jax.random.split(key, 3)
        bound = 1.0 / np.sqrt(c_in * KSIZE)
        w = jax.random.uniform(kw, (c_out, c_in, KSIZE), jnp.float32, -bound, bound)
        b = jax.random.uniform(kb, (c_out,), jnp.float32, -bound, bound)
        conv_params.append((w, b))
    key, kfw, kfb = jax.random.split(key, 3)
    fbound = 1.0 / np.sqrt(256 * 16)
    fc_w = jax.random.uniform(kfw, (1, 256 * 16), jnp.float32, -fbound, fbound)
    fc_b = jax.random.uniform(kfb, (1,), jnp.float32, -fbound, fbound)

    # TODO(synk): PhaseShift's per-forward torch.randint draw has no in-kernel equivalent;
    # shifts in [-2, 2) are drawn host-side (deterministic) and folded into the kernel as
    # static circular rolls (matching torch.roll semantics).
    key, ks = jax.random.split(key)
    shifts = tuple(int(s) for s in np.asarray(jax.random.randint(ks, (3,), -2, 2)))

    packed, fcw2d, fcb = prepare_params(conv_params, fc_w, fc_b)   # hoisted weight repack
    y = jax.block_until_ready(discriminator_forward(x, packed, fcw2d, fcb, shifts=shifts))
    assert y.shape == (N, 1), y.shape

    y_ref = ref_forward(np.asarray(x),
                        [(np.asarray(w), np.asarray(b)) for w, b in conv_params],
                        np.asarray(fc_w), np.asarray(fc_b), shifts)
    abs_err = float(np.max(np.abs(np.asarray(y, np.float64) - y_ref)))
    tol = 2e-2 + 5e-2 * float(np.max(np.abs(y_ref)))               # atol+rtol (bf16 weights)
    assert abs_err < tol, f"abs err {abs_err} vs tol {tol}"
    print("KERNEL_OK")
</pallas_src>

<mosaic_0001>
module attributes {stable_mosaic.version = 11 : i64} {
  func.func @disc_kernel(%arg0: i32, %arg1: memref<1x1024x28xbf16, #tpu.memory_space<vmem>>, %arg2: memref<28x32xbf16, #tpu.memory_space<vmem>>, %arg3: memref<1x32xf32, #tpu.memory_space<vmem>>, %arg4: memref<896x64xbf16, #tpu.memory_space<vmem>>, %arg5: memref<1x64xf32, #tpu.memory_space<vmem>>, %arg6: memref<1792x128xbf16, #tpu.memory_space<vmem>>, %arg7: memref<1x128xf32, #tpu.memory_space<vmem>>, %arg8: memref<3584x256xbf16, #tpu.memory_space<vmem>>, %arg9: memref<1x256xf32, #tpu.memory_space<vmem>>, %arg10: memref<16x256xf32, #tpu.memory_space<vmem>>, %arg11: memref<1x1xf32, #tpu.memory_space<vmem>>, %arg12: memref<1x1x1xf32, #tpu.memory_space<vmem>>, %arg13: memref<1048x32xf32, #tpu.memory_space<vmem>>, %arg14: memref<280x64xf32, #tpu.memory_space<vmem>>, %arg15: memref<88x128xf32, #tpu.memory_space<vmem>>) attributes {dimension_semantics = [#tpu.dimension_semantics<parallel>], iteration_bounds = array<i64: 2>, scalar_prefetch = 0 : i64, scratch_operands = 3 : i64, tpu.core_type = #tpu.core_type<tc>, window_params = [{transform_indices = @transform_0, window_bounds = array<i64: 1, 1024, 28>}, {pipeline_mode = #tpu.pipeline_mode<synchronous>, transform_indices = @transform_1, window_bounds = array<i64: 28, 32>}, {pipeline_mode = #tpu.pipeline_mode<synchronous>, transform_indices = @transform_2, window_bounds = array<i64: 1, 32>}, {pipeline_mode = #tpu.pipeline_mode<synchronous>, transform_indices = @transform_3, window_bounds = array<i64: 896, 64>}, {pipeline_mode = #tpu.pipeline_mode<synchronous>, transform_indices = @transform_4, window_bounds = array<i64: 1, 64>}, {pipeline_mode = #tpu.pipeline_mode<synchronous>, transform_indices = @transform_5, window_bounds = array<i64: 1792, 128>}, {pipeline_mode = #tpu.pipeline_mode<synchronous>, transform_indices = @transform_6, window_bounds = array<i64: 1, 128>}, {pipeline_mode = #tpu.pipeline_mode<synchronous>, transform_indices = @transform_7, window_bounds = array<i64: 3584, 256>}, {pipeline_mode = #tpu.pipeline_mode<synchronous>, transform_indices = @transform_8, window_bounds = array<i64: 1, 256>}, {pipeline_mode = #tpu.pipeline_mode<synchronous>, transform_indices = @transform_9, window_bounds = array<i64: 16, 256>}, {pipeline_mode = #tpu.pipeline_mode<synchronous>, transform_indices = @transform_10, window_bounds = array<i64: 1, 1>}, {transform_indices = @transform_11, window_bounds = array<i64: 1, 1, 1>}]} {
    %c0 = arith.constant 0 : index
    %c0_0 = arith.constant 0 : index
    %c0_1 = arith.constant 0 : index
    %0 = vector.load %arg1[%c0, %c0_0, %c0_1] : memref<1x1024x28xbf16, #tpu.memory_space<vmem>>, vector<1x1024x28xbf16>
    %1 = vector.shape_cast %0 : vector<1x1024x28xbf16> to vector<1024x28xbf16>
    %c0_2 = arith.constant 0 : index
    %c0_3 = arith.constant 0 : index
    %2 = vector.load %arg2[%c0_2, %c0_3] : memref<28x32xbf16, #tpu.memory_space<vmem>>, vector<28x32xbf16>
    %cst = arith.constant dense<0.000000e+00> : vector<1024x32xf32>
    %3 = tpu.matmul %1, %2, %cst {dimension_numbers = #tpu.dot_dimension_numbers<[1], [0], [0], [1], [0, 0, 1, 1], [], []>} : vector<1024x28xbf16>, vector<28x32xbf16>, vector<1024x32xf32> -> vector<1024x32xf32>
    %c0_4 = arith.constant 0 : index
    %c0_5 = arith.constant 0 : index
    %4 = vector.load %arg3[%c0_4, %c0_5] : memref<1x32xf32, #tpu.memory_space<vmem>>, vector<1x32xf32>
    %5 = vector.broadcast %4 : vector<1x32xf32> to vector<1024x32xf32>
    %6 = arith.addf %3, %5 : vector<1024x32xf32>
    %cst_6 = arith.constant 0.000000e+00 : f32
    %7 = vector.broadcast %cst_6 : f32 to vector<1024x32xf32>
    %8 = arith.cmpf oge, %6, %7 : vector<1024x32xf32>
    %cst_7 = arith.constant 2.000000e-01 : f32
    %9 = vector.broadcast %cst_7 : f32 to vector<1024x32xf32>
    %10 = arith.mulf %9, %6 : vector<1024x32xf32>
    %11 = arith.select %8, %6, %10 : vector<1024x32xi1>, vector<1024x32xf32>
    %cst_8 = arith.constant 0.000000e+00 : f32
    %12 = vector.broadcast %cst_8 : f32 to vector<11x32xf32>
    %cst_9 = arith.constant 0.000000e+00 : f32
    %13 = vector.broadcast %cst_9 : f32 to vector<13x32xf32>
    %14 = vector.extract_strided_slice %11 {offsets = [1023, 0], sizes = [1, 32], strides = [1, 1]} : vector<1024x32xf32> to vector<1x32xf32>
    %15 = vector.extract_strided_slice %11 {offsets = [0, 0], sizes = [1023, 32], strides = [1, 1]} : vector<1024x32xf32> to vector<1023x32xf32>
    %16 = tpu.concatenate %12, %14, %15, %13 in 0 : vector<11x32xf32>, vector<1x32xf32>, vector<1023x32xf32>, vector<13x32xf32> -> vector<1048x32xf32>
    %c0_10 = arith.constant 0 : index
    %c0_11 = arith.constant 0 : index
    %17 = vector.load %arg13[%c0_10, %c0_11] : memref<1048x32xf32, #tpu.memory_space<vmem>>, vector<1048x32xf32>
    tpu.vector_store %arg13[%c0_10, %c0_11], %16 {strides = array<i32>} : memref<1048x32xf32, #tpu.memory_space<vmem>>, vector<1048x32xf32>,
    %c0_12 = arith.constant 0 : index
    %c0_13 = arith.constant 0 : index
    %18 = tpu.strided_load %arg13[%c0_12, %c0_13] {strides = array<i32: 4, 1>} : memref<1048x32xf32, #tpu.memory_space<vmem>>, vector<262x32xf32>
    %c1 = arith.constant 1 : index
    %c0_14 = arith.constant 0 : index
    %19 = tpu.strided_load %arg13[%c1, %c0_14] {strides = array<i32: 4, 1>} : memref<1048x32xf32, #tpu.memory_space<vmem>>, vector<262x32xf32>
    %c2 = arith.constant 2 : index
    %c0_15 = arith.constant 0 : index
    %20 = tpu.strided_load %arg13[%c2, %c0_15] {strides = array<i32: 4, 1>} : memref<1048x32xf32, #tpu.memory_space<vmem>>, vector<262x32xf32>
    %c3 = arith.constant 3 : index
    %c0_16 = arith.constant 0 : index
    %21 = tpu.strided_load %arg13[%c3, %c0_16] {strides = array<i32: 4, 1>} : memref<1048x32xf32, #tpu.memory_space<vmem>>, vector<262x32xf32>
    %22 = tpu.concatenate %18, %19, %20, %21 in 1 : vector<262x32xf32>, vector<262x32xf32>, vector<262x32xf32>, vector<262x32xf32> -> vector<262x128xf32>
    %23 = vector.extract_strided_slice %22 {offsets = [0, 0], sizes = [256, 128], strides = [1, 1]} : vector<262x128xf32> to vector<256x128xf32>
    %24 = vector.extract_strided_slice %22 {offsets = [1, 0], sizes = [256, 128], strides = [1, 1]} : vector<262x128xf32> to vector<256x128xf32>
    %25 = vector.extract_strided_slice %22 {offsets = [2, 0], sizes = [256, 128], strides = [1, 1]} : vector<262x128xf32> to vector<256x128xf32>
    %26 = vector.extract_strided_slice %22 {offsets = [3, 0], sizes = [256, 128], strides = [1, 1]} : vector<262x128xf32> to vector<256x128xf32>
    %27 = vector.extract_strided_slice %22 {offsets = [4, 0], sizes = [256, 128], strides = [1, 1]} : vector<262x128xf32> to vector<256x128xf32>
    %28 = vector.extract_strided_slice %22 {offsets = [5, 0], sizes = [256, 128], strides = [1, 1]} : vector<262x128xf32> to vector<256x128xf32>
    %29 = vector.extract_strided_slice %22 {offsets = [6, 0], sizes = [256, 128], strides = [1, 1]} : vector<262x128xf32> to vector<256x128xf32>
    %30 = tpu.concatenate %23, %24, %25, %26, %27, %28, %29 in 1 : vector<256x128xf32>, vector<256x128xf32>, vector<256x128xf32>, vector<256x128xf32>, vector<256x128xf32>, vector<256x128xf32>, vector<256x128xf32> -> vector<256x896xf32>
    %31 = arith.truncf %30 : vector<256x896xf32> to vector<256x896xbf16>
    %c0_17 = arith.constant 0 : index
    %c0_18 = arith.constant 0 : index
    %32 = vector.load %arg4[%c0_17, %c0_18] : memref<896x64xbf16, #tpu.memory_space<vmem>>, vector<896x64xbf16>
    %cst_19 = arith.constant dense<0.000000e+00> : vector<256x64xf32>
    %33 = tpu.matmul %31, %32, %cst_19 {dimension_numbers = #tpu.dot_dimension_numbers<[1], [0], [0], [1], [0, 0, 1, 1], [], []>} : vector<256x896xbf16>, vector<896x64xbf16>, vector<256x64xf32> -> vector<256x64xf32>
    %c0_20 = arith.constant 0 : index
    %c0_21 = arith.constant 0 : index
    %34 = vector.load %arg5[%c0_20, %c0_21] : memref<1x64xf32, #tpu.memory_space<vmem>>, vector<1x64xf32>
    %35 = vector.broadcast %34 : vector<1x64xf32> to vector<256x64xf32>
    %36 = arith.addf %33, %35 : vector<256x64xf32>
    %cst_22 = arith.constant 0.000000e+00 : f32
    %37 = vector.broadcast %cst_22 : f32 to vector<256x64xf32>
    %38 = arith.cmpf oge, %36, %37 : vector<256x64xf32>
    %cst_23 = arith.constant 2.000000e-01 : f32
    %39 = vector.broadcast %cst_23 : f32 to vector<256x64xf32>
    %40 = arith.mulf %39, %36 : vector<256x64xf32>
    %41 = arith.select %38, %36, %40 : vector<256x64xi1>, vector<256x64xf32>
    %cst_24 = arith.constant 0.000000e+00 : f32
    %42 = vector.broadcast %cst_24 : f32 to vector<11x64xf32>
    %cst_25 = arith.constant 0.000000e+00 : f32
    %43 = vector.broadcast %cst_25 : f32 to vector<13x64xf32>
    %44 = vector.extract_strided_slice %41 {offsets = [2, 0], sizes = [254, 64], strides = [1, 1]} : vector<256x64xf32> to vector<254x64xf32>
    %45 = vector.extract_strided_slice %41 {offsets = [0, 0], sizes = [2, 64], strides = [1, 1]} : vector<256x64xf32> to vector<2x64xf32>
    %46 = tpu.concatenate %42, %44, %45, %43 in 0 : vector<11x64xf32>, vector<254x64xf32>, vector<2x64xf32>, vector<13x64xf32> -> vector<280x64xf32>
    %c0_26 = arith.constant 0 : index
    %c0_27 = arith.constant 0 : index
    %47 = vector.load %arg14[%c0_26, %c0_27] : memref<280x64xf32, #tpu.memory_space<vmem>>, vector<280x64xf32>
    tpu.vector_store %arg14[%c0_26, %c0_27], %46 {strides = array<i32>} : memref<280x64xf32, #tpu.memory_space<vmem>>, vector<280x64xf32>,
    %c0_28 = arith.constant 0 : index
    %c0_29 = arith.constant 0 : index
    %48 = tpu.strided_load %arg14[%c0_28, %c0_29] {strides = array<i32: 4, 1>} : memref<280x64xf32, #tpu.memory_space<vmem>>, vector<70x64xf32>
    %c1_30 = arith.constant 1 : index
    %c0_31 = arith.constant 0 : index
    %49 = tpu.strided_load %arg14[%c1_30, %c0_31] {strides = array<i32: 4, 1>} : memref<280x64xf32, #tpu.memory_space<vmem>>, vector<70x64xf32>
    %c2_32 = arith.constant 2 : index
    %c0_33 = arith.constant 0 : index
    %50 = tpu.strided_load %arg14[%c2_32, %c0_33] {strides = array<i32: 4, 1>} : memref<280x64xf32, #tpu.memory_space<vmem>>, vector<70x64xf32>
    %c3_34 = arith.constant 3 : index
    %c0_35 = arith.constant 0 : index
    %51 = tpu.strided_load %arg14[%c3_34, %c0_35] {strides = array<i32: 4, 1>} : memref<280x64xf32, #tpu.memory_space<vmem>>, vector<70x64xf32>
    %52 = tpu.concatenate %48, %49, %50, %51 in 1 : vector<70x64xf32>, vector<70x64xf32>, vector<70x64xf32>, vector<70x64xf32> -> vector<70x256xf32>
    %53 = vector.extract_strided_slice %52 {offsets = [0, 0], sizes = [64, 256], strides = [1, 1]} : vector<70x256xf32> to vector<64x256xf32>
    %54 = vector.extract_strided_slice %52 {offsets = [1, 0], sizes = [64, 256], strides = [1, 1]} : vector<70x256xf32> to vector<64x256xf32>
    %55 = vector.extract_strided_slice %52 {offsets = [2, 0], sizes = [64, 256], strides = [1, 1]} : vector<70x256xf32> to vector<64x256xf32>
    %56 = vector.extract_strided_slice %52 {offsets = [3, 0], sizes = [64, 256], strides = [1, 1]} : vector<70x256xf32> to vector<64x256xf32>
    %57 = vector.extract_strided_slice %52 {offsets = [4, 0], sizes = [64, 256], strides = [1, 1]} : vector<70x256xf32> to vector<64x256xf32>
    %58 = vector.extract_strided_slice %52 {offsets = [5, 0], sizes = [64, 256], strides = [1, 1]} : vector<70x256xf32> to vector<64x256xf32>
    %59 = vector.extract_strided_slice %52 {offsets = [6, 0], sizes = [64, 256], strides = [1, 1]} : vector<70x256xf32> to vector<64x256xf32>
    %60 = tpu.concatenate %53, %54, %55, %56, %57, %58, %59 in 1 : vector<64x256xf32>, vector<64x256xf32>, vector<64x256xf32>, vector<64x256xf32>, vector<64x256xf32>, vector<64x256xf32>, vector<64x256xf32> -> vector<64x1792xf32>
    %61 = arith.truncf %60 : vector<64x1792xf32> to vector<64x1792xbf16>
    %c0_36 = arith.constant 0 : index
    %c0_37 = arith.constant 0 : index
    %62 = vector.load %arg6[%c0_36, %c0_37] : memref<1792x128xbf16, #tpu.memory_space<vmem>>, vector<1792x128xbf16>
    %cst_38 = arith.constant dense<0.000000e+00> : vector<64x128xf32>
    %63 = tpu.matmul %61, %62, %cst_38 {dimension_numbers = #tpu.dot_dimension_numbers<[1], [0], [0], [1], [0, 0, 1, 1], [], []>} : vector<64x1792xbf16>, vector<1792x128xbf16>, vector<64x128xf32> -> vector<64x128xf32>
    %c0_39 = arith.constant 0 : index
    %c0_40 = arith.constant 0 : index
    %64 = vector.load %arg7[%c0_39, %c0_40] : memref<1x128xf32, #tpu.memory_space<vmem>>, vector<1x128xf32>
    %65 = vector.broadcast %64 : vector<1x128xf32> to vector<64x128xf32>
    %66 = arith.addf %63, %65 : vector<64x128xf32>
    %cst_41 = arith.constant 0.000000e+00 : f32
    %67 = vector.broadcast %cst_41 : f32 to vector<64x128xf32>
    %68 = arith.cmpf oge, %66, %67 : vector<64x128xf32>
    %cst_42 = arith.constant 2.000000e-01 : f32
    %69 = vector.broadcast %cst_42 : f32 to vector<64x128xf32>
    %70 = arith.mulf %69, %66 : vector<64x128xf32>
    %71 = arith.select %68, %66, %70 : vector<64x128xi1>, vector<64x128xf32>
    %cst_43 = arith.constant 0.000000e+00 : f32
    %72 = vector.broadcast %cst_43 : f32 to vector<11x128xf32>
    %cst_44 = arith.constant 0.000000e+00 : f32
    %73 = vector.broadcast %cst_44 : f32 to vector<13x128xf32>
    %74 = tpu.concatenate %72, %71, %73 in 0 : vector<11x128xf32>, vector<64x128xf32>, vector<13x128xf32> -> vector<88x128xf32>
    %c0_45 = arith.constant 0 : index
    %c0_46 = arith.constant 0 : index
    %75 = vector.load %arg15[%c0_45, %c0_46] : memref<88x128xf32, #tpu.memory_space<vmem>>, vector<88x128xf32>
    tpu.vector_store %arg15[%c0_45, %c0_46], %74 {strides = array<i32>} : memref<88x128xf32, #tpu.memory_space<vmem>>, vector<88x128xf32>,
    %c0_47 = arith.constant 0 : index
    %c0_48 = arith.constant 0 : index
    %76 = tpu.strided_load %arg15[%c0_47, %c0_48] {strides = array<i32: 4, 1>} : memref<88x128xf32, #tpu.memory_space<vmem>>, vector<22x128xf32>
    %c1_49 = arith.constant 1 : index
    %c0_50 = arith.constant 0 : index
    %77 = tpu.strided_load %arg15[%c1_49, %c0_50] {strides = array<i32: 4, 1>} : memref<88x128xf32, #tpu.memory_space<vmem>>, vector<22x128xf32>
    %c2_51 = arith.constant 2 : index
    %c0_52 = arith.constant 0 : index
    %78 = tpu.strided_load %arg15[%c2_51, %c0_52] {strides = array<i32: 4, 1>} : memref<88x128xf32, #tpu.memory_space<vmem>>, vector<22x128xf32>
    %c3_53 = arith.constant 3 : index
    %c0_54 = arith.constant 0 : index
    %79 = tpu.strided_load %arg15[%c3_53, %c0_54] {strides = array<i32: 4, 1>} : memref<88x128xf32, #tpu.memory_space<vmem>>, vector<22x128xf32>
    %80 = tpu.concatenate %76, %77, %78, %79 in 1 : vector<22x128xf32>, vector<22x128xf32>, vector<22x128xf32>, vector<22x128xf32> -> vector<22x512xf32>
    %81 = vector.extract_strided_slice %80 {offsets = [0, 0], sizes = [16, 512], strides = [1, 1]} : vector<22x512xf32> to vector<16x512xf32>
    %82 = vector.extract_strided_slice %80 {offsets = [1, 0], sizes = [16, 512], strides = [1, 1]} : vector<22x512xf32> to vector<16x512xf32>
    %83 = vector.extract_strided_slice %80 {offsets = [2, 0], sizes = [16, 512], strides = [1, 1]} : vector<22x512xf32> to vector<16x512xf32>
    %84 = vector.extract_strided_slice %80 {offsets = [3, 0], sizes = [16, 512], strides = [1, 1]} : vector<22x512xf32> to vector<16x512xf32>
    %85 = vector.extract_strided_slice %80 {offsets = [4, 0], sizes = [16, 512], strides = [1, 1]} : vector<22x512xf32> to vector<16x512xf32>
    %86 = vector.extract_strided_slice %80 {offsets = [5, 0], sizes = [16, 512], strides = [1, 1]} : vector<22x512xf32> to vector<16x512xf32>
    %87 = vector.extract_strided_slice %80 {offsets = [6, 0], sizes = [16, 512], strides = [1, 1]} : vector<22x512xf32> to vector<16x512xf32>
    %88 = tpu.concatenate %81, %82, %83, %84, %85, %86, %87 in 1 : vector<16x512xf32>, vector<16x512xf32>, vector<16x512xf32>, vector<16x512xf32>, vector<16x512xf32>, vector<16x512xf32>, vector<16x512xf32> -> vector<16x3584xf32>
    %89 = arith.truncf %88 : vector<16x3584xf32> to vector<16x3584xbf16>
    %c0_55 = arith.constant 0 : index
    %c0_56 = arith.constant 0 : index
    %90 = vector.load %arg8[%c0_55, %c0_56] : memref<3584x256xbf16, #tpu.memory_space<vmem>>, vector<3584x256xbf16>
    %cst_57 = arith.constant dense<0.000000e+00> : vector<16x256xf32>
    %91 = tpu.matmul %89, %90, %cst_57 {dimension_numbers = #tpu.dot_dimension_numbers<[1], [0], [0], [1], [0, 0, 1, 1], [], []>} : vector<16x3584xbf16>, vector<3584x256xbf16>, vector<16x256xf32> -> vector<16x256xf32>
    %c0_58 = arith.constant 0 : index
    %c0_59 = arith.constant 0 : index
    %92 = vector.load %arg9[%c0_58, %c0_59] : memref<1x256xf32, #tpu.memory_space<vmem>>, vector<1x256xf32>
    %93 = vector.broadcast %92 : vector<1x256xf32> to vector<16x256xf32>
    %94 = arith.addf %91, %93 : vector<16x256xf32>
    %cst_60 = arith.constant 0.000000e+00 : f32
    %95 = vector.broadcast %cst_60 : f32 to vector<16x256xf32>
    %96 = arith.cmpf oge, %94, %95 : vector<16x256xf32>
    %cst_61 = arith.constant 2.000000e-01 : f32
    %97 = vector.broadcast %cst_61 : f32 to vector<16x256xf32>
    %98 = arith.mulf %97, %94 : vector<16x256xf32>
    %99 = arith.select %96, %94, %98 : vector<16x256xi1>, vector<16x256xf32>
    %c0_62 = arith.constant 0 : index
    %c0_63 = arith.constant 0 : index
    %100 = vector.load %arg10[%c0_62, %c0_63] : memref<16x256xf32, #tpu.memory_space<vmem>>, vector<16x256xf32>
    %101 = arith.mulf %99, %100 : vector<16x256xf32>
    %cst_64 = arith.constant dense<0.000000e+00> : vector<256xf32>
    %102 = vector.multi_reduction <add>, %101, %cst_64 [0] : vector<16x256xf32> to vector<256xf32>
    %103 = vector.shape_cast %102 : vector<256xf32> to vector<1x256xf32>
    %cst_65 = arith.constant dense<0.000000e+00> : vector<1xf32>
    %104 = vector.multi_reduction <add>, %103, %cst_65 [1] : vector<1x256xf32> to vector<1xf32>
    %105 = vector.shape_cast %104 : vector<1xf32> to vector<1x1xf32>
    %c0_66 = arith.constant 0 : index
    %c0_67 = arith.constant 0 : index
    %106 = vector.load %arg11[%c0_66, %c0_67] : memref<1x1xf32, #tpu.memory_space<vmem>>, vector<1x1xf32>
    %107 = arith.addf %105, %106 : vector<1x1xf32>
    %c0_68 = arith.constant 0 : index
    %c0_69 = arith.constant 0 : index
    %c0_70 = arith.constant 0 : index
    %108 = vector.load %arg12[%c0_68, %c0_69, %c0_70] : memref<1x1x1xf32, #tpu.memory_space<vmem>>, vector<1x1x1xf32>
    %109 = vector.shape_cast %108 : vector<1x1x1xf32> to vector<1x1xf32>
    %110 = vector.shape_cast %107 : vector<1x1xf32> to vector<1x1x1xf32>
    tpu.vector_store %arg12[%c0_68, %c0_69, %c0_70], %110 {strides = array<i32>} : memref<1x1x1xf32, #tpu.memory_space<vmem>>, vector<1x1x1xf32>,
    return
  }
  func.func @transform_0(%arg0: i32) -> (i32, i32, i32) {
    %c0_i32 = arith.constant 0 : i32
    %c0_i32_0 = arith.constant 0 : i32
    %c0_i32_1 = arith.constant 0 : i32
    return %arg0, %c0_i32, %c0_i32_0 : i32, i32, i32
  }
  func.func @transform_1(%arg0: i32) -> (i32, i32) {
    %c0_i32 = arith.constant 0 : i32
    %c0_i32_0 = arith.constant 0 : i32
    %c0_i32_1 = arith.constant 0 : i32
    return %c0_i32, %c0_i32_0 : i32, i32
  }
  func.func @transform_2(%arg0: i32) -> (i32, i32) {
    %c0_i32 = arith.constant 0 : i32
    %c0_i32_0 = arith.constant 0 : i32
    %c0_i32_1 = arith.constant 0 : i32
    return %c0_i32, %c0_i32_0 : i32, i32
  }
  func.func @transform_3(%arg0: i32) -> (i32, i32) {
    %c0_i32 = arith.constant 0 : i32
    %c0_i32_0 = arith.constant 0 : i32
    %c0_i32_1 = arith.constant 0 : i32
    return %c0_i32, %c0_i32_0 : i32, i32
  }
  func.func @transform_4(%arg0: i32) -> (i32, i32) {
    %c0_i32 = arith.constant 0 : i32
    %c0_i32_0 = arith.constant 0 : i32
    %c0_i32_1 = arith.constant 0 : i32
    return %c0_i32, %c0_i32_0 : i32, i32
  }
  func.func @transform_5(%arg0: i32) -> (i32, i32) {
    %c0_i32 = arith.constant 0 : i32
    %c0_i32_0 = arith.constant 0 : i32
    %c0_i32_1 = arith.constant 0 : i32
    return %c0_i32, %c0_i32_0 : i32, i32
  }
  func.func @transform_6(%arg0: i32) -> (i32, i32) {
    %c0_i32 = arith.constant 0 : i32
    %c0_i32_0 = arith.constant 0 : i32
    %c0_i32_1 = arith.constant 0 : i32
    return %c0_i32, %c0_i32_0 : i32, i32
  }
  func.func @transform_7(%arg0: i32) -> (i32, i32) {
    %c0_i32 = arith.constant 0 : i32
    %c0_i32_0 = arith.constant 0 : i32
    %c0_i32_1 = arith.constant 0 : i32
    return %c0_i32, %c0_i32_0 : i32, i32
  }
  func.func @transform_8(%arg0: i32) -> (i32, i32) {
    %c0_i32 = arith.constant 0 : i32
    %c0_i32_0 = arith.constant 0 : i32
    %c0_i32_1 = arith.constant 0 : i32
    return %c0_i32, %c0_i32_0 : i32, i32
  }
  func.func @transform_9(%arg0: i32) -> (i32, i32) {
    %c0_i32 = arith.constant 0 : i32
    %c0_i32_0 = arith.constant 0 : i32
    %c0_i32_1 = arith.constant 0 : i32
    return %c0_i32, %c0_i32_0 : i32, i32
  }
  func.func @transform_10(%arg0: i32) -> (i32, i32) {
    %c0_i32 = arith.constant 0 : i32
    %c0_i32_0 = arith.constant 0 : i32
    %c0_i32_1 = arith.constant 0 : i32
    return %c0_i32, %c0_i32_0 : i32, i32
  }
  func.func @transform_11(%arg0: i32) -> (i32, i32, i32) {
    %c0_i32 = arith.constant 0 : i32
    %c0_i32_0 = arith.constant 0 : i32
    %c0_i32_1 = arith.constant 0 : i32
    return %arg0, %c0_i32, %c0_i32_0 : i32, i32, i32
  }
}

</mosaic_0001>

<llo_original>
// kernel: discriminator_forward.1
$region0: #{discriminator_forward.1}
  #allocation0 [shape = 'u32[]', space=smem, size = 0x4, offset = 0x4, fixed_abs, tag = 'smem constant byte address 0x4 - core index']
  #allocation1 [shape = 'u32[144,128]{1,0:T(1,128)}', space=vmem, size = 0x12000, scoped, tag = 'internal scratch']
  #allocation2 [shape = 'f32[1048,32]{1,0:T(8,128)}', space=vmem, size = 0x83000, scoped, tag = 'scratch operand']
  #allocation3 [shape = 'f32[280,64]{1,0:T(8,128)}', space=vmem, size = 0x23000, scoped, tag = 'scratch operand']
  #allocation4 [shape = 'f32[88,128]{1,0:T(8,128)}', space=vmem, size = 0xb000, scoped, tag = 'scratch operand']
  #allocation5 [shape = 'f32[1,1]{1,0:T(1,128)S(1)}', space=vmem, size = 0x200, scoped, tag = 'scoped memory for discriminator_forward.1']
  %s0 = inlined_call_operand.vmem [shape: bf16[2,1024,28], index: 0, kind: input, shape index: {}]
  %s1 = inlined_call_operand.vmem [shape: bf16[28,32], index: 1, kind: input, shape index: {}]
  %s2 = inlined_call_operand.vmem [shape: f32[1,32], index: 2, kind: input, shape index: {}]
  %s3 = inlined_call_operand.vmem [shape: bf16[896,64], index: 3, kind: input, shape index: {}]
  %s4 = inlined_call_operand.vmem [shape: f32[1,64], index: 4, kind: input, shape index: {}]
  %s5 = inlined_call_operand.vmem [shape: bf16[1792,128], index: 5, kind: input, shape index: {}]
  %s6 = inlined_call_operand.vmem [shape: f32[1,128], index: 6, kind: input, shape index: {}]
  %s7 = inlined_call_operand.vmem [shape: bf16[3584,256], index: 7, kind: input, shape index: {}]
  %s8 = inlined_call_operand.vmem [shape: f32[1,256], index: 8, kind: input, shape index: {}]
  %s9 = inlined_call_operand.vmem [shape: f32[16,256], index: 9, kind: input, shape index: {}]
  %s10 = inlined_call_operand.<no memory space> [shape: f32[1,1], index: 10, kind: input, shape index: {}]
  %s11 = inlined_call_operand.vmem [shape: f32[2,1,1], index: 11, kind: output, shape index: {}]
  %s12 = sld [smem:[#allocation0]]
  $region77: #{discriminator_forward.1} parent=0
    _
  %s14 = ssub.s32 1, %s12
  %s15 = scalar_select 0, %s14, %s12
  %v16 = vstv %s10
  %17 = vst [vmem:[#allocation5] sm:$0x1] %v16
  loop: start=0, step=1, limit=4
  $region2: #{discriminator_forward.1} parent=0 // loop_pre_header
    _
  $region3: #{discriminator_forward.1} parent=0 // loop_header
    %s19 = sphi 0, %s23
    %p20 = scmp.ge.s32.totalorder %s19, 4
    %s29 = sphi 0, %s31
    %s32 = sphi 0, %s29
    %s33 = sphi 0, %s32
    %s49 = sphi 0, %s33
    %s53 = sphi 0, %s53
    %s55 = sphi 0, %s53
    %s56 = sphi 0, %s55
    %s70 = sphi 0, %s56
    %s74 = sphi 0, %s74
    %s76 = sphi 0, %s74
    %s77 = sphi 0, %s76
    %s91 = sphi 0, %s77
    %s95 = sphi 0, %s95
    %s97 = sphi 0, %s95
    %s98 = sphi 0, %s97
    %s112 = sphi 0, %s98
    %s116 = sphi 0, %s116
    %s118 = sphi 0, %s116
    %s119 = sphi 0, %s118
    %s133 = sphi 0, %s119
    %s137 = sphi 0, %s137
    %s139 = sphi 0, %s137
    %s140 = sphi 0, %s139
    %s154 = sphi 0, %s140
    %s158 = sphi 0, %s158
    %s160 = sphi 0, %s158
    %s161 = sphi 0, %s160
    %s175 = sphi 0, %s161
    %s179 = sphi 0, %s179
    %s181 = sphi 0, %s179
    %s182 = sphi 0, %s181
    %s196 = sphi 0, %s182
    %s200 = sphi 0, %s200
    %s202 = sphi 0, %s200
    %s203 = sphi 0, %s202
    %s217 = sphi 0, %s203
    %s221 = sphi 0, %s221
    %s223 = sphi 0, %s221
    %s224 = sphi 0, %s223
    %s238 = sphi 0, %s224
    %s242 = sphi 0, %s242
    %s244 = sphi 0, %s242
    %s245 = sphi 0, %s244
    %s259 = sphi 0, %s245
    %s265 = sphi 0, %s267
    %s268 = sphi 0, %s265
    %s269 = sphi 0, %s268
    %s285 = sphi 0, %s269
  $region4: #{discriminator_forward.1} parent=0 // loop_header_branch
    %22 = sbr.rel (%p20) target = $region8
  $region5: #{discriminator_forward.1} parent=0 // loop_body
    %s24 = ssub.s32 %s19, 1
    %s25 = ssub.s32 %s19, 2
    %s26 = sadd.s32 %s19, 1
    %s27 = ssub.s32 %s19, %s26
    %p28 = scmp.eq.s32.totalorder %s27, 0
    %s30 = sadd.s32 %s29, 1
    %s31 = scalar_select %p28, %s29, %s30
    %p34 = pneg %p28
    %p35 = scmp.eq.s32.totalorder %s19, 1
    %p36 = por %p34, %p35
    %p37 = scmp.ne.s32.totalorder %s29, %s32
    %p38 = scmp.eq.s32.totalorder %s19, 0
    %p39 = por %p37, %p38
    %p40 = scmp.ne.s32.totalorder %s29, %s32
    %p41 = scmp.eq.s32.totalorder %s24, 1
    %p42 = por %p40, %p41
    %p43 = scmp.ne.s32.totalorder %s32, %s33
    %p44 = scmp.eq.s32.totalorder %s24, 0
    %p45 = por %p43, %p44
    %p46 = scmp.ne.s32.totalorder %s32, %s33
    %p47 = scmp.eq.s32.totalorder %s25, 1
    %p48 = por %p46, %p47
    %p50 = scmp.ne.s32.totalorder %s33, %s49
    %p51 = scmp.eq.s32.totalorder %s25, 0
    %p52 = por %p50, %p51
    %s54 = sadd.s32 %s53, 1
    %p57 = scmp.eq.s32.totalorder %s19, 1
    %p58 = scmp.ne.s32.totalorder %s53, %s55
    %p59 = scmp.eq.s32.totalorder %s19, 0
    %p60 = por %p58, %p59
    %p61 = scmp.ne.s32.totalorder %s53, %s55
    %p62 = scmp.eq.s32.totalorder %s24, 1
    %p63 = por %p61, %p62
    %p64 = scmp.ne.s32.totalorder %s55, %s56
    %p65 = scmp.eq.s32.totalorder %s24, 0
    %p66 = por %p64, %p65
    %p67 = scmp.ne.s32.totalorder %s55, %s56
    %p68 = scmp.eq.s32.totalorder %s25, 1
    %p69 = por %p67, %p68
    %p71 = scmp.ne.s32.totalorder %s56, %s70
    %p72 = scmp.eq.s32.totalorder %s25, 0
    %p73 = por %p71, %p72
    %s75 = sadd.s32 %s74, 1
    %p78 = scmp.eq.s32.totalorder %s19, 1
    %p79 = scmp.ne.s32.totalorder %s74, %s76
    %p80 = scmp.eq.s32.totalorder %s19, 0
    %p81 = por %p79, %p80
    %p82 = scmp.ne.s32.totalorder %s74, %s76
    %p83 = scmp.eq.s32.totalorder %s24, 1
    %p84 = por %p82, %p83
    %p85 = scmp.ne.s32.totalorder %s76, %s77
    %p86 = scmp.eq.s32.totalorder %s24, 0
    %p87 = por %p85, %p86
    %p88 = scmp.ne.s32.totalorder %s76, %s77
    %p89 = scmp.eq.s32.totalorder %s25, 1
    %p90 = por %p88, %p89
    %p92 = scmp.ne.s32.totalorder %s77, %s91
    %p93 = scmp.eq.s32.totalorder %s25, 0
    %p94 = por %p92, %p93
    %s96 = sadd.s32 %s95, 1
    %p99 = scmp.eq.s32.totalorder %s19, 1
    %p100 = scmp.ne.s32.totalorder %s95, %s97
    %p101 = scmp.eq.s32.totalorder %s19, 0
    %p102 = por %p100, %p101
    %p103 = scmp.ne.s32.totalorder %s95, %s97
    %p104 = scmp.eq.s32.totalorder %s24, 1
    %p105 = por %p103, %p104
    %p106 = scmp.ne.s32.totalorder %s97, %s98
    %p107 = scmp.eq.s32.totalorder %s24, 0
    %p108 = por %p106, %p107
    %p109 = scmp.ne.s32.totalorder %s97, %s98
    %p110 = scmp.eq.s32.totalorder %s25, 1
    %p111 = por %p109, %p110
    %p113 = scmp.ne.s32.totalorder %s98, %s112
    %p114 = scmp.eq.s32.totalorder %s25, 0
    %p115 = por %p113, %p114
    %s117 = sadd.s32 %s116, 1
    %p120 = scmp.eq.s32.totalorder %s19, 1
    %p121 = scmp.ne.s32.totalorder %s116, %s118
    %p122 = scmp.eq.s32.totalorder %s19, 0
    %p123 = por %p121, %p122
    %p124 = scmp.ne.s32.totalorder %s116, %s118
    %p125 = scmp.eq.s32.totalorder %s24, 1
    %p126 = por %p124, %p125
    %p127 = scmp.ne.s32.totalorder %s118, %s119
    %p128 = scmp.eq.s32.totalorder %s24, 0
    %p129 = por %p127, %p128
    %p130 = scmp.ne.s32.totalorder %s118, %s119
    %p131 = scmp.eq.s32.totalorder %s25, 1
    %p132 = por %p130, %p131
    %p134 = scmp.ne.s32.totalorder %s119, %s133
    %p135 = scmp.eq.s32.totalorder %s25, 0
    %p136 = por %p134, %p135
    %s138 = sadd.s32 %s137, 1
    %p141 = scmp.eq.s32.totalorder %s19, 1
    %p142 = scmp.ne.s32.totalorder %s137, %s139
    %p143 = scmp.eq.s32.totalorder %s19, 0
    %p144 = por %p142, %p143
    %p145 = scmp.ne.s32.totalorder %s137, %s139
    %p146 = scmp.eq.s32.totalorder %s24, 1
    %p147 = por %p145, %p146
    %p148 = scmp.ne.s32.totalorder %s139, %s140
    %p149 = scmp.eq.s32.totalorder %s24, 0
    %p150 = por %p148, %p149
    %p151 = scmp.ne.s32.totalorder %s139, %s140
    %p152 = scmp.eq.s32.totalorder %s25, 1
    %p153 = por %p151, %p152
    %p155 = scmp.ne.s32.totalorder %s140, %s154
    %p156 = scmp.eq.s32.totalorder %s25, 0
    %p157 = por %p155, %p156
    %s159 = sadd.s32 %s158, 1
    %p162 = scmp.eq.s32.totalorder %s19, 1
    %p163 = scmp.ne.s32.totalorder %s158, %s160
    %p164 = scmp.eq.s32.totalorder %s19, 0
    %p165 = por %p163, %p164
    %p166 = scmp.ne.s32.totalorder %s158, %s160
    %p167 = scmp.eq.s32.totalorder %s24, 1
    %p168 = por %p166, %p167
    %p169 = scmp.ne.s32.totalorder %s160, %s161
    %p170 = scmp.eq.s32.totalorder %s24, 0
    %p171 = por %p169, %p170
    %p172 = scmp.ne.s32.totalorder %s160, %s161
    %p173 = scmp.eq.s32.totalorder %s25, 1
    %p174 = por %p172, %p173
    %p176 = scmp.ne.s32.totalorder %s161, %s175
    %p177 = scmp.eq.s32.totalorder %s25, 0
    %p178 = por %p176, %p177
    %s180 = sadd.s32 %s179, 1
    %p183 = scmp.eq.s32.totalorder %s19, 1
    %p184 = scmp.ne.s32.totalorder %s179, %s181
    %p185 = scmp.eq.s32.totalorder %s19, 0
    %p186 = por %p184, %p185
    %p187 = scmp.ne.s32.totalorder %s179, %s181
    %p188 = scmp.eq.s32.totalorder %s24, 1
    %p189 = por %p187, %p188
    %p190 = scmp.ne.s32.totalorder %s181, %s182
    %p191 = scmp.eq.s32.totalorder %s24, 0
    %p192 = por %p190, %p191
    %p193 = scmp.ne.s32.totalorder %s181, %s182
    %p194 = scmp.eq.s32.totalorder %s25, 1
    %p195 = por %p193, %p194
    %p197 = scmp.ne.s32.totalorder %s182, %s196
    %p198 = scmp.eq.s32.totalorder %s25, 0
    %p199 = por %p197, %p198
    %s201 = sadd.s32 %s200, 1
    %p204 = scmp.eq.s32.totalorder %s19, 1
    %p205 = scmp.ne.s32.totalorder %s200, %s202
    %p206 = scmp.eq.s32.totalorder %s19, 0
    %p207 = por %p205, %p206
    %p208 = scmp.ne.s32.totalorder %s200, %s202
    %p209 = scmp.eq.s32.totalorder %s24, 1
    %p210 = por %p208, %p209
    %p211 = scmp.ne.s32.totalorder %s202, %s203
    %p212 = scmp.eq.s32.totalorder %s24, 0
    %p213 = por %p211, %p212
    %p214 = scmp.ne.s32.totalorder %s202, %s203
    %p215 = scmp.eq.s32.totalorder %s25, 1
    %p216 = por %p214, %p215
    %p218 = scmp.ne.s32.totalorder %s203, %s217
    %p219 = scmp.eq.s32.totalorder %s25, 0
    %p220 = por %p218, %p219
    %s222 = sadd.s32 %s221, 1
    %p225 = scmp.eq.s32.totalorder %s19, 1
    %p226 = scmp.ne.s32.totalorder %s221, %s223
    %p227 = scmp.eq.s32.totalorder %s19, 0
    %p228 = por %p226, %p227
    %p229 = scmp.ne.s32.totalorder %s221, %s223
    %p230 = scmp.eq.s32.totalorder %s24, 1
    %p231 = por %p229, %p230
    %p232 = scmp.ne.s32.totalorder %s223, %s224
    %p233 = scmp.eq.s32.totalorder %s24, 0
    %p234 = por %p232, %p233
    %p235 = scmp.ne.s32.totalorder %s223, %s224
    %p236 = scmp.eq.s32.totalorder %s25, 1
    %p237 = por %p235, %p236
    %p239 = scmp.ne.s32.totalorder %s224, %s238
    %p240 = scmp.eq.s32.totalorder %s25, 0
    %p241 = por %p239, %p240
    %s243 = sadd.s32 %s242, 1
    %p246 = scmp.eq.s32.totalorder %s19, 1
    %p247 = scmp.ne.s32.totalorder %s242, %s244
    %p248 = scmp.eq.s32.totalorder %s19, 0
    %p249 = por %p247, %p248
    %p250 = scmp.ne.s32.totalorder %s242, %s244
    %p251 = scmp.eq.s32.totalorder %s24, 1
    %p252 = por %p250, %p251
    %p253 = scmp.ne.s32.totalorder %s244, %s245
    %p254 = scmp.eq.s32.totalorder %s24, 0
    %p255 = por %p253, %p254
    %p256 = scmp.ne.s32.totalorder %s244, %s245
    %p257 = scmp.eq.s32.totalorder %s25, 1
    %p258 = por %p256, %p257
    %p260 = scmp.ne.s32.totalorder %s245, %s259
    %p261 = scmp.eq.s32.totalorder %s25, 0
    %p262 = por %p260, %p261
    %s263 = ssub.s32 %s19, %s26
    %p264 = scmp.eq.s32.totalorder %s263, 0
    %s266 = sadd.s32 %s265, 1
    %s267 = scalar_select %p264, %s265, %s266
    %p270 = pneg %p264
    %p271 = scmp.eq.s32.totalorder %s19, 1
    %p272 = por %p270, %p271
    %p273 = scmp.ne.s32.totalorder %s265, %s268
    %p274 = scmp.eq.s32.totalorder %s19, 0
    %p275 = por %p273, %p274
    %p276 = scmp.ne.s32.totalorder %s265, %s268
    %p277 = scmp.eq.s32.totalorder %s24, 1
    %p278 = por %p276, %p277
    %p279 = scmp.ne.s32.totalorder %s268, %s269
    %p280 = scmp.eq.s32.totalorder %s24, 0
    %p281 = por %p279, %p280
    %p282 = scmp.ne.s32.totalorder %s268, %s269
    %p283 = scmp.eq.s32.totalorder %s25, 1
    %p284 = por %p282, %p283
    %p286 = scmp.ne.s32.totalorder %s269, %s285
    %p287 = scmp.eq.s32.totalorder %s25, 0
    %p288 = por %p286, %p287
    %p289 = scmp.le.s32.totalorder 1, %s19
    %p290 = scmp.lt.s32.totalorder %s19, 3
    %p291 = pnand %p289, %p290
    %p292 = pneg %p291
    // Predicated region
    $region9: #{discriminator_forward.1} parent=5 // pred_check
      _
    $region10: #{discriminator_forward.1} parent=5 // pred_check_branch
      %294 = sbr.rel (%p291) target = $region12
    $region11: #{discriminator_forward.1} parent=5 // pred_region
      %s295 = ssub.s32 %s19, 1
      // Predicated region
      $region13: #{discriminator_forward.1} parent=11 // pred_check
        %p296 = pneg %p66
      $region14: #{discriminator_forward.1} parent=11 // pred_check_branch
        %298 = sbr.rel (%p296) target = $region16
      $region15: #{discriminator_forward.1} parent=11 // pred_region
        _
      $region16: #{discriminator_forward.1} parent=11 // pred_fallthru
        _
      // Predicated region
      $region17: #{discriminator_forward.1} parent=11 // pred_check
        %p299 = pneg %p87
      $region18: #{discriminator_forward.1} parent=11 // pred_check_branch
        %301 = sbr.rel (%p299) target = $region20
      $region19: #{discriminator_forward.1} parent=11 // pred_region
        _
      $region20: #{discriminator_forward.1} parent=11 // pred_fallthru
        _
      // Predicated region
      $region21: #{discriminator_forward.1} parent=11 // pred_check
        %p302 = pneg %p108
      $region22: #{discriminator_forward.1} parent=11 // pred_check_branch
        %304 = sbr.rel (%p302) target = $region24
      $region23: #{discriminator_forward.1} parent=11 // pred_region
        _
      $region24: #{discriminator_forward.1} parent=11 // pred_fallthru
        _
      // Predicated region
      $region25: #{discriminator_forward.1} parent=11 // pred_check
        %p305 = pneg %p129
      $region26: #{discriminator_forward.1} parent=11 // pred_check_branch
        %307 = sbr.rel (%p305) target = $region28
      $region27: #{discriminator_forward.1} parent=11 // pred_region
        _
      $region28: #{discriminator_forward.1} parent=11 // pred_fallthru
        _
      // Predicated region
      $region29: #{discriminator_forward.1} parent=11 // pred_check
        %p308 = pneg %p150
      $region30: #{discriminator_forward.1} parent=11 // pred_check_branch
        %310 = sbr.rel (%p308) target = $region32
      $region31: #{discriminator_forward.1} parent=11 // pred_region
        _
      $region32: #{discriminator_forward.1} parent=11 // pred_fallthru
        _
      // Predicated region
      $region33: #{discriminator_forward.1} parent=11 // pred_check
        %p311 = pneg %p171
      $region34: #{discriminator_forward.1} parent=11 // pred_check_branch
        %313 = sbr.rel (%p311) target = $region36
      $region35: #{discriminator_forward.1} parent=11 // pred_region
        _
      $region36: #{discriminator_forward.1} parent=11 // pred_fallthru
        _
      // Predicated region
      $region37: #{discriminator_forward.1} parent=11 // pred_check
        %p314 = pneg %p192
      $region38: #{discriminator_forward.1} parent=11 // pred_check_branch
        %316 = sbr.rel (%p314) target = $region40
      $region39: #{discriminator_forward.1} parent=11 // pred_region
        _
      $region40: #{discriminator_forward.1} parent=11 // pred_fallthru
        _
      // Predicated region
      $region41: #{discriminator_forward.1} parent=11 // pred_check
        %p317 = pneg %p213
      $region42: #{discriminator_forward.1} parent=11 // pred_check_branch
        %319 = sbr.rel (%p317) target = $region44
      $region43: #{discriminator_forward.1} parent=11 // pred_region
        _
      $region44: #{discriminator_forward.1} parent=11 // pred_fallthru
        _
      // Predicated region
      $region45: #{discriminator_forward.1} parent=11 // pred_check
        %p320 = pneg %p234
      $region46: #{discriminator_forward.1} parent=11 // pred_check_branch
        %322 = sbr.rel (%p320) target = $region48
      $region47: #{discriminator_forward.1} parent=11 // pred_region
        _
      $region48: #{discriminator_forward.1} parent=11 // pred_fallthru
        _
      // Predicated region
      $region49: #{discriminator_forward.1} parent=11 // pred_check
        %p323 = pneg %p255
      $region50: #{discriminator_forward.1} parent=11 // pred_check_branch
        %325 = sbr.rel (%p323) target = $region52
      $region51: #{discriminator_forward.1} parent=11 // pred_region
        _
      $region52: #{discriminator_forward.1} parent=11 // pred_fallthru
        _
    $region12: #{discriminator_forward.1} parent=5 // pred_fallthru
      _
    %p326 = scmp.lt.s32.totalorder %s19, 2
    // Predicated region
    $region53: #{discriminator_forward.1} parent=5 // pred_check
      %p327 = pneg %p326
    $region54: #{discriminator_forward.1} parent=5 // pred_check_branch
      %329 = sbr.rel (%p327) target = $region56
    $region55: #{discriminator_forward.1} parent=5 // pred_region
      // Predicated region
      $region57: #{discriminator_forward.1} parent=55 // pred_check
        %p330 = pneg %p39
      $region58: #{discriminator_forward.1} parent=55 // pred_check_branch
        %332 = sbr.rel (%p330) target = $region60
      $region59: #{discriminator_forward.1} parent=55 // pred_region
        %p333 = scmp.lt.s32.totalorder %s19, 1
        %s334 = scalar_select %p333, %s19, 1
        %s335 = smul.addr %s334, 128
        %s336 = smul.addr %s335, 4
        %s337 = scalar_lea.vmem %s0, %s336
      $region60: #{discriminator_forward.1} parent=55 // pred_fallthru
        _
    $region56: #{discriminator_forward.1} parent=5 // pred_fallthru
      _
    %p338 = scmp.le.s32.totalorder 1, %s19
    %p339 = scmp.lt.s32.totalorder %s19, 3
    %p340 = pnand %p338, %p339
    %p341 = pneg %p340
    // Predicated region
    $region61: #{discriminator_forward.1} parent=5 // pred_check
      _
    $region62: #{discriminator_forward.1} parent=5 // pred_check_branch
      %343 = sbr.rel (%p340) target = $region64
    $region63: #{discriminator_forward.1} parent=5 // pred_region
      %s344 = ssub.s32 %s19, 1
      %p345 = scmp.lt.s32.totalorder %s24, 1
      %s346 = scalar_select %p345, %s24, 1
      %s347 = smul.addr %s346, 128
      %s348 = smul.addr %s347, 4
      %s349 = scalar_lea.vmem %s0, %s348
      %p350 = pneg %p45
      %p351 = pneg %p42
      %p352 = pneg %p66
      %p353 = pneg %p63
      %p354 = pneg %p87
      %p355 = pneg %p84
      %p356 = pneg %p108
      %p357 = pneg %p105
      %p358 = pneg %p129
      %p359 = pneg %p126
      %p360 = pneg %p150
      %p361 = pneg %p147
      %p362 = pneg %p171
      %p363 = pneg %p168
      %p364 = pneg %p192
      %p365 = pneg %p189
      %p366 = pneg %p213
      %p367 = pneg %p210
      %p368 = pneg %p234
      %p369 = pneg %p231
      %p370 = pneg %p255
      %p371 = pneg %p252
      %p372 = pneg %p281
      %p373 = pneg %p278
      %p374 = scmp.lt.s32.totalorder %s24, 1
      %s375 = scalar_select %p374, %s24, 1
      %s376 = scalar_lea.vmem %s11, %s375
      %p377 = scmp.lt.s32.totalorder %s24, 1
      %s378 = scalar_select %p377, %s24, 1
      %s379 = smul.addr %s378, 128
      %s380 = smul.addr %s379, 4
      %s381 = scalar_lea.vmem %s0, %s380
      %p382 = scmp.lt.s32.totalorder %s24, 1
      %s383 = scalar_select %p382, %s24, 1
      %s384 = scalar_lea.vmem %s11, %s383
      %v386 = vld [vmem:[%s381] sm:$0xf]
      %v387 = vld [vmem:[%s381 + $0x4] sm:$0xf]
      %v388 = vld [vmem:[%s381 + $0x8] sm:$0xf]
      %v389 = vld [vmem:[%s381 + $0xc] sm:$0xf]
      %v390 = vld [vmem:[%s381 + $0x10] sm:$0xf]
      %v391 = vld [vmem:[%s381 + $0x14] sm:$0xf]
      %v392 = vld [vmem:[%s381 + $0x18] sm:$0xf]
      %v393 = vld [vmem:[%s381 + $0x1c] sm:$0xf]
      %v394 = vld [vmem:[%s381 + $0x20] sm:$0xf]
      %v395 = vld [vmem:[%s381 + $0x24] sm:$0xf]
      %v396 = vld [vmem:[%s381 + $0x28] sm:$0xf]
      %v397 = vld [vmem:[%s381 + $0x2c] sm:$0xf]
      %v398 = vld [vmem:[%s381 + $0x30] sm:$0xf]
      %v399 = vld [vmem:[%s381 + $0x34] sm:$0xf]
      %v400 = vld [vmem:[%s381 + $0x38] sm:$0xf]
      %v401 = vld [vmem:[%s381 + $0x3c] sm:$0xf]
      %v402 = vld [vmem:[%s381 + $0x40] sm:$0xf]
      %v403 = vld [vmem:[%s381 + $0x44] sm:$0xf]
      %v404 = vld [vmem:[%s381 + $0x48] sm:$0xf]
      %v405 = vld [vmem:[%s381 + $0x4c] sm:$0xf]
      %v406 = vld [vmem:[%s381 + $0x50] sm:$0xf]
      %v407 = vld [vmem:[%s381 + $0x54] sm:$0xf]
      %v408 = vld [vmem:[%s381 + $0x58] sm:$0xf]
      %v409 = vld [vmem:[%s381 + $0x5c] sm:$0xf]
      %v410 = vld [vmem:[%s381 + $0x60] sm:$0xf]
      %v411 = vld [vmem:[%s381 + $0x64] sm:$0xf]
      %v412 = vld [vmem:[%s381 + $0x68] sm:$0xf]
      %v413 = vld [vmem:[%s381 + $0x6c] sm:$0xf]
      %v414 = vld [vmem:[%s381 + $0x70] sm:$0xf]
      %v415 = vld [vmem:[%s381 + $0x74] sm:$0xf]
      %v416 = vld [vmem:[%s381 + $0x78] sm:$0xf]
      %v417 = vld [vmem:[%s381 + $0x7c] sm:$0xf]
      %v418 = vld [vmem:[%s381 + $0x80] sm:$0xf]
      %v419 = vld [vmem:[%s381 + $0x84] sm:$0xf]
      %v420 = vld [vmem:[%s381 + $0x88] sm:$0xf]
      %v421 = vld [vmem:[%s381 + $0x8c] sm:$0xf]
      %v422 = vld [vmem:[%s381 + $0x90] sm:$0xf]
      %v423 = vld [vmem:[%s381 + $0x94] sm:$0xf]
      %v424 = vld [vmem:[%s381 + $0x98] sm:$0xf]
      %v425 = vld [vmem:[%s381 + $0x9c] sm:$0xf]
      %v426 = vld [vmem:[%s381 + $0xa0] sm:$0xf]
      %v427 = vld [vmem:[%s381 + $0xa4] sm:$0xf]
      %v428 = vld [vmem:[%s381 + $0xa8] sm:$0xf]
      %v429 = vld [vmem:[%s381 + $0xac] sm:$0xf]
      %v430 = vld [vmem:[%s381 + $0xb0] sm:$0xf]
      %v431 = vld [vmem:[%s381 + $0xb4] sm:$0xf]
      %v432 = vld [vmem:[%s381 + $0xb8] sm:$0xf]
      %v433 = vld [vmem:[%s381 + $0xbc] sm:$0xf]
      %v434 = vld [vmem:[%s381 + $0xc0] sm:$0xf]
      %v435 = vld [vmem:[%s381 + $0xc4] sm:$0xf]
      %v436 = vld [vmem:[%s381 + $0xc8] sm:$0xf]
      %v437 = vld [vmem:[%s381 + $0xcc] sm:$0xf]
      %v438 = vld [vmem:[%s381 + $0xd0] sm:$0xf]
      %v439 = vld [vmem:[%s381 + $0xd4] sm:$0xf]
      %v440 = vld [vmem:[%s381 + $0xd8] sm:$0xf]
      %v441 = vld [vmem:[%s381 + $0xdc] sm:$0xf]
      %v442 = vld [vmem:[%s381 + $0xe0] sm:$0xf]
      %v443 = vld [vmem:[%s381 + $0xe4] sm:$0xf]
      %v444 = vld [vmem:[%s381 + $0xe8] sm:$0xf]
      %v445 = vld [vmem:[%s381 + $0xec] sm:$0xf]
      %v446 = vld [vmem:[%s381 + $0xf0] sm:$0xf]
      %v447 = vld [vmem:[%s381 + $0xf4] sm:$0xf]
      %v448 = vld [vmem:[%s381 + $0xf8] sm:$0xf]
      %v449 = vld [vmem:[%s381 + $0xfc] sm:$0xf]
      %v450 = vld [vmem:[%s381 + $0x100] sm:$0xf]
      %v451 = vld [vmem:[%s381 + $0x104] sm:$0xf]
      %v452 = vld [vmem:[%s381 + $0x108] sm:$0xf]
      %v453 = vld [vmem:[%s381 + $0x10c] sm:$0xf]
      %v454 = vld [vmem:[%s381 + $0x110] sm:$0xf]
      %v455 = vld [vmem:[%s381 + $0x114] sm:$0xf]
      %v456 = vld [vmem:[%s381 + $0x118] sm:$0xf]
      %v457 = vld [vmem:[%s381 + $0x11c] sm:$0xf]
      %v458 = vld [vmem:[%s381 + $0x120] sm:$0xf]
      %v459 = vld [vmem:[%s381 + $0x124] sm:$0xf]
      %v460 = vld [vmem:[%s381 + $0x128] sm:$0xf]
      %v461 = vld [vmem:[%s381 + $0x12c] sm:$0xf]
      %v462 = vld [vmem:[%s381 + $0x130] sm:$0xf]
      %v463 = vld [vmem:[%s381 + $0x134] sm:$0xf]
      %v464 = vld [vmem:[%s381 + $0x138] sm:$0xf]
      %v465 = vld [vmem:[%s381 + $0x13c] sm:$0xf]
      %v466 = vld [vmem:[%s381 + $0x140] sm:$0xf]
      %v467 = vld [vmem:[%s381 + $0x144] sm:$0xf]
      %v468 = vld [vmem:[%s381 + $0x148] sm:$0xf]
      %v469 = vld [vmem:[%s381 + $0x14c] sm:$0xf]
      %v470 = vld [vmem:[%s381 + $0x150] sm:$0xf]
      %v471 = vld [vmem:[%s381 + $0x154] sm:$0xf]
      %v472 = vld [vmem:[%s381 + $0x158] sm:$0xf]
      %v473 = vld [vmem:[%s381 + $0x15c] sm:$0xf]
      %v474 = vld [vmem:[%s381 + $0x160] sm:$0xf]
      %v475 = vld [vmem:[%s381 + $0x164] sm:$0xf]
      %v476 = vld [vmem:[%s381 + $0x168] sm:$0xf]
      %v477 = vld [vmem:[%s381 + $0x16c] sm:$0xf]
      %v478 = vld [vmem:[%s381 + $0x170] sm:$0xf]
      %v479 = vld [vmem:[%s381 + $0x174] sm:$0xf]
      %v480 = vld [vmem:[%s381 + $0x178] sm:$0xf]
      %v481 = vld [vmem:[%s381 + $0x17c] sm:$0xf]
      %v482 = vld [vmem:[%s381 + $0x180] sm:$0xf]
      %v483 = vld [vmem:[%s381 + $0x184] sm:$0xf]
      %v484 = vld [vmem:[%s381 + $0x188] sm:$0xf]
      %v485 = vld [vmem:[%s381 + $0x18c] sm:$0xf]
      %v486 = vld [vmem:[%s381 + $0x190] sm:$0xf]
      %v487 = vld [vmem:[%s381 + $0x194] sm:$0xf]
      %v488 = vld [vmem:[%s381 + $0x198] sm:$0xf]
      %v489 = vld [vmem:[%s381 + $0x19c] sm:$0xf]
      %v490 = vld [vmem:[%s381 + $0x1a0] sm:$0xf]
      %v491 = vld [vmem:[%s381 + $0x1a4] sm:$0xf]
      %v492 = vld [vmem:[%s381 + $0x1a8] sm:$0xf]
      %v493 = vld [vmem:[%s381 + $0x1ac] sm:$0xf]
      %v494 = vld [vmem:[%s381 + $0x1b0] sm:$0xf]
      %v495 = vld [vmem:[%s381 + $0x1b4] sm:$0xf]
      %v496 = vld [vmem:[%s381 + $0x1b8] sm:$0xf]
      %v497 = vld [vmem:[%s381 + $0x1bc] sm:$0xf]
      %v498 = vld [vmem:[%s381 + $0x1c0] sm:$0xf]
      %v499 = vld [vmem:[%s381 + $0x1c4] sm:$0xf]
      %v500 = vld [vmem:[%s381 + $0x1c8] sm:$0xf]
      %v501 = vld [vmem:[%s381 + $0x1cc] sm:$0xf]
      %v502 = vld [vmem:[%s381 + $0x1d0] sm:$0xf]
      %v503 = vld [vmem:[%s381 + $0x1d4] sm:$0xf]
      %v504 = vld [vmem:[%s381 + $0x1d8] sm:$0xf]
      %v505 = vld [vmem:[%s381 + $0x1dc] sm:$0xf]
      %v506 = vld [vmem:[%s381 + $0x1e0] sm:$0xf]
      %v507 = vld [vmem:[%s381 + $0x1e4] sm:$0xf]
      %v508 = vld [vmem:[%s381 + $0x1e8] sm:$0xf]
      %v509 = vld [vmem:[%s381 + $0x1ec] sm:$0xf]
      %v510 = vld [vmem:[%s381 + $0x1f0] sm:$0xf]
      %v511 = vld [vmem:[%s381 + $0x1f4] sm:$0xf]
      %v512 = vld [vmem:[%s381 + $0x1f8] sm:$0xf]
      %v513 = vld [vmem:[%s381 + $0x1fc] sm:$0xf]
      %v514 = vld [vmem:[%s1] sm:$0xf]
      %v515 = vld [vmem:[%s1 + $0x4] sm:$0xf]
      %v516 = vld [vmem:[%s1 + $0x8] sm:$0xf]
      %v517 = vld [vmem:[%s1 + $0xc] sm:$0x3]
      %v518 = vld [vmem:[%s2] sm:$0x1]
      %v520 = vlaneseq
      %v521 = vshrl.u32 %v520, 7
      %v522 = vsub.s32 0, %v521
      %v523 = vrot.slane %v518, %v522
      %v653 = vunpack.c.l.b16 %v386
      %v654 = vunpack.c.l.b16 %v387
      %v655 = vunpack.c.l.b16 %v388
      %v656 = vunpack.c.l.b16 %v389
      %v657 = vunpack.c.l.b16 %v390
      %v658 = vunpack.c.l.b16 %v391
      %v659 = vunpack.c.l.b16 %v392
      %v660 = vunpack.c.l.b16 %v393
      %v661 = vunpack.c.l.b16 %v394
      %v662 = vunpack.c.l.b16 %v395
      %v663 = vunpack.c.l.b16 %v396
      %v664 = vunpack.c.l.b16 %v397
      %v665 = vunpack.c.l.b16 %v398
      %v666 = vunpack.c.l.b16 %v399
      %v667 = vunpack.c.l.b16 %v400
      %v668 = vunpack.c.l.b16 %v401
      %v669 = vunpack.c.l.b16 %v402
      %v670 = vunpack.c.l.b16 %v403
      %v671 = vunpack.c.l.b16 %v404
      %v672 = vunpack.c.l.b16 %v405
      %v673 = vunpack.c.l.b16 %v406
      %v674 = vunpack.c.l.b16 %v407
      %v675 = vunpack.c.l.b16 %v408
      %v676 = vunpack.c.l.b16 %v409
      %v677 = vunpack.c.l.b16 %v410
      %v678 = vunpack.c.l.b16 %v411
      %v679 = vunpack.c.l.b16 %v412
      %v680 = vunpack.c.l.b16 %v413
      %v681 = vunpack.c.l.b16 %v414
      %v682 = vunpack.c.l.b16 %v415
      %v683 = vunpack.c.l.b16 %v416
      %v684 = vunpack.c.l.b16 %v417
      %v685 = vunpack.c.l.b16 %v418
      %v686 = vunpack.c.l.b16 %v419
      %v687 = vunpack.c.l.b16 %v420
      %v688 = vunpack.c.l.b16 %v421
      %v689 = vunpack.c.l.b16 %v422
      %v690 = vunpack.c.l.b16 %v423
      %v691 = vunpack.c.l.b16 %v424
      %v692 = vunpack.c.l.b16 %v425
      %v693 = vunpack.c.l.b16 %v426
      %v694 = vunpack.c.l.b16 %v427
      %v695 = vunpack.c.l.b16 %v428
      %v696 = vunpack.c.l.b16 %v429
      %v697 = vunpack.c.l.b16 %v430
      %v698 = vunpack.c.l.b16 %v431
      %v699 = vunpack.c.l.b16 %v432
      %v700 = vunpack.c.l.b16 %v433
      %v701 = vunpack.c.l.b16 %v434
      %v702 = vunpack.c.l.b16 %v435
      %v703 = vunpack.c.l.b16 %v436
      %v704 = vunpack.c.l.b16 %v437
      %v705 = vunpack.c.l.b16 %v438
      %v706 = vunpack.c.l.b16 %v439
      %v707 = vunpack.c.l.b16 %v440
      %v708 = vunpack.c.l.b16 %v441
      %v709 = vunpack.c.l.b16 %v442
      %v710 = vunpack.c.l.b16 %v443
      %v711 = vunpack.c.l.b16 %v444
      %v712 = vunpack.c.l.b16 %v445
      %v713 = vunpack.c.l.b16 %v446
      %v714 = vunpack.c.l.b16 %v447
      %v715 = vunpack.c.l.b16 %v448
      %v716 = vunpack.c.l.b16 %v449
      %v717 = vunpack.c.l.b16 %v450
      %v718 = vunpack.c.l.b16 %v451
      %v719 = vunpack.c.l.b16 %v452
      %v720 = vunpack.c.l.b16 %v453
      %v721 = vunpack.c.l.b16 %v454
      %v722 = vunpack.c.l.b16 %v455
      %v723 = vunpack.c.l.b16 %v456
      %v724 = vunpack.c.l.b16 %v457
      %v725 = vunpack.c.l.b16 %v458
      %v726 = vunpack.c.l.b16 %v459
      %v727 = vunpack.c.l.b16 %v460
      %v728 = vunpack.c.l.b16 %v461
      %v729 = vunpack.c.l.b16 %v462
      %v730 = vunpack.c.l.b16 %v463
      %v731 = vunpack.c.l.b16 %v464
      %v732 = vunpack.c.l.b16 %v465
      %v733 = vunpack.c.l.b16 %v466
      %v734 = vunpack.c.l.b16 %v467
      %v735 = vunpack.c.l.b16 %v468
      %v736 = vunpack.c.l.b16 %v469
      %v737 = vunpack.c.l.b16 %v470
      %v738 = vunpack.c.l.b16 %v471
      %v739 = vunpack.c.l.b16 %v472
      %v740 = vunpack.c.l.b16 %v473
      %v741 = vunpack.c.l.b16 %v474
      %v742 = vunpack.c.l.b16 %v475
      %v743 = vunpack.c.l.b16 %v476
      %v744 = vunpack.c.l.b16 %v477
      %v745 = vunpack.c.l.b16 %v478
      %v746 = vunpack.c.l.b16 %v479
      %v747 = vunpack.c.l.b16 %v480
      %v748 = vunpack.c.l.b16 %v481
      %v749 = vunpack.c.l.b16 %v482
      %v750 = vunpack.c.l.b16 %v483
      %v751 = vunpack.c.l.b16 %v484
      %v752 = vunpack.c.l.b16 %v485
      %v753 = vunpack.c.l.b16 %v486
      %v754 = vunpack.c.l.b16 %v487
      %v755 = vunpack.c.l.b16 %v488
      %v756 = vunpack.c.l.b16 %v489
      %v757 = vunpack.c.l.b16 %v490
      %v758 = vunpack.c.l.b16 %v491
      %v759 = vunpack.c.l.b16 %v492
      %v760 = vunpack.c.l.b16 %v493
      %v761 = vunpack.c.l.b16 %v494
      %v762 = vunpack.c.l.b16 %v495
      %v763 = vunpack.c.l.b16 %v496
      %v764 = vunpack.c.l.b16 %v497
      %v765 = vunpack.c.l.b16 %v498
      %v766 = vunpack.c.l.b16 %v499
      %v767 = vunpack.c.l.b16 %v500
      %v768 = vunpack.c.l.b16 %v501
      %v769 = vunpack.c.l.b16 %v502
      %v770 = vunpack.c.l.b16 %v503
      %v771 = vunpack.c.l.b16 %v504
      %v772 = vunpack.c.l.b16 %v505
      %v773 = vunpack.c.l.b16 %v506
      %v774 = vunpack.c.l.b16 %v507
      %v775 = vunpack.c.l.b16 %v508
      %v776 = vunpack.c.l.b16 %v509
      %v777 = vunpack.c.l.b16 %v510
      %v778 = vunpack.c.l.b16 %v511
      %v779 = vunpack.c.l.b16 %v512
      %v780 = vunpack.c.l.b16 %v513
      %v781 = vpack.c.b16 %v654, %v653
      %v782 = vpack.c.b16 %v656, %v655
      %v783 = vpack.c.b16 %v658, %v657
      %v784 = vpack.c.b16 %v660, %v659
      %v785 = vpack.c.b16 %v662, %v661
      %v786 = vpack.c.b16 %v664, %v663
      %v787 = vpack.c.b16 %v666, %v665
      %v788 = vpack.c.b16 %v668, %v667
      %v789 = vpack.c.b16 %v670, %v669
      %v790 = vpack.c.b16 %v672, %v671
      %v791 = vpack.c.b16 %v674, %v673
      %v792 = vpack.c.b16 %v676, %v675
      %v793 = vpack.c.b16 %v678, %v677
      %v794 = vpack.c.b16 %v680, %v679
      %v795 = vpack.c.b16 %v682, %v681
      %v796 = vpack.c.b16 %v684, %v683
      %v797 = vpack.c.b16 %v686, %v685
      %v798 = vpack.c.b16 %v688, %v687
      %v799 = vpack.c.b16 %v690, %v689
      %v800 = vpack.c.b16 %v692, %v691
      %v801 = vpack.c.b16 %v694, %v693
      %v802 = vpack.c.b16 %v696, %v695
      %v803 = vpack.c.b16 %v698, %v697
      %v804 = vpack.c.b16 %v700, %v699
      %v805 = vpack.c.b16 %v702, %v701
      %v806 = vpack.c.b16 %v704, %v703
      %v807 = vpack.c.b16 %v706, %v705
      %v808 = vpack.c.b16 %v708, %v707
      %v809 = vpack.c.b16 %v710, %v709
      %v810 = vpack.c.b16 %v712, %v711
      %v811 = vpack.c.b16 %v714, %v713
      %v812 = vpack.c.b16 %v716, %v715
      %v813 = vpack.c.b16 %v718, %v717
      %v814 = vpack.c.b16 %v720, %v719
      %v815 = vpack.c.b16 %v722, %v721
      %v816 = vpack.c.b16 %v724, %v723
      %v817 = vpack.c.b16 %v726, %v725
      %v818 = vpack.c.b16 %v728, %v727
      %v819 = vpack.c.b16 %v730, %v729
      %v820 = vpack.c.b16 %v732, %v731
      %v821 = vpack.c.b16 %v734, %v733
      %v822 = vpack.c.b16 %v736, %v735
      %v823 = vpack.c.b16 %v738, %v737
      %v824 = vpack.c.b16 %v740, %v739
      %v825 = vpack.c.b16 %v742, %v741
      %v826 = vpack.c.b16 %v744, %v743
      %v827 = vpack.c.b16 %v746, %v745
      %v828 = vpack.c.b16 %v748, %v747
      %v829 = vpack.c.b16 %v750, %v749
      %v830 = vpack.c.b16 %v752, %v751
      %v831 = vpack.c.b16 %v754, %v753
      %v832 = vpack.c.b16 %v756, %v755
      %v833 = vpack.c.b16 %v758, %v757
      %v834 = vpack.c.b16 %v760, %v759
      %v835 = vpack.c.b16 %v762, %v761
      %v836 = vpack.c.b16 %v764, %v763
      %v837 = vpack.c.b16 %v766, %v765
      %v838 = vpack.c.b16 %v768, %v767
      %v839 = vpack.c.b16 %v770, %v769
      %v840 = vpack.c.b16 %v772, %v771
      %v841 = vpack.c.b16 %v774, %v773
      %v842 = vpack.c.b16 %v776, %v775
      %v843 = vpack.c.b16 %v778, %v777
      %v844 = vpack.c.b16 %v780, %v779
      %v849 = vunpack.c.l.b16 %v514
      %v850 = vunpack.c.l.b16 %v515
      %v851 = vunpack.c.l.b16 %v516
      %v852 = vunpack.c.l.b16 %v517
      %v853 = vpack.c.b16 %v850, %v849
      %v854 = vpack.c.b16 %v852, %v851
      %vm856 = vcmask 228352
      %v858 = vsel %vm856, %v781, 0
      %v861 = vsel %vm856, %v782, 0
      %v864 = vsel %vm856, %v783, 0
      %v867 = vsel %vm856, %v784, 0
      %v870 = vsel %vm856, %v785, 0
      %v873 = vsel %vm856, %v786, 0
      %v876 = vsel %vm856, %v787, 0
      %v879 = vsel %vm856, %v788, 0
      %v882 = vsel %vm856, %v789, 0
      %v885 = vsel %vm856, %v790, 0
      %v888 = vsel %vm856, %v791, 0
      %v891 = vsel %vm856, %v792, 0
      %v894 = vsel %vm856, %v793, 0
      %v897 = vsel %vm856, %v794, 0
      %v900 = vsel %vm856, %v795, 0
      %v903 = vsel %vm856, %v796, 0
      %v906 = vsel %vm856, %v797, 0
      %v909 = vsel %vm856, %v798, 0
      %v912 = vsel %vm856, %v799, 0
      %v915 = vsel %vm856, %v800, 0
      %v918 = vsel %vm856, %v801, 0
      %v921 = vsel %vm856, %v802, 0
      %v924 = vsel %vm856, %v803, 0
      %v927 = vsel %vm856, %v804, 0
      %v930 = vsel %vm856, %v805, 0
      %v933 = vsel %vm856, %v806, 0
      %v936 = vsel %vm856, %v807, 0
      %v939 = vsel %vm856, %v808, 0
      %v942 = vsel %vm856, %v809, 0
      %v945 = vsel %vm856, %v810, 0
      %v948 = vsel %vm856, %v811, 0
      %v951 = vsel %vm856, %v812, 0
      %v954 = vsel %vm856, %v813, 0
      %v957 = vsel %vm856, %v814, 0
      %v960 = vsel %vm856, %v815, 0
      %v963 = vsel %vm856, %v816, 0
      %v966 = vsel %vm856, %v817, 0
      %v969 = vsel %vm856, %v818, 0
      %v972 = vsel %vm856, %v819, 0
      %v975 = vsel %vm856, %v820, 0
      %v978 = vsel %vm856, %v821, 0
      %v981 = vsel %vm856, %v822, 0
      %v984 = vsel %vm856, %v823, 0
      %v987 = vsel %vm856, %v824, 0
      %v990 = vsel %vm856, %v825, 0
      %v993 = vsel %vm856, %v826, 0
      %v996 = vsel %vm856, %v827, 0
      %v999 = vsel %vm856, %v828, 0
      %v1002 = vsel %vm856, %v829, 0
      %v1005 = vsel %vm856, %v830, 0
      %v1008 = vsel %vm856, %v831, 0
      %v1011 = vsel %vm856, %v832, 0
      %v1014 = vsel %vm856, %v833, 0
      %v1017 = vsel %vm856, %v834, 0
      %v1020 = vsel %vm856, %v835, 0
      %v1023 = vsel %vm856, %v836, 0
      %v1026 = vsel %vm856, %v837, 0
      %v1029 = vsel %vm856, %v838, 0
      %v1032 = vsel %vm856, %v839, 0
      %v1035 = vsel %vm856, %v840, 0
      %v1038 = vsel %vm856, %v841, 0
      %v1041 = vsel %vm856, %v842, 0
      %v1044 = vsel %vm856, %v843, 0
      %v1047 = vsel %vm856, %v844, 0
      %vm1049 = vcmask 1045504
      %v1051 = vsel %vm1049, %v854, 0
      %1053 = vmatprep.subr.bf16.mxu0 0
      %1054 = vmatpush1.bf16.msra.mxu0 0
      %1055 = vmatprep.subr.bf16.mxu0 0
      %1056 = vmatpush1.bf16.msra.mxu0 0
      %1057 = vmatprep.subr.bf16.mxu0 0
      %1058 = vmatpush1.bf16.msra.mxu0 0
      %1059 = vmatprep.subr.bf16.mxu0 0
      %1060 = vmatpush1.bf16.msra.mxu0 0
      %1061 = vmatprep.subr.bf16.mxu0 0
      %1062 = vmatpush1.bf16.msra.mxu0 0
      %1063 = vmatprep.subr.bf16.mxu0 0
      %1064 = vmatpush1.bf16.msra.mxu0 0
      %1065 = vmatprep.subr.bf16.mxu0 0
      %1066 = vmatpush1.bf16.msra.mxu0 %v1051
      %1067 = vmatprep.subr.bf16.mxu0 0
      %1068 = vmatpush1.bf16.msra.mxu0 %v853
      %1069 = vmatprep.subr.bf16.mxu0 0
      %1070 = vmatpush2.bf16.msra.mxu0 0
      %1071 = vmatprep.subr.bf16.mxu0 0
      %1072 = vmatpush2.bf16.msra.mxu0 0
      %1073 = vmatprep.subr.bf16.mxu0 0
      %1074 = vmatpush2.bf16.msra.mxu0 0
      %1075 = vmatprep.subr.bf16.mxu0 0
      %1076 = vmatpush2.bf16.msra.mxu0 0
      %1077 = vmatprep.subr.bf16.mxu0 0
      %1078 = vmatpush2.bf16.msra.mxu0 0
      %1079 = vmatprep.subr.bf16.mxu0 0
      %1080 = vmatpush2.bf16.msra.mxu0 0
      %1081 = vmatprep.subr.bf16.mxu0 0
      %1082 = vmatpush2.bf16.msra.mxu0 0
      %1083 = vmatprep.subr.bf16.mxu0 0
      %1084 = vmatpush2.bf16.msra.mxu0 0
      %1085 = vmatprep.mubr.bf16.mxu0 0
      %1086 = vmatmul.mubr.bf16.gmra.mxu0 %v858
      %v1087 = vpop.f32.mrf.mxu0
      %v1088 = vadd.f32 %v523, %v1087
      %v1089 = vpop.f32.mrf.mxu0
      %v1090 = vpop.f32.mrf.mxu0
      %v1091 = vadd.f32 %v523, %v1090
      %v1092 = vpop.f32.mrf.mxu0
      %1093 = vmatprep.mubr.bf16.mxu0 0
      %1094 = vmatmul.mubr.bf16.gmra.mxu0 %v861
      %v1095 = vpop.f32.mrf.mxu0
      %v1096 = vadd.f32 %v523, %v1095
      %v1097 = vpop.f32.mrf.mxu0
      %v1098 = vpop.f32.mrf.mxu0
      %v1099 = vadd.f32 %v523, %v1098
      %v1100 = vpop.f32.mrf.mxu0
      %1101 = vmatprep.mubr.bf16.mxu0 0
      %1102 = vmatmul.mubr.bf16.gmra.mxu0 %v864
      %v1103 = vpop.f32.mrf.mxu0
      %v1104 = vadd.f32 %v523, %v1103
      %v1105 = vpop.f32.mrf.mxu0
      %v1106 = vpop.f32.mrf.mxu0
      %v1107 = vadd.f32 %v523, %v1106
      %v1108 = vpop.f32.mrf.mxu0
      %1109 = vmatprep.mubr.bf16.mxu0 0
      %1110 = vmatmul.mubr.bf16.gmra.mxu0 %v867
      %v1111 = vpop.f32.mrf.mxu0
      %v1112 = vadd.f32 %v523, %v1111
      %v1113 = vpop.f32.mrf.mxu0
      %v1114 = vpop.f32.mrf.mxu0
      %v1115 = vadd.f32 %v523, %v1114
      %v1116 = vpop.f32.mrf.mxu0
      %1117 = vmatprep.mubr.bf16.mxu0 0
      %1118 = vmatmul.mubr.bf16.gmra.mxu0 %v870
      %v1119 = vpop.f32.mrf.mxu0
      %v1120 = vadd.f32 %v523, %v1119
      %v1121 = vpop.f32.mrf.mxu0
      %v1122 = vpop.f32.mrf.mxu0
      %v1123 = vadd.f32 %v523, %v1122
      %v1124 = vpop.f32.mrf.mxu0
      %1125 = vmatprep.mubr.bf16.mxu0 0
      %1126 = vmatmul.mubr.bf16.gmra.mxu0 %v873
      %v1127 = vpop.f32.mrf.mxu0
      %v1128 = vadd.f32 %v523, %v1127
      %v1129 = vpop.f32.mrf.mxu0
      %v1130 = vpop.f32.mrf.mxu0
      %v1131 = vadd.f32 %v523, %v1130
      %v1132 = vpop.f32.mrf.mxu0
      %1133 = vmatprep.mubr.bf16.mxu0 0
      %1134 = vmatmul.mubr.bf16.gmra.mxu0 %v876
      %v1135 = vpop.f32.mrf.mxu0
      %v1136 = vadd.f32 %v523, %v1135
      %v1137 = vpop.f32.mrf.mxu0
      %v1138 = vpop.f32.mrf.mxu0
      %v1139 = vadd.f32 %v523, %v1138
      %v1140 = vpop.f32.mrf.mxu0
      %1141 = vmatprep.mubr.bf16.mxu0 0
      %1142 = vmatmul.mubr.bf16.gmra.mxu0 %v879
      %v1143 = vpop.f32.mrf.mxu0
      %v1144 = vadd.f32 %v523, %v1143
      %v1145 = vpop.f32.mrf.mxu0
      %v1146 = vpop.f32.mrf.mxu0
      %v1147 = vadd.f32 %v523, %v1146
      %v1148 = vpop.f32.mrf.mxu0
      %1149 = vmatprep.mubr.bf16.mxu0 0
      %1150 = vmatmul.mubr.bf16.gmra.mxu0 %v882
      %v1151 = vpop.f32.mrf.mxu0
      %v1152 = vadd.f32 %v523, %v1151
      %v1153 = vpop.f32.mrf.mxu0
      %v1154 = vpop.f32.mrf.mxu0
      %v1155 = vadd.f32 %v523, %v1154
      %v1156 = vpop.f32.mrf.mxu0
      %1157 = vmatprep.mubr.bf16.mxu0 0
      %1158 = vmatmul.mubr.bf16.gmra.mxu0 %v885
      %v1159 = vpop.f32.mrf.mxu0
      %v1160 = vadd.f32 %v523, %v1159
      %v1161 = vpop.f32.mrf.mxu0
      %v1162 = vpop.f32.mrf.mxu0
      %v1163 = vadd.f32 %v523, %v1162
      %v1164 = vpop.f32.mrf.mxu0
      %1165 = vmatprep.mubr.bf16.mxu0 0
      %1166 = vmatmul.mubr.bf16.gmra.mxu0 %v888
      %v1167 = vpop.f32.mrf.mxu0
      %v1168 = vadd.f32 %v523, %v1167
      %v1169 = vpop.f32.mrf.mxu0
      %v1170 = vpop.f32.mrf.mxu0
      %v1171 = vadd.f32 %v523, %v1170
      %v1172 = vpop.f32.mrf.mxu0
      %1173 = vmatprep.mubr.bf16.mxu0 0
      %1174 = vmatmul.mubr.bf16.gmra.mxu0 %v891
      %v1175 = vpop.f32.mrf.mxu0
      %v1176 = vadd.f32 %v523, %v1175
      %v1177 = vpop.f32.mrf.mxu0
      %v1178 = vpop.f32.mrf.mxu0
      %v1179 = vadd.f32 %v523, %v1178
      %v1180 = vpop.f32.mrf.mxu0
      %1181 = vmatprep.mubr.bf16.mxu0 0
      %1182 = vmatmul.mubr.bf16.gmra.mxu0 %v894
      %v1183 = vpop.f32.mrf.mxu0
      %v1184 = vadd.f32 %v523, %v1183
      %v1185 = vpop.f32.mrf.mxu0
      %v1186 = vpop.f32.mrf.mxu0
      %v1187 = vadd.f32 %v523, %v1186
      %v1188 = vpop.f32.mrf.mxu0
      %1189 = vmatprep.mubr.bf16.mxu0 0
      %1190 = vmatmul.mubr.bf16.gmra.mxu0 %v897
      %v1191 = vpop.f32.mrf.mxu0
      %v1192 = vadd.f32 %v523, %v1191
      %v1193 = vpop.f32.mrf.mxu0
      %v1194 = vpop.f32.mrf.mxu0
      %v1195 = vadd.f32 %v523, %v1194
      %v1196 = vpop.f32.mrf.mxu0
      %1197 = vmatprep.mubr.bf16.mxu0 0
      %1198 = vmatmul.mubr.bf16.gmra.mxu0 %v900
      %v1199 = vpop.f32.mrf.mxu0
      %v1200 = vadd.f32 %v523, %v1199
      %v1201 = vpop.f32.mrf.mxu0
      %v1202 = vpop.f32.mrf.mxu0
      %v1203 = vadd.f32 %v523, %v1202
      %v1204 = vpop.f32.mrf.mxu0
      %1205 = vmatprep.mubr.bf16.mxu0 0
      %1206 = vmatmul.mubr.bf16.gmra.mxu0 %v903
      %v1207 = vpop.f32.mrf.mxu0
      %v1208 = vadd.f32 %v523, %v1207
      %v1209 = vpop.f32.mrf.mxu0
      %v1210 = vpop.f32.mrf.mxu0
      %v1211 = vadd.f32 %v523, %v1210
      %v1212 = vpop.f32.mrf.mxu0
      %1213 = vmatprep.mubr.bf16.mxu0 0
      %1214 = vmatmul.mubr.bf16.gmra.mxu0 %v906
      %v1215 = vpop.f32.mrf.mxu0
      %v1216 = vadd.f32 %v523, %v1215
      %v1217 = vpop.f32.mrf.mxu0
      %v1218 = vpop.f32.mrf.mxu0
      %v1219 = vadd.f32 %v523, %v1218
      %v1220 = vpop.f32.mrf.mxu0
      %1221 = vmatprep.mubr.bf16.mxu0 0
      %1222 = vmatmul.mubr.bf16.gmra.mxu0 %v909
      %v1223 = vpop.f32.mrf.mxu0
      %v1224 = vadd.f32 %v523, %v1223
      %v1225 = vpop.f32.mrf.mxu0
      %v1226 = vpop.f32.mrf.mxu0
      %v1227 = vadd.f32 %v523, %v1226
      %v1228 = vpop.f32.mrf.mxu0
      %1229 = vmatprep.mubr.bf16.mxu0 0
      %1230 = vmatmul.mubr.bf16.gmra.mxu0 %v912
      %v1231 = vpop.f32.mrf.mxu0
      %v1232 = vadd.f32 %v523, %v1231
      %v1233 = vpop.f32.mrf.mxu0
      %v1234 = vpop.f32.mrf.mxu0
      %v1235 = vadd.f32 %v523, %v1234
      %v1236 = vpop.f32.mrf.mxu0
      %1237 = vmatprep.mubr.bf16.mxu0 0
      %1238 = vmatmul.mubr.bf16.gmra.mxu0 %v915
      %v1239 = vpop.f32.mrf.mxu0
      %v1240 = vadd.f32 %v523, %v1239
      %v1241 = vpop.f32.mrf.mxu0
      %v1242 = vpop.f32.mrf.mxu0
      %v1243 = vadd.f32 %v523, %v1242
      %v1244 = vpop.f32.mrf.mxu0
      %1245 = vmatprep.mubr.bf16.mxu0 0
      %1246 = vmatmul.mubr.bf16.gmra.mxu0 %v918
      %v1247 = vpop.f32.mrf.mxu0
      %v1248 = vadd.f32 %v523, %v1247
      %v1249 = vpop.f32.mrf.mxu0
      %v1250 = vpop.f32.mrf.mxu0
      %v1251 = vadd.f32 %v523, %v1250
      %v1252 = vpop.f32.mrf.mxu0
      %1253 = vmatprep.mubr.bf16.mxu0 0
      %1254 = vmatmul.mubr.bf16.gmra.mxu0 %v921
      %v1255 = vpop.f32.mrf.mxu0
      %v1256 = vadd.f32 %v523, %v1255
      %v1257 = vpop.f32.mrf.mxu0
      %v1258 = vpop.f32.mrf.mxu0
      %v1259 = vadd.f32 %v523, %v1258
      %v1260 = vpop.f32.mrf.mxu0
      %1261 = vmatprep.mubr.bf16.mxu0 0
      %1262 = vmatmul.mubr.bf16.gmra.mxu0 %v924
      %v1263 = vpop.f32.mrf.mxu0
      %v1264 = vadd.f32 %v523, %v1263
      %v1265 = vpop.f32.mrf.mxu0
      %v1266 = vpop.f32.mrf.mxu0
      %v1267 = vadd.f32 %v523, %v1266
      %v1268 = vpop.f32.mrf.mxu0
      %1269 = vmatprep.mubr.bf16.mxu0 0
      %1270 = vmatmul.mubr.bf16.gmra.mxu0 %v927
      %v1271 = vpop.f32.mrf.mxu0
      %v1272 = vadd.f32 %v523, %v1271
      %v1273 = vpop.f32.mrf.mxu0
      %v1274 = vpop.f32.mrf.mxu0
      %v1275 = vadd.f32 %v523, %v1274
      %v1276 = vpop.f32.mrf.mxu0
      %1277 = vmatprep.mubr.bf16.mxu0 0
      %1278 = vmatmul.mubr.bf16.gmra.mxu0 %v930
      %v1279 = vpop.f32.mrf.mxu0
      %v1280 = vadd.f32 %v523, %v1279
      %v1281 = vpop.f32.mrf.mxu0
      %v1282 = vpop.f32.mrf.mxu0
      %v1283 = vadd.f32 %v523, %v1282
      %v1284 = vpop.f32.mrf.mxu0
      %1285 = vmatprep.mubr.bf16.mxu0 0
      %1286 = vmatmul.mubr.bf16.gmra.mxu0 %v933
      %v1287 = vpop.f32.mrf.mxu0
      %v1288 = vadd.f32 %v523, %v1287
      %v1289 = vpop.f32.mrf.mxu0
      %v1290 = vpop.f32.mrf.mxu0
      %v1291 = vadd.f32 %v523, %v1290
      %v1292 = vpop.f32.mrf.mxu0
      %1293 = vmatprep.mubr.bf16.mxu0 0
      %1294 = vmatmul.mubr.bf16.gmra.mxu0 %v936
      %v1295 = vpop.f32.mrf.mxu0
      %v1296 = vadd.f32 %v523, %v1295
      %v1297 = vpop.f32.mrf.mxu0
      %v1298 = vpop.f32.mrf.mxu0
      %v1299 = vadd.f32 %v523, %v1298
      %v1300 = vpop.f32.mrf.mxu0
      %1301 = vmatprep.mubr.bf16.mxu0 0
      %1302 = vmatmul.mubr.bf16.gmra.mxu0 %v939
      %v1303 = vpop.f32.mrf.mxu0
      %v1304 = vadd.f32 %v523, %v1303
      %v1305 = vpop.f32.mrf.mxu0
      %v1306 = vpop.f32.mrf.mxu0
      %v1307 = vadd.f32 %v523, %v1306
      %v1308 = vpop.f32.mrf.mxu0
      %1309 = vmatprep.mubr.bf16.mxu0 0
      %1310 = vmatmul.mubr.bf16.gmra.mxu0 %v942
      %v1311 = vpop.f32.mrf.mxu0
      %v1312 = vadd.f32 %v523, %v1311
      %v1313 = vpop.f32.mrf.mxu0
      %v1314 = vpop.f32.mrf.mxu0
      %v1315 = vadd.f32 %v523, %v1314
      %v1316 = vpop.f32.mrf.mxu0
      %1317 = vmatprep.mubr.bf16.mxu0 0
      %1318 = vmatmul.mubr.bf16.gmra.mxu0 %v945
      %v1319 = vpop.f32.mrf.mxu0
      %v1320 = vadd.f32 %v523, %v1319
      %v1321 = vpop.f32.mrf.mxu0
      %v1322 = vpop.f32.mrf.mxu0
      %v1323 = vadd.f32 %v523, %v1322
      %v1324 = vpop.f32.mrf.mxu0
      %1325 = vmatprep.mubr.bf16.mxu0 0
      %1326 = vmatmul.mubr.bf16.gmra.mxu0 %v948
      %v1327 = vpop.f32.mrf.mxu0
      %v1328 = vadd.f32 %v523, %v1327
      %v1329 = vpop.f32.mrf.mxu0
      %v1330 = vpop.f32.mrf.mxu0
      %v1331 = vadd.f32 %v523, %v1330
      %v1332 = vpop.f32.mrf.mxu0
      %1333 = vmatprep.mubr.bf16.mxu0 0
      %1334 = vmatmul.mubr.bf16.gmra.mxu0 %v951
      %v1335 = vpop.f32.mrf.mxu0
      %v1336 = vadd.f32 %v523, %v1335
      %v1337 = vpop.f32.mrf.mxu0
      %v1338 = vpop.f32.mrf.mxu0
      %v1339 = vadd.f32 %v523, %v1338
      %v1340 = vpop.f32.mrf.mxu0
      %1341 = vmatprep.mubr.bf16.mxu0 0
      %1342 = vmatmul.mubr.bf16.gmra.mxu0 %v954
      %v1343 = vpop.f32.mrf.mxu0
      %v1344 = vadd.f32 %v523, %v1343
      %v1345 = vpop.f32.mrf.mxu0
      %v1346 = vpop.f32.mrf.mxu0
      %v1347 = vadd.f32 %v523, %v1346
      %v1348 = vpop.f32.mrf.mxu0
      %1349 = vmatprep.mubr.bf16.mxu0 0
      %1350 = vmatmul.mubr.bf16.gmra.mxu0 %v957
      %v1351 = vpop.f32.mrf.mxu0
      %v1352 = vadd.f32 %v523, %v1351
      %v1353 = vpop.f32.mrf.mxu0
      %v1354 = vpop.f32.mrf.mxu0
      %v1355 = vadd.f32 %v523, %v1354
      %v1356 = vpop.f32.mrf.mxu0
      %1357 = vmatprep.mubr.bf16.mxu0 0
      %1358 = vmatmul.mubr.bf16.gmra.mxu0 %v960
      %v1359 = vpop.f32.mrf.mxu0
      %v1360 = vadd.f32 %v523, %v1359
      %v1361 = vpop.f32.mrf.mxu0
      %v1362 = vpop.f32.mrf.mxu0
      %v1363 = vadd.f32 %v523, %v1362
      %v1364 = vpop.f32.mrf.mxu0
      %1365 = vmatprep.mubr.bf16.mxu0 0
      %1366 = vmatmul.mubr.bf16.gmra.mxu0 %v963
      %v1367 = vpop.f32.mrf.mxu0
      %v1368 = vadd.f32 %v523, %v1367
      %v1369 = vpop.f32.mrf.mxu0
      %v1370 = vpop.f32.mrf.mxu0
      %v1371 = vadd.f32 %v523, %v1370
      %v1372 = vpop.f32.mrf.mxu0
      %1373 = vmatprep.mubr.bf16.mxu0 0
      %1374 = vmatmul.mubr.bf16.gmra.mxu0 %v966
      %v1375 = vpop.f32.mrf.mxu0
      %v1376 = vadd.f32 %v523, %v1375
      %v1377 = vpop.f32.mrf.mxu0
      %v1378 = vpop.f32.mrf.mxu0
      %v1379 = vadd.f32 %v523, %v1378
      %v1380 = vpop.f32.mrf.mxu0
      %1381 = vmatprep.mubr.bf16.mxu0 0
      %1382 = vmatmul.mubr.bf16.gmra.mxu0 %v969
      %v1383 = vpop.f32.mrf.mxu0
      %v1384 = vadd.f32 %v523, %v1383
      %v1385 = vpop.f32.mrf.mxu0
      %v1386 = vpop.f32.mrf.mxu0
      %v1387 = vadd.f32 %v523, %v1386
      %v1388 = vpop.f32.mrf.mxu0
      %1389 = vmatprep.mubr.bf16.mxu0 0
      %1390 = vmatmul.mubr.bf16.gmra.mxu0 %v972
      %v1391 = vpop.f32.mrf.mxu0
      %v1392 = vadd.f32 %v523, %v1391
      %v1393 = vpop.f32.mrf.mxu0
      %v1394 = vpop.f32.mrf.mxu0
      %v1395 = vadd.f32 %v523, %v1394
      %v1396 = vpop.f32.mrf.mxu0
      %1397 = vmatprep.mubr.bf16.mxu0 0
      %1398 = vmatmul.mubr.bf16.gmra.mxu0 %v975
      %v1399 = vpop.f32.mrf.mxu0
      %v1400 = vadd.f32 %v523, %v1399
      %v1401 = vpop.f32.mrf.mxu0
      %v1402 = vpop.f32.mrf.mxu0
      %v1403 = vadd.f32 %v523, %v1402
      %v1404 = vpop.f32.mrf.mxu0
      %1405 = vmatprep.mubr.bf16.mxu0 0
      %1406 = vmatmul.mubr.bf16.gmra.mxu0 %v978
      %v1407 = vpop.f32.mrf.mxu0
      %v1408 = vadd.f32 %v523, %v1407
      %v1409 = vpop.f32.mrf.mxu0
      %v1410 = vpop.f32.mrf.mxu0
      %v1411 = vadd.f32 %v523, %v1410
      %v1412 = vpop.f32.mrf.mxu0
      %1413 = vmatprep.mubr.bf16.mxu0 0
      %1414 = vmatmul.mubr.bf16.gmra.mxu0 %v981
      %v1415 = vpop.f32.mrf.mxu0
      %v1416 = vadd.f32 %v523, %v1415
      %v1417 = vpop.f32.mrf.mxu0
      %v1418 = vpop.f32.mrf.mxu0
      %v1419 = vadd.f32 %v523, %v1418
      %v1420 = vpop.f32.mrf.mxu0
      %1421 = vmatprep.mubr.bf16.mxu0 0
      %1422 = vmatmul.mubr.bf16.gmra.mxu0 %v984
      %v1423 = vpop.f32.mrf.mxu0
      %v1424 = vadd.f32 %v523, %v1423
      %v1425 = vpop.f32.mrf.mxu0
      %v1426 = vpop.f32.mrf.mxu0
      %v1427 = vadd.f32 %v523, %v1426
      %v1428 = vpop.f32.mrf.mxu0
      %1429 = vmatprep.mubr.bf16.mxu0 0
      %1430 = vmatmul.mubr.bf16.gmra.mxu0 %v987
      %v1431 = vpop.f32.mrf.mxu0
      %v1432 = vadd.f32 %v523, %v1431
      %v1433 = vpop.f32.mrf.mxu0
      %v1434 = vpop.f32.mrf.mxu0
      %v1435 = vadd.f32 %v523, %v1434
      %v1436 = vpop.f32.mrf.mxu0
      %1437 = vmatprep.mubr.bf16.mxu0 0
      %1438 = vmatmul.mubr.bf16.gmra.mxu0 %v990
      %v1439 = vpop.f32.mrf.mxu0
      %v1440 = vadd.f32 %v523, %v1439
      %v1441 = vpop.f32.mrf.mxu0
      %v1442 = vpop.f32.mrf.mxu0
      %v1443 = vadd.f32 %v523, %v1442
      %v1444 = vpop.f32.mrf.mxu0
      %1445 = vmatprep.mubr.bf16.mxu0 0
      %1446 = vmatmul.mubr.bf16.gmra.mxu0 %v993
      %v1447 = vpop.f32.mrf.mxu0
      %v1448 = vadd.f32 %v523, %v1447
      %v1449 = vpop.f32.mrf.mxu0
      %v1450 = vpop.f32.mrf.mxu0
      %v1451 = vadd.f32 %v523, %v1450
      %v1452 = vpop.f32.mrf.mxu0
      %1453 = vmatprep.mubr.bf16.mxu0 0
      %1454 = vmatmul.mubr.bf16.gmra.mxu0 %v996
      %v1455 = vpop.f32.mrf.mxu0
      %v1456 = vadd.f32 %v523, %v1455
      %v1457 = vpop.f32.mrf.mxu0
      %v1458 = vpop.f32.mrf.mxu0
      %v1459 = vadd.f32 %v523, %v1458
      %v1460 = vpop.f32.mrf.mxu0
      %1461 = vmatprep.mubr.bf16.mxu0 0
      %1462 = vmatmul.mubr.bf16.gmra.mxu0 %v999
      %v1463 = vpop.f32.mrf.mxu0
      %v1464 = vadd.f32 %v523, %v1463
      %v1465 = vpop.f32.mrf.mxu0
      %v1466 = vpop.f32.mrf.mxu0
      %v1467 = vadd.f32 %v523, %v1466
      %v1468 = vpop.f32.mrf.mxu0
      %1469 = vmatprep.mubr.bf16.mxu0 0
      %1470 = vmatmul.mubr.bf16.gmra.mxu0 %v1002
      %v1471 = vpop.f32.mrf.mxu0
      %v1472 = vadd.f32 %v523, %v1471
      %v1473 = vpop.f32.mrf.mxu0
      %v1474 = vpop.f32.mrf.mxu0
      %v1475 = vadd.f32 %v523, %v1474
      %v1476 = vpop.f32.mrf.mxu0
      %1477 = vmatprep.mubr.bf16.mxu0 0
      %1478 = vmatmul.mubr.bf16.gmra.mxu0 %v1005
      %v1479 = vpop.f32.mrf.mxu0
      %v1480 = vadd.f32 %v523, %v1479
      %v1481 = vpop.f32.mrf.mxu0
      %v1482 = vpop.f32.mrf.mxu0
      %v1483 = vadd.f32 %v523, %v1482
      %v1484 = vpop.f32.mrf.mxu0
      %1485 = vmatprep.mubr.bf16.mxu0 0
      %1486 = vmatmul.mubr.bf16.gmra.mxu0 %v1008
      %v1487 = vpop.f32.mrf.mxu0
      %v1488 = vadd.f32 %v523, %v1487
      %v1489 = vpop.f32.mrf.mxu0
      %v1490 = vpop.f32.mrf.mxu0
      %v1491 = vadd.f32 %v523, %v1490
      %v1492 = vpop.f32.mrf.mxu0
      %1493 = vmatprep.mubr.bf16.mxu0 0
      %1494 = vmatmul.mubr.bf16.gmra.mxu0 %v1011
      %v1495 = vpop.f32.mrf.mxu0
      %v1496 = vadd.f32 %v523, %v1495
      %v1497 = vpop.f32.mrf.mxu0
      %v1498 = vpop.f32.mrf.mxu0
      %v1499 = vadd.f32 %v523, %v1498
      %v1500 = vpop.f32.mrf.mxu0
      %1501 = vmatprep.mubr.bf16.mxu0 0
      %1502 = vmatmul.mubr.bf16.gmra.mxu0 %v1014
      %v1503 = vpop.f32.mrf.mxu0
      %v1504 = vadd.f32 %v523, %v1503
      %v1505 = vpop.f32.mrf.mxu0
      %v1506 = vpop.f32.mrf.mxu0
      %v1507 = vadd.f32 %v523, %v1506
      %v1508 = vpop.f32.mrf.mxu0
      %1509 = vmatprep.mubr.bf16.mxu0 0
      %1510 = vmatmul.mubr.bf16.gmra.mxu0 %v1017
      %v1511 = vpop.f32.mrf.mxu0
      %v1512 = vadd.f32 %v523, %v1511
      %v1513 = vpop.f32.mrf.mxu0
      %v1514 = vpop.f32.mrf.mxu0
      %v1515 = vadd.f32 %v523, %v1514
      %v1516 = vpop.f32.mrf.mxu0
      %1517 = vmatprep.mubr.bf16.mxu0 0
      %1518 = vmatmul.mubr.bf16.gmra.mxu0 %v1020
      %v1519 = vpop.f32.mrf.mxu0
      %v1520 = vadd.f32 %v523, %v1519
      %v1521 = vpop.f32.mrf.mxu0
      %v1522 = vpop.f32.mrf.mxu0
      %v1523 = vadd.f32 %v523, %v1522
      %v1524 = vpop.f32.mrf.mxu0
      %1525 = vmatprep.mubr.bf16.mxu0 0
      %1526 = vmatmul.mubr.bf16.gmra.mxu0 %v1023
      %v1527 = vpop.f32.mrf.mxu0
      %v1528 = vadd.f32 %v523, %v1527
      %v1529 = vpop.f32.mrf.mxu0
      %v1530 = vpop.f32.mrf.mxu0
      %v1531 = vadd.f32 %v523, %v1530
      %v1532 = vpop.f32.mrf.mxu0
      %1533 = vmatprep.mubr.bf16.mxu0 0
      %1534 = vmatmul.mubr.bf16.gmra.mxu0 %v1026
      %v1535 = vpop.f32.mrf.mxu0
      %v1536 = vadd.f32 %v523, %v1535
      %v1537 = vpop.f32.mrf.mxu0
      %v1538 = vpop.f32.mrf.mxu0
      %v1539 = vadd.f32 %v523, %v1538
      %v1540 = vpop.f32.mrf.mxu0
      %1541 = vmatprep.mubr.bf16.mxu0 0
      %1542 = vmatmul.mubr.bf16.gmra.mxu0 %v1029
      %v1543 = vpop.f32.mrf.mxu0
      %v1544 = vadd.f32 %v523, %v1543
      %v1545 = vpop.f32.mrf.mxu0
      %v1546 = vpop.f32.mrf.mxu0
      %v1547 = vadd.f32 %v523, %v1546
      %v1548 = vpop.f32.mrf.mxu0
      %1549 = vmatprep.mubr.bf16.mxu0 0
      %1550 = vmatmul.mubr.bf16.gmra.mxu0 %v1032
      %v1551 = vpop.f32.mrf.mxu0
      %v1552 = vadd.f32 %v523, %v1551
      %v1553 = vpop.f32.mrf.mxu0
      %v1554 = vpop.f32.mrf.mxu0
      %v1555 = vadd.f32 %v523, %v1554
      %v1556 = vpop.f32.mrf.mxu0
      %1557 = vmatprep.mubr.bf16.mxu0 0
      %1558 = vmatmul.mubr.bf16.gmra.mxu0 %v1035
      %v1559 = vpop.f32.mrf.mxu0
      %v1560 = vadd.f32 %v523, %v1559
      %v1561 = vpop.f32.mrf.mxu0
      %v1562 = vpop.f32.mrf.mxu0
      %v1563 = vadd.f32 %v523, %v1562
      %v1564 = vpop.f32.mrf.mxu0
      %1565 = vmatprep.mubr.bf16.mxu0 0
      %1566 = vmatmul.mubr.bf16.gmra.mxu0 %v1038
      %v1567 = vpop.f32.mrf.mxu0
      %v1568 = vadd.f32 %v523, %v1567
      %v1569 = vpop.f32.mrf.mxu0
      %v1570 = vpop.f32.mrf.mxu0
      %v1571 = vadd.f32 %v523, %v1570
      %v1572 = vpop.f32.mrf.mxu0
      %1573 = vmatprep.mubr.bf16.mxu0 0
      %1574 = vmatmul.mubr.bf16.gmra.mxu0 %v1041
      %v1575 = vpop.f32.mrf.mxu0
      %v1576 = vadd.f32 %v523, %v1575
      %v1577 = vpop.f32.mrf.mxu0
      %v1578 = vpop.f32.mrf.mxu0
      %v1579 = vadd.f32 %v523, %v1578
      %v1580 = vpop.f32.mrf.mxu0
      %1581 = vmatprep.mubr.bf16.mxu0 0
      %1582 = vmatmul.mubr.bf16.gmra.mxu0 %v1044
      %v1583 = vpop.f32.mrf.mxu0
      %v1584 = vadd.f32 %v523, %v1583
      %v1585 = vpop.f32.mrf.mxu0
      %v1586 = vpop.f32.mrf.mxu0
      %v1587 = vadd.f32 %v523, %v1586
      %v1588 = vpop.f32.mrf.mxu0
      %1589 = vmatprep.mubr.bf16.mxu0 0
      %1590 = vmatmul.mubr.bf16.gmra.mxu0 %v1047
      %v1591 = vpop.f32.mrf.mxu0
      %v1592 = vadd.f32 %v523, %v1591
      %v1593 = vpop.f32.mrf.mxu0
      %v1594 = vpop.f32.mrf.mxu0
      %v1595 = vadd.f32 %v523, %v1594
      %v1596 = vpop.f32.mrf.mxu0
      %1597 = vdwg.mxu0
      %vm1598 = vcmp.ge.f32.partialorder %v1088, 0.0
      %vm1599 = vcmp.ge.f32.partialorder %v1091, 0.0
      %vm1600 = vcmp.ge.f32.partialorder %v1096, 0.0
      %vm1601 = vcmp.ge.f32.partialorder %v1099, 0.0
      %vm1602 = vcmp.ge.f32.partialorder %v1104, 0.0
      %vm1603 = vcmp.ge.f32.partialorder %v1107, 0.0
      %vm1604 = vcmp.ge.f32.partialorder %v1112, 0.0
      %vm1605 = vcmp.ge.f32.partialorder %v1115, 0.0
      %vm1606 = vcmp.ge.f32.partialorder %v1120, 0.0
      %vm1607 = vcmp.ge.f32.partialorder %v1123, 0.0
      %vm1608 = vcmp.ge.f32.partialorder %v1128, 0.0
      %vm1609 = vcmp.ge.f32.partialorder %v1131, 0.0
      %vm1610 = vcmp.ge.f32.partialorder %v1136, 0.0
      %vm1611 = vcmp.ge.f32.partialorder %v1139, 0.0
      %vm1612 = vcmp.ge.f32.partialorder %v1144, 0.0
      %vm1613 = vcmp.ge.f32.partialorder %v1147, 0.0
      %vm1614 = vcmp.ge.f32.partialorder %v1152, 0.0
      %vm1615 = vcmp.ge.f32.partialorder %v1155, 0.0
      %vm1616 = vcmp.ge.f32.partialorder %v1160, 0.0
      %vm1617 = vcmp.ge.f32.partialorder %v1163, 0.0
      %vm1618 = vcmp.ge.f32.partialorder %v1168, 0.0
      %vm1619 = vcmp.ge.f32.partialorder %v1171, 0.0
      %vm1620 = vcmp.ge.f32.partialorder %v1176, 0.0
      %vm1621 = vcmp.ge.f32.partialorder %v1179, 0.0
      %vm1622 = vcmp.ge.f32.partialorder %v1184, 0.0
      %vm1623 = vcmp.ge.f32.partialorder %v1187, 0.0
      %vm1624 = vcmp.ge.f32.partialorder %v1192, 0.0
      %vm1625 = vcmp.ge.f32.partialorder %v1195, 0.0
      %vm1626 = vcmp.ge.f32.partialorder %v1200, 0.0
      %vm1627 = vcmp.ge.f32.partialorder %v1203, 0.0
      %vm1628 = vcmp.ge.f32.partialorder %v1208, 0.0
      %vm1629 = vcmp.ge.f32.partialorder %v1211, 0.0
      %vm1630 = vcmp.ge.f32.partialorder %v1216, 0.0
      %vm1631 = vcmp.ge.f32.partialorder %v1219, 0.0
      %vm1632 = vcmp.ge.f32.partialorder %v1224, 0.0
      %vm1633 = vcmp.ge.f32.partialorder %v1227, 0.0
      %vm1634 = vcmp.ge.f32.partialorder %v1232, 0.0
      %vm1635 = vcmp.ge.f32.partialorder %v1235, 0.0
      %vm1636 = vcmp.ge.f32.partialorder %v1240, 0.0
      %vm1637 = vcmp.ge.f32.partialorder %v1243, 0.0
      %vm1638 = vcmp.ge.f32.partialorder %v1248, 0.0
      %vm1639 = vcmp.ge.f32.partialorder %v1251, 0.0
      %vm1640 = vcmp.ge.f32.partialorder %v1256, 0.0
      %vm1641 = vcmp.ge.f32.partialorder %v1259, 0.0
      %vm1642 = vcmp.ge.f32.partialorder %v1264, 0.0
      %vm1643 = vcmp.ge.f32.partialorder %v1267, 0.0
      %vm1644 = vcmp.ge.f32.partialorder %v1272, 0.0
      %vm1645 = vcmp.ge.f32.partialorder %v1275, 0.0
      %vm1646 = vcmp.ge.f32.partialorder %v1280, 0.0
      %vm1647 = vcmp.ge.f32.partialorder %v1283, 0.0
      %vm1648 = vcmp.ge.f32.partialorder %v1288, 0.0
      %vm1649 = vcmp.ge.f32.partialorder %v1291, 0.0
      %vm1650 = vcmp.ge.f32.partialorder %v1296, 0.0
      %vm1651 = vcmp.ge.f32.partialorder %v1299, 0.0
      %vm1652 = vcmp.ge.f32.partialorder %v1304, 0.0
      %vm1653 = vcmp.ge.f32.partialorder %v1307, 0.0
      %vm1654 = vcmp.ge.f32.partialorder %v1312, 0.0
      %vm1655 = vcmp.ge.f32.partialorder %v1315, 0.0
      %vm1656 = vcmp.ge.f32.partialorder %v1320, 0.0
      %vm1657 = vcmp.ge.f32.partialorder %v1323, 0.0
      %vm1658 = vcmp.ge.f32.partialorder %v1328, 0.0
      %vm1659 = vcmp.ge.f32.partialorder %v1331, 0.0
      %vm1660 = vcmp.ge.f32.partialorder %v1336, 0.0
      %vm1661 = vcmp.ge.f32.partialorder %v1339, 0.0
      %vm1662 = vcmp.ge.f32.partialorder %v1344, 0.0
      %vm1663 = vcmp.ge.f32.partialorder %v1347, 0.0
      %vm1664 = vcmp.ge.f32.partialorder %v1352, 0.0
      %vm1665 = vcmp.ge.f32.partialorder %v1355, 0.0
      %vm1666 = vcmp.ge.f32.partialorder %v1360, 0.0
      %vm1667 = vcmp.ge.f32.partialorder %v1363, 0.0
      %vm1668 = vcmp.ge.f32.partialorder %v1368, 0.0
      %vm1669 = vcmp.ge.f32.partialorder %v1371, 0.0
      %vm1670 = vcmp.ge.f32.partialorder %v1376, 0.0
      %vm1671 = vcmp.ge.f32.partialorder %v1379, 0.0
      %vm1672 = vcmp.ge.f32.partialorder %v1384, 0.0
      %vm1673 = vcmp.ge.f32.partialorder %v1387, 0.0
      %vm1674 = vcmp.ge.f32.partialorder %v1392, 0.0
      %vm1675 = vcmp.ge.f32.partialorder %v1395, 0.0
      %vm1676 = vcmp.ge.f32.partialorder %v1400, 0.0
      %vm1677 = vcmp.ge.f32.partialorder %v1403, 0.0
      %vm1678 = vcmp.ge.f32.partialorder %v1408, 0.0
      %vm1679 = vcmp.ge.f32.partialorder %v1411, 0.0
      %vm1680 = vcmp.ge.f32.partialorder %v1416, 0.0
      %vm1681 = vcmp.ge.f32.partialorder %v1419, 0.0
      %vm1682 = vcmp.ge.f32.partialorder %v1424, 0.0
      %vm1683 = vcmp.ge.f32.partialorder %v1427, 0.0
      %vm1684 = vcmp.ge.f32.partialorder %v1432, 0.0
      %vm1685 = vcmp.ge.f32.partialorder %v1435, 0.0
      %vm1686 = vcmp.ge.f32.partialorder %v1440, 0.0
      %vm1687 = vcmp.ge.f32.partialorder %v1443, 0.0
      %vm1688 = vcmp.ge.f32.partialorder %v1448, 0.0
      %vm1689 = vcmp.ge.f32.partialorder %v1451, 0.0
      %vm1690 = vcmp.ge.f32.partialorder %v1456, 0.0
      %vm1691 = vcmp.ge.f32.partialorder %v1459, 0.0
      %vm1692 = vcmp.ge.f32.partialorder %v1464, 0.0
      %vm1693 = vcmp.ge.f32.partialorder %v1467, 0.0
      %vm1694 = vcmp.ge.f32.partialorder %v1472, 0.0
      %vm1695 = vcmp.ge.f32.partialorder %v1475, 0.0
      %vm1696 = vcmp.ge.f32.partialorder %v1480, 0.0
      %vm1697 = vcmp.ge.f32.partialorder %v1483, 0.0
      %vm1698 = vcmp.ge.f32.partialorder %v1488, 0.0
      %vm1699 = vcmp.ge.f32.partialorder %v1491, 0.0
      %vm1700 = vcmp.ge.f32.partialorder %v1496, 0.0
      %vm1701 = vcmp.ge.f32.partialorder %v1499, 0.0
      %vm1702 = vcmp.ge.f32.partialorder %v1504, 0.0
      %vm1703 = vcmp.ge.f32.partialorder %v1507, 0.0
      %vm1704 = vcmp.ge.f32.partialorder %v1512, 0.0
      %vm1705 = vcmp.ge.f32.partialorder %v1515, 0.0
      %vm1706 = vcmp.ge.f32.partialorder %v1520, 0.0
      %vm1707 = vcmp.ge.f32.partialorder %v1523, 0.0
      %vm1708 = vcmp.ge.f32.partialorder %v1528, 0.0
      %vm1709 = vcmp.ge.f32.partialorder %v1531, 0.0
      %vm1710 = vcmp.ge.f32.partialorder %v1536, 0.0
      %vm1711 = vcmp.ge.f32.partialorder %v1539, 0.0
      %vm1712 = vcmp.ge.f32.partialorder %v1544, 0.0
      %vm1713 = vcmp.ge.f32.partialorder %v1547, 0.0
      %vm1714 = vcmp.ge.f32.partialorder %v1552, 0.0
      %vm1715 = vcmp.ge.f32.partialorder %v1555, 0.0
      %vm1716 = vcmp.ge.f32.partialorder %v1560, 0.0
      %vm1717 = vcmp.ge.f32.partialorder %v1563, 0.0
      %vm1718 = vcmp.ge.f32.partialorder %v1568, 0.0
      %vm1719 = vcmp.ge.f32.partialorder %v1571, 0.0
      %vm1720 = vcmp.ge.f32.partialorder %v1576, 0.0
      %vm1721 = vcmp.ge.f32.partialorder %v1579, 0.0
      %vm1722 = vcmp.ge.f32.partialorder %v1584, 0.0
      %vm1723 = vcmp.ge.f32.partialorder %v1587, 0.0
      %vm1724 = vcmp.ge.f32.partialorder %v1592, 0.0
      %vm1725 = vcmp.ge.f32.partialorder %v1595, 0.0
      %v1726 = vmul.f32 %v1088, 0.2
      %v1727 = vmul.f32 %v1091, 0.2
      %v1728 = vmul.f32 %v1096, 0.2
      %v1729 = vmul.f32 %v1099, 0.2
      %v1730 = vmul.f32 %v1104, 0.2
      %v1731 = vmul.f32 %v1107, 0.2
      %v1732 = vmul.f32 %v1112, 0.2
      %v1733 = vmul.f32 %v1115, 0.2
      %v1734 = vmul.f32 %v1120, 0.2
      %v1735 = vmul.f32 %v1123, 0.2
      %v1736 = vmul.f32 %v1128, 0.2
      %v1737 = vmul.f32 %v1131, 0.2
      %v1738 = vmul.f32 %v1136, 0.2
      %v1739 = vmul.f32 %v1139, 0.2
      %v1740 = vmul.f32 %v1144, 0.2
      %v1741 = vmul.f32 %v1147, 0.2
      %v1742 = vmul.f32 %v1152, 0.2
      %v1743 = vmul.f32 %v1155, 0.2
      %v1744 = vmul.f32 %v1160, 0.2
      %v1745 = vmul.f32 %v1163, 0.2
      %v1746 = vmul.f32 %v1168, 0.2
      %v1747 = vmul.f32 %v1171, 0.2
      %v1748 = vmul.f32 %v1176, 0.2
      %v1749 = vmul.f32 %v1179, 0.2
      %v1750 = vmul.f32 %v1184, 0.2
      %v1751 = vmul.f32 %v1187, 0.2
      %v1752 = vmul.f32 %v1192, 0.2
      %v1753 = vmul.f32 %v1195, 0.2
      %v1754 = vmul.f32 %v1200, 0.2
      %v1755 = vmul.f32 %v1203, 0.2
      %v1756 = vmul.f32 %v1208, 0.2
      %v1757 = vmul.f32 %v1211, 0.2
      %v1758 = vmul.f32 %v1216, 0.2
      %v1759 = vmul.f32 %v1219, 0.2
      %v1760 = vmul.f32 %v1224, 0.2
      %v1761 = vmul.f32 %v1227, 0.2
      %v1762 = vmul.f32 %v1232, 0.2
      %v1763 = vmul.f32 %v1235, 0.2
      %v1764 = vmul.f32 %v1240, 0.2
      %v1765 = vmul.f32 %v1243, 0.2
      %v1766 = vmul.f32 %v1248, 0.2
      %v1767 = vmul.f32 %v1251, 0.2
      %v1768 = vmul.f32 %v1256, 0.2
      %v1769 = vmul.f32 %v1259, 0.2
      %v1770 = vmul.f32 %v1264, 0.2
      %v1771 = vmul.f32 %v1267, 0.2
      %v1772 = vmul.f32 %v1272, 0.2
      %v1773 = vmul.f32 %v1275, 0.2
      %v1774 = vmul.f32 %v1280, 0.2
      %v1775 = vmul.f32 %v1283, 0.2
      %v1776 = vmul.f32 %v1288, 0.2
      %v1777 = vmul.f32 %v1291, 0.2
      %v1778 = vmul.f32 %v1296, 0.2
      %v1779 = vmul.f32 %v1299, 0.2
      %v1780 = vmul.f32 %v1304, 0.2
      %v1781 = vmul.f32 %v1307, 0.2
      %v1782 = vmul.f32 %v1312, 0.2
      %v1783 = vmul.f32 %v1315, 0.2
      %v1784 = vmul.f32 %v1320, 0.2
      %v1785 = vmul.f32 %v1323, 0.2
      %v1786 = vmul.f32 %v1328, 0.2
      %v1787 = vmul.f32 %v1331, 0.2
      %v1788 = vmul.f32 %v1336, 0.2
      %v1789 = vmul.f32 %v1339, 0.2
      %v1790 = vmul.f32 %v1344, 0.2
      %v1791 = vmul.f32 %v1347, 0.2
      %v1792 = vmul.f32 %v1352, 0.2
      %v1793 = vmul.f32 %v1355, 0.2
      %v1794 = vmul.f32 %v1360, 0.2
      %v1795 = vmul.f32 %v1363, 0.2
      %v1796 = vmul.f32 %v1368, 0.2
      %v1797 = vmul.f32 %v1371, 0.2
      %v1798 = vmul.f32 %v1376, 0.2
      %v1799 = vmul.f32 %v1379, 0.2
      %v1800 = vmul.f32 %v1384, 0.2
      %v1801 = vmul.f32 %v1387, 0.2
      %v1802 = vmul.f32 %v1392, 0.2
      %v1803 = vmul.f32 %v1395, 0.2
      %v1804 = vmul.f32 %v1400, 0.2
      %v1805 = vmul.f32 %v1403, 0.2
      %v1806 = vmul.f32 %v1408, 0.2
      %v1807 = vmul.f32 %v1411, 0.2
      %v1808 = vmul.f32 %v1416, 0.2
      %v1809 = vmul.f32 %v1419, 0.2
      %v1810 = vmul.f32 %v1424, 0.2
      %v1811 = vmul.f32 %v1427, 0.2
      %v1812 = vmul.f32 %v1432, 0.2
      %v1813 = vmul.f32 %v1435, 0.2
      %v1814 = vmul.f32 %v1440, 0.2
      %v1815 = vmul.f32 %v1443, 0.2
      %v1816 = vmul.f32 %v1448, 0.2
      %v1817 = vmul.f32 %v1451, 0.2
      %v1818 = vmul.f32 %v1456, 0.2
      %v1819 = vmul.f32 %v1459, 0.2
      %v1820 = vmul.f32 %v1464, 0.2
      %v1821 = vmul.f32 %v1467, 0.2
      %v1822 = vmul.f32 %v1472, 0.2
      %v1823 = vmul.f32 %v1475, 0.2
      %v1824 = vmul.f32 %v1480, 0.2
      %v1825 = vmul.f32 %v1483, 0.2
      %v1826 = vmul.f32 %v1488, 0.2
      %v1827 = vmul.f32 %v1491, 0.2
      %v1828 = vmul.f32 %v1496, 0.2
      %v1829 = vmul.f32 %v1499, 0.2
      %v1830 = vmul.f32 %v1504, 0.2
      %v1831 = vmul.f32 %v1507, 0.2
      %v1832 = vmul.f32 %v1512, 0.2
      %v1833 = vmul.f32 %v1515, 0.2
      %v1834 = vmul.f32 %v1520, 0.2
      %v1835 = vmul.f32 %v1523, 0.2
      %v1836 = vmul.f32 %v1528, 0.2
      %v1837 = vmul.f32 %v1531, 0.2
      %v1838 = vmul.f32 %v1536, 0.2
      %v1839 = vmul.f32 %v1539, 0.2
      %v1840 = vmul.f32 %v1544, 0.2
      %v1841 = vmul.f32 %v1547, 0.2
      %v1842 = vmul.f32 %v1552, 0.2
      %v1843 = vmul.f32 %v1555, 0.2
      %v1844 = vmul.f32 %v1560, 0.2
      %v1845 = vmul.f32 %v1563, 0.2
      %v1846 = vmul.f32 %v1568, 0.2
      %v1847 = vmul.f32 %v1571, 0.2
      %v1848 = vmul.f32 %v1576, 0.2
      %v1849 = vmul.f32 %v1579, 0.2
      %v1850 = vmul.f32 %v1584, 0.2
      %v1851 = vmul.f32 %v1587, 0.2
      %v1852 = vmul.f32 %v1592, 0.2
      %v1853 = vmul.f32 %v1595, 0.2
      %v1854 = vsel %vm1598, %v1088, %v1726
      %v1855 = vsel %vm1599, %v1091, %v1727
      %v1856 = vsel %vm1600, %v1096, %v1728
      %v1857 = vsel %vm1601, %v1099, %v1729
      %v1858 = vsel %vm1602, %v1104, %v1730
      %v1859 = vsel %vm1603, %v1107, %v1731
      %v1860 = vsel %vm1604, %v1112, %v1732
      %v1861 = vsel %vm1605, %v1115, %v1733
      %v1862 = vsel %vm1606, %v1120, %v1734
      %v1863 = vsel %vm1607, %v1123, %v1735
      %v1864 = vsel %vm1608, %v1128, %v1736
      %v1865 = vsel %vm1609, %v1131, %v1737
      %v1866 = vsel %vm1610, %v1136, %v1738
      %v1867 = vsel %vm1611, %v1139, %v1739
      %v1868 = vsel %vm1612, %v1144, %v1740
      %v1869 = vsel %vm1613, %v1147, %v1741
      %v1870 = vsel %vm1614, %v1152, %v1742
      %v1871 = vsel %vm1615, %v1155, %v1743
      %v1872 = vsel %vm1616, %v1160, %v1744
      %v1873 = vsel %vm1617, %v1163, %v1745
      %v1874 = vsel %vm1618, %v1168, %v1746
      %v1875 = vsel %vm1619, %v1171, %v1747
      %v1876 = vsel %vm1620, %v1176, %v1748
      %v1877 = vsel %vm1621, %v1179, %v1749
      %v1878 = vsel %vm1622, %v1184, %v1750
      %v1879 = vsel %vm1623, %v1187, %v1751
      %v1880 = vsel %vm1624, %v1192, %v1752
      %v1881 = vsel %vm1625, %v1195, %v1753
      %v1882 = vsel %vm1626, %v1200, %v1754
      %v1883 = vsel %vm1627, %v1203, %v1755
      %v1884 = vsel %vm1628, %v1208, %v1756
      %v1885 = vsel %vm1629, %v1211, %v1757
      %v1886 = vsel %vm1630, %v1216, %v1758
      %v1887 = vsel %vm1631, %v1219, %v1759
      %v1888 = vsel %vm1632, %v1224, %v1760
      %v1889 = vsel %vm1633, %v1227, %v1761
      %v1890 = vsel %vm1634, %v1232, %v1762
      %v1891 = vsel %vm1635, %v1235, %v1763
      %v1892 = vsel %vm1636, %v1240, %v1764
      %v1893 = vsel %vm1637, %v1243, %v1765
      %v1894 = vsel %vm1638, %v1248, %v1766
      %v1895 = vsel %vm1639, %v1251, %v1767
      %v1896 = vsel %vm1640, %v1256, %v1768
      %v1897 = vsel %vm1641, %v1259, %v1769
      %v1898 = vsel %vm1642, %v1264, %v1770
      %v1899 = vsel %vm1643, %v1267, %v1771
      %v1900 = vsel %vm1644, %v1272, %v1772
      %v1901 = vsel %vm1645, %v1275, %v1773
      %v1902 = vsel %vm1646, %v1280, %v1774
      %v1903 = vsel %vm1647, %v1283, %v1775
      %v1904 = vsel %vm1648, %v1288, %v1776
      %v1905 = vsel %vm1649, %v1291, %v1777
      %v1906 = vsel %vm1650, %v1296, %v1778
      %v1907 = vsel %vm1651, %v1299, %v1779
      %v1908 = vsel %vm1652, %v1304, %v1780
      %v1909 = vsel %vm1653, %v1307, %v1781
      %v1910 = vsel %vm1654, %v1312, %v1782
      %v1911 = vsel %vm1655, %v1315, %v1783
      %v1912 = vsel %vm1656, %v1320, %v1784
      %v1913 = vsel %vm1657, %v1323, %v1785
      %v1914 = vsel %vm1658, %v1328, %v1786
      %v1915 = vsel %vm1659, %v1331, %v1787
      %v1916 = vsel %vm1660, %v1336, %v1788
      %v1917 = vsel %vm1661, %v1339, %v1789
      %v1918 = vsel %vm1662, %v1344, %v1790
      %v1919 = vsel %vm1663, %v1347, %v1791
      %v1920 = vsel %vm1664, %v1352, %v1792
      %v1921 = vsel %vm1665, %v1355, %v1793
      %v1922 = vsel %vm1666, %v1360, %v1794
      %v1923 = vsel %vm1667, %v1363, %v1795
      %v1924 = vsel %vm1668, %v1368, %v1796
      %v1925 = vsel %vm1669, %v1371, %v1797
      %v1926 = vsel %vm1670, %v1376, %v1798
      %v1927 = vsel %vm1671, %v1379, %v1799
      %v1928 = vsel %vm1672, %v1384, %v1800
      %v1929 = vsel %vm1673, %v1387, %v1801
      %v1930 = vsel %vm1674, %v1392, %v1802
      %v1931 = vsel %vm1675, %v1395, %v1803
      %v1932 = vsel %vm1676, %v1400, %v1804
      %v1933 = vsel %vm1677, %v1403, %v1805
      %v1934 = vsel %vm1678, %v1408, %v1806
      %v1935 = vsel %vm1679, %v1411, %v1807
      %v1936 = vsel %vm1680, %v1416, %v1808
      %v1937 = vsel %vm1681, %v1419, %v1809
      %v1938 = vsel %vm1682, %v1424, %v1810
      %v1939 = vsel %vm1683, %v1427, %v1811
      %v1940 = vsel %vm1684, %v1432, %v1812
      %v1941 = vsel %vm1685, %v1435, %v1813
      %v1942 = vsel %vm1686, %v1440, %v1814
      %v1943 = vsel %vm1687, %v1443, %v1815
      %v1944 = vsel %vm1688, %v1448, %v1816
      %v1945 = vsel %vm1689, %v1451, %v1817
      %v1946 = vsel %vm1690, %v1456, %v1818
      %v1947 = vsel %vm1691, %v1459, %v1819
      %v1948 = vsel %vm1692, %v1464, %v1820
      %v1949 = vsel %vm1693, %v1467, %v1821
      %v1950 = vsel %vm1694, %v1472, %v1822
      %v1951 = vsel %vm1695, %v1475, %v1823
      %v1952 = vsel %vm1696, %v1480, %v1824
      %v1953 = vsel %vm1697, %v1483, %v1825
      %v1954 = vsel %vm1698, %v1488, %v1826
      %v1955 = vsel %vm1699, %v1491, %v1827
      %v1956 = vsel %vm1700, %v1496, %v1828
      %v1957 = vsel %vm1701, %v1499, %v1829
      %v1958 = vsel %vm1702, %v1504, %v1830
      %v1959 = vsel %vm1703, %v1507, %v1831
      %v1960 = vsel %vm1704, %v1512, %v1832
      %v1961 = vsel %vm1705, %v1515, %v1833
      %v1962 = vsel %vm1706, %v1520, %v1834
      %v1963 = vsel %vm1707, %v1523, %v1835
      %v1964 = vsel %vm1708, %v1528, %v1836
      %v1965 = vsel %vm1709, %v1531, %v1837
      %v1966 = vsel %vm1710, %v1536, %v1838
      %v1967 = vsel %vm1711, %v1539, %v1839
      %v1968 = vsel %vm1712, %v1544, %v1840
      %v1969 = vsel %vm1713, %v1547, %v1841
      %v1970 = vsel %vm1714, %v1552, %v1842
      %v1971 = vsel %vm1715, %v1555, %v1843
      %v1972 = vsel %vm1716, %v1560, %v1844
      %v1973 = vsel %vm1717, %v1563, %v1845
      %v1974 = vsel %vm1718, %v1568, %v1846
      %v1975 = vsel %vm1719, %v1571, %v1847
      %v1976 = vsel %vm1720, %v1576, %v1848
      %v1977 = vsel %vm1721, %v1579, %v1849
      %v1978 = vsel %vm1722, %v1584, %v1850
      %v1979 = vsel %vm1723, %v1587, %v1851
      %v1980 = vsel %vm1724, %v1592, %v1852
      %v1981 = vsel %vm1725, %v1595, %v1853
      %v1983 = vrot.slane %v1981, 4
      %vm2112 = vcmask 1043456
      %v2113 = vrot.slane %v1854, 4
      %v2114 = vrot.slane %v1855, 4
      %v2115 = vsel %vm2112, %v2113, %v2114
      %v2116 = vrot.slane %v1856, 4
      %v2117 = vsel %vm2112, %v2114, %v2116
      %v2118 = vrot.slane %v1857, 4
      %v2119 = vsel %vm2112, %v2116, %v2118
      %v2120 = vrot.slane %v1858, 4
      %v2121 = vsel %vm2112, %v2118, %v2120
      %v2122 = vrot.slane %v1859, 4
      %v2123 = vsel %vm2112, %v2120, %v2122
      %v2124 = vrot.slane %v1860, 4
      %v2125 = vsel %vm2112, %v2122, %v2124
      %v2126 = vrot.slane %v1861, 4
      %v2127 = vsel %vm2112, %v2124, %v2126
      %v2128 = vrot.slane %v1862, 4
      %v2129 = vsel %vm2112, %v2126, %v2128
      %v2130 = vrot.slane %v1863, 4
      %v2131 = vsel %vm2112, %v2128, %v2130
      %v2132 = vrot.slane %v1864, 4
      %v2133 = vsel %vm2112, %v2130, %v2132
      %v2134 = vrot.slane %v1865, 4
      %v2135 = vsel %vm2112, %v2132, %v2134
      %v2136 = vrot.slane %v1866, 4
      %v2137 = vsel %vm2112, %v2134, %v2136
      %v2138 = vrot.slane %v1867, 4
      %v2139 = vsel %vm2112, %v2136, %v2138
      %v2140 = vrot.slane %v1868, 4
      %v2141 = vsel %vm2112, %v2138, %v2140
      %v2142 = vrot.slane %v1869, 4
      %v2143 = vsel %vm2112, %v2140, %v2142
      %v2144 = vrot.slane %v1870, 4
      %v2145 = vsel %vm2112, %v2142, %v2144
      %v2146 = vrot.slane %v1871, 4
      %v2147 = vsel %vm2112, %v2144, %v2146
      %v2148 = vrot.slane %v1872, 4
      %v2149 = vsel %vm2112, %v2146, %v2148
      %v2150 = vrot.slane %v1873, 4
      %v2151 = vsel %vm2112, %v2148, %v2150
      %v2152 = vrot.slane %v1874, 4
      %v2153 = vsel %vm2112, %v2150, %v2152
      %v2154 = vrot.slane %v1875, 4
      %v2155 = vsel %vm2112, %v2152, %v2154
      %v2156 = vrot.slane %v1876, 4
      %v2157 = vsel %vm2112, %v2154, %v2156
      %v2158 = vrot.slane %v1877, 4
      %v2159 = vsel %vm2112, %v2156, %v2158
      %v2160 = vrot.slane %v1878, 4
      %v2161 = vsel %vm2112, %v2158, %v2160
      %v2162 = vrot.slane %v1879, 4
      %v2163 = vsel %vm2112, %v2160, %v2162
      %v2164 = vrot.slane %v1880, 4
      %v2165 = vsel %vm2112, %v2162, %v2164
      %v2166 = vrot.slane %v1881, 4
      %v2167 = vsel %vm2112, %v2164, %v2166
      %v2168 = vrot.slane %v1882, 4
      %v2169 = vsel %vm2112, %v2166, %v2168
      %v2170 = vrot.slane %v1883, 4
      %v2171 = vsel %vm2112, %v2168, %v2170
      %v2172 = vrot.slane %v1884, 4
      %v2173 = vsel %vm2112, %v2170, %v2172
      %v2174 = vrot.slane %v1885, 4
      %v2175 = vsel %vm2112, %v2172, %v2174
      %v2176 = vrot.slane %v1886, 4
      %v2177 = vsel %vm2112, %v2174, %v2176
      %v2178 = vrot.slane %v1887, 4
      %v2179 = vsel %vm2112, %v2176, %v2178
      %v2180 = vrot.slane %v1888, 4
      %v2181 = vsel %vm2112, %v2178, %v2180
      %v2182 = vrot.slane %v1889, 4
      %v2183 = vsel %vm2112, %v2180, %v2182
      %v2184 = vrot.slane %v1890, 4
      %v2185 = vsel %vm2112, %v2182, %v2184
      %v2186 = vrot.slane %v1891, 4
      %v2187 = vsel %vm2112, %v2184, %v2186
      %v2188 = vrot.slane %v1892, 4
      %v2189 = vsel %vm2112, %v2186, %v2188
      %v2190 = vrot.slane %v1893, 4
      %v2191 = vsel %vm2112, %v2188, %v2190
      %v2192 = vrot.slane %v1894, 4
      %v2193 = vsel %vm2112, %v2190, %v2192
      %v2194 = vrot.slane %v1895, 4
      %v2195 = vsel %vm2112, %v2192, %v2194
      %v2196 = vrot.slane %v1896, 4
      %v2197 = vsel %vm2112, %v2194, %v2196
      %v2198 = vrot.slane %v1897, 4
      %v2199 = vsel %vm2112, %v2196, %v2198
      %v2200 = vrot.slane %v1898, 4
      %v2201 = vsel %vm2112, %v2198, %v2200
      %v2202 = vrot.slane %v1899, 4
      %v2203 = vsel %vm2112, %v2200, %v2202
      %v2204 = vrot.slane %v1900, 4
      %v2205 = vsel %vm2112, %v2202, %v2204
      %v2206 = vrot.slane %v1901, 4
      %v2207 = vsel %vm2112, %v2204, %v2206
      %v2208 = vrot.slane %v1902, 4
      %v2209 = vsel %vm2112, %v2206, %v2208
      %v2210 = vrot.slane %v1903, 4
      %v2211 = vsel %vm2112, %v2208, %v2210
      %v2212 = vrot.slane %v1904, 4
      %v2213 = vsel %vm2112, %v2210, %v2212
      %v2214 = vrot.slane %v1905, 4
      %v2215 = vsel %vm2112, %v2212, %v2214
      %v2216 = vrot.slane %v1906, 4
      %v2217 = vsel %vm2112, %v2214, %v2216
      %v2218 = vrot.slane %v1907, 4
      %v2219 = vsel %vm2112, %v2216, %v2218
      %v2220 = vrot.slane %v1908, 4
      %v2221 = vsel %vm2112, %v2218, %v2220
      %v2222 = vrot.slane %v1909, 4
      %v2223 = vsel %vm2112, %v2220, %v2222
      %v2224 = vrot.slane %v1910, 4
      %v2225 = vsel %vm2112, %v2222, %v2224
      %v2226 = vrot.slane %v1911, 4
      %v2227 = vsel %vm2112, %v2224, %v2226
      %v2228 = vrot.slane %v1912, 4
      %v2229 = vsel %vm2112, %v2226, %v2228
      %v2230 = vrot.slane %v1913, 4
      %v2231 = vsel %vm2112, %v2228, %v2230
      %v2232 = vrot.slane %v1914, 4
      %v2233 = vsel %vm2112, %v2230, %v2232
      %v2234 = vrot.slane %v1915, 4
      %v2235 = vsel %vm2112, %v2232, %v2234
      %v2236 = vrot.slane %v1916, 4
      %v2237 = vsel %vm2112, %v2234, %v2236
      %v2238 = vrot.slane %v1917, 4
      %v2239 = vsel %vm2112, %v2236, %v2238
      %v2240 = vrot.slane %v1918, 4
      %v2241 = vsel %vm2112, %v2238, %v2240
      %v2242 = vrot.slane %v1919, 4
      %v2243 = vsel %vm2112, %v2240, %v2242
      %v2244 = vrot.slane %v1920, 4
      %v2245 = vsel %vm2112, %v2242, %v2244
      %v2246 = vrot.slane %v1921, 4
      %v2247 = vsel %vm2112, %v2244, %v2246
      %v2248 = vrot.slane %v1922, 4
      %v2249 = vsel %vm2112, %v2246, %v2248
      %v2250 = vrot.slane %v1923, 4
      %v2251 = vsel %vm2112, %v2248, %v2250
      %v2252 = vrot.slane %v1924, 4
      %v2253 = vsel %vm2112, %v2250, %v2252
      %v2254 = vrot.slane %v1925, 4
      %v2255 = vsel %vm2112, %v2252, %v2254
      %v2256 = vrot.slane %v1926, 4
      %v2257 = vsel %vm2112, %v2254, %v2256
      %v2258 = vrot.slane %v1927, 4
      %v2259 = vsel %vm2112, %v2256, %v2258
      %v2260 = vrot.slane %v1928, 4
      %v2261 = vsel %vm2112, %v2258, %v2260
      %v2262 = vrot.slane %v1929, 4
      %v2263 = vsel %vm2112, %v2260, %v2262
      %v2264 = vrot.slane %v1930, 4
      %v2265 = vsel %vm2112, %v2262, %v2264
      %v2266 = vrot.slane %v1931, 4
      %v2267 = vsel %vm2112, %v2264, %v2266
      %v2268 = vrot.slane %v1932, 4
      %v2269 = vsel %vm2112, %v2266, %v2268
      %v2270 = vrot.slane %v1933, 4
      %v2271 = vsel %vm2112, %v2268, %v2270
      %v2272 = vrot.slane %v1934, 4
      %v2273 = vsel %vm2112, %v2270, %v2272
      %v2274 = vrot.slane %v1935, 4
      %v2275 = vsel %vm2112, %v2272, %v2274
      %v2276 = vrot.slane %v1936, 4
      %v2277 = vsel %vm2112, %v2274, %v2276
      %v2278 = vrot.slane %v1937, 4
      %v2279 = vsel %vm2112, %v2276, %v2278
      %v2280 = vrot.slane %v1938, 4
      %v2281 = vsel %vm2112, %v2278, %v2280
      %v2282 = vrot.slane %v1939, 4
      %v2283 = vsel %vm2112, %v2280, %v2282
      %v2284 = vrot.slane %v1940, 4
      %v2285 = vsel %vm2112, %v2282, %v2284
      %v2286 = vrot.slane %v1941, 4
      %v2287 = vsel %vm2112, %v2284, %v2286
      %v2288 = vrot.slane %v1942, 4
      %v2289 = vsel %vm2112, %v2286, %v2288
      %v2290 = vrot.slane %v1943, 4
      %v2291 = vsel %vm2112, %v2288, %v2290
      %v2292 = vrot.slane %v1944, 4
      %v2293 = vsel %vm2112, %v2290, %v2292
      %v2294 = vrot.slane %v1945, 4
      %v2295 = vsel %vm2112, %v2292, %v2294
      %v2296 = vrot.slane %v1946, 4
      %v2297 = vsel %vm2112, %v2294, %v2296
      %v2298 = vrot.slane %v1947, 4
      %v2299 = vsel %vm2112, %v2296, %v2298
      %v2300 = vrot.slane %v1948, 4
      %v2301 = vsel %vm2112, %v2298, %v2300
      %v2302 = vrot.slane %v1949, 4
      %v2303 = vsel %vm2112, %v2300, %v2302
      %v2304 = vrot.slane %v1950, 4
      %v2305 = vsel %vm2112, %v2302, %v2304
      %v2306 = vrot.slane %v1951, 4
      %v2307 = vsel %vm2112, %v2304, %v2306
      %v2308 = vrot.slane %v1952, 4
      %v2309 = vsel %vm2112, %v2306, %v2308
      %v2310 = vrot.slane %v1953, 4
      %v2311 = vsel %vm2112, %v2308, %v2310
      %v2312 = vrot.slane %v1954, 4
      %v2313 = vsel %vm2112, %v2310, %v2312
      %v2314 = vrot.slane %v1955, 4
      %v2315 = vsel %vm2112, %v2312, %v2314
      %v2316 = vrot.slane %v1956, 4
      %v2317 = vsel %vm2112, %v2314, %v2316
      %v2318 = vrot.slane %v1957, 4
      %v2319 = vsel %vm2112, %v2316, %v2318
      %v2320 = vrot.slane %v1958, 4
      %v2321 = vsel %vm2112, %v2318, %v2320
      %v2322 = vrot.slane %v1959, 4
      %v2323 = vsel %vm2112, %v2320, %v2322
      %v2324 = vrot.slane %v1960, 4
      %v2325 = vsel %vm2112, %v2322, %v2324
      %v2326 = vrot.slane %v1961, 4
      %v2327 = vsel %vm2112, %v2324, %v2326
      %v2328 = vrot.slane %v1962, 4
      %v2329 = vsel %vm2112, %v2326, %v2328
      %v2330 = vrot.slane %v1963, 4
      %v2331 = vsel %vm2112, %v2328, %v2330
      %v2332 = vrot.slane %v1964, 4
      %v2333 = vsel %vm2112, %v2330, %v2332
      %v2334 = vrot.slane %v1965, 4
      %v2335 = vsel %vm2112, %v2332, %v2334
      %v2336 = vrot.slane %v1966, 4
      %v2337 = vsel %vm2112, %v2334, %v2336
      %v2338 = vrot.slane %v1967, 4
      %v2339 = vsel %vm2112, %v2336, %v2338
      %v2340 = vrot.slane %v1968, 4
      %v2341 = vsel %vm2112, %v2338, %v2340
      %v2342 = vrot.slane %v1969, 4
      %v2343 = vsel %vm2112, %v2340, %v2342
      %v2344 = vrot.slane %v1970, 4
      %v2345 = vsel %vm2112, %v2342, %v2344
      %v2346 = vrot.slane %v1971, 4
      %v2347 = vsel %vm2112, %v2344, %v2346
      %v2348 = vrot.slane %v1972, 4
      %v2349 = vsel %vm2112, %v2346, %v2348
      %v2350 = vrot.slane %v1973, 4
      %v2351 = vsel %vm2112, %v2348, %v2350
      %v2352 = vrot.slane %v1974, 4
      %v2353 = vsel %vm2112, %v2350, %v2352
      %v2354 = vrot.slane %v1975, 4
      %v2355 = vsel %vm2112, %v2352, %v2354
      %v2356 = vrot.slane %v1976, 4
      %v2357 = vsel %vm2112, %v2354, %v2356
      %v2358 = vrot.slane %v1977, 4
      %v2359 = vsel %vm2112, %v2356, %v2358
      %v2360 = vrot.slane %v1978, 4
      %v2361 = vsel %vm2112, %v2358, %v2360
      %v2362 = vrot.slane %v1979, 4
      %v2363 = vsel %vm2112, %v2360, %v2362
      %v2364 = vrot.slane %v1980, 4
      %v2365 = vsel %vm2112, %v2362, %v2364
      %v2366 = vsel %vm2112, %v2364, %v1983
      %vm2495 = vcmask 1042432
      %v2496 = vsel %vm2495, 0.0, %v1983
      %v2497 = vsel %vm2112, %v2496, %v2113
      %v2498 = vsel %vm2495, %v1983, 0.0
      %vm2499 = vcmask 261120
      %2500 = vst.msk [vmem:[#allocation2] sm:$0xff] %vm2499, 0.0
      %2501 = vst.msk [vmem:[#allocation2 + $0x8] sm:$0xff] %vm2499, %v2497
      %2502 = vst.msk [vmem:[#allocation2 + $0x10] sm:$0xff] %vm2499, %v2115
      %2503 = vst.msk [vmem:[#allocation2 + $0x18] sm:$0xff] %vm2499, %v2117
      %2504 = vst.msk [vmem:[#allocation2 + $0x20] sm:$0xff] %vm2499, %v2119
      %2505 = vst.msk [vmem:[#allocation2 + $0x28] sm:$0xff] %vm2499, %v2121
      %2506 = vst.msk [vmem:[#allocation2 + $0x30] sm:$0xff] %vm2499, %v2123
      %2507 = vst.msk [vmem:[#allocation2 + $0x38] sm:$0xff] %vm2499, %v2125
      %2508 = vst.msk [vmem:[#allocation2 + $0x40] sm:$0xff] %vm2499, %v2127
      %2509 = vst.msk [vmem:[#allocation2 + $0x48] sm:$0xff] %vm2499, %v2129
      %2510 = vst.msk [vmem:[#allocation2 + $0x50] sm:$0xff] %vm2499, %v2131
      %2511 = vst.msk [vmem:[#allocation2 + $0x58] sm:$0xff] %vm2499, %v2133
      %2512 = vst.msk [vmem:[#allocation2 + $0x60] sm:$0xff] %vm2499, %v2135
      %2513 = vst.msk [vmem:[#allocation2 + $0x68] sm:$0xff] %vm2499, %v2137
      %2514 = vst.msk [vmem:[#allocation2 + $0x70] sm:$0xff] %vm2499, %v2139
      %2515 = vst.msk [vmem:[#allocation2 + $0x78] sm:$0xff] %vm2499, %v2141
      %2516 = vst.msk [vmem:[#allocation2 + $0x80] sm:$0xff] %vm2499, %v2143
      %2517 = vst.msk [vmem:[#allocation2 + $0x88] sm:$0xff] %vm2499, %v2145
      %2518 = vst.msk [vmem:[#allocation2 + $0x90] sm:$0xff] %vm2499, %v2147
      %2519 = vst.msk [vmem:[#allocation2 + $0x98] sm:$0xff] %vm2499, %v2149
      %2520 = vst.msk [vmem:[#allocation2 + $0xa0] sm:$0xff] %vm2499, %v2151
      %2521 = vst.msk [vmem:[#allocation2 + $0xa8] sm:$0xff] %vm2499, %v2153
      %2522 = vst.msk [vmem:[#allocation2 + $0xb0] sm:$0xff] %vm2499, %v2155
      %2523 = vst.msk [vmem:[#allocation2 + $0xb8] sm:$0xff] %vm2499, %v2157
      %2524 = vst.msk [vmem:[#allocation2 + $0xc0] sm:$0xff] %vm2499, %v2159
      %2525 = vst.msk [vmem:[#allocation2 + $0xc8] sm:$0xff] %vm2499, %v2161
      %2526 = vst.msk [vmem:[#allocation2 + $0xd0] sm:$0xff] %vm2499, %v2163
      %2527 = vst.msk [vmem:[#allocation2 + $0xd8] sm:$0xff] %vm2499, %v2165
      %2528 = vst.msk [vmem:[#allocation2 + $0xe0] sm:$0xff] %vm2499, %v2167
      %2529 = vst.msk [vmem:[#allocation2 + $0xe8] sm:$0xff] %vm2499, %v2169
      %2530 = vst.msk [vmem:[#allocation2 + $0xf0] sm:$0xff] %vm2499, %v2171
      %2531 = vst.msk [vmem:[#allocation2 + $0xf8] sm:$0xff] %vm2499, %v2173
      %2532 = vst.msk [vmem:[#allocation2 + $0x100] sm:$0xff] %vm2499, %v2175
      %2533 = vst.msk [vmem:[#allocation2 + $0x108] sm:$0xff] %vm2499, %v2177
      %2534 = vst.msk [vmem:[#allocation2 + $0x110] sm:$0xff] %vm2499, %v2179
      %2535 = vst.msk [vmem:[#allocation2 + $0x118] sm:$0xff] %vm2499, %v2181
      %2536 = vst.msk [vmem:[#allocation2 + $0x120] sm:$0xff] %vm2499, %v2183
      %2537 = vst.msk [vmem:[#allocation2 + $0x128] sm:$0xff] %vm2499, %v2185
      %2538 = vst.msk [vmem:[#allocation2 + $0x130] sm:$0xff] %vm2499, %v2187
      %2539 = vst.msk [vmem:[#allocation2 + $0x138] sm:$0xff] %vm2499, %v2189
      %2540 = vst.msk [vmem:[#allocation2 + $0x140] sm:$0xff] %vm2499, %v2191
      %2541 = vst.msk [vmem:[#allocation2 + $0x148] sm:$0xff] %vm2499, %v2193
      %2542 = vst.msk [vmem:[#allocation2 + $0x150] sm:$0xff] %vm2499, %v2195
      %2543 = vst.msk [vmem:[#allocation2 + $0x158] sm:$0xff] %vm2499, %v2197
      %2544 = vst.msk [vmem:[#allocation2 + $0x160] sm:$0xff] %vm2499, %v2199
      %2545 = vst.msk [vmem:[#allocation2 + $0x168] sm:$0xff] %vm2499, %v2201
      %2546 = vst.msk [vmem:[#allocation2 + $0x170] sm:$0xff] %vm2499, %v2203
      %2547 = vst.msk [vmem:[#allocation2 + $0x178] sm:$0xff] %vm2499, %v2205
      %2548 = vst.msk [vmem:[#allocation2 + $0x180] sm:$0xff] %vm2499, %v2207
      %2549 = vst.msk [vmem:[#allocation2 + $0x188] sm:$0xff] %vm2499, %v2209
      %2550 = vst.msk [vmem:[#allocation2 + $0x190] sm:$0xff] %vm2499, %v2211
      %2551 = vst.msk [vmem:[#allocation2 + $0x198] sm:$0xff] %vm2499, %v2213
      %2552 = vst.msk [vmem:[#allocation2 + $0x1a0] sm:$0xff] %vm2499, %v2215
      %2553 = vst.msk [vmem:[#allocation2 + $0x1a8] sm:$0xff] %vm2499, %v2217
      %2554 = vst.msk [vmem:[#allocation2 + $0x1b0] sm:$0xff] %vm2499, %v2219
      %2555 = vst.msk [vmem:[#allocation2 + $0x1b8] sm:$0xff] %vm2499, %v2221
      %2556 = vst.msk [vmem:[#allocation2 + $0x1c0] sm:$0xff] %vm2499, %v2223
      %2557 = vst.msk [vmem:[#allocation2 + $0x1c8] sm:$0xff] %vm2499, %v2225
      %2558 = vst.msk [vmem:[#allocation2 + $0x1d0] sm:$0xff] %vm2499, %v2227
      %2559 = vst.msk [vmem:[#allocation2 + $0x1d8] sm:$0xff] %vm2499, %v2229
      %2560 = vst.msk [vmem:[#allocation2 + $0x1e0] sm:$0xff] %vm2499, %v2231
      %2561 = vst.msk [vmem:[#allocation2 + $0x1e8] sm:$0xff] %vm2499, %v2233
      %2562 = vst.msk [vmem:[#allocation2 + $0x1f0] sm:$0xff] %vm2499, %v2235
      %2563 = vst.msk [vmem:[#allocation2 + $0x1f8] sm:$0xff] %vm2499, %v2237
      %2564 = vst.msk [vmem:[#allocation2 + $0x200] sm:$0xff] %vm2499, %v2239
      %2565 = vst.msk [vmem:[#allocation2 + $0x208] sm:$0xff] %vm2499, %v2241
      %2566 = vst.msk [vmem:[#allocation2 + $0x210] sm:$0xff] %vm2499, %v2243
      %2567 = vst.msk [vmem:[#allocation2 + $0x218] sm:$0xff] %vm2499, %v2245
      %2568 = vst.msk [vmem:[#allocation2 + $0x220] sm:$0xff] %vm2499, %v2247
      %2569 = vst.msk [vmem:[#allocation2 + $0x228] sm:$0xff] %vm2499, %v2249
      %2570 = vst.msk [vmem:[#allocation2 + $0x230] sm:$0xff] %vm2499, %v2251
      %2571 = vst.msk [vmem:[#allocation2 + $0x238] sm:$0xff] %vm2499, %v2253
      %2572 = vst.msk [vmem:[#allocation2 + $0x240] sm:$0xff] %vm2499, %v2255
      %2573 = vst.msk [vmem:[#allocation2 + $0x248] sm:$0xff] %vm2499, %v2257
      %2574 = vst.msk [vmem:[#allocation2 + $0x250] sm:$0xff] %vm2499, %v2259
      %2575 = vst.msk [vmem:[#allocation2 + $0x258] sm:$0xff] %vm2499, %v2261
      %2576 = vst.msk [vmem:[#allocation2 + $0x260] sm:$0xff] %vm2499, %v2263
      %2577 = vst.msk [vmem:[#allocation2 + $0x268] sm:$0xff] %vm2499, %v2265
      %2578 = vst.msk [vmem:[#allocation2 + $0x270] sm:$0xff] %vm2499, %v2267
      %2579 = vst.msk [vmem:[#allocation2 + $0x278] sm:$0xff] %vm2499, %v2269
      %2580 = vst.msk [vmem:[#allocation2 + $0x280] sm:$0xff] %vm2499, %v2271
      %2581 = vst.msk [vmem:[#allocation2 + $0x288] sm:$0xff] %vm2499, %v2273
      %2582 = vst.msk [vmem:[#allocation2 + $0x290] sm:$0xff] %vm2499, %v2275
      %2583 = vst.msk [vmem:[#allocation2 + $0x298] sm:$0xff] %vm2499, %v2277
      %2584 = vst.msk [vmem:[#allocation2 + $0x2a0] sm:$0xff] %vm2499, %v2279
      %2585 = vst.msk [vmem:[#allocation2 + $0x2a8] sm:$0xff] %vm2499, %v2281
      %2586 = vst.msk [vmem:[#allocation2 + $0x2b0] sm:$0xff] %vm2499, %v2283
      %2587 = vst.msk [vmem:[#allocation2 + $0x2b8] sm:$0xff] %vm2499, %v2285
      %2588 = vst.msk [vmem:[#allocation2 + $0x2c0] sm:$0xff] %vm2499, %v2287
      %2589 = vst.msk [vmem:[#allocation2 + $0x2c8] sm:$0xff] %vm2499, %v2289
      %2590 = vst.msk [vmem:[#allocation2 + $0x2d0] sm:$0xff] %vm2499, %v2291
      %2591 = vst.msk [vmem:[#allocation2 + $0x2d8] sm:$0xff] %vm2499, %v2293
      %2592 = vst.msk [vmem:[#allocation2 + $0x2e0] sm:$0xff] %vm2499, %v2295
      %2593 = vst.msk [vmem:[#allocation2 + $0x2e8] sm:$0xff] %vm2499, %v2297
      %2594 = vst.msk [vmem:[#allocation2 + $0x2f0] sm:$0xff] %vm2499, %v2299
      %2595 = vst.msk [vmem:[#allocation2 + $0x2f8] sm:$0xff] %vm2499, %v2301
      %2596 = vst.msk [vmem:[#allocation2 + $0x300] sm:$0xff] %vm2499, %v2303
      %2597 = vst.msk [vmem:[#allocation2 + $0x308] sm:$0xff] %vm2499, %v2305
      %2598 = vst.msk [vmem:[#allocation2 + $0x310] sm:$0xff] %vm2499, %v2307
      %2599 = vst.msk [vmem:[#allocation2 + $0x318] sm:$0xff] %vm2499, %v2309
      %2600 = vst.msk [vmem:[#allocation2 + $0x320] sm:$0xff] %vm2499, %v2311
      %2601 = vst.msk [vmem:[#allocation2 + $0x328] sm:$0xff] %vm2499, %v2313
      %2602 = vst.msk [vmem:[#allocation2 + $0x330] sm:$0xff] %vm2499, %v2315
      %2603 = vst.msk [vmem:[#allocation2 + $0x338] sm:$0xff] %vm2499, %v2317
      %2604 = vst.msk [vmem:[#allocation2 + $0x340] sm:$0xff] %vm2499, %v2319
      %2605 = vst.msk [vmem:[#allocation2 + $0x348] sm:$0xff] %vm2499, %v2321
      %2606 = vst.msk [vmem:[#allocation2 + $0x350] sm:$0xff] %vm2499, %v2323
      %2607 = vst.msk [vmem:[#allocation2 + $0x358] sm:$0xff] %vm2499, %v2325
      %2608 = vst.msk [vmem:[#allocation2 + $0x360] sm:$0xff] %vm2499, %v2327
      %2609 = vst.msk [vmem:[#allocation2 + $0x368] sm:$0xff] %vm2499, %v2329
      %2610 = vst.msk [vmem:[#allocation2 + $0x370] sm:$0xff] %vm2499, %v2331
      %2611 = vst.msk [vmem:[#allocation2 + $0x378] sm:$0xff] %vm2499, %v2333
      %2612 = vst.msk [vmem:[#allocation2 + $0x380] sm:$0xff] %vm2499, %v2335
      %2613 = vst.msk [vmem:[#allocation2 + $0x388] sm:$0xff] %vm2499, %v2337
      %2614 = vst.msk [vmem:[#allocation2 + $0x390] sm:$0xff] %vm2499, %v2339
      %2615 = vst.msk [vmem:[#allocation2 + $0x398] sm:$0xff] %vm2499, %v2341
      %2616 = vst.msk [vmem:[#allocation2 + $0x3a0] sm:$0xff] %vm2499, %v2343
      %2617 = vst.msk [vmem:[#allocation2 + $0x3a8] sm:$0xff] %vm2499, %v2345
      %2618 = vst.msk [vmem:[#allocation2 + $0x3b0] sm:$0xff] %vm2499, %v2347
      %2619 = vst.msk [vmem:[#allocation2 + $0x3b8] sm:$0xff] %vm2499, %v2349
      %2620 = vst.msk [vmem:[#allocation2 + $0x3c0] sm:$0xff] %vm2499, %v2351
      %2621 = vst.msk [vmem:[#allocation2 + $0x3c8] sm:$0xff] %vm2499, %v2353
      %2622 = vst.msk [vmem:[#allocation2 + $0x3d0] sm:$0xff] %vm2499, %v2355
      %2623 = vst.msk [vmem:[#allocation2 + $0x3d8] sm:$0xff] %vm2499, %v2357
      %2624 = vst.msk [vmem:[#allocation2 + $0x3e0] sm:$0xff] %vm2499, %v2359
      %2625 = vst.msk [vmem:[#allocation2 + $0x3e8] sm:$0xff] %vm2499, %v2361
      %2626 = vst.msk [vmem:[#allocation2 + $0x3f0] sm:$0xff] %vm2499, %v2363
      %2627 = vst.msk [vmem:[#allocation2 + $0x3f8] sm:$0xff] %vm2499, %v2365
      %2628 = vst.msk [vmem:[#allocation2 + $0x400] sm:$0xff] %vm2499, %v2366
      %2629 = vst.msk [vmem:[#allocation2 + $0x408] sm:$0xff] %vm2499, %v2498
      %2630 = vst.msk [vmem:[#allocation2 + $0x410] sm:$0xff] %vm2499, 0.0
      %v2631 = vld [vmem:[#allocation2] ss:$4 sm:$0xff]
      %s2632 = scalar_lea.vmem [#allocation2], 32
      %v2633 = vld [vmem:[%s2632] ss:$4 sm:$0xff]
      %s2634 = scalar_lea.vmem [#allocation2], 64
      %v2635 = vld [vmem:[%s2634] ss:$4 sm:$0xff]
      %s2636 = scalar_lea.vmem [#allocation2], 96
      %v2637 = vld [vmem:[%s2636] ss:$4 sm:$0xff]
      %s2638 = scalar_lea.vmem [#allocation2], 128
      %v2639 = vld [vmem:[%s2638] ss:$4 sm:$0xff]
      %s2640 = scalar_lea.vmem [#allocation2], 160
      %v2641 = vld [vmem:[%s2640] ss:$4 sm:$0xff]
      %s2642 = scalar_lea.vmem [#allocation2], 192
      %v2643 = vld [vmem:[%s2642] ss:$4 sm:$0xff]
      %s2644 = scalar_lea.vmem [#allocation2], 224
      %v2645 = vld [vmem:[%s2644] ss:$4 sm:$0xff]
      %s2646 = scalar_lea.vmem [#allocation2], 256
      %v2647 = vld [vmem:[%s2646] ss:$4 sm:$0xff]
      %s2648 = scalar_lea.vmem [#allocation2], 288
      %v2649 = vld [vmem:[%s2648] ss:$4 sm:$0xff]
      %s2650 = scalar_lea.vmem [#allocation2], 320
      %v2651 = vld [vmem:[%s2650] ss:$4 sm:$0xff]
      %s2652 = scalar_lea.vmem [#allocation2], 352
      %v2653 = vld [vmem:[%s2652] ss:$4 sm:$0xff]
      %s2654 = scalar_lea.vmem [#allocation2], 384
      %v2655 = vld [vmem:[%s2654] ss:$4 sm:$0xff]
      %s2656 = scalar_lea.vmem [#allocation2], 416
      %v2657 = vld [vmem:[%s2656] ss:$4 sm:$0xff]
      %s2658 = scalar_lea.vmem [#allocation2], 448
      %v2659 = vld [vmem:[%s2658] ss:$4 sm:$0xff]
      %s2660 = scalar_lea.vmem [#allocation2], 480
      %v2661 = vld [vmem:[%s2660] ss:$4 sm:$0xff]
      %s2662 = scalar_lea.vmem [#allocation2], 512
      %v2663 = vld [vmem:[%s2662] ss:$4 sm:$0xff]
      %s2664 = scalar_lea.vmem [#allocation2], 544
      %v2665 = vld [vmem:[%s2664] ss:$4 sm:$0xff]
      %s2666 = scalar_lea.vmem [#allocation2], 576
      %v2667 = vld [vmem:[%s2666] ss:$4 sm:$0xff]
      %s2668 = scalar_lea.vmem [#allocation2], 608
      %v2669 = vld [vmem:[%s2668] ss:$4 sm:$0xff]
      %s2670 = scalar_lea.vmem [#allocation2], 640
      %v2671 = vld [vmem:[%s2670] ss:$4 sm:$0xff]
      %s2672 = scalar_lea.vmem [#allocation2], 672
      %v2673 = vld [vmem:[%s2672] ss:$4 sm:$0xff]
      %s2674 = scalar_lea.vmem [#allocation2], 704
      %v2675 = vld [vmem:[%s2674] ss:$4 sm:$0xff]
      %s2676 = scalar_lea.vmem [#allocation2], 736
      %v2677 = vld [vmem:[%s2676] ss:$4 sm:$0xff]
      %s2678 = scalar_lea.vmem [#allocation2], 768
      %v2679 = vld [vmem:[%s2678] ss:$4 sm:$0xff]
      %s2680 = scalar_lea.vmem [#allocation2], 800
      %v2681 = vld [vmem:[%s2680] ss:$4 sm:$0xff]
      %s2682 = scalar_lea.vmem [#allocation2], 832
      %v2683 = vld [vmem:[%s2682] ss:$4 sm:$0xff]
      %s2684 = scalar_lea.vmem [#allocation2], 864
      %v2685 = vld [vmem:[%s2684] ss:$4 sm:$0xff]
      %s2686 = scalar_lea.vmem [#allocation2], 896
      %v2687 = vld [vmem:[%s2686] ss:$4 sm:$0xff]
      %s2688 = scalar_lea.vmem [#allocation2], 928
      %v2689 = vld [vmem:[%s2688] ss:$4 sm:$0xff]
      %s2690 = scalar_lea.vmem [#allocation2], 960
      %v2691 = vld [vmem:[%s2690] ss:$4 sm:$0xff]
      %s2692 = scalar_lea.vmem [#allocation2], 992
      %v2693 = vld [vmem:[%s2692] ss:$4 sm:$0xff]
      %s2694 = scalar_lea.vmem [#allocation2], 1024
      %v2695 = vld [vmem:[%s2694] ss:$4 sm:$0x3f]
      %s2696 = scalar_lea.vmem [#allocation2], 1
      %v2697 = vld [vmem:[%s2696] ss:$4 sm:$0xff]
      %s2698 = scalar_lea.vmem [#allocation2], 33
      %v2699 = vld [vmem:[%s2698] ss:$4 sm:$0xff]
      %s2700 = scalar_lea.vmem [#allocation2], 65
      %v2701 = vld [vmem:[%s2700] ss:$4 sm:$0xff]
      %s2702 = scalar_lea.vmem [#allocation2], 97
      %v2703 = vld [vmem:[%s2702] ss:$4 sm:$0xff]
      %s2704 = scalar_lea.vmem [#allocation2], 129
      %v2705 = vld [vmem:[%s2704] ss:$4 sm:$0xff]
      %s2706 = scalar_lea.vmem [#allocation2], 161
      %v2707 = vld [vmem:[%s2706] ss:$4 sm:$0xff]
      %s2708 = scalar_lea.vmem [#allocation2], 193
      %v2709 = vld [vmem:[%s2708] ss:$4 sm:$0xff]
      %s2710 = scalar_lea.vmem [#allocation2], 225
      %v2711 = vld [vmem:[%s2710] ss:$4 sm:$0xff]
      %s2712 = scalar_lea.vmem [#allocation2], 257
      %v2713 = vld [vmem:[%s2712] ss:$4 sm:$0xff]
      %s2714 = scalar_lea.vmem [#allocation2], 289
      %v2715 = vld [vmem:[%s2714] ss:$4 sm:$0xff]
      %s2716 = scalar_lea.vmem [#allocation2], 321
      %v2717 = vld [vmem:[%s2716] ss:$4 sm:$0xff]
      %s2718 = scalar_lea.vmem [#allocation2], 353
      %v2719 = vld [vmem:[%s2718] ss:$4 sm:$0xff]
      %s2720 = scalar_lea.vmem [#allocation2], 385
      %v2721 = vld [vmem:[%s2720] ss:$4 sm:$0xff]
      %s2722 = scalar_lea.vmem [#allocation2], 417
      %v2723 = vld [vmem:[%s2722] ss:$4 sm:$0xff]
      %s2724 = scalar_lea.vmem [#allocation2], 449
      %v2725 = vld [vmem:[%s2724] ss:$4 sm:$0xff]
      %s2726 = scalar_lea.vmem [#allocation2], 481
      %v2727 = vld [vmem:[%s2726] ss:$4 sm:$0xff]
      %s2728 = scalar_lea.vmem [#allocation2], 513
      %v2729 = vld [vmem:[%s2728] ss:$4 sm:$0xff]
      %s2730 = scalar_lea.vmem [#allocation2], 545
      %v2731 = vld [vmem:[%s2730] ss:$4 sm:$0xff]
      %s2732 = scalar_lea.vmem [#allocation2], 577
      %v2733 = vld [vmem:[%s2732] ss:$4 sm:$0xff]
      %s2734 = scalar_lea.vmem [#allocation2], 609
      %v2735 = vld [vmem:[%s2734] ss:$4 sm:$0xff]
      %s2736 = scalar_lea.vmem [#allocation2], 641
      %v2737 = vld [vmem:[%s2736] ss:$4 sm:$0xff]
      %s2738 = scalar_lea.vmem [#allocation2], 673
      %v2739 = vld [vmem:[%s2738] ss:$4 sm:$0xff]
      %s2740 = scalar_lea.vmem [#allocation2], 705
      %v2741 = vld [vmem:[%s2740] ss:$4 sm:$0xff]
      %s2742 = scalar_lea.vmem [#allocation2], 737
      %v2743 = vld [vmem:[%s2742] ss:$4 sm:$0xff]
      %s2744 = scalar_lea.vmem [#allocation2], 769
      %v2745 = vld [vmem:[%s2744] ss:$4 sm:$0xff]
      %s2746 = scalar_lea.vmem [#allocation2], 801
      %v2747 = vld [vmem:[%s2746] ss:$4 sm:$0xff]
      %s2748 = scalar_lea.vmem [#allocation2], 833
      %v2749 = vld [vmem:[%s2748] ss:$4 sm:$0xff]
      %s2750 = scalar_lea.vmem [#allocation2], 865
      %v2751 = vld [vmem:[%s2750] ss:$4 sm:$0xff]
      %s2752 = scalar_lea.vmem [#allocation2], 897
      %v2753 = vld [vmem:[%s2752] ss:$4 sm:$0xff]
      %s2754 = scalar_lea.vmem [#allocation2], 929
      %v2755 = vld [vmem:[%s2754] ss:$4 sm:$0xff]
      %s2756 = scalar_lea.vmem [#allocation2], 961
      %v2757 = vld [vmem:[%s2756] ss:$4 sm:$0xff]
      %s2758 = scalar_lea.vmem [#allocation2], 993
      %v2759 = vld [vmem:[%s2758] ss:$4 sm:$0xff]
      %s2760 = scalar_lea.vmem [#allocation2], 1025
      %v2761 = vld [vmem:[%s2760] ss:$4 sm:$0x3f]
      %s2762 = scalar_lea.vmem [#allocation2], 2
      %v2763 = vld [vmem:[%s2762] ss:$4 sm:$0xff]
      %s2764 = scalar_lea.vmem [#allocation2], 34
      %v2765 = vld [vmem:[%s2764] ss:$4 sm:$0xff]
      %s2766 = scalar_lea.vmem [#allocation2], 66
      %v2767 = vld [vmem:[%s2766] ss:$4 sm:$0xff]
      %s2768 = scalar_lea.vmem [#allocation2], 98
      %v2769 = vld [vmem:[%s2768] ss:$4 sm:$0xff]
      %s2770 = scalar_lea.vmem [#allocation2], 130
      %v2771 = vld [vmem:[%s2770] ss:$4 sm:$0xff]
      %s2772 = scalar_lea.vmem [#allocation2], 162
      %v2773 = vld [vmem:[%s2772] ss:$4 sm:$0xff]
      %s2774 = scalar_lea.vmem [#allocation2], 194
      %v2775 = vld [vmem:[%s2774] ss:$4 sm:$0xff]
      %s2776 = scalar_lea.vmem [#allocation2], 226
      %v2777 = vld [vmem:[%s2776] ss:$4 sm:$0xff]
      %s2778 = scalar_lea.vmem [#allocation2], 258
      %v2779 = vld [vmem:[%s2778] ss:$4 sm:$0xff]
      %s2780 = scalar_lea.vmem [#allocation2], 290
      %v2781 = vld [vmem:[%s2780] ss:$4 sm:$0xff]
      %s2782 = scalar_lea.vmem [#allocation2], 322
      %v2783 = vld [vmem:[%s2782] ss:$4 sm:$0xff]
      %s2784 = scalar_lea.vmem [#allocation2], 354
      %v2785 = vld [vmem:[%s2784] ss:$4 sm:$0xff]
      %s2786 = scalar_lea.vmem [#allocation2], 386
      %v2787 = vld [vmem:[%s2786] ss:$4 sm:$0xff]
      %s2788 = scalar_lea.vmem [#allocation2], 418
      %v2789 = vld [vmem:[%s2788] ss:$4 sm:$0xff]
      %s2790 = scalar_lea.vmem [#allocation2], 450
      %v2791 = vld [vmem:[%s2790] ss:$4 sm:$0xff]
      %s2792 = scalar_lea.vmem [#allocation2], 482
      %v2793 = vld [vmem:[%s2792] ss:$4 sm:$0xff]
      %s2794 = scalar_lea.vmem [#allocation2], 514
      %v2795 = vld [vmem:[%s2794] ss:$4 sm:$0xff]
      %s2796 = scalar_lea.vmem [#allocation2], 546
      %v2797 = vld [vmem:[%s2796] ss:$4 sm:$0xff]
      %s2798 = scalar_lea.vmem [#allocation2], 578
      %v2799 = vld [vmem:[%s2798] ss:$4 sm:$0xff]
      %s2800 = scalar_lea.vmem [#allocation2], 610
      %v2801 = vld [vmem:[%s2800] ss:$4 sm:$0xff]
      %s2802 = scalar_lea.vmem [#allocation2], 642
      %v2803 = vld [vmem:[%s2802] ss:$4 sm:$0xff]
      %s2804 = scalar_lea.vmem [#allocation2], 674
      %v2805 = vld [vmem:[%s2804] ss:$4 sm:$0xff]
      %s2806 = scalar_lea.vmem [#allocation2], 706
      %v2807 = vld [vmem:[%s2806] ss:$4 sm:$0xff]
      %s2808 = scalar_lea.vmem [#allocation2], 738
      %v2809 = vld [vmem:[%s2808] ss:$4 sm:$0xff]
      %s2810 = scalar_lea.vmem [#allocation2], 770
      %v2811 = vld [vmem:[%s2810] ss:$4 sm:$0xff]
      %s2812 = scalar_lea.vmem [#allocation2], 802
      %v2813 = vld [vmem:[%s2812] ss:$4 sm:$0xff]
      %s2814 = scalar_lea.vmem [#allocation2], 834
      %v2815 = vld [vmem:[%s2814] ss:$4 sm:$0xff]
      %s2816 = scalar_lea.vmem [#allocation2], 866
      %v2817 = vld [vmem:[%s2816] ss:$4 sm:$0xff]
      %s2818 = scalar_lea.vmem [#allocation2], 898
      %v2819 = vld [vmem:[%s2818] ss:$4 sm:$0xff]
      %s2820 = scalar_lea.vmem [#allocation2], 930
      %v2821 = vld [vmem:[%s2820] ss:$4 sm:$0xff]
      %s2822 = scalar_lea.vmem [#allocation2], 962
      %v2823 = vld [vmem:[%s2822] ss:$4 sm:$0xff]
      %s2824 = scalar_lea.vmem [#allocation2], 994
      %v2825 = vld [vmem:[%s2824] ss:$4 sm:$0xff]
      %s2826 = scalar_lea.vmem [#allocation2], 1026
      %v2827 = vld [vmem:[%s2826] ss:$4 sm:$0x3f]
      %s2828 = scalar_lea.vmem [#allocation2], 3
      %v2829 = vld [vmem:[%s2828] ss:$4 sm:$0xff]
      %s2830 = scalar_lea.vmem [#allocation2], 35
      %v2831 = vld [vmem:[%s2830] ss:$4 sm:$0xff]
      %s2832 = scalar_lea.vmem [#allocation2], 67
      %v2833 = vld [vmem:[%s2832] ss:$4 sm:$0xff]
      %s2834 = scalar_lea.vmem [#allocation2], 99
      %v2835 = vld [vmem:[%s2834] ss:$4 sm:$0xff]
      %s2836 = scalar_lea.vmem [#allocation2], 131
      %v2837 = vld [vmem:[%s2836] ss:$4 sm:$0xff]
      %s2838 = scalar_lea.vmem [#allocation2], 163
      %v2839 = vld [vmem:[%s2838] ss:$4 sm:$0xff]
      %s2840 = scalar_lea.vmem [#allocation2], 195
      %v2841 = vld [vmem:[%s2840] ss:$4 sm:$0xff]
      %s2842 = scalar_lea.vmem [#allocation2], 227
      %v2843 = vld [vmem:[%s2842] ss:$4 sm:$0xff]
      %s2844 = scalar_lea.vmem [#allocation2], 259
      %v2845 = vld [vmem:[%s2844] ss:$4 sm:$0xff]
      %s2846 = scalar_lea.vmem [#allocation2], 291
      %v2847 = vld [vmem:[%s2846] ss:$4 sm:$0xff]
      %s2848 = scalar_lea.vmem [#allocation2], 323
      %v2849 = vld [vmem:[%s2848] ss:$4 sm:$0xff]
      %s2850 = scalar_lea.vmem [#allocation2], 355
      %v2851 = vld [vmem:[%s2850] ss:$4 sm:$0xff]
      %s2852 = scalar_lea.vmem [#allocation2], 387
      %v2853 = vld [vmem:[%s2852] ss:$4 sm:$0xff]
      %s2854 = scalar_lea.vmem [#allocation2], 419
      %v2855 = vld [vmem:[%s2854] ss:$4 sm:$0xff]
      %s2856 = scalar_lea.vmem [#allocation2], 451
      %v2857 = vld [vmem:[%s2856] ss:$4 sm:$0xff]
      %s2858 = scalar_lea.vmem [#allocation2], 483
      %v2859 = vld [vmem:[%s2858] ss:$4 sm:$0xff]
      %s2860 = scalar_lea.vmem [#allocation2], 515
      %v2861 = vld [vmem:[%s2860] ss:$4 sm:$0xff]
      %s2862 = scalar_lea.vmem [#allocation2], 547
      %v2863 = vld [vmem:[%s2862] ss:$4 sm:$0xff]
      %s2864 = scalar_lea.vmem [#allocation2], 579
      %v2865 = vld [vmem:[%s2864] ss:$4 sm:$0xff]
      %s2866 = scalar_lea.vmem [#allocation2], 611
      %v2867 = vld [vmem:[%s2866] ss:$4 sm:$0xff]
      %s2868 = scalar_lea.vmem [#allocation2], 643
      %v2869 = vld [vmem:[%s2868] ss:$4 sm:$0xff]
      %s2870 = scalar_lea.vmem [#allocation2], 675
      %v2871 = vld [vmem:[%s2870] ss:$4 sm:$0xff]
      %s2872 = scalar_lea.vmem [#allocation2], 707
      %v2873 = vld [vmem:[%s2872] ss:$4 sm:$0xff]
      %s2874 = scalar_lea.vmem [#allocation2], 739
      %v2875 = vld [vmem:[%s2874] ss:$4 sm:$0xff]
      %s2876 = scalar_lea.vmem [#allocation2], 771
      %v2877 = vld [vmem:[%s2876] ss:$4 sm:$0xff]
      %s2878 = scalar_lea.vmem [#allocation2], 803
      %v2879 = vld [vmem:[%s2878] ss:$4 sm:$0xff]
      %s2880 = scalar_lea.vmem [#allocation2], 835
      %v2881 = vld [vmem:[%s2880] ss:$4 sm:$0xff]
      %s2882 = scalar_lea.vmem [#allocation2], 867
      %v2883 = vld [vmem:[%s2882] ss:$4 sm:$0xff]
      %s2884 = scalar_lea.vmem [#allocation2], 899
      %v2885 = vld [vmem:[%s2884] ss:$4 sm:$0xff]
      %s2886 = scalar_lea.vmem [#allocation2], 931
      %v2887 = vld [vmem:[%s2886] ss:$4 sm:$0xff]
      %s2888 = scalar_lea.vmem [#allocation2], 963
      %v2889 = vld [vmem:[%s2888] ss:$4 sm:$0xff]
      %s2890 = scalar_lea.vmem [#allocation2], 995
      %v2891 = vld [vmem:[%s2890] ss:$4 sm:$0xff]
      %s2892 = scalar_lea.vmem [#allocation2], 1027
      %v2893 = vld [vmem:[%s2892] ss:$4 sm:$0x3f]
      %2927 = vrot.lane.b32.xlu0 %v2697, 32
      %v2928 = vpop.permute.xlu0 %2927
      %2929 = vrot.lane.b32.xlu0 %v2699, 32
      %v2930 = vpop.permute.xlu0 %2929
      %2931 = vrot.lane.b32.xlu0 %v2701, 32
      %v2932 = vpop.permute.xlu0 %2931
      %2933 = vrot.lane.b32.xlu0 %v2703, 32
      %v2934 = vpop.permute.xlu0 %2933
      %2935 = vrot.lane.b32.xlu0 %v2705, 32
      %v2936 = vpop.permute.xlu0 %2935
      %2937 = vrot.lane.b32.xlu0 %v2707, 32
      %v2938 = vpop.permute.xlu0 %2937
      %2939 = vrot.lane.b32.xlu0 %v2709, 32
      %v2940 = vpop.permute.xlu0 %2939
      %2941 = vrot.lane.b32.xlu0 %v2711, 32
      %v2942 = vpop.permute.xlu0 %2941
      %2943 = vrot.lane.b32.xlu0 %v2713, 32
      %v2944 = vpop.permute.xlu0 %2943
      %2945 = vrot.lane.b32.xlu0 %v2715, 32
      %v2946 = vpop.permute.xlu0 %2945
      %2947 = vrot.lane.b32.xlu0 %v2717, 32
      %v2948 = vpop.permute.xlu0 %2947
      %2949 = vrot.lane.b32.xlu0 %v2719, 32
      %v2950 = vpop.permute.xlu0 %2949
      %2951 = vrot.lane.b32.xlu0 %v2721, 32
      %v2952 = vpop.permute.xlu0 %2951
      %2953 = vrot.lane.b32.xlu0 %v2723, 32
      %v2954 = vpop.permute.xlu0 %2953
      %2955 = vrot.lane.b32.xlu0 %v2725, 32
      %v2956 = vpop.permute.xlu0 %2955
      %2957 = vrot.lane.b32.xlu0 %v2727, 32
      %v2958 = vpop.permute.xlu0 %2957
      %2959 = vrot.lane.b32.xlu0 %v2729, 32
      %v2960 = vpop.permute.xlu0 %2959
      %2961 = vrot.lane.b32.xlu0 %v2731, 32
      %v2962 = vpop.permute.xlu0 %2961
      %2963 = vrot.lane.b32.xlu0 %v2733, 32
      %v2964 = vpop.permute.xlu0 %2963
      %2965 = vrot.lane.b32.xlu0 %v2735, 32
      %v2966 = vpop.permute.xlu0 %2965
      %2967 = vrot.lane.b32.xlu0 %v2737, 32
      %v2968 = vpop.permute.xlu0 %2967
      %2969 = vrot.lane.b32.xlu0 %v2739, 32
      %v2970 = vpop.permute.xlu0 %2969
      %2971 = vrot.lane.b32.xlu0 %v2741, 32
      %v2972 = vpop.permute.xlu0 %2971
      %2973 = vrot.lane.b32.xlu0 %v2743, 32
      %v2974 = vpop.permute.xlu0 %2973
      %2975 = vrot.lane.b32.xlu0 %v2745, 32
      %v2976 = vpop.permute.xlu0 %2975
      %2977 = vrot.lane.b32.xlu0 %v2747, 32
      %v2978 = vpop.permute.xlu0 %2977
      %2979 = vrot.lane.b32.xlu0 %v2749, 32
      %v2980 = vpop.permute.xlu0 %2979
      %2981 = vrot.lane.b32.xlu0 %v2751, 32
      %v2982 = vpop.permute.xlu0 %2981
      %2983 = vrot.lane.b32.xlu0 %v2753, 32
      %v2984 = vpop.permute.xlu0 %2983
      %2985 = vrot.lane.b32.xlu0 %v2755, 32
      %v2986 = vpop.permute.xlu0 %2985
      %2987 = vrot.lane.b32.xlu0 %v2757, 32
      %v2988 = vpop.permute.xlu0 %2987
      %2989 = vrot.lane.b32.xlu0 %v2759, 32
      %v2990 = vpop.permute.xlu0 %2989
      %2991 = vrot.lane.b32.xlu0 %v2761, 32
      %v2992 = vpop.permute.xlu0 %2991
      %3059 = vrot.lane.b32.xlu0 %v2763, 64
      %v3060 = vpop.permute.xlu0 %3059
      %3061 = vrot.lane.b32.xlu0 %v2765, 64
      %v3062 = vpop.permute.xlu0 %3061
      %3063 = vrot.lane.b32.xlu0 %v2767, 64
      %v3064 = vpop.permute.xlu0 %3063
      %3065 = vrot.lane.b32.xlu0 %v2769, 64
      %v3066 = vpop.permute.xlu0 %3065
      %3067 = vrot.lane.b32.xlu0 %v2771, 64
      %v3068 = vpop.permute.xlu0 %3067
      %3069 = vrot.lane.b32.xlu0 %v2773, 64
      %v3070 = vpop.permute.xlu0 %3069
      %3071 = vrot.lane.b32.xlu0 %v2775, 64
      %v3072 = vpop.permute.xlu0 %3071
      %3073 = vrot.lane.b32.xlu0 %v2777, 64
      %v3074 = vpop.permute.xlu0 %3073
      %3075 = vrot.lane.b32.xlu0 %v2779, 64
      %v3076 = vpop.permute.xlu0 %3075
      %3077 = vrot.lane.b32.xlu0 %v2781, 64
      %v3078 = vpop.permute.xlu0 %3077
      %3079 = vrot.lane.b32.xlu0 %v2783, 64
      %v3080 = vpop.permute.xlu0 %3079
      %3081 = vrot.lane.b32.xlu0 %v2785, 64
      %v3082 = vpop.permute.xlu0 %3081
      %3083 = vrot.lane.b32.xlu0 %v2787, 64
      %v3084 = vpop.permute.xlu0 %3083
      %3085 = vrot.lane.b32.xlu0 %v2789, 64
      %v3086 = vpop.permute.xlu0 %3085
      %3087 = vrot.lane.b32.xlu0 %v2791, 64
      %v3088 = vpop.permute.xlu0 %3087
      %3089 = vrot.lane.b32.xlu0 %v2793, 64
      %v3090 = vpop.permute.xlu0 %3089
      %3091 = vrot.lane.b32.xlu0 %v2795, 64
      %v3092 = vpop.permute.xlu0 %3091
      %3093 = vrot.lane.b32.xlu0 %v2797, 64
      %v3094 = vpop.permute.xlu0 %3093
      %3095 = vrot.lane.b32.xlu0 %v2799, 64
      %v3096 = vpop.permute.xlu0 %3095
      %3097 = vrot.lane.b32.xlu0 %v2801, 64
      %v3098 = vpop.permute.xlu0 %3097
      %3099 = vrot.lane.b32.xlu0 %v2803, 64
      %v3100 = vpop.permute.xlu0 %3099
      %3101 = vrot.lane.b32.xlu0 %v2805, 64
      %v3102 = vpop.permute.xlu0 %3101
      %3103 = vrot.lane.b32.xlu0 %v2807, 64
      %v3104 = vpop.permute.xlu0 %3103
      %3105 = vrot.lane.b32.xlu0 %v2809, 64
      %v3106 = vpop.permute.xlu0 %3105
      %3107 = vrot.lane.b32.xlu0 %v2811, 64
      %v3108 = vpop.permute.xlu0 %3107
      %3109 = vrot.lane.b32.xlu0 %v2813, 64
      %v3110 = vpop.permute.xlu0 %3109
      %3111 = vrot.lane.b32.xlu0 %v2815, 64
      %v3112 = vpop.permute.xlu0 %3111
      %3113 = vrot.lane.b32.xlu0 %v2817, 64
      %v3114 = vpop.permute.xlu0 %3113
      %3115 = vrot.lane.b32.xlu0 %v2819, 64
      %v3116 = vpop.permute.xlu0 %3115
      %3117 = vrot.lane.b32.xlu0 %v2821, 64
      %v3118 = vpop.permute.xlu0 %3117
      %3119 = vrot.lane.b32.xlu0 %v2823, 64
      %v3120 = vpop.permute.xlu0 %3119
      %3121 = vrot.lane.b32.xlu0 %v2825, 64
      %v3122 = vpop.permute.xlu0 %3121
      %3123 = vrot.lane.b32.xlu0 %v2827, 64
      %v3124 = vpop.permute.xlu0 %3123
      %3191 = vrot.lane.b32.xlu0 %v2829, 96
      %v3192 = vpop.permute.xlu0 %3191
      %3193 = vrot.lane.b32.xlu0 %v2831, 96
      %v3194 = vpop.permute.xlu0 %3193
      %3195 = vrot.lane.b32.xlu0 %v2833, 96
      %v3196 = vpop.permute.xlu0 %3195
      %3197 = vrot.lane.b32.xlu0 %v2835, 96
      %v3198 = vpop.permute.xlu0 %3197
      %3199 = vrot.lane.b32.xlu0 %v2837, 96
      %v3200 = vpop.permute.xlu0 %3199
      %3201 = vrot.lane.b32.xlu0 %v2839, 96
      %v3202 = vpop.permute.xlu0 %3201
      %3203 = vrot.lane.b32.xlu0 %v2841, 96
      %v3204 = vpop.permute.xlu0 %3203
      %3205 = vrot.lane.b32.xlu0 %v2843, 96
      %v3206 = vpop.permute.xlu0 %3205
      %3207 = vrot.lane.b32.xlu0 %v2845, 96
      %v3208 = vpop.permute.xlu0 %3207
      %3209 = vrot.lane.b32.xlu0 %v2847, 96
      %v3210 = vpop.permute.xlu0 %3209
      %3211 = vrot.lane.b32.xlu0 %v2849, 96
      %v3212 = vpop.permute.xlu0 %3211
      %3213 = vrot.lane.b32.xlu0 %v2851, 96
      %v3214 = vpop.permute.xlu0 %3213
      %3215 = vrot.lane.b32.xlu0 %v2853, 96
      %v3216 = vpop.permute.xlu0 %3215
      %3217 = vrot.lane.b32.xlu0 %v2855, 96
      %v3218 = vpop.permute.xlu0 %3217
      %3219 = vrot.lane.b32.xlu0 %v2857, 96
      %v3220 = vpop.permute.xlu0 %3219
      %3221 = vrot.lane.b32.xlu0 %v2859, 96
      %v3222 = vpop.permute.xlu0 %3221
      %3223 = vrot.lane.b32.xlu0 %v2861, 96
      %v3224 = vpop.permute.xlu0 %3223
      %3225 = vrot.lane.b32.xlu0 %v2863, 96
      %v3226 = vpop.permute.xlu0 %3225
      %3227 = vrot.lane.b32.xlu0 %v2865, 96
      %v3228 = vpop.permute.xlu0 %3227
      %3229 = vrot.lane.b32.xlu0 %v2867, 96
      %v3230 = vpop.permute.xlu0 %3229
      %3231 = vrot.lane.b32.xlu0 %v2869, 96
      %v3232 = vpop.permute.xlu0 %3231
      %3233 = vrot.lane.b32.xlu0 %v2871, 96
      %v3234 = vpop.permute.xlu0 %3233
      %3235 = vrot.lane.b32.xlu0 %v2873, 96
      %v3236 = vpop.permute.xlu0 %3235
      %3237 = vrot.lane.b32.xlu0 %v2875, 96
      %v3238 = vpop.permute.xlu0 %3237
      %3239 = vrot.lane.b32.xlu0 %v2877, 96
      %v3240 = vpop.permute.xlu0 %3239
      %3241 = vrot.lane.b32.xlu0 %v2879, 96
      %v3242 = vpop.permute.xlu0 %3241
      %3243 = vrot.lane.b32.xlu0 %v2881, 96
      %v3244 = vpop.permute.xlu0 %3243
      %3245 = vrot.lane.b32.xlu0 %v2883, 96
      %v3246 = vpop.permute.xlu0 %3245
      %3247 = vrot.lane.b32.xlu0 %v2885, 96
      %v3248 = vpop.permute.xlu0 %3247
      %3249 = vrot.lane.b32.xlu0 %v2887, 96
      %v3250 = vpop.permute.xlu0 %3249
      %3251 = vrot.lane.b32.xlu0 %v2889, 96
      %v3252 = vpop.permute.xlu0 %3251
      %3253 = vrot.lane.b32.xlu0 %v2891, 96
      %v3254 = vpop.permute.xlu0 %3253
      %3255 = vrot.lane.b32.xlu0 %v2893, 96
      %v3256 = vpop.permute.xlu0 %3255
      %v3290 = vsel %vm2499, %v2631, %v2928
      %v3291 = vsel %vm2499, %v2633, %v2930
      %v3292 = vsel %vm2499, %v2635, %v2932
      %v3293 = vsel %vm2499, %v2637, %v2934
      %v3294 = vsel %vm2499, %v2639, %v2936
      %v3295 = vsel %vm2499, %v2641, %v2938
      %v3296 = vsel %vm2499, %v2643, %v2940
      %v3297 = vsel %vm2499, %v2645, %v2942
      %v3298 = vsel %vm2499, %v2647, %v2944
      %v3299 = vsel %vm2499, %v2649, %v2946
      %v3300 = vsel %vm2499, %v2651, %v2948
      %v3301 = vsel %vm2499, %v2653, %v2950
      %v3302 = vsel %vm2499, %v2655, %v2952
      %v3303 = vsel %vm2499, %v2657, %v2954
      %v3304 = vsel %vm2499, %v2659, %v2956
      %v3305 = vsel %vm2499, %v2661, %v2958
      %v3306 = vsel %vm2499, %v2663, %v2960
      %v3307 = vsel %vm2499, %v2665, %v2962
      %v3308 = vsel %vm2499, %v2667, %v2964
      %v3309 = vsel %vm2499, %v2669, %v2966
      %v3310 = vsel %vm2499, %v2671, %v2968
      %v3311 = vsel %vm2499, %v2673, %v2970
      %v3312 = vsel %vm2499, %v2675, %v2972
      %v3313 = vsel %vm2499, %v2677, %v2974
      %v3314 = vsel %vm2499, %v2679, %v2976
      %v3315 = vsel %vm2499, %v2681, %v2978
      %v3316 = vsel %vm2499, %v2683, %v2980
      %v3317 = vsel %vm2499, %v2685, %v2982
      %v3318 = vsel %vm2499, %v2687, %v2984
      %v3319 = vsel %vm2499, %v2689, %v2986
      %v3320 = vsel %vm2499, %v2691, %v2988
      %v3321 = vsel %vm2499, %v2693, %v2990
      %v3322 = vsel %vm2499, %v2695, %v2992
      %vm3323 = vcmask 523264
      %v3324 = vsel %vm3323, %v3290, %v3060
      %v3325 = vsel %vm3323, %v3291, %v3062
      %v3326 = vsel %vm3323, %v3292, %v3064
      %v3327 = vsel %vm3323, %v3293, %v3066
      %v3328 = vsel %vm3323, %v3294, %v3068
      %v3329 = vsel %vm3323, %v3295, %v3070
      %v3330 = vsel %vm3323, %v3296, %v3072
      %v3331 = vsel %vm3323, %v3297, %v3074
      %v3332 = vsel %vm3323, %v3298, %v3076
      %v3333 = vsel %vm3323, %v3299, %v3078
      %v3334 = vsel %vm3323, %v3300, %v3080
      %v3335 = vsel %vm3323, %v3301, %v3082
      %v3336 = vsel %vm3323, %v3302, %v3084
      %v3337 = vsel %vm3323, %v3303, %v3086
      %v3338 = vsel %vm3323, %v3304, %v3088
      %v3339 = vsel %vm3323, %v3305, %v3090
      %v3340 = vsel %vm3323, %v3306, %v3092
      %v3341 = vsel %vm3323, %v3307, %v3094
      %v3342 = vsel %vm3323, %v3308, %v3096
      %v3343 = vsel %vm3323, %v3309, %v3098
      %v3344 = vsel %vm3323, %v3310, %v3100
      %v3345 = vsel %vm3323, %v3311, %v3102
      %v3346 = vsel %vm3323, %v3312, %v3104
      %v3347 = vsel %vm3323, %v3313, %v3106
      %v3348 = vsel %vm3323, %v3314, %v3108
      %v3349 = vsel %vm3323, %v3315, %v3110
      %v3350 = vsel %vm3323, %v3316, %v3112
      %v3351 = vsel %vm3323, %v3317, %v3114
      %v3352 = vsel %vm3323, %v3318, %v3116
      %v3353 = vsel %vm3323, %v3319, %v3118
      %v3354 = vsel %vm3323, %v3320, %v3120
      %v3355 = vsel %vm3323, %v3321, %v3122
      %v3356 = vsel %vm3323, %v3322, %v3124
      %vm3357 = vcmask 785408
      %v3358 = vsel %vm3357, %v3324, %v3192
      %v3359 = vsel %vm3357, %v3325, %v3194
      %v3360 = vsel %vm3357, %v3326, %v3196
      %v3361 = vsel %vm3357, %v3327, %v3198
      %v3362 = vsel %vm3357, %v3328, %v3200
      %v3363 = vsel %vm3357, %v3329, %v3202
      %v3364 = vsel %vm3357, %v3330, %v3204
      %v3365 = vsel %vm3357, %v3331, %v3206
      %v3366 = vsel %vm3357, %v3332, %v3208
      %v3367 = vsel %vm3357, %v3333, %v3210
      %v3368 = vsel %vm3357, %v3334, %v3212
      %v3369 = vsel %vm3357, %v3335, %v3214
      %v3370 = vsel %vm3357, %v3336, %v3216
      %v3371 = vsel %vm3357, %v3337, %v3218
      %v3372 = vsel %vm3357, %v3338, %v3220
      %v3373 = vsel %vm3357, %v3339, %v3222
      %v3374 = vsel %vm3357, %v3340, %v3224
      %v3375 = vsel %vm3357, %v3341, %v3226
      %v3376 = vsel %vm3357, %v3342, %v3228
      %v3377 = vsel %vm3357, %v3343, %v3230
      %v3378 = vsel %vm3357, %v3344, %v3232
      %v3379 = vsel %vm3357, %v3345, %v3234
      %v3380 = vsel %vm3357, %v3346, %v3236
      %v3381 = vsel %vm3357, %v3347, %v3238
      %v3382 = vsel %vm3357, %v3348, %v3240
      %v3383 = vsel %vm3357, %v3349, %v3242
      %v3384 = vsel %vm3357, %v3350, %v3244
      %v3385 = vsel %vm3357, %v3351, %v3246
      %v3386 = vsel %vm3357, %v3352, %v3248
      %v3387 = vsel %vm3357, %v3353, %v3250
      %v3388 = vsel %vm3357, %v3354, %v3252
      %v3389 = vsel %vm3357, %v3355, %v3254
      %v3390 = vsel %vm3357, %v3356, %v3256
      %vm3424 = vcmask 1046528
      %v3425 = vrot.slane %v3358, 1
      %v3426 = vrot.slane %v3359, 1
      %v3427 = vsel %vm3424, %v3425, %v3426
      %v3428 = vrot.slane %v3360, 1
      %v3429 = vsel %vm3424, %v3426, %v3428
      %v3430 = vrot.slane %v3361, 1
      %v3431 = vsel %vm3424, %v3428, %v3430
      %v3432 = vrot.slane %v3362, 1
      %v3433 = vsel %vm3424, %v3430, %v3432
      %v3434 = vrot.slane %v3363, 1
      %v3435 = vsel %vm3424, %v3432, %v3434
      %v3436 = vrot.slane %v3364, 1
      %v3437 = vsel %vm3424, %v3434, %v3436
      %v3438 = vrot.slane %v3365, 1
      %v3439 = vsel %vm3424, %v3436, %v3438
      %v3440 = vrot.slane %v3366, 1
      %v3441 = vsel %vm3424, %v3438, %v3440
      %v3442 = vrot.slane %v3367, 1
      %v3443 = vsel %vm3424, %v3440, %v3442
      %v3444 = vrot.slane %v3368, 1
      %v3445 = vsel %vm3424, %v3442, %v3444
      %v3446 = vrot.slane %v3369, 1
      %v3447 = vsel %vm3424, %v3444, %v3446
      %v3448 = vrot.slane %v3370, 1
      %v3449 = vsel %vm3424, %v3446, %v3448
      %v3450 = vrot.slane %v3371, 1
      %v3451 = vsel %vm3424, %v3448, %v3450
      %v3452 = vrot.slane %v3372, 1
      %v3453 = vsel %vm3424, %v3450, %v3452
      %v3454 = vrot.slane %v3373, 1
      %v3455 = vsel %vm3424, %v3452, %v3454
      %v3456 = vrot.slane %v3374, 1
      %v3457 = vsel %vm3424, %v3454, %v3456
      %v3458 = vrot.slane %v3375, 1
      %v3459 = vsel %vm3424, %v3456, %v3458
      %v3460 = vrot.slane %v3376, 1
      %v3461 = vsel %vm3424, %v3458, %v3460
      %v3462 = vrot.slane %v3377, 1
      %v3463 = vsel %vm3424, %v3460, %v3462
      %v3464 = vrot.slane %v3378, 1
      %v3465 = vsel %vm3424, %v3462, %v3464
      %v3466 = vrot.slane %v3379, 1
      %v3467 = vsel %vm3424, %v3464, %v3466
      %v3468 = vrot.slane %v3380, 1
      %v3469 = vsel %vm3424, %v3466, %v3468
      %v3470 = vrot.slane %v3381, 1
      %v3471 = vsel %vm3424, %v3468, %v3470
      %v3472 = vrot.slane %v3382, 1
      %v3473 = vsel %vm3424, %v3470, %v3472
      %v3474 = vrot.slane %v3383, 1
      %v3475 = vsel %vm3424, %v3472, %v3474
      %v3476 = vrot.slane %v3384, 1
      %v3477 = vsel %vm3424, %v3474, %v3476
      %v3478 = vrot.slane %v3385, 1
      %v3479 = vsel %vm3424, %v3476, %v3478
      %v3480 = vrot.slane %v3386, 1
      %v3481 = vsel %vm3424, %v3478, %v3480
      %v3482 = vrot.slane %v3387, 1
      %v3483 = vsel %vm3424, %v3480, %v3482
      %v3484 = vrot.slane %v3388, 1
      %v3485 = vsel %vm3424, %v3482, %v3484
      %v3486 = vrot.slane %v3389, 1
      %v3487 = vsel %vm3424, %v3484, %v3486
      %v3488 = vrot.slane %v3390, 1
      %v3489 = vsel %vm3424, %v3486, %v3488
      %v3522 = vrot.slane %v3358, 2
      %v3523 = vrot.slane %v3359, 2
      %v3524 = vsel %vm1049, %v3522, %v3523
      %v3525 = vrot.slane %v3360, 2
      %v3526 = vsel %vm1049, %v3523, %v3525
      %v3527 = vrot.slane %v3361, 2
      %v3528 = vsel %vm1049, %v3525, %v3527
      %v3529 = vrot.slane %v3362, 2
      %v3530 = vsel %vm1049, %v3527, %v3529
      %v3531 = vrot.slane %v3363, 2
      %v3532 = vsel %vm1049, %v3529, %v3531
      %v3533 = vrot.slane %v3364, 2
      %v3534 = vsel %vm1049, %v3531, %v3533
      %v3535 = vrot.slane %v3365, 2
      %v3536 = vsel %vm1049, %v3533, %v3535
      %v3537 = vrot.slane %v3366, 2
      %v3538 = vsel %vm1049, %v3535, %v3537
      %v3539 = vrot.slane %v3367, 2
      %v3540 = vsel %vm1049, %v3537, %v3539
      %v3541 = vrot.slane %v3368, 2
      %v3542 = vsel %vm1049, %v3539, %v3541
      %v3543 = vrot.slane %v3369, 2
      %v3544 = vsel %vm1049, %v3541, %v3543
      %v3545 = vrot.slane %v3370, 2
      %v3546 = vsel %vm1049, %v3543, %v3545
      %v3547 = vrot.slane %v3371, 2
      %v3548 = vsel %vm1049, %v3545, %v3547
      %v3549 = vrot.slane %v3372, 2
      %v3550 = vsel %vm1049, %v3547, %v3549
      %v3551 = vrot.slane %v3373, 2
      %v3552 = vsel %vm1049, %v3549, %v3551
      %v3553 = vrot.slane %v3374, 2
      %v3554 = vsel %vm1049, %v3551, %v3553
      %v3555 = vrot.slane %v3375, 2
      %v3556 = vsel %vm1049, %v3553, %v3555
      %v3557 = vrot.slane %v3376, 2
      %v3558 = vsel %vm1049, %v3555, %v3557
      %v3559 = vrot.slane %v3377, 2
      %v3560 = vsel %vm1049, %v3557, %v3559
      %v3561 = vrot.slane %v3378, 2
      %v3562 = vsel %vm1049, %v3559, %v3561
      %v3563 = vrot.slane %v3379, 2
      %v3564 = vsel %vm1049, %v3561, %v3563
      %v3565 = vrot.slane %v3380, 2
      %v3566 = vsel %vm1049, %v3563, %v3565
      %v3567 = vrot.slane %v3381, 2
      %v3568 = vsel %vm1049, %v3565, %v3567
      %v3569 = vrot.slane %v3382, 2
      %v3570 = vsel %vm1049, %v3567, %v3569
      %v3571 = vrot.slane %v3383, 2
      %v3572 = vsel %vm1049, %v3569, %v3571
      %v3573 = vrot.slane %v3384, 2
      %v3574 = vsel %vm1049, %v3571, %v3573
      %v3575 = vrot.slane %v3385, 2
      %v3576 = vsel %vm1049, %v3573, %v3575
      %v3577 = vrot.slane %v3386, 2
      %v3578 = vsel %vm1049, %v3575, %v3577
      %v3579 = vrot.slane %v3387, 2
      %v3580 = vsel %vm1049, %v3577, %v3579
      %v3581 = vrot.slane %v3388, 2
      %v3582 = vsel %vm1049, %v3579, %v3581
      %v3583 = vrot.slane %v3389, 2
      %v3584 = vsel %vm1049, %v3581, %v3583
      %v3585 = vrot.slane %v3390, 2
      %v3586 = vsel %vm1049, %v3583, %v3585
      %vm3619 = vcmask 1044480
      %v3620 = vrot.slane %v3358, 3
      %v3621 = vrot.slane %v3359, 3
      %v3622 = vsel %vm3619, %v3620, %v3621
      %v3623 = vrot.slane %v3360, 3
      %v3624 = vsel %vm3619, %v3621, %v3623
      %v3625 = vrot.slane %v3361, 3
      %v3626 = vsel %vm3619, %v3623, %v3625
      %v3627 = vrot.slane %v3362, 3
      %v3628 = vsel %vm3619, %v3625, %v3627
      %v3629 = vrot.slane %v3363, 3
      %v3630 = vsel %vm3619, %v3627, %v3629
      %v3631 = vrot.slane %v3364, 3
      %v3632 = vsel %vm3619, %v3629, %v3631
      %v3633 = vrot.slane %v3365, 3
      %v3634 = vsel %vm3619, %v3631, %v3633
      %v3635 = vrot.slane %v3366, 3
      %v3636 = vsel %vm3619, %v3633, %v3635
      %v3637 = vrot.slane %v3367, 3
      %v3638 = vsel %vm3619, %v3635, %v3637
      %v3639 = vrot.slane %v3368, 3
      %v3640 = vsel %vm3619, %v3637, %v3639
      %v3641 = vrot.slane %v3369, 3
      %v3642 = vsel %vm3619, %v3639, %v3641
      %v3643 = vrot.slane %v3370, 3
      %v3644 = vsel %vm3619, %v3641, %v3643
      %v3645 = vrot.slane %v3371, 3
      %v3646 = vsel %vm3619, %v3643, %v3645
      %v3647 = vrot.slane %v3372, 3
      %v3648 = vsel %vm3619, %v3645, %v3647
      %v3649 = vrot.slane %v3373, 3
      %v3650 = vsel %vm3619, %v3647, %v3649
      %v3651 = vrot.slane %v3374, 3
      %v3652 = vsel %vm3619, %v3649, %v3651
      %v3653 = vrot.slane %v3375, 3
      %v3654 = vsel %vm3619, %v3651, %v3653
      %v3655 = vrot.slane %v3376, 3
      %v3656 = vsel %vm3619, %v3653, %v3655
      %v3657 = vrot.slane %v3377, 3
      %v3658 = vsel %vm3619, %v3655, %v3657
      %v3659 = vrot.slane %v3378, 3
      %v3660 = vsel %vm3619, %v3657, %v3659
      %v3661 = vrot.slane %v3379, 3
      %v3662 = vsel %vm3619, %v3659, %v3661
      %v3663 = vrot.slane %v3380, 3
      %v3664 = vsel %vm3619, %v3661, %v3663
      %v3665 = vrot.slane %v3381, 3
      %v3666 = vsel %vm3619, %v3663, %v3665
      %v3667 = vrot.slane %v3382, 3
      %v3668 = vsel %vm3619, %v3665, %v3667
      %v3669 = vrot.slane %v3383, 3
      %v3670 = vsel %vm3619, %v3667, %v3669
      %v3671 = vrot.slane %v3384, 3
      %v3672 = vsel %vm3619, %v3669, %v3671
      %v3673 = vrot.slane %v3385, 3
      %v3674 = vsel %vm3619, %v3671, %v3673
      %v3675 = vrot.slane %v3386, 3
      %v3676 = vsel %vm3619, %v3673, %v3675
      %v3677 = vrot.slane %v3387, 3
      %v3678 = vsel %vm3619, %v3675, %v3677
      %v3679 = vrot.slane %v3388, 3
      %v3680 = vsel %vm3619, %v3677, %v3679
      %v3681 = vrot.slane %v3389, 3
      %v3682 = vsel %vm3619, %v3679, %v3681
      %v3683 = vrot.slane %v3390, 3
      %v3684 = vsel %vm3619, %v3681, %v3683
      %v3717 = vrot.slane %v3358, 4
      %v3718 = vrot.slane %v3359, 4
      %v3719 = vsel %vm2112, %v3717, %v3718
      %v3720 = vrot.slane %v3360, 4
      %v3721 = vsel %vm2112, %v3718, %v3720
      %v3722 = vrot.slane %v3361, 4
      %v3723 = vsel %vm2112, %v3720, %v3722
      %v3724 = vrot.slane %v3362, 4
      %v3725 = vsel %vm2112, %v3722, %v3724
      %v3726 = vrot.slane %v3363, 4
      %v3727 = vsel %vm2112, %v3724, %v3726
      %v3728 = vrot.slane %v3364, 4
      %v3729 = vsel %vm2112, %v3726, %v3728
      %v3730 = vrot.slane %v3365, 4
      %v3731 = vsel %vm2112, %v3728, %v3730
      %v3732 = vrot.slane %v3366, 4
      %v3733 = vsel %vm2112, %v3730, %v3732
      %v3734 = vrot.slane %v3367, 4
      %v3735 = vsel %vm2112, %v3732, %v3734
      %v3736 = vrot.slane %v3368, 4
      %v3737 = vsel %vm2112, %v3734, %v3736
      %v3738 = vrot.slane %v3369, 4
      %v3739 = vsel %vm2112, %v3736, %v3738
      %v3740 = vrot.slane %v3370, 4
      %v3741 = vsel %vm2112, %v3738, %v3740
      %v3742 = vrot.slane %v3371, 4
      %v3743 = vsel %vm2112, %v3740, %v3742
      %v3744 = vrot.slane %v3372, 4
      %v3745 = vsel %vm2112, %v3742, %v3744
      %v3746 = vrot.slane %v3373, 4
      %v3747 = vsel %vm2112, %v3744, %v3746
      %v3748 = vrot.slane %v3374, 4
      %v3749 = vsel %vm2112, %v3746, %v3748
      %v3750 = vrot.slane %v3375, 4
      %v3751 = vsel %vm2112, %v3748, %v3750
      %v3752 = vrot.slane %v3376, 4
      %v3753 = vsel %vm2112, %v3750, %v3752
      %v3754 = vrot.slane %v3377, 4
      %v3755 = vsel %vm2112, %v3752, %v3754
      %v3756 = vrot.slane %v3378, 4
      %v3757 = vsel %vm2112, %v3754, %v3756
      %v3758 = vrot.slane %v3379, 4
      %v3759 = vsel %vm2112, %v3756, %v3758
      %v3760 = vrot.slane %v3380, 4
      %v3761 = vsel %vm2112, %v3758, %v3760
      %v3762 = vrot.slane %v3381, 4
      %v3763 = vsel %vm2112, %v3760, %v3762
      %v3764 = vrot.slane %v3382, 4
      %v3765 = vsel %vm2112, %v3762, %v3764
      %v3766 = vrot.slane %v3383, 4
      %v3767 = vsel %vm2112, %v3764, %v3766
      %v3768 = vrot.slane %v3384, 4
      %v3769 = vsel %vm2112, %v3766, %v3768
      %v3770 = vrot.slane %v3385, 4
      %v3771 = vsel %vm2112, %v3768, %v3770
      %v3772 = vrot.slane %v3386, 4
      %v3773 = vsel %vm2112, %v3770, %v3772
      %v3774 = vrot.slane %v3387, 4
      %v3775 = vsel %vm2112, %v3772, %v3774
      %v3776 = vrot.slane %v3388, 4
      %v3777 = vsel %vm2112, %v3774, %v3776
      %v3778 = vrot.slane %v3389, 4
      %v3779 = vsel %vm2112, %v3776, %v3778
      %v3780 = vrot.slane %v3390, 4
      %v3781 = vsel %vm2112, %v3778, %v3780
      %v3814 = vrot.slane %v3358, 5
      %v3815 = vrot.slane %v3359, 5
      %v3816 = vsel %vm2495, %v3814, %v3815
      %v3817 = vrot.slane %v3360, 5
      %v3818 = vsel %vm2495, %v3815, %v3817
      %v3819 = vrot.slane %v3361, 5
      %v3820 = vsel %vm2495, %v3817, %v3819
      %v3821 = vrot.slane %v3362, 5
      %v3822 = vsel %vm2495, %v3819, %v3821
      %v3823 = vrot.slane %v3363, 5
      %v3824 = vsel %vm2495, %v3821, %v3823
      %v3825 = vrot.slane %v3364, 5
      %v3826 = vsel %vm2495, %v3823, %v3825
      %v3827 = vrot.slane %v3365, 5
      %v3828 = vsel %vm2495, %v3825, %v3827
      %v3829 = vrot.slane %v3366, 5
      %v3830 = vsel %vm2495, %v3827, %v3829
      %v3831 = vrot.slane %v3367, 5
      %v3832 = vsel %vm2495, %v3829, %v3831
      %v3833 = vrot.slane %v3368, 5
      %v3834 = vsel %vm2495, %v3831, %v3833
      %v3835 = vrot.slane %v3369, 5
      %v3836 = vsel %vm2495, %v3833, %v3835
      %v3837 = vrot.slane %v3370, 5
      %v3838 = vsel %vm2495, %v3835, %v3837
      %v3839 = vrot.slane %v3371, 5
      %v3840 = vsel %vm2495, %v3837, %v3839
      %v3841 = vrot.slane %v3372, 5
      %v3842 = vsel %vm2495, %v3839, %v3841
      %v3843 = vrot.slane %v3373, 5
      %v3844 = vsel %vm2495, %v3841, %v3843
      %v3845 = vrot.slane %v3374, 5
      %v3846 = vsel %vm2495, %v3843, %v3845
      %v3847 = vrot.slane %v3375, 5
      %v3848 = vsel %vm2495, %v3845, %v3847
      %v3849 = vrot.slane %v3376, 5
      %v3850 = vsel %vm2495, %v3847, %v3849
      %v3851 = vrot.slane %v3377, 5
      %v3852 = vsel %vm2495, %v3849, %v3851
      %v3853 = vrot.slane %v3378, 5
      %v3854 = vsel %vm2495, %v3851, %v3853
      %v3855 = vrot.slane %v3379, 5
      %v3856 = vsel %vm2495, %v3853, %v3855
      %v3857 = vrot.slane %v3380, 5
      %v3858 = vsel %vm2495, %v3855, %v3857
      %v3859 = vrot.slane %v3381, 5
      %v3860 = vsel %vm2495, %v3857, %v3859
      %v3861 = vrot.slane %v3382, 5
      %v3862 = vsel %vm2495, %v3859, %v3861
      %v3863 = vrot.slane %v3383, 5
      %v3864 = vsel %vm2495, %v3861, %v3863
      %v3865 = vrot.slane %v3384, 5
      %v3866 = vsel %vm2495, %v3863, %v3865
      %v3867 = vrot.slane %v3385, 5
      %v3868 = vsel %vm2495, %v3865, %v3867
      %v3869 = vrot.slane %v3386, 5
      %v3870 = vsel %vm2495, %v3867, %v3869
      %v3871 = vrot.slane %v3387, 5
      %v3872 = vsel %vm2495, %v3869, %v3871
      %v3873 = vrot.slane %v3388, 5
      %v3874 = vsel %vm2495, %v3871, %v3873
      %v3875 = vrot.slane %v3389, 5
      %v3876 = vsel %vm2495, %v3873, %v3875
      %v3877 = vrot.slane %v3390, 5
      %v3878 = vsel %vm2495, %v3875, %v3877
      %vm3911 = vcmask 1041408
      %v3912 = vrot.slane %v3358, 6
      %v3913 = vrot.slane %v3359, 6
      %v3914 = vsel %vm3911, %v3912, %v3913
      %v3915 = vrot.slane %v3360, 6
      %v3916 = vsel %vm3911, %v3913, %v3915
      %v3917 = vrot.slane %v3361, 6
      %v3918 = vsel %vm3911, %v3915, %v3917
      %v3919 = vrot.slane %v3362, 6
      %v3920 = vsel %vm3911, %v3917, %v3919
      %v3921 = vrot.slane %v3363, 6
      %v3922 = vsel %vm3911, %v3919, %v3921
      %v3923 = vrot.slane %v3364, 6
      %v3924 = vsel %vm3911, %v3921, %v3923
      %v3925 = vrot.slane %v3365, 6
      %v3926 = vsel %vm3911, %v3923, %v3925
      %v3927 = vrot.slane %v3366, 6
      %v3928 = vsel %vm3911, %v3925, %v3927
      %v3929 = vrot.slane %v3367, 6
      %v3930 = vsel %vm3911, %v3927, %v3929
      %v3931 = vrot.slane %v3368, 6
      %v3932 = vsel %vm3911, %v3929, %v3931
      %v3933 = vrot.slane %v3369, 6
      %v3934 = vsel %vm3911, %v3931, %v3933
      %v3935 = vrot.slane %v3370, 6
      %v3936 = vsel %vm3911, %v3933, %v3935
      %v3937 = vrot.slane %v3371, 6
      %v3938 = vsel %vm3911, %v3935, %v3937
      %v3939 = vrot.slane %v3372, 6
      %v3940 = vsel %vm3911, %v3937, %v3939
      %v3941 = vrot.slane %v3373, 6
      %v3942 = vsel %vm3911, %v3939, %v3941
      %v3943 = vrot.slane %v3374, 6
      %v3944 = vsel %vm3911, %v3941, %v3943
      %v3945 = vrot.slane %v3375, 6
      %v3946 = vsel %vm3911, %v3943, %v3945
      %v3947 = vrot.slane %v3376, 6
      %v3948 = vsel %vm3911, %v3945, %v3947
      %v3949 = vrot.slane %v3377, 6
      %v3950 = vsel %vm3911, %v3947, %v3949
      %v3951 = vrot.slane %v3378, 6
      %v3952 = vsel %vm3911, %v3949, %v3951
      %v3953 = vrot.slane %v3379, 6
      %v3954 = vsel %vm3911, %v3951, %v3953
      %v3955 = vrot.slane %v3380, 6
      %v3956 = vsel %vm3911, %v3953, %v3955
      %v3957 = vrot.slane %v3381, 6
      %v3958 = vsel %vm3911, %v3955, %v3957
      %v3959 = vrot.slane %v3382, 6
      %v3960 = vsel %vm3911, %v3957, %v3959
      %v3961 = vrot.slane %v3383, 6
      %v3962 = vsel %vm3911, %v3959, %v3961
      %v3963 = vrot.slane %v3384, 6
      %v3964 = vsel %vm3911, %v3961, %v3963
      %v3965 = vrot.slane %v3385, 6
      %v3966 = vsel %vm3911, %v3963, %v3965
      %v3967 = vrot.slane %v3386, 6
      %v3968 = vsel %vm3911, %v3965, %v3967
      %v3969 = vrot.slane %v3387, 6
      %v3970 = vsel %vm3911, %v3967, %v3969
      %v3971 = vrot.slane %v3388, 6
      %v3972 = vsel %vm3911, %v3969, %v3971
      %v3973 = vrot.slane %v3389, 6
      %v3974 = vsel %vm3911, %v3971, %v3973
      %v3975 = vrot.slane %v3390, 6
      %v3976 = vsel %vm3911, %v3973, %v3975
      %v4009 = vpack.c.bf16 %v3359, %v3358
      %v4010 = vpack.c.bf16 %v3429, %v3427
      %v4011 = vpack.c.bf16 %v3526, %v3524
      %v4012 = vpack.c.bf16 %v3624, %v3622
      %v4013 = vpack.c.bf16 %v3721, %v3719
      %v4014 = vpack.c.bf16 %v3818, %v3816
      %v4015 = vpack.c.bf16 %v3916, %v3914
      %v4016 = vpack.c.bf16 %v3361, %v3360
      %v4017 = vpack.c.bf16 %v3433, %v3431
      %v4018 = vpack.c.bf16 %v3530, %v3528
      %v4019 = vpack.c.bf16 %v3628, %v3626
      %v4020 = vpack.c.bf16 %v3725, %v3723
      %v4021 = vpack.c.bf16 %v3822, %v3820
      %v4022 = vpack.c.bf16 %v3920, %v3918
      %v4023 = vpack.c.bf16 %v3363, %v3362
      %v4024 = vpack.c.bf16 %v3437, %v3435
      %v4025 = vpack.c.bf16 %v3534, %v3532
      %v4026 = vpack.c.bf16 %v3632, %v3630
      %v4027 = vpack.c.bf16 %v3729, %v3727
      %v4028 = vpack.c.bf16 %v3826, %v3824
      %v4029 = vpack.c.bf16 %v3924, %v3922
      %v4030 = vpack.c.bf16 %v3365, %v3364
      %v4031 = vpack.c.bf16 %v3441, %v3439
      %v4032 = vpack.c.bf16 %v3538, %v3536
      %v4033 = vpack.c.bf16 %v3636, %v3634
      %v4034 = vpack.c.bf16 %v3733, %v3731
      %v4035 = vpack.c.bf16 %v3830, %v3828
      %v4036 = vpack.c.bf16 %v3928, %v3926
      %v4037 = vpack.c.bf16 %v3367, %v3366
      %v4038 = vpack.c.bf16 %v3445, %v3443
      %v4039 = vpack.c.bf16 %v3542, %v3540
      %v4040 = vpack.c.bf16 %v3640, %v3638
      %v4041 = vpack.c.bf16 %v3737, %v3735
      %v4042 = vpack.c.bf16 %v3834, %v3832
      %v4043 = vpack.c.bf16 %v3932, %v3930
      %v4044 = vpack.c.bf16 %v3369, %v3368
      %v4045 = vpack.c.bf16 %v3449, %v3447
      %v4046 = vpack.c.bf16 %v3546, %v3544
      %v4047 = vpack.c.bf16 %v3644, %v3642
      %v4048 = vpack.c.bf16 %v3741, %v3739
      %v4049 = vpack.c.bf16 %v3838, %v3836
      %v4050 = vpack.c.bf16 %v3936, %v3934
      %v4051 = vpack.c.bf16 %v3371, %v3370
      %v4052 = vpack.c.bf16 %v3453, %v3451
      %v4053 = vpack.c.bf16 %v3550, %v3548
      %v4054 = vpack.c.bf16 %v3648, %v3646
      %v4055 = vpack.c.bf16 %v3745, %v3743
      %v4056 = vpack.c.bf16 %v3842, %v3840
      %v4057 = vpack.c.bf16 %v3940, %v3938
      %v4058 = vpack.c.bf16 %v3373, %v3372
      %v4059 = vpack.c.bf16 %v3457, %v3455
      %v4060 = vpack.c.bf16 %v3554, %v3552
      %v4061 = vpack.c.bf16 %v3652, %v3650
      %v4062 = vpack.c.bf16 %v3749, %v3747
      %v4063 = vpack.c.bf16 %v3846, %v3844
      %v4064 = vpack.c.bf16 %v3944, %v3942
      %v4065 = vpack.c.bf16 %v3375, %v3374
      %v4066 = vpack.c.bf16 %v3461, %v3459
      %v4067 = vpack.c.bf16 %v3558, %v3556
      %v4068 = vpack.c.bf16 %v3656, %v3654
      %v4069 = vpack.c.bf16 %v3753, %v3751
      %v4070 = vpack.c.bf16 %v3850, %v3848
      %v4071 = vpack.c.bf16 %v3948, %v3946
      %v4072 = vpack.c.bf16 %v3377, %v3376
      %v4073 = vpack.c.bf16 %v3465, %v3463
      %v4074 = vpack.c.bf16 %v3562, %v3560
      %v4075 = vpack.c.bf16 %v3660, %v3658
      %v4076 = vpack.c.bf16 %v3757, %v3755
      %v4077 = vpack.c.bf16 %v3854, %v3852
      %v4078 = vpack.c.bf16 %v3952, %v3950
      %v4079 = vpack.c.bf16 %v3379, %v3378
      %v4080 = vpack.c.bf16 %v3469, %v3467
      %v4081 = vpack.c.bf16 %v3566, %v3564
      %v4082 = vpack.c.bf16 %v3664, %v3662
      %v4083 = vpack.c.bf16 %v3761, %v3759
      %v4084 = vpack.c.bf16 %v3858, %v3856
      %v4085 = vpack.c.bf16 %v3956, %v3954
      %v4086 = vpack.c.bf16 %v3381, %v3380
      %v4087 = vpack.c.bf16 %v3473, %v3471
      %v4088 = vpack.c.bf16 %v3570, %v3568
      %v4089 = vpack.c.bf16 %v3668, %v3666
      %v4090 = vpack.c.bf16 %v3765, %v3763
      %v4091 = vpack.c.bf16 %v3862, %v3860
      %v4092 = vpack.c.bf16 %v3960, %v3958
      %v4093 = vpack.c.bf16 %v3383, %v3382
      %v4094 = vpack.c.bf16 %v3477, %v3475
      %v4095 = vpack.c.bf16 %v3574, %v3572
      %v4096 = vpack.c.bf16 %v3672, %v3670
      %v4097 = vpack.c.bf16 %v3769, %v3767
      %v4098 = vpack.c.bf16 %v3866, %v3864
      %v4099 = vpack.c.bf16 %v3964, %v3962
      %v4100 = vpack.c.bf16 %v3385, %v3384
      %v4101 = vpack.c.bf16 %v3481, %v3479
      %v4102 = vpack.c.bf16 %v3578, %v3576
      %v4103 = vpack.c.bf16 %v3676, %v3674
      %v4104 = vpack.c.bf16 %v3773, %v3771
      %v4105 = vpack.c.bf16 %v3870, %v3868
      %v4106 = vpack.c.bf16 %v3968, %v3966
      %v4107 = vpack.c.bf16 %v3387, %v3386
      %v4108 = vpack.c.bf16 %v3485, %v3483
      %v4109 = vpack.c.bf16 %v3582, %v3580
      %v4110 = vpack.c.bf16 %v3680, %v3678
      %v4111 = vpack.c.bf16 %v3777, %v3775
      %v4112 = vpack.c.bf16 %v3874, %v3872
      %v4113 = vpack.c.bf16 %v3972, %v3970
      %v4114 = vpack.c.bf16 %v3389, %v3388
      %v4115 = vpack.c.bf16 %v3489, %v3487
      %v4116 = vpack.c.bf16 %v3586, %v3584
      %v4117 = vpack.c.bf16 %v3684, %v3682
      %v4118 = vpack.c.bf16 %v3781, %v3779
      %v4119 = vpack.c.bf16 %v3878, %v3876
      %v4120 = vpack.c.bf16 %v3976, %v3974
      %v4121 = vld [vmem:[%s3] sm:$0xf]
      %v4122 = vld [vmem:[%s3 + $0x4] sm:$0xf]
      %v4123 = vld [vmem:[%s3 + $0x8] sm:$0xf]
      %v4124 = vld [vmem:[%s3 + $0xc] sm:$0xf]
      %v4125 = vld [vmem:[%s3 + $0x10] sm:$0xf]
      %v4126 = vld [vmem:[%s3 + $0x14] sm:$0xf]
      %v4127 = vld [vmem:[%s3 + $0x18] sm:$0xf]
      %v4128 = vld [vmem:[%s3 + $0x1c] sm:$0xf]
      %v4129 = vld [vmem:[%s3 + $0x20] sm:$0xf]
      %v4130 = vld [vmem:[%s3 + $0x24] sm:$0xf]
      %v4131 = vld [vmem:[%s3 + $0x28] sm:$0xf]
      %v4132 = vld [vmem:[%s3 + $0x2c] sm:$0xf]
      %v4133 = vld [vmem:[%s3 + $0x30] sm:$0xf]
      %v4134 = vld [vmem:[%s3 + $0x34] sm:$0xf]
      %v4135 = vld [vmem:[%s3 + $0x38] sm:$0xf]
      %v4136 = vld [vmem:[%s3 + $0x3c] sm:$0xf]
      %v4137 = vld [vmem:[%s3 + $0x40] sm:$0xf]
      %v4138 = vld [vmem:[%s3 + $0x44] sm:$0xf]
      %v4139 = vld [vmem:[%s3 + $0x48] sm:$0xf]
      %v4140 = vld [vmem:[%s3 + $0x4c] sm:$0xf]
      %v4141 = vld [vmem:[%s3 + $0x50] sm:$0xf]
      %v4142 = vld [vmem:[%s3 + $0x54] sm:$0xf]
      %v4143 = vld [vmem:[%s3 + $0x58] sm:$0xf]
      %v4144 = vld [vmem:[%s3 + $0x5c] sm:$0xf]
      %v4145 = vld [vmem:[%s3 + $0x60] sm:$0xf]
      %v4146 = vld [vmem:[%s3 + $0x64] sm:$0xf]
      %v4147 = vld [vmem:[%s3 + $0x68] sm:$0xf]
      %v4148 = vld [vmem:[%s3 + $0x6c] sm:$0xf]
      %v4149 = vld [vmem:[%s3 + $0x70] sm:$0xf]
      %v4150 = vld [vmem:[%s3 + $0x74] sm:$0xf]
      %v4151 = vld [vmem:[%s3 + $0x78] sm:$0xf]
      %v4152 = vld [vmem:[%s3 + $0x7c] sm:$0xf]
      %v4153 = vld [vmem:[%s3 + $0x80] sm:$0xf]
      %v4154 = vld [vmem:[%s3 + $0x84] sm:$0xf]
      %v4155 = vld [vmem:[%s3 + $0x88] sm:$0xf]
      %v4156 = vld [vmem:[%s3 + $0x8c] sm:$0xf]
      %v4157 = vld [vmem:[%s3 + $0x90] sm:$0xf]
      %v4158 = vld [vmem:[%s3 + $0x94] sm:$0xf]
      %v4159 = vld [vmem:[%s3 + $0x98] sm:$0xf]
      %v4160 = vld [vmem:[%s3 + $0x9c] sm:$0xf]
      %v4161 = vld [vmem:[%s3 + $0xa0] sm:$0xf]
      %v4162 = vld [vmem:[%s3 + $0xa4] sm:$0xf]
      %v4163 = vld [vmem:[%s3 + $0xa8] sm:$0xf]
      %v4164 = vld [vmem:[%s3 + $0xac] sm:$0xf]
      %v4165 = vld [vmem:[%s3 + $0xb0] sm:$0xf]
      %v4166 = vld [vmem:[%s3 + $0xb4] sm:$0xf]
      %v4167 = vld [vmem:[%s3 + $0xb8] sm:$0xf]
      %v4168 = vld [vmem:[%s3 + $0xbc] sm:$0xf]
      %v4169 = vld [vmem:[%s3 + $0xc0] sm:$0xf]
      %v4170 = vld [vmem:[%s3 + $0xc4] sm:$0xf]
      %v4171 = vld [vmem:[%s3 + $0xc8] sm:$0xf]
      %v4172 = vld [vmem:[%s3 + $0xcc] sm:$0xf]
      %v4173 = vld [vmem:[%s3 + $0xd0] sm:$0xf]
      %v4174 = vld [vmem:[%s3 + $0xd4] sm:$0xf]
      %v4175 = vld [vmem:[%s3 + $0xd8] sm:$0xf]
      %v4176 = vld [vmem:[%s3 + $0xdc] sm:$0xf]
      %v4177 = vld [vmem:[%s3 + $0xe0] sm:$0xf]
      %v4178 = vld [vmem:[%s3 + $0xe4] sm:$0xf]
      %v4179 = vld [vmem:[%s3 + $0xe8] sm:$0xf]
      %v4180 = vld [vmem:[%s3 + $0xec] sm:$0xf]
      %v4181 = vld [vmem:[%s3 + $0xf0] sm:$0xf]
      %v4182 = vld [vmem:[%s3 + $0xf4] sm:$0xf]
      %v4183 = vld [vmem:[%s3 + $0xf8] sm:$0xf]
      %v4184 = vld [vmem:[%s3 + $0xfc] sm:$0xf]
      %v4185 = vld [vmem:[%s3 + $0x100] sm:$0xf]
      %v4186 = vld [vmem:[%s3 + $0x104] sm:$0xf]
      %v4187 = vld [vmem:[%s3 + $0x108] sm:$0xf]
      %v4188 = vld [vmem:[%s3 + $0x10c] sm:$0xf]
      %v4189 = vld [vmem:[%s3 + $0x110] sm:$0xf]
      %v4190 = vld [vmem:[%s3 + $0x114] sm:$0xf]
      %v4191 = vld [vmem:[%s3 + $0x118] sm:$0xf]
      %v4192 = vld [vmem:[%s3 + $0x11c] sm:$0xf]
      %v4193 = vld [vmem:[%s3 + $0x120] sm:$0xf]
      %v4194 = vld [vmem:[%s3 + $0x124] sm:$0xf]
      %v4195 = vld [vmem:[%s3 + $0x128] sm:$0xf]
      %v4196 = vld [vmem:[%s3 + $0x12c] sm:$0xf]
      %v4197 = vld [vmem:[%s3 + $0x130] sm:$0xf]
      %v4198 = vld [vmem:[%s3 + $0x134] sm:$0xf]
      %v4199 = vld [vmem:[%s3 + $0x138] sm:$0xf]
      %v4200 = vld [vmem:[%s3 + $0x13c] sm:$0xf]
      %v4201 = vld [vmem:[%s3 + $0x140] sm:$0xf]
      %v4202 = vld [vmem:[%s3 + $0x144] sm:$0xf]
      %v4203 = vld [vmem:[%s3 + $0x148] sm:$0xf]
      %v4204 = vld [vmem:[%s3 + $0x14c] sm:$0xf]
      %v4205 = vld [vmem:[%s3 + $0x150] sm:$0xf]
      %v4206 = vld [vmem:[%s3 + $0x154] sm:$0xf]
      %v4207 = vld [vmem:[%s3 + $0x158] sm:$0xf]
      %v4208 = vld [vmem:[%s3 + $0x15c] sm:$0xf]
      %v4209 = vld [vmem:[%s3 + $0x160] sm:$0xf]
      %v4210 = vld [vmem:[%s3 + $0x164] sm:$0xf]
      %v4211 = vld [vmem:[%s3 + $0x168] sm:$0xf]
      %v4212 = vld [vmem:[%s3 + $0x16c] sm:$0xf]
      %v4213 = vld [vmem:[%s3 + $0x170] sm:$0xf]
      %v4214 = vld [vmem:[%s3 + $0x174] sm:$0xf]
      %v4215 = vld [vmem:[%s3 + $0x178] sm:$0xf]
      %v4216 = vld [vmem:[%s3 + $0x17c] sm:$0xf]
      %v4217 = vld [vmem:[%s3 + $0x180] sm:$0xf]
      %v4218 = vld [vmem:[%s3 + $0x184] sm:$0xf]
      %v4219 = vld [vmem:[%s3 + $0x188] sm:$0xf]
      %v4220 = vld [vmem:[%s3 + $0x18c] sm:$0xf]
      %v4221 = vld [vmem:[%s3 + $0x190] sm:$0xf]
      %v4222 = vld [vmem:[%s3 + $0x194] sm:$0xf]
      %v4223 = vld [vmem:[%s3 + $0x198] sm:$0xf]
      %v4224 = vld [vmem:[%s3 + $0x19c] sm:$0xf]
      %v4225 = vld [vmem:[%s3 + $0x1a0] sm:$0xf]
      %v4226 = vld [vmem:[%s3 + $0x1a4] sm:$0xf]
      %v4227 = vld [vmem:[%s3 + $0x1a8] sm:$0xf]
      %v4228 = vld [vmem:[%s3 + $0x1ac] sm:$0xf]
      %v4229 = vld [vmem:[%s3 + $0x1b0] sm:$0xf]
      %v4230 = vld [vmem:[%s3 + $0x1b4] sm:$0xf]
      %v4231 = vld [vmem:[%s3 + $0x1b8] sm:$0xf]
      %v4232 = vld [vmem:[%s3 + $0x1bc] sm:$0xf]
      %v4233 = vld [vmem:[%s4] sm:$0x1]
      %v4235 = vlaneseq
      %v4236 = vshrl.u32 %v4235, 7
      %v4237 = vsub.s32 0, %v4236
      %v4238 = vrot.slane %v4233, %v4237
      %v4352 = vunpack.c.l.b16 %v4121
      %v4353 = vunpack.c.l.b16 %v4122
      %v4354 = vunpack.c.l.b16 %v4123
      %v4355 = vunpack.c.l.b16 %v4124
      %v4356 = vunpack.c.l.b16 %v4125
      %v4357 = vunpack.c.l.b16 %v4126
      %v4358 = vunpack.c.l.b16 %v4127
      %v4359 = vunpack.c.l.b16 %v4128
      %v4360 = vunpack.c.l.b16 %v4129
      %v4361 = vunpack.c.l.b16 %v4130
      %v4362 = vunpack.c.l.b16 %v4131
      %v4363 = vunpack.c.l.b16 %v4132
      %v4364 = vunpack.c.l.b16 %v4133
      %v4365 = vunpack.c.l.b16 %v4134
      %v4366 = vunpack.c.l.b16 %v4135
      %v4367 = vunpack.c.l.b16 %v4136
      %v4368 = vunpack.c.l.b16 %v4137
      %v4369 = vunpack.c.l.b16 %v4138
      %v4370 = vunpack.c.l.b16 %v4139
      %v4371 = vunpack.c.l.b16 %v4140
      %v4372 = vunpack.c.l.b16 %v4141
      %v4373 = vunpack.c.l.b16 %v4142
      %v4374 = vunpack.c.l.b16 %v4143
      %v4375 = vunpack.c.l.b16 %v4144
      %v4376 = vunpack.c.l.b16 %v4145
      %v4377 = vunpack.c.l.b16 %v4146
      %v4378 = vunpack.c.l.b16 %v4147
      %v4379 = vunpack.c.l.b16 %v4148
      %v4380 = vunpack.c.l.b16 %v4149
      %v4381 = vunpack.c.l.b16 %v4150
      %v4382 = vunpack.c.l.b16 %v4151
      %v4383 = vunpack.c.l.b16 %v4152
      %v4384 = vunpack.c.l.b16 %v4153
      %v4385 = vunpack.c.l.b16 %v4154
      %v4386 = vunpack.c.l.b16 %v4155
      %v4387 = vunpack.c.l.b16 %v4156
      %v4388 = vunpack.c.l.b16 %v4157
      %v4389 = vunpack.c.l.b16 %v4158
      %v4390 = vunpack.c.l.b16 %v4159
      %v4391 = vunpack.c.l.b16 %v4160
      %v4392 = vunpack.c.l.b16 %v4161
      %v4393 = vunpack.c.l.b16 %v4162
      %v4394 = vunpack.c.l.b16 %v4163
      %v4395 = vunpack.c.l.b16 %v4164
      %v4396 = vunpack.c.l.b16 %v4165
      %v4397 = vunpack.c.l.b16 %v4166
      %v4398 = vunpack.c.l.b16 %v4167
      %v4399 = vunpack.c.l.b16 %v4168
      %v4400 = vunpack.c.l.b16 %v4169
      %v4401 = vunpack.c.l.b16 %v4170
      %v4402 = vunpack.c.l.b16 %v4171
      %v4403 = vunpack.c.l.b16 %v4172
      %v4404 = vunpack.c.l.b16 %v4173
      %v4405 = vunpack.c.l.b16 %v4174
      %v4406 = vunpack.c.l.b16 %v4175
      %v4407 = vunpack.c.l.b16 %v4176
      %v4408 = vunpack.c.l.b16 %v4177
      %v4409 = vunpack.c.l.b16 %v4178
      %v4410 = vunpack.c.l.b16 %v4179
      %v4411 = vunpack.c.l.b16 %v4180
      %v4412 = vunpack.c.l.b16 %v4181
      %v4413 = vunpack.c.l.b16 %v4182
      %v4414 = vunpack.c.l.b16 %v4183
      %v4415 = vunpack.c.l.b16 %v4184
      %v4416 = vunpack.c.l.b16 %v4185
      %v4417 = vunpack.c.l.b16 %v4186
      %v4418 = vunpack.c.l.b16 %v4187
      %v4419 = vunpack.c.l.b16 %v4188
      %v4420 = vunpack.c.l.b16 %v4189
      %v4421 = vunpack.c.l.b16 %v4190
      %v4422 = vunpack.c.l.b16 %v4191
      %v4423 = vunpack.c.l.b16 %v4192
      %v4424 = vunpack.c.l.b16 %v4193
      %v4425 = vunpack.c.l.b16 %v4194
      %v4426 = vunpack.c.l.b16 %v4195
      %v4427 = vunpack.c.l.b16 %v4196
      %v4428 = vunpack.c.l.b16 %v4197
      %v4429 = vunpack.c.l.b16 %v4198
      %v4430 = vunpack.c.l.b16 %v4199
      %v4431 = vunpack.c.l.b16 %v4200
      %v4432 = vunpack.c.l.b16 %v4201
      %v4433 = vunpack.c.l.b16 %v4202
      %v4434 = vunpack.c.l.b16 %v4203
      %v4435 = vunpack.c.l.b16 %v4204
      %v4436 = vunpack.c.l.b16 %v4205
      %v4437 = vunpack.c.l.b16 %v4206
      %v4438 = vunpack.c.l.b16 %v4207
      %v4439 = vunpack.c.l.b16 %v4208
      %v4440 = vunpack.c.l.b16 %v4209
      %v4441 = vunpack.c.l.b16 %v4210
      %v4442 = vunpack.c.l.b16 %v4211
      %v4443 = vunpack.c.l.b16 %v4212
      %v4444 = vunpack.c.l.b16 %v4213
      %v4445 = vunpack.c.l.b16 %v4214
      %v4446 = vunpack.c.l.b16 %v4215
      %v4447 = vunpack.c.l.b16 %v4216
      %v4448 = vunpack.c.l.b16 %v4217
      %v4449 = vunpack.c.l.b16 %v4218
      %v4450 = vunpack.c.l.b16 %v4219
      %v4451 = vunpack.c.l.b16 %v4220
      %v4452 = vunpack.c.l.b16 %v4221
      %v4453 = vunpack.c.l.b16 %v4222
      %v4454 = vunpack.c.l.b16 %v4223
      %v4455 = vunpack.c.l.b16 %v4224
      %v4456 = vunpack.c.l.b16 %v4225
      %v4457 = vunpack.c.l.b16 %v4226
      %v4458 = vunpack.c.l.b16 %v4227
      %v4459 = vunpack.c.l.b16 %v4228
      %v4460 = vunpack.c.l.b16 %v4229
      %v4461 = vunpack.c.l.b16 %v4230
      %v4462 = vunpack.c.l.b16 %v4231
      %v4463 = vunpack.c.l.b16 %v4232
      %v4464 = vpack.c.b16 %v4353, %v4352
      %v4465 = vpack.c.b16 %v4355, %v4354
      %v4466 = vpack.c.b16 %v4357, %v4356
      %v4467 = vpack.c.b16 %v4359, %v4358
      %v4468 = vpack.c.b16 %v4361, %v4360
      %v4469 = vpack.c.b16 %v4363, %v4362
      %v4470 = vpack.c.b16 %v4365, %v4364
      %v4471 = vpack.c.b16 %v4367, %v4366
      %v4472 = vpack.c.b16 %v4369, %v4368
      %v4473 = vpack.c.b16 %v4371, %v4370
      %v4474 = vpack.c.b16 %v4373, %v4372
      %v4475 = vpack.c.b16 %v4375, %v4374
      %v4476 = vpack.c.b16 %v4377, %v4376
      %v4477 = vpack.c.b16 %v4379, %v4378
      %v4478 = vpack.c.b16 %v4381, %v4380
      %v4479 = vpack.c.b16 %v4383, %v4382
      %v4480 = vpack.c.b16 %v4385, %v4384
      %v4481 = vpack.c.b16 %v4387, %v4386
      %v4482 = vpack.c.b16 %v4389, %v4388
      %v4483 = vpack.c.b16 %v4391, %v4390
      %v4484 = vpack.c.b16 %v4393, %v4392
      %v4485 = vpack.c.b16 %v4395, %v4394
      %v4486 = vpack.c.b16 %v4397, %v4396
      %v4487 = vpack.c.b16 %v4399, %v4398
      %v4488 = vpack.c.b16 %v4401, %v4400
      %v4489 = vpack.c.b16 %v4403, %v4402
      %v4490 = vpack.c.b16 %v4405, %v4404
      %v4491 = vpack.c.b16 %v4407, %v4406
      %v4492 = vpack.c.b16 %v4409, %v4408
      %v4493 = vpack.c.b16 %v4411, %v4410
      %v4494 = vpack.c.b16 %v4413, %v4412
      %v4495 = vpack.c.b16 %v4415, %v4414
      %v4496 = vpack.c.b16 %v4417, %v4416
      %v4497 = vpack.c.b16 %v4419, %v4418
      %v4498 = vpack.c.b16 %v4421, %v4420
      %v4499 = vpack.c.b16 %v4423, %v4422
      %v4500 = vpack.c.b16 %v4425, %v4424
      %v4501 = vpack.c.b16 %v4427, %v4426
      %v4502 = vpack.c.b16 %v4429, %v4428
      %v4503 = vpack.c.b16 %v4431, %v4430
      %v4504 = vpack.c.b16 %v4433, %v4432
      %v4505 = vpack.c.b16 %v4435, %v4434
      %v4506 = vpack.c.b16 %v4437, %v4436
      %v4507 = vpack.c.b16 %v4439, %v4438
      %v4508 = vpack.c.b16 %v4441, %v4440
      %v4509 = vpack.c.b16 %v4443, %v4442
      %v4510 = vpack.c.b16 %v4445, %v4444
      %v4511 = vpack.c.b16 %v4447, %v4446
      %v4512 = vpack.c.b16 %v4449, %v4448
      %v4513 = vpack.c.b16 %v4451, %v4450
      %v4514 = vpack.c.b16 %v4453, %v4452
      %v4515 = vpack.c.b16 %v4455, %v4454
      %v4516 = vpack.c.b16 %v4457, %v4456
      %v4517 = vpack.c.b16 %v4459, %v4458
      %v4518 = vpack.c.b16 %v4461, %v4460
      %v4519 = vpack.c.b16 %v4463, %v4462
      %4576 = vmatprep.subr.bf16.mxu0 0
      %4577 = vmatpush1.bf16.msra.mxu0 %v4471
      %4578 = vmatprep.subr.bf16.mxu0 0
      %4579 = vmatpush1.bf16.msra.mxu0 %v4470
      %4580 = vmatprep.subr.bf16.mxu0 0
      %4581 = vmatpush1.bf16.msra.mxu0 %v4469
      %4582 = vmatprep.subr.bf16.mxu0 0
      %4583 = vmatpush1.bf16.msra.mxu0 %v4468
      %4584 = vmatprep.subr.bf16.mxu0 0
      %4585 = vmatpush1.bf16.msra.mxu0 %v4467
      %4586 = vmatprep.subr.bf16.mxu0 0
      %4587 = vmatpush1.bf16.msra.mxu0 %v4466
      %4588 = vmatprep.subr.bf16.mxu0 0
      %4589 = vmatpush1.bf16.msra.mxu0 %v4465
      %4590 = vmatprep.subr.bf16.mxu0 0
      %4591 = vmatpush1.bf16.msra.mxu0 %v4464
      %4592 = vmatprep.subr.bf16.mxu0 0
      %4593 = vmatpush2.bf16.msra.mxu0 %v4479
      %4594 = vmatprep.subr.bf16.mxu0 0
      %4595 = vmatpush2.bf16.msra.mxu0 %v4478
      %4596 = vmatprep.subr.bf16.mxu0 0
      %4597 = vmatpush2.bf16.msra.mxu0 %v4477
      %4598 = vmatprep.subr.bf16.mxu0 0
      %4599 = vmatpush2.bf16.msra.mxu0 %v4476
      %4600 = vmatprep.subr.bf16.mxu0 0
      %4601 = vmatpush2.bf16.msra.mxu0 %v4475
      %4602 = vmatprep.subr.bf16.mxu0 0
      %4603 = vmatpush2.bf16.msra.mxu0 %v4474
      %4604 = vmatprep.subr.bf16.mxu0 0
      %4605 = vmatpush2.bf16.msra.mxu0 %v4473
      %4606 = vmatprep.subr.bf16.mxu0 0
      %4607 = vmatpush2.bf16.msra.mxu0 %v4472
      %4608 = vmatprep.mubr.bf16.mxu0 %v4010
      %4609 = vmatmul.mubr.bf16.gmra.mxu0 %v4009
      %v4610 = vpop.f32.mrf.mxu0
      %v4611 = vadd.f32 %v4238, %v4610
      %v4612 = vpop.f32.mrf.mxu0
      %v4613 = vpop.f32.mrf.mxu0
      %v4614 = vadd.f32 %v4238, %v4613
      %v4615 = vpop.f32.mrf.mxu0
      %4616 = vmatprep.mubr.bf16.mxu0 %v4017
      %4617 = vmatmul.mubr.bf16.gmra.mxu0 %v4016
      %v4618 = vpop.f32.mrf.mxu0
      %v4619 = vadd.f32 %v4238, %v4618
      %v4620 = vpop.f32.mrf.mxu0
      %v4621 = vpop.f32.mrf.mxu0
      %v4622 = vadd.f32 %v4238, %v4621
      %v4623 = vpop.f32.mrf.mxu0
      %4624 = vmatprep.mubr.bf16.mxu0 %v4024
      %4625 = vmatmul.mubr.bf16.gmra.mxu0 %v4023
      %v4626 = vpop.f32.mrf.mxu0
      %v4627 = vadd.f32 %v4238, %v4626
      %v4628 = vpop.f32.mrf.mxu0
      %v4629 = vpop.f32.mrf.mxu0
      %v4630 = vadd.f32 %v4238, %v4629
      %v4631 = vpop.f32.mrf.mxu0
      %4632 = vmatprep.mubr.bf16.mxu0 %v4031
      %4633 = vmatmul.mubr.bf16.gmra.mxu0 %v4030
      %v4634 = vpop.f32.mrf.mxu0
      %v4635 = vadd.f32 %v4238, %v4634
      %v4636 = vpop.f32.mrf.mxu0
      %v4637 = vpop.f32.mrf.mxu0
      %v4638 = vadd.f32 %v4238, %v4637
      %v4639 = vpop.f32.mrf.mxu0
      %4640 = vmatprep.mubr.bf16.mxu0 %v4038
      %4641 = vmatmul.mubr.bf16.gmra.mxu0 %v4037
      %v4642 = vpop.f32.mrf.mxu0
      %v4643 = vadd.f32 %v4238, %v4642
      %v4644 = vpop.f32.mrf.mxu0
      %v4645 = vpop.f32.mrf.mxu0
      %v4646 = vadd.f32 %v4238, %v4645
      %v4647 = vpop.f32.mrf.mxu0
      %4648 = vmatprep.mubr.bf16.mxu0 %v4045
      %4649 = vmatmul.mubr.bf16.gmra.mxu0 %v4044
      %v4650 = vpop.f32.mrf.mxu0
      %v4651 = vadd.f32 %v4238, %v4650
      %v4652 = vpop.f32.mrf.mxu0
      %v4653 = vpop.f32.mrf.mxu0
      %v4654 = vadd.f32 %v4238, %v4653
      %v4655 = vpop.f32.mrf.mxu0
      %4656 = vmatprep.mubr.bf16.mxu0 %v4052
      %4657 = vmatmul.mubr.bf16.gmra.mxu0 %v4051
      %v4658 = vpop.f32.mrf.mxu0
      %v4659 = vadd.f32 %v4238, %v4658
      %v4660 = vpop.f32.mrf.mxu0
      %v4661 = vpop.f32.mrf.mxu0
      %v4662 = vadd.f32 %v4238, %v4661
      %v4663 = vpop.f32.mrf.mxu0
      %4664 = vmatprep.mubr.bf16.mxu0 %v4059
      %4665 = vmatmul.mubr.bf16.gmra.mxu0 %v4058
      %v4666 = vpop.f32.mrf.mxu0
      %v4667 = vadd.f32 %v4238, %v4666
      %v4668 = vpop.f32.mrf.mxu0
      %v4669 = vpop.f32.mrf.mxu0
      %v4670 = vadd.f32 %v4238, %v4669
      %v4671 = vpop.f32.mrf.mxu0
      %4672 = vmatprep.mubr.bf16.mxu0 %v4066
      %4673 = vmatmul.mubr.bf16.gmra.mxu0 %v4065
      %v4674 = vpop.f32.mrf.mxu0
      %v4675 = vadd.f32 %v4238, %v4674
      %v4676 = vpop.f32.mrf.mxu0
      %v4677 = vpop.f32.mrf.mxu0
      %v4678 = vadd.f32 %v4238, %v4677
      %v4679 = vpop.f32.mrf.mxu0
      %4680 = vmatprep.mubr.bf16.mxu0 %v4073
      %4681 = vmatmul.mubr.bf16.gmra.mxu0 %v4072
      %v4682 = vpop.f32.mrf.mxu0
      %v4683 = vadd.f32 %v4238, %v4682
      %v4684 = vpop.f32.mrf.mxu0
      %v4685 = vpop.f32.mrf.mxu0
      %v4686 = vadd.f32 %v4238, %v4685
      %v4687 = vpop.f32.mrf.mxu0
      %4688 = vmatprep.mubr.bf16.mxu0 %v4080
      %4689 = vmatmul.mubr.bf16.gmra.mxu0 %v4079
      %v4690 = vpop.f32.mrf.mxu0
      %v4691 = vadd.f32 %v4238, %v4690
      %v4692 = vpop.f32.mrf.mxu0
      %v4693 = vpop.f32.mrf.mxu0
      %v4694 = vadd.f32 %v4238, %v4693
      %v4695 = vpop.f32.mrf.mxu0
      %4696 = vmatprep.mubr.bf16.mxu0 %v4087
      %4697 = vmatmul.mubr.bf16.gmra.mxu0 %v4086
      %v4698 = vpop.f32.mrf.mxu0
      %v4699 = vadd.f32 %v4238, %v4698
      %v4700 = vpop.f32.mrf.mxu0
      %v4701 = vpop.f32.mrf.mxu0
      %v4702 = vadd.f32 %v4238, %v4701
      %v4703 = vpop.f32.mrf.mxu0
      %4704 = vmatprep.mubr.bf16.mxu0 %v4094
      %4705 = vmatmul.mubr.bf16.gmra.mxu0 %v4093
      %v4706 = vpop.f32.mrf.mxu0
      %v4707 = vadd.f32 %v4238, %v4706
      %v4708 = vpop.f32.mrf.mxu0
      %v4709 = vpop.f32.mrf.mxu0
      %v4710 = vadd.f32 %v4238, %v4709
      %v4711 = vpop.f32.mrf.mxu0
      %4712 = vmatprep.mubr.bf16.mxu0 %v4101
      %4713 = vmatmul.mubr.bf16.gmra.mxu0 %v4100
      %v4714 = vpop.f32.mrf.mxu0
      %v4715 = vadd.f32 %v4238, %v4714
      %v4716 = vpop.f32.mrf.mxu0
      %v4717 = vpop.f32.mrf.mxu0
      %v4718 = vadd.f32 %v4238, %v4717
      %v4719 = vpop.f32.mrf.mxu0
      %4720 = vmatprep.mubr.bf16.mxu0 %v4108
      %4721 = vmatmul.mubr.bf16.gmra.mxu0 %v4107
      %v4722 = vpop.f32.mrf.mxu0
      %v4723 = vadd.f32 %v4238, %v4722
      %v4724 = vpop.f32.mrf.mxu0
      %v4725 = vpop.f32.mrf.mxu0
      %v4726 = vadd.f32 %v4238, %v4725
      %v4727 = vpop.f32.mrf.mxu0
      %4728 = vmatprep.mubr.bf16.mxu0 %v4115
      %4729 = vmatmul.mubr.bf16.gmra.mxu0 %v4114
      %v4730 = vpop.f32.mrf.mxu0
      %v4731 = vadd.f32 %v4238, %v4730
      %v4732 = vpop.f32.mrf.mxu0
      %v4733 = vpop.f32.mrf.mxu0
      %v4734 = vadd.f32 %v4238, %v4733
      %v4735 = vpop.f32.mrf.mxu0
      %4736 = vdwg.mxu0
      %4737 = vmatprep.subr.bf16.mxu0 0
      %4738 = vmatpush1.bf16.msra.mxu0 %v4487
      %4739 = vmatprep.subr.bf16.mxu0 0
      %4740 = vmatpush1.bf16.msra.mxu0 %v4486
      %4741 = vmatprep.subr.bf16.mxu0 0
      %4742 = vmatpush1.bf16.msra.mxu0 %v4485
      %4743 = vmatprep.subr.bf16.mxu0 0
      %4744 = vmatpush1.bf16.msra.mxu0 %v4484
      %4745 = vmatprep.subr.bf16.mxu0 0
      %4746 = vmatpush1.bf16.msra.mxu0 %v4483
      %4747 = vmatprep.subr.bf16.mxu0 0
      %4748 = vmatpush1.bf16.msra.mxu0 %v4482
      %4749 = vmatprep.subr.bf16.mxu0 0
      %4750 = vmatpush1.bf16.msra.mxu0 %v4481
      %4751 = vmatprep.subr.bf16.mxu0 0
      %4752 = vmatpush1.bf16.msra.mxu0 %v4480
      %4753 = vmatprep.subr.bf16.mxu0 0
      %4754 = vmatpush2.bf16.msra.mxu0 %v4495
      %4755 = vmatprep.subr.bf16.mxu0 0
      %4756 = vmatpush2.bf16.msra.mxu0 %v4494
      %4757 = vmatprep.subr.bf16.mxu0 0
      %4758 = vmatpush2.bf16.msra.mxu0 %v4493
      %4759 = vmatprep.subr.bf16.mxu0 0
      %4760 = vmatpush2.bf16.msra.mxu0 %v4492
      %4761 = vmatprep.subr.bf16.mxu0 0
      %4762 = vmatpush2.bf16.msra.mxu0 %v4491
      %4763 = vmatprep.subr.bf16.mxu0 0
      %4764 = vmatpush2.bf16.msra.mxu0 %v4490
      %4765 = vmatprep.subr.bf16.mxu0 0
      %4766 = vmatpush2.bf16.msra.mxu0 %v4489
      %4767 = vmatprep.subr.bf16.mxu0 0
      %4768 = vmatpush2.bf16.msra.mxu0 %v4488
      %4769 = vmatprep.mubr.bf16.mxu0 %v4012
      %4770 = vmatmul.mubr.bf16.gmra.mxu0 %v4011
      %v4771 = vpop.f32.mrf.mxu0
      %v4772 = vadd.f32 %v4611, %v4771
      %v4773 = vpop.f32.mrf.mxu0
      %v4774 = vpop.f32.mrf.mxu0
      %v4775 = vadd.f32 %v4614, %v4774
      %v4776 = vpop.f32.mrf.mxu0
      %4777 = vmatprep.mubr.bf16.mxu0 %v4019
      %4778 = vmatmul.mubr.bf16.gmra.mxu0 %v4018
      %v4779 = vpop.f32.mrf.mxu0
      %v4780 = vadd.f32 %v4619, %v4779
      %v4781 = vpop.f32.mrf.mxu0
      %v4782 = vpop.f32.mrf.mxu0
      %v4783 = vadd.f32 %v4622, %v4782
      %v4784 = vpop.f32.mrf.mxu0
      %4785 = vmatprep.mubr.bf16.mxu0 %v4026
      %4786 = vmatmul.mubr.bf16.gmra.mxu0 %v4025
      %v4787 = vpop.f32.mrf.mxu0
      %v4788 = vadd.f32 %v4627, %v4787
      %v4789 = vpop.f32.mrf.mxu0
      %v4790 = vpop.f32.mrf.mxu0
      %v4791 = vadd.f32 %v4630, %v4790
      %v4792 = vpop.f32.mrf.mxu0
      %4793 = vmatprep.mubr.bf16.mxu0 %v4033
      %4794 = vmatmul.mubr.bf16.gmra.mxu0 %v4032
      %v4795 = vpop.f32.mrf.mxu0
      %v4796 = vadd.f32 %v4635, %v4795
      %v4797 = vpop.f32.mrf.mxu0
      %v4798 = vpop.f32.mrf.mxu0
      %v4799 = vadd.f32 %v4638, %v4798
      %v4800 = vpop.f32.mrf.mxu0
      %4801 = vmatprep.mubr.bf16.mxu0 %v4040
      %4802 = vmatmul.mubr.bf16.gmra.mxu0 %v4039
      %v4803 = vpop.f32.mrf.mxu0
      %v4804 = vadd.f32 %v4643, %v4803
      %v4805 = vpop.f32.mrf.mxu0
      %v4806 = vpop.f32.mrf.mxu0
      %v4807 = vadd.f32 %v4646, %v4806
      %v4808 = vpop.f32.mrf.mxu0
      %4809 = vmatprep.mubr.bf16.mxu0 %v4047
      %4810 = vmatmul.mubr.bf16.gmra.mxu0 %v4046
      %v4811 = vpop.f32.mrf.mxu0
      %v4812 = vadd.f32 %v4651, %v4811
      %v4813 = vpop.f32.mrf.mxu0
      %v4814 = vpop.f32.mrf.mxu0
      %v4815 = vadd.f32 %v4654, %v4814
      %v4816 = vpop.f32.mrf.mxu0
      %4817 = vmatprep.mubr.bf16.mxu0 %v4054
      %4818 = vmatmul.mubr.bf16.gmra.mxu0 %v4053
      %v4819 = vpop.f32.mrf.mxu0
      %v4820 = vadd.f32 %v4659, %v4819
      %v4821 = vpop.f32.mrf.mxu0
      %v4822 = vpop.f32.mrf.mxu0
      %v4823 = vadd.f32 %v4662, %v4822
      %v4824 = vpop.f32.mrf.mxu0
      %4825 = vmatprep.mubr.bf16.mxu0 %v4061
      %4826 = vmatmul.mubr.bf16.gmra.mxu0 %v4060
      %v4827 = vpop.f32.mrf.mxu0
      %v4828 = vadd.f32 %v4667, %v4827
      %v4829 = vpop.f32.mrf.mxu0
      %v4830 = vpop.f32.mrf.mxu0
      %v4831 = vadd.f32 %v4670, %v4830
      %v4832 = vpop.f32.mrf.mxu0
      %4833 = vmatprep.mubr.bf16.mxu0 %v4068
      %4834 = vmatmul.mubr.bf16.gmra.mxu0 %v4067
      %v4835 = vpop.f32.mrf.mxu0
      %v4836 = vadd.f32 %v4675, %v4835
      %v4837 = vpop.f32.mrf.mxu0
      %v4838 = vpop.f32.mrf.mxu0
      %v4839 = vadd.f32 %v4678, %v4838
      %v4840 = vpop.f32.mrf.mxu0
      %4841 = vmatprep.mubr.bf16.mxu0 %v4075
      %4842 = vmatmul.mubr.bf16.gmra.mxu0 %v4074
      %v4843 = vpop.f32.mrf.mxu0
      %v4844 = vadd.f32 %v4683, %v4843
      %v4845 = vpop.f32.mrf.mxu0
      %v4846 = vpop.f32.mrf.mxu0
      %v4847 = vadd.f32 %v4686, %v4846
      %v4848 = vpop.f32.mrf.mxu0
      %4849 = vmatprep.mubr.bf16.mxu0 %v4082
      %4850 = vmatmul.mubr.bf16.gmra.mxu0 %v4081
      %v4851 = vpop.f32.mrf.mxu0
      %v4852 = vadd.f32 %v4691, %v4851
      %v4853 = vpop.f32.mrf.mxu0
      %v4854 = vpop.f32.mrf.mxu0
      %v4855 = vadd.f32 %v4694, %v4854
      %v4856 = vpop.f32.mrf.mxu0
      %4857 = vmatprep.mubr.bf16.mxu0 %v4089
      %4858 = vmatmul.mubr.bf16.gmra.mxu0 %v4088
      %v4859 = vpop.f32.mrf.mxu0
      %v4860 = vadd.f32 %v4699, %v4859
      %v4861 = vpop.f32.mrf.mxu0
      %v4862 = vpop.f32.mrf.mxu0
      %v4863 = vadd.f32 %v4702, %v4862
      %v4864 = vpop.f32.mrf.mxu0
      %4865 = vmatprep.mubr.bf16.mxu0 %v4096
      %4866 = vmatmul.mubr.bf16.gmra.mxu0 %v4095
      %v4867 = vpop.f32.mrf.mxu0
      %v4868 = vadd.f32 %v4707, %v4867
      %v4869 = vpop.f32.mrf.mxu0
      %v4870 = vpop.f32.mrf.mxu0
      %v4871 = vadd.f32 %v4710, %v4870
      %v4872 = vpop.f32.mrf.mxu0
      %4873 = vmatprep.mubr.bf16.mxu0 %v4103
      %4874 = vmatmul.mubr.bf16.gmra.mxu0 %v4102
      %v4875 = vpop.f32.mrf.mxu0
      %v4876 = vadd.f32 %v4715, %v4875
      %v4877 = vpop.f32.mrf.mxu0
      %v4878 = vpop.f32.mrf.mxu0
      %v4879 = vadd.f32 %v4718, %v4878
      %v4880 = vpop.f32.mrf.mxu0
      %4881 = vmatprep.mubr.bf16.mxu0 %v4110
      %4882 = vmatmul.mubr.bf16.gmra.mxu0 %v4109
      %v4883 = vpop.f32.mrf.mxu0
      %v4884 = vadd.f32 %v4723, %v4883
      %v4885 = vpop.f32.mrf.mxu0
      %v4886 = vpop.f32.mrf.mxu0
      %v4887 = vadd.f32 %v4726, %v4886
      %v4888 = vpop.f32.mrf.mxu0
      %4889 = vmatprep.mubr.bf16.mxu0 %v4117
      %4890 = vmatmul.mubr.bf16.gmra.mxu0 %v4116
      %v4891 = vpop.f32.mrf.mxu0
      %v4892 = vadd.f32 %v4731, %v4891
      %v4893 = vpop.f32.mrf.mxu0
      %v4894 = vpop.f32.mrf.mxu0
      %v4895 = vadd.f32 %v4734, %v4894
      %v4896 = vpop.f32.mrf.mxu0
      %4897 = vdwg.mxu0
      %4898 = vmatprep.subr.bf16.mxu0 0
      %4899 = vmatpush1.bf16.msra.mxu0 %v4503
      %4900 = vmatprep.subr.bf16.mxu0 0
      %4901 = vmatpush1.bf16.msra.mxu0 %v4502
      %4902 = vmatprep.subr.bf16.mxu0 0
      %4903 = vmatpush1.bf16.msra.mxu0 %v4501
      %4904 = vmatprep.subr.bf16.mxu0 0
      %4905 = vmatpush1.bf16.msra.mxu0 %v4500
      %4906 = vmatprep.subr.bf16.mxu0 0
      %4907 = vmatpush1.bf16.msra.mxu0 %v4499
      %4908 = vmatprep.subr.bf16.mxu0 0
      %4909 = vmatpush1.bf16.msra.mxu0 %v4498
      %4910 = vmatprep.subr.bf16.mxu0 0
      %4911 = vmatpush1.bf16.msra.mxu0 %v4497
      %4912 = vmatprep.subr.bf16.mxu0 0
      %4913 = vmatpush1.bf16.msra.mxu0 %v4496
      %4914 = vmatprep.subr.bf16.mxu0 0
      %4915 = vmatpush2.bf16.msra.mxu0 %v4511
      %4916 = vmatprep.subr.bf16.mxu0 0
      %4917 = vmatpush2.bf16.msra.mxu0 %v4510
      %4918 = vmatprep.subr.bf16.mxu0 0
      %4919 = vmatpush2.bf16.msra.mxu0 %v4509
      %4920 = vmatprep.subr.bf16.mxu0 0
      %4921 = vmatpush2.bf16.msra.mxu0 %v4508
      %4922 = vmatprep.subr.bf16.mxu0 0
      %4923 = vmatpush2.bf16.msra.mxu0 %v4507
      %4924 = vmatprep.subr.bf16.mxu0 0
      %4925 = vmatpush2.bf16.msra.mxu0 %v4506
      %4926 = vmatprep.subr.bf16.mxu0 0
      %4927 = vmatpush2.bf16.msra.mxu0 %v4505
      %4928 = vmatprep.subr.bf16.mxu0 0
      %4929 = vmatpush2.bf16.msra.mxu0 %v4504
      %4930 = vmatprep.mubr.bf16.mxu0 %v4014
      %4931 = vmatmul.mubr.bf16.gmra.mxu0 %v4013
      %v4932 = vpop.f32.mrf.mxu0
      %v4933 = vadd.f32 %v4772, %v4932
      %v4934 = vpop.f32.mrf.mxu0
      %v4935 = vpop.f32.mrf.mxu0
      %v4936 = vadd.f32 %v4775, %v4935
      %v4937 = vpop.f32.mrf.mxu0
      %4938 = vmatprep.mubr.bf16.mxu0 %v4021
      %4939 = vmatmul.mubr.bf16.gmra.mxu0 %v4020
      %v4940 = vpop.f32.mrf.mxu0
      %v4941 = vadd.f32 %v4780, %v4940
      %v4942 = vpop.f32.mrf.mxu0
      %v4943 = vpop.f32.mrf.mxu0
      %v4944 = vadd.f32 %v4783, %v4943
      %v4945 = vpop.f32.mrf.mxu0
      %4946 = vmatprep.mubr.bf16.mxu0 %v4028
      %4947 = vmatmul.mubr.bf16.gmra.mxu0 %v4027
      %v4948 = vpop.f32.mrf.mxu0
      %v4949 = vadd.f32 %v4788, %v4948
      %v4950 = vpop.f32.mrf.mxu0
      %v4951 = vpop.f32.mrf.mxu0
      %v4952 = vadd.f32 %v4791, %v4951
      %v4953 = vpop.f32.mrf.mxu0
      %4954 = vmatprep.mubr.bf16.mxu0 %v4035
      %4955 = vmatmul.mubr.bf16.gmra.mxu0 %v4034
      %v4956 = vpop.f32.mrf.mxu0
      %v4957 = vadd.f32 %v4796, %v4956
      %v4958 = vpop.f32.mrf.mxu0
      %v4959 = vpop.f32.mrf.mxu0
      %v4960 = vadd.f32 %v4799, %v4959
      %v4961 = vpop.f32.mrf.mxu0
      %4962 = vmatprep.mubr.bf16.mxu0 %v4042
      %4963 = vmatmul.mubr.bf16.gmra.mxu0 %v4041
      %v4964 = vpop.f32.mrf.mxu0
      %v4965 = vadd.f32 %v4804, %v4964
      %v4966 = vpop.f32.mrf.mxu0
      %v4967 = vpop.f32.mrf.mxu0
      %v4968 = vadd.f32 %v4807, %v4967
      %v4969 = vpop.f32.mrf.mxu0
      %4970 = vmatprep.mubr.bf16.mxu0 %v4049
      %4971 = vmatmul.mubr.bf16.gmra.mxu0 %v4048
      %v4972 = vpop.f32.mrf.mxu0
      %v4973 = vadd.f32 %v4812, %v4972
      %v4974 = vpop.f32.mrf.mxu0
      %v4975 = vpop.f32.mrf.mxu0
      %v4976 = vadd.f32 %v4815, %v4975
      %v4977 = vpop.f32.mrf.mxu0
      %4978 = vmatprep.mubr.bf16.mxu0 %v4056
      %4979 = vmatmul.mubr.bf16.gmra.mxu0 %v4055
      %v4980 = vpop.f32.mrf.mxu0
      %v4981 = vadd.f32 %v4820, %v4980
      %v4982 = vpop.f32.mrf.mxu0
      %v4983 = vpop.f32.mrf.mxu0
      %v4984 = vadd.f32 %v4823, %v4983
      %v4985 = vpop.f32.mrf.mxu0
      %4986 = vmatprep.mubr.bf16.mxu0 %v4063
      %4987 = vmatmul.mubr.bf16.gmra.mxu0 %v4062
      %v4988 = vpop.f32.mrf.mxu0
      %v4989 = vadd.f32 %v4828, %v4988
      %v4990 = vpop.f32.mrf.mxu0
      %v4991 = vpop.f32.mrf.mxu0
      %v4992 = vadd.f32 %v4831, %v4991
      %v4993 = vpop.f32.mrf.mxu0
      %4994 = vmatprep.mubr.bf16.mxu0 %v4070
      %4995 = vmatmul.mubr.bf16.gmra.mxu0 %v4069
      %v4996 = vpop.f32.mrf.mxu0
      %v4997 = vadd.f32 %v4836, %v4996
      %v4998 = vpop.f32.mrf.mxu0
      %v4999 = vpop.f32.mrf.mxu0
      %v5000 = vadd.f32 %v4839, %v4999
      %v5001 = vpop.f32.mrf.mxu0
      %5002 = vmatprep.mubr.bf16.mxu0 %v4077
      %5003 = vmatmul.mubr.bf16.gmra.mxu0 %v4076
      %v5004 = vpop.f32.mrf.mxu0
      %v5005 = vadd.f32 %v4844, %v5004
      %v5006 = vpop.f32.mrf.mxu0
      %v5007 = vpop.f32.mrf.mxu0
      %v5008 = vadd.f32 %v4847, %v5007
      %v5009 = vpop.f32.mrf.mxu0
      %5010 = vmatprep.mubr.bf16.mxu0 %v4084
      %5011 = vmatmul.mubr.bf16.gmra.mxu0 %v4083
      %v5012 = vpop.f32.mrf.mxu0
      %v5013 = vadd.f32 %v4852, %v5012
      %v5014 = vpop.f32.mrf.mxu0
      %v5015 = vpop.f32.mrf.mxu0
      %v5016 = vadd.f32 %v4855, %v5015
      %v5017 = vpop.f32.mrf.mxu0
      %5018 = vmatprep.mubr.bf16.mxu0 %v4091
      %5019 = vmatmul.mubr.bf16.gmra.mxu0 %v4090
      %v5020 = vpop.f32.mrf.mxu0
      %v5021 = vadd.f32 %v4860, %v5020
      %v5022 = vpop.f32.mrf.mxu0
      %v5023 = vpop.f32.mrf.mxu0
      %v5024 = vadd.f32 %v4863, %v5023
      %v5025 = vpop.f32.mrf.mxu0
      %5026 = vmatprep.mubr.bf16.mxu0 %v4098
      %5027 = vmatmul.mubr.bf16.gmra.mxu0 %v4097
      %v5028 = vpop.f32.mrf.mxu0
      %v5029 = vadd.f32 %v4868, %v5028
      %v5030 = vpop.f32.mrf.mxu0
      %v5031 = vpop.f32.mrf.mxu0
      %v5032 = vadd.f32 %v4871, %v5031
      %v5033 = vpop.f32.mrf.mxu0
      %5034 = vmatprep.mubr.bf16.mxu0 %v4105
      %5035 = vmatmul.mubr.bf16.gmra.mxu0 %v4104
      %v5036 = vpop.f32.mrf.mxu0
      %v5037 = vadd.f32 %v4876, %v5036
      %v5038 = vpop.f32.mrf.mxu0
      %v5039 = vpop.f32.mrf.mxu0
      %v5040 = vadd.f32 %v4879, %v5039
      %v5041 = vpop.f32.mrf.mxu0
      %5042 = vmatprep.mubr.bf16.mxu0 %v4112
      %5043 = vmatmul.mubr.bf16.gmra.mxu0 %v4111
      %v5044 = vpop.f32.mrf.mxu0
      %v5045 = vadd.f32 %v4884, %v5044
      %v5046 = vpop.f32.mrf.mxu0
      %v5047 = vpop.f32.mrf.mxu0
      %v5048 = vadd.f32 %v4887, %v5047
      %v5049 = vpop.f32.mrf.mxu0
      %5050 = vmatprep.mubr.bf16.mxu0 %v4119
      %5051 = vmatmul.mubr.bf16.gmra.mxu0 %v4118
      %v5052 = vpop.f32.mrf.mxu0
      %v5053 = vadd.f32 %v4892, %v5052
      %v5054 = vpop.f32.mrf.mxu0
      %v5055 = vpop.f32.mrf.mxu0
      %v5056 = vadd.f32 %v4895, %v5055
      %v5057 = vpop.f32.mrf.mxu0
      %5058 = vdwg.mxu0
      %5059 = vmatprep.subr.bf16.mxu0 0
      %5060 = vmatpush1.bf16.msra.mxu0 %v4519
      %5061 = vmatprep.subr.bf16.mxu0 0
      %5062 = vmatpush1.bf16.msra.mxu0 %v4518
      %5063 = vmatprep.subr.bf16.mxu0 0
      %5064 = vmatpush1.bf16.msra.mxu0 %v4517
      %5065 = vmatprep.subr.bf16.mxu0 0
      %5066 = vmatpush1.bf16.msra.mxu0 %v4516
      %5067 = vmatprep.subr.bf16.mxu0 0
      %5068 = vmatpush1.bf16.msra.mxu0 %v4515
      %5069 = vmatprep.subr.bf16.mxu0 0
      %5070 = vmatpush1.bf16.msra.mxu0 %v4514
      %5071 = vmatprep.subr.bf16.mxu0 0
      %5072 = vmatpush1.bf16.msra.mxu0 %v4513
      %5073 = vmatprep.subr.bf16.mxu0 0
      %5074 = vmatpush1.bf16.msra.mxu0 %v4512
      %5075 = vmatprep.subr.bf16.mxu0 0
      %5076 = vmatpush2.bf16.msra.mxu0 0
      %5077 = vmatprep.subr.bf16.mxu0 0
      %5078 = vmatpush2.bf16.msra.mxu0 0
      %5079 = vmatprep.subr.bf16.mxu0 0
      %5080 = vmatpush2.bf16.msra.mxu0 0
      %5081 = vmatprep.subr.bf16.mxu0 0
      %5082 = vmatpush2.bf16.msra.mxu0 0
      %5083 = vmatprep.subr.bf16.mxu0 0
      %5084 = vmatpush2.bf16.msra.mxu0 0
      %5085 = vmatprep.subr.bf16.mxu0 0
      %5086 = vmatpush2.bf16.msra.mxu0 0
      %5087 = vmatprep.subr.bf16.mxu0 0
      %5088 = vmatpush2.bf16.msra.mxu0 0
      %5089 = vmatprep.subr.bf16.mxu0 0
      %5090 = vmatpush2.bf16.msra.mxu0 0
      %5091 = vmatprep.mubr.bf16.mxu0 0
      %5092 = vmatmul.mubr.bf16.gmra.mxu0 %v4015
      %v5093 = vpop.f32.mrf.mxu0
      %v5094 = vadd.f32 %v4933, %v5093
      %v5095 = vpop.f32.mrf.mxu0
      %v5096 = vpop.f32.mrf.mxu0
      %v5097 = vadd.f32 %v4936, %v5096
      %v5098 = vpop.f32.mrf.mxu0
      %5099 = vmatprep.mubr.bf16.mxu0 0
      %5100 = vmatmul.mubr.bf16.gmra.mxu0 %v4022
      %v5101 = vpop.f32.mrf.mxu0
      %v5102 = vadd.f32 %v4941, %v5101
      %v5103 = vpop.f32.mrf.mxu0
      %v5104 = vpop.f32.mrf.mxu0
      %v5105 = vadd.f32 %v4944, %v5104
      %v5106 = vpop.f32.mrf.mxu0
      %5107 = vmatprep.mubr.bf16.mxu0 0
      %5108 = vmatmul.mubr.bf16.gmra.mxu0 %v4029
      %v5109 = vpop.f32.mrf.mxu0
      %v5110 = vadd.f32 %v4949, %v5109
      %v5111 = vpop.f32.mrf.mxu0
      %v5112 = vpop.f32.mrf.mxu0
      %v5113 = vadd.f32 %v4952, %v5112
      %v5114 = vpop.f32.mrf.mxu0
      %5115 = vmatprep.mubr.bf16.mxu0 0
      %5116 = vmatmul.mubr.bf16.gmra.mxu0 %v4036
      %v5117 = vpop.f32.mrf.mxu0
      %v5118 = vadd.f32 %v4957, %v5117
      %v5119 = vpop.f32.mrf.mxu0
      %v5120 = vpop.f32.mrf.mxu0
      %v5121 = vadd.f32 %v4960, %v5120
      %v5122 = vpop.f32.mrf.mxu0
      %5123 = vmatprep.mubr.bf16.mxu0 0
      %5124 = vmatmul.mubr.bf16.gmra.mxu0 %v4043
      %v5125 = vpop.f32.mrf.mxu0
      %v5126 = vadd.f32 %v4965, %v5125
      %v5127 = vpop.f32.mrf.mxu0
      %v5128 = vpop.f32.mrf.mxu0
      %v5129 = vadd.f32 %v4968, %v5128
      %v5130 = vpop.f32.mrf.mxu0
      %5131 = vmatprep.mubr.bf16.mxu0 0
      %5132 = vmatmul.mubr.bf16.gmra.mxu0 %v4050
      %v5133 = vpop.f32.mrf.mxu0
      %v5134 = vadd.f32 %v4973, %v5133
      %v5135 = vpop.f32.mrf.mxu0
      %v5136 = vpop.f32.mrf.mxu0
      %v5137 = vadd.f32 %v4976, %v5136
      %v5138 = vpop.f32.mrf.mxu0
      %5139 = vmatprep.mubr.bf16.mxu0 0
      %5140 = vmatmul.mubr.bf16.gmra.mxu0 %v4057
      %v5141 = vpop.f32.mrf.mxu0
      %v5142 = vadd.f32 %v4981, %v5141
      %v5143 = vpop.f32.mrf.mxu0
      %v5144 = vpop.f32.mrf.mxu0
      %v5145 = vadd.f32 %v4984, %v5144
      %v5146 = vpop.f32.mrf.mxu0
      %5147 = vmatprep.mubr.bf16.mxu0 0
      %5148 = vmatmul.mubr.bf16.gmra.mxu0 %v4064
      %v5149 = vpop.f32.mrf.mxu0
      %v5150 = vadd.f32 %v4989, %v5149
      %v5151 = vpop.f32.mrf.mxu0
      %v5152 = vpop.f32.mrf.mxu0
      %v5153 = vadd.f32 %v4992, %v5152
      %v5154 = vpop.f32.mrf.mxu0
      %5155 = vmatprep.mubr.bf16.mxu0 0
      %5156 = vmatmul.mubr.bf16.gmra.mxu0 %v4071
      %v5157 = vpop.f32.mrf.mxu0
      %v5158 = vadd.f32 %v4997, %v5157
      %v5159 = vpop.f32.mrf.mxu0
      %v5160 = vpop.f32.mrf.mxu0
      %v5161 = vadd.f32 %v5000, %v5160
      %v5162 = vpop.f32.mrf.mxu0
      %5163 = vmatprep.mubr.bf16.mxu0 0
      %5164 = vmatmul.mubr.bf16.gmra.mxu0 %v4078
      %v5165 = vpop.f32.mrf.mxu0
      %v5166 = vadd.f32 %v5005, %v5165
      %v5167 = vpop.f32.mrf.mxu0
      %v5168 = vpop.f32.mrf.mxu0
      %v5169 = vadd.f32 %v5008, %v5168
      %v5170 = vpop.f32.mrf.mxu0
      %5171 = vmatprep.mubr.bf16.mxu0 0
      %5172 = vmatmul.mubr.bf16.gmra.mxu0 %v4085
      %v5173 = vpop.f32.mrf.mxu0
      %v5174 = vadd.f32 %v5013, %v5173
      %v5175 = vpop.f32.mrf.mxu0
      %v5176 = vpop.f32.mrf.mxu0
      %v5177 = vadd.f32 %v5016, %v5176
      %v5178 = vpop.f32.mrf.mxu0
      %5179 = vmatprep.mubr.bf16.mxu0 0
      %5180 = vmatmul.mubr.bf16.gmra.mxu0 %v4092
      %v5181 = vpop.f32.mrf.mxu0
      %v5182 = vadd.f32 %v5021, %v5181
      %v5183 = vpop.f32.mrf.mxu0
      %v5184 = vpop.f32.mrf.mxu0
      %v5185 = vadd.f32 %v5024, %v5184
      %v5186 = vpop.f32.mrf.mxu0
      %5187 = vmatprep.mubr.bf16.mxu0 0
      %5188 = vmatmul.mubr.bf16.gmra.mxu0 %v4099
      %v5189 = vpop.f32.mrf.mxu0
      %v5190 = vadd.f32 %v5029, %v5189
      %v5191 = vpop.f32.mrf.mxu0
      %v5192 = vpop.f32.mrf.mxu0
      %v5193 = vadd.f32 %v5032, %v5192
      %v5194 = vpop.f32.mrf.mxu0
      %5195 = vmatprep.mubr.bf16.mxu0 0
      %5196 = vmatmul.mubr.bf16.gmra.mxu0 %v4106
      %v5197 = vpop.f32.mrf.mxu0
      %v5198 = vadd.f32 %v5037, %v5197
      %v5199 = vpop.f32.mrf.mxu0
      %v5200 = vpop.f32.mrf.mxu0
      %v5201 = vadd.f32 %v5040, %v5200
      %v5202 = vpop.f32.mrf.mxu0
      %5203 = vmatprep.mubr.bf16.mxu0 0
      %5204 = vmatmul.mubr.bf16.gmra.mxu0 %v4113
      %v5205 = vpop.f32.mrf.mxu0
      %v5206 = vadd.f32 %v5045, %v5205
      %v5207 = vpop.f32.mrf.mxu0
      %v5208 = vpop.f32.mrf.mxu0
      %v5209 = vadd.f32 %v5048, %v5208
      %v5210 = vpop.f32.mrf.mxu0
      %5211 = vmatprep.mubr.bf16.mxu0 0
      %5212 = vmatmul.mubr.bf16.gmra.mxu0 %v4120
      %v5213 = vpop.f32.mrf.mxu0
      %v5214 = vadd.f32 %v5053, %v5213
      %v5215 = vpop.f32.mrf.mxu0
      %v5216 = vpop.f32.mrf.mxu0
      %v5217 = vadd.f32 %v5056, %v5216
      %v5218 = vpop.f32.mrf.mxu0
      %5219 = vdwg.mxu0
      %vm5220 = vcmp.ge.f32.partialorder %v5094, 0.0
      %vm5221 = vcmp.ge.f32.partialorder %v5097, 0.0
      %vm5222 = vcmp.ge.f32.partialorder %v5102, 0.0
      %vm5223 = vcmp.ge.f32.partialorder %v5105, 0.0
      %vm5224 = vcmp.ge.f32.partialorder %v5110, 0.0
      %vm5225 = vcmp.ge.f32.partialorder %v5113, 0.0
      %vm5226 = vcmp.ge.f32.partialorder %v5118, 0.0
      %vm5227 = vcmp.ge.f32.partialorder %v5121, 0.0
      %vm5228 = vcmp.ge.f32.partialorder %v5126, 0.0
      %vm5229 = vcmp.ge.f32.partialorder %v5129, 0.0
      %vm5230 = vcmp.ge.f32.partialorder %v5134, 0.0
      %vm5231 = vcmp.ge.f32.partialorder %v5137, 0.0
      %vm5232 = vcmp.ge.f32.partialorder %v5142, 0.0
      %vm5233 = vcmp.ge.f32.partialorder %v5145, 0.0
      %vm5234 = vcmp.ge.f32.partialorder %v5150, 0.0
      %vm5235 = vcmp.ge.f32.partialorder %v5153, 0.0
      %vm5236 = vcmp.ge.f32.partialorder %v5158, 0.0
      %vm5237 = vcmp.ge.f32.partialorder %v5161, 0.0
      %vm5238 = vcmp.ge.f32.partialorder %v5166, 0.0
      %vm5239 = vcmp.ge.f32.partialorder %v5169, 0.0
      %vm5240 = vcmp.ge.f32.partialorder %v5174, 0.0
      %vm5241 = vcmp.ge.f32.partialorder %v5177, 0.0
      %vm5242 = vcmp.ge.f32.partialorder %v5182, 0.0
      %vm5243 = vcmp.ge.f32.partialorder %v5185, 0.0
      %vm5244 = vcmp.ge.f32.partialorder %v5190, 0.0
      %vm5245 = vcmp.ge.f32.partialorder %v5193, 0.0
      %vm5246 = vcmp.ge.f32.partialorder %v5198, 0.0
      %vm5247 = vcmp.ge.f32.partialorder %v5201, 0.0
      %vm5248 = vcmp.ge.f32.partialorder %v5206, 0.0
      %vm5249 = vcmp.ge.f32.partialorder %v5209, 0.0
      %vm5250 = vcmp.ge.f32.partialorder %v5214, 0.0
      %vm5251 = vcmp.ge.f32.partialorder %v5217, 0.0
      %v5252 = vmul.f32 %v5094, 0.2
      %v5253 = vmul.f32 %v5097, 0.2
      %v5254 = vmul.f32 %v5102, 0.2
      %v5255 = vmul.f32 %v5105, 0.2
      %v5256 = vmul.f32 %v5110, 0.2
      %v5257 = vmul.f32 %v5113, 0.2
      %v5258 = vmul.f32 %v5118, 0.2
      %v5259 = vmul.f32 %v5121, 0.2
      %v5260 = vmul.f32 %v5126, 0.2
      %v5261 = vmul.f32 %v5129, 0.2
      %v5262 = vmul.f32 %v5134, 0.2
      %v5263 = vmul.f32 %v5137, 0.2
      %v5264 = vmul.f32 %v5142, 0.2
      %v5265 = vmul.f32 %v5145, 0.2
      %v5266 = vmul.f32 %v5150, 0.2
      %v5267 = vmul.f32 %v5153, 0.2
      %v5268 = vmul.f32 %v5158, 0.2
      %v5269 = vmul.f32 %v5161, 0.2
      %v5270 = vmul.f32 %v5166, 0.2
      %v5271 = vmul.f32 %v5169, 0.2
      %v5272 = vmul.f32 %v5174, 0.2
      %v5273 = vmul.f32 %v5177, 0.2
      %v5274 = vmul.f32 %v5182, 0.2
      %v5275 = vmul.f32 %v5185, 0.2
      %v5276 = vmul.f32 %v5190, 0.2
      %v5277 = vmul.f32 %v5193, 0.2
      %v5278 = vmul.f32 %v5198, 0.2
      %v5279 = vmul.f32 %v5201, 0.2
      %v5280 = vmul.f32 %v5206, 0.2
      %v5281 = vmul.f32 %v5209, 0.2
      %v5282 = vmul.f32 %v5214, 0.2
      %v5283 = vmul.f32 %v5217, 0.2
      %v5284 = vsel %vm5220, %v5094, %v5252
      %v5285 = vsel %vm5221, %v5097, %v5253
      %v5286 = vsel %vm5222, %v5102, %v5254
      %v5287 = vsel %vm5223, %v5105, %v5255
      %v5288 = vsel %vm5224, %v5110, %v5256
      %v5289 = vsel %vm5225, %v5113, %v5257
      %v5290 = vsel %vm5226, %v5118, %v5258
      %v5291 = vsel %vm5227, %v5121, %v5259
      %v5292 = vsel %vm5228, %v5126, %v5260
      %v5293 = vsel %vm5229, %v5129, %v5261
      %v5294 = vsel %vm5230, %v5134, %v5262
      %v5295 = vsel %vm5231, %v5137, %v5263
      %v5296 = vsel %vm5232, %v5142, %v5264
      %v5297 = vsel %vm5233, %v5145, %v5265
      %v5298 = vsel %vm5234, %v5150, %v5266
      %v5299 = vsel %vm5235, %v5153, %v5267
      %v5300 = vsel %vm5236, %v5158, %v5268
      %v5301 = vsel %vm5237, %v5161, %v5269
      %v5302 = vsel %vm5238, %v5166, %v5270
      %v5303 = vsel %vm5239, %v5169, %v5271
      %v5304 = vsel %vm5240, %v5174, %v5272
      %v5305 = vsel %vm5241, %v5177, %v5273
      %v5306 = vsel %vm5242, %v5182, %v5274
      %v5307 = vsel %vm5243, %v5185, %v5275
      %v5308 = vsel %vm5244, %v5190, %v5276
      %v5309 = vsel %vm5245, %v5193, %v5277
      %v5310 = vsel %vm5246, %v5198, %v5278
      %v5311 = vsel %vm5247, %v5201, %v5279
      %v5312 = vsel %vm5248, %v5206, %v5280
      %v5313 = vsel %vm5249, %v5209, %v5281
      %v5314 = vsel %vm5250, %v5214, %v5282
      %v5315 = vsel %vm5251, %v5217, %v5283
      %vm5348 = vcmask 1040384
      %v5349 = vrot.slane %v5284, 7
      %v5350 = vrot.slane %v5285, 7
      %v5351 = vsel %vm5348, %v5349, %v5350
      %v5352 = vrot.slane %v5286, 7
      %v5353 = vsel %vm5348, %v5350, %v5352
      %v5354 = vrot.slane %v5287, 7
      %v5355 = vsel %vm5348, %v5352, %v5354
      %v5356 = vrot.slane %v5288, 7
      %v5357 = vsel %vm5348, %v5354, %v5356
      %v5358 = vrot.slane %v5289, 7
      %v5359 = vsel %vm5348, %v5356, %v5358
      %v5360 = vrot.slane %v5290, 7
      %v5361 = vsel %vm5348, %v5358, %v5360
      %v5362 = vrot.slane %v5291, 7
      %v5363 = vsel %vm5348, %v5360, %v5362
      %v5364 = vrot.slane %v5292, 7
      %v5365 = vsel %vm5348, %v5362, %v5364
      %v5366 = vrot.slane %v5293, 7
      %v5367 = vsel %vm5348, %v5364, %v5366
      %v5368 = vrot.slane %v5294, 7
      %v5369 = vsel %vm5348, %v5366, %v5368
      %v5370 = vrot.slane %v5295, 7
      %v5371 = vsel %vm5348, %v5368, %v5370
      %v5372 = vrot.slane %v5296, 7
      %v5373 = vsel %vm5348, %v5370, %v5372
      %v5374 = vrot.slane %v5297, 7
      %v5375 = vsel %vm5348, %v5372, %v5374
      %v5376 = vrot.slane %v5298, 7
      %v5377 = vsel %vm5348, %v5374, %v5376
      %v5378 = vrot.slane %v5299, 7
      %v5379 = vsel %vm5348, %v5376, %v5378
      %v5380 = vrot.slane %v5300, 7
      %v5381 = vsel %vm5348, %v5378, %v5380
      %v5382 = vrot.slane %v5301, 7
      %v5383 = vsel %vm5348, %v5380, %v5382
      %v5384 = vrot.slane %v5302, 7
      %v5385 = vsel %vm5348, %v5382, %v5384
      %v5386 = vrot.slane %v5303, 7
      %v5387 = vsel %vm5348, %v5384, %v5386
      %v5388 = vrot.slane %v5304, 7
      %v5389 = vsel %vm5348, %v5386, %v5388
      %v5390 = vrot.slane %v5305, 7
      %v5391 = vsel %vm5348, %v5388, %v5390
      %v5392 = vrot.slane %v5306, 7
      %v5393 = vsel %vm5348, %v5390, %v5392
      %v5394 = vrot.slane %v5307, 7
      %v5395 = vsel %vm5348, %v5392, %v5394
      %v5396 = vrot.slane %v5308, 7
      %v5397 = vsel %vm5348, %v5394, %v5396
      %v5398 = vrot.slane %v5309, 7
      %v5399 = vsel %vm5348, %v5396, %v5398
      %v5400 = vrot.slane %v5310, 7
      %v5401 = vsel %vm5348, %v5398, %v5400
      %v5402 = vrot.slane %v5311, 7
      %v5403 = vsel %vm5348, %v5400, %v5402
      %v5404 = vrot.slane %v5312, 7
      %v5405 = vsel %vm5348, %v5402, %v5404
      %v5406 = vrot.slane %v5313, 7
      %v5407 = vsel %vm5348, %v5404, %v5406
      %v5408 = vrot.slane %v5314, 7
      %v5409 = vsel %vm5348, %v5406, %v5408
      %v5410 = vrot.slane %v5315, 7
      %v5411 = vsel %vm5348, %v5408, %v5410
      %v5445 = vsel %vm2495, 0.0, %v5349
      %v5446 = vsel %vm5348, %v5410, %v5349
      %v5447 = vsel %vm2495, %v5446, 0.0
      %5448 = vst.msk [vmem:[#allocation3] sm:$0xff] %vm3323, 0.0
      %5449 = vst.msk [vmem:[#allocation3 + $0x8] sm:$0xff] %vm3323, %v5445
      %5450 = vst.msk [vmem:[#allocation3 + $0x10] sm:$0xff] %vm3323, %v5351
      %5451 = vst.msk [vmem:[#allocation3 + $0x18] sm:$0xff] %vm3323, %v5353
      %5452 = vst.msk [vmem:[#allocation3 + $0x20] sm:$0xff] %vm3323, %v5355
      %5453 = vst.msk [vmem:[#allocation3 + $0x28] sm:$0xff] %vm3323, %v5357
      %5454 = vst.msk [vmem:[#allocation3 + $0x30] sm:$0xff] %vm3323, %v5359
      %5455 = vst.msk [vmem:[#allocation3 + $0x38] sm:$0xff] %vm3323, %v5361
      %5456 = vst.msk [vmem:[#allocation3 + $0x40] sm:$0xff] %vm3323, %v5363
      %5457 = vst.msk [vmem:[#allocation3 + $0x48] sm:$0xff] %vm3323, %v5365
      %5458 = vst.msk [vmem:[#allocation3 + $0x50] sm:$0xff] %vm3323, %v5367
      %5459 = vst.msk [vmem:[#allocation3 + $0x58] sm:$0xff] %vm3323, %v5369
      %5460 = vst.msk [vmem:[#allocation3 + $0x60] sm:$0xff] %vm3323, %v5371
      %5461 = vst.msk [vmem:[#allocation3 + $0x68] sm:$0xff] %vm3323, %v5373
      %5462 = vst.msk [vmem:[#allocation3 + $0x70] sm:$0xff] %vm3323, %v5375
      %5463 = vst.msk [vmem:[#allocation3 + $0x78] sm:$0xff] %vm3323, %v5377
      %5464 = vst.msk [vmem:[#allocation3 + $0x80] sm:$0xff] %vm3323, %v5379
      %5465 = vst.msk [vmem:[#allocation3 + $0x88] sm:$0xff] %vm3323, %v5381
      %5466 = vst.msk [vmem:[#allocation3 + $0x90] sm:$0xff] %vm3323, %v5383
      %5467 = vst.msk [vmem:[#allocation3 + $0x98] sm:$0xff] %vm3323, %v5385
      %5468 = vst.msk [vmem:[#allocation3 + $0xa0] sm:$0xff] %vm3323, %v5387
      %5469 = vst.msk [vmem:[#allocation3 + $0xa8] sm:$0xff] %vm3323, %v5389
      %5470 = vst.msk [vmem:[#allocation3 + $0xb0] sm:$0xff] %vm3323, %v5391
      %5471 = vst.msk [vmem:[#allocation3 + $0xb8] sm:$0xff] %vm3323, %v5393
      %5472 = vst.msk [vmem:[#allocation3 + $0xc0] sm:$0xff] %vm3323, %v5395
      %5473 = vst.msk [vmem:[#allocation3 + $0xc8] sm:$0xff] %vm3323, %v5397
      %5474 = vst.msk [vmem:[#allocation3 + $0xd0] sm:$0xff] %vm3323, %v5399
      %5475 = vst.msk [vmem:[#allocation3 + $0xd8] sm:$0xff] %vm3323, %v5401
      %5476 = vst.msk [vmem:[#allocation3 + $0xe0] sm:$0xff] %vm3323, %v5403
      %5477 = vst.msk [vmem:[#allocation3 + $0xe8] sm:$0xff] %vm3323, %v5405
      %5478 = vst.msk [vmem:[#allocation3 + $0xf0] sm:$0xff] %vm3323, %v5407
      %5479 = vst.msk [vmem:[#allocation3 + $0xf8] sm:$0xff] %vm3323, %v5409
      %5480 = vst.msk [vmem:[#allocation3 + $0x100] sm:$0xff] %vm3323, %v5411
      %5481 = vst.msk [vmem:[#allocation3 + $0x108] sm:$0xff] %vm3323, %v5447
      %5482 = vst.msk [vmem:[#allocation3 + $0x110] sm:$0xff] %vm3323, 0.0
      %v5483 = vld [vmem:[#allocation3] ss:$4 sm:$0xff]
      %s5484 = scalar_lea.vmem [#allocation3], 32
      %v5485 = vld [vmem:[%s5484] ss:$4 sm:$0xff]
      %s5486 = scalar_lea.vmem [#allocation3], 64
      %v5487 = vld [vmem:[%s5486] ss:$4 sm:$0xff]
      %s5488 = scalar_lea.vmem [#allocation3], 96
      %v5489 = vld [vmem:[%s5488] ss:$4 sm:$0xff]
      %s5490 = scalar_lea.vmem [#allocation3], 128
      %v5491 = vld [vmem:[%s5490] ss:$4 sm:$0xff]
      %s5492 = scalar_lea.vmem [#allocation3], 160
      %v5493 = vld [vmem:[%s5492] ss:$4 sm:$0xff]
      %s5494 = scalar_lea.vmem [#allocation3], 192
      %v5495 = vld [vmem:[%s5494] ss:$4 sm:$0xff]
      %s5496 = scalar_lea.vmem [#allocation3], 224
      %v5497 = vld [vmem:[%s5496] ss:$4 sm:$0xff]
      %s5498 = scalar_lea.vmem [#allocation3], 256
      %v5499 = vld [vmem:[%s5498] ss:$4 sm:$0x3f]
      %s5500 = scalar_lea.vmem [#allocation3], 1
      %v5501 = vld [vmem:[%s5500] ss:$4 sm:$0xff]
      %s5502 = scalar_lea.vmem [#allocation3], 33
      %v5503 = vld [vmem:[%s5502] ss:$4 sm:$0xff]
      %s5504 = scalar_lea.vmem [#allocation3], 65
      %v5505 = vld [vmem:[%s5504] ss:$4 sm:$0xff]
      %s5506 = scalar_lea.vmem [#allocation3], 97
      %v5507 = vld [vmem:[%s5506] ss:$4 sm:$0xff]
      %s5508 = scalar_lea.vmem [#allocation3], 129
      %v5509 = vld [vmem:[%s5508] ss:$4 sm:$0xff]
      %s5510 = scalar_lea.vmem [#allocation3], 161
      %v5511 = vld [vmem:[%s5510] ss:$4 sm:$0xff]
      %s5512 = scalar_lea.vmem [#allocation3], 193
      %v5513 = vld [vmem:[%s5512] ss:$4 sm:$0xff]
      %s5514 = scalar_lea.vmem [#allocation3], 225
      %v5515 = vld [vmem:[%s5514] ss:$4 sm:$0xff]
      %s5516 = scalar_lea.vmem [#allocation3], 257
      %v5517 = vld [vmem:[%s5516] ss:$4 sm:$0x3f]
      %s5518 = scalar_lea.vmem [#allocation3], 2
      %v5519 = vld [vmem:[%s5518] ss:$4 sm:$0xff]
      %s5520 = scalar_lea.vmem [#allocation3], 34
      %v5521 = vld [vmem:[%s5520] ss:$4 sm:$0xff]
      %s5522 = scalar_lea.vmem [#allocation3], 66
      %v5523 = vld [vmem:[%s5522] ss:$4 sm:$0xff]
      %s5524 = scalar_lea.vmem [#allocation3], 98
      %v5525 = vld [vmem:[%s5524] ss:$4 sm:$0xff]
      %s5526 = scalar_lea.vmem [#allocation3], 130
      %v5527 = vld [vmem:[%s5526] ss:$4 sm:$0xff]
      %s5528 = scalar_lea.vmem [#allocation3], 162
      %v5529 = vld [vmem:[%s5528] ss:$4 sm:$0xff]
      %s5530 = scalar_lea.vmem [#allocation3], 194
      %v5531 = vld [vmem:[%s5530] ss:$4 sm:$0xff]
      %s5532 = scalar_lea.vmem [#allocation3], 226
      %v5533 = vld [vmem:[%s5532] ss:$4 sm:$0xff]
      %s5534 = scalar_lea.vmem [#allocation3], 258
      %v5535 = vld [vmem:[%s5534] ss:$4 sm:$0x3f]
      %s5536 = scalar_lea.vmem [#allocation3], 3
      %v5537 = vld [vmem:[%s5536] ss:$4 sm:$0xff]
      %s5538 = scalar_lea.vmem [#allocation3], 35
      %v5539 = vld [vmem:[%s5538] ss:$4 sm:$0xff]
      %s5540 = scalar_lea.vmem [#allocation3], 67
      %v5541 = vld [vmem:[%s5540] ss:$4 sm:$0xff]
      %s5542 = scalar_lea.vmem [#allocation3], 99
      %v5543 = vld [vmem:[%s5542] ss:$4 sm:$0xff]
      %s5544 = scalar_lea.vmem [#allocation3], 131
      %v5545 = vld [vmem:[%s5544] ss:$4 sm:$0xff]
      %s5546 = scalar_lea.vmem [#allocation3], 163
      %v5547 = vld [vmem:[%s5546] ss:$4 sm:$0xff]
      %s5548 = scalar_lea.vmem [#allocation3], 195
      %v5549 = vld [vmem:[%s5548] ss:$4 sm:$0xff]
      %s5550 = scalar_lea.vmem [#allocation3], 227
      %v5551 = vld [vmem:[%s5550] ss:$4 sm:$0xff]
      %s5552 = scalar_lea.vmem [#allocation3], 259
      %v5553 = vld [vmem:[%s5552] ss:$4 sm:$0x3f]
      %5563 = vrot.lane.b32.xlu0 %v5501, 64
      %v5564 = vpop.permute.xlu0 %5563
      %5565 = vrot.lane.b32.xlu0 %v5503, 64
      %v5566 = vpop.permute.xlu0 %5565
      %5567 = vrot.lane.b32.xlu0 %v5505, 64
      %v5568 = vpop.permute.xlu0 %5567
      %5569 = vrot.lane.b32.xlu0 %v5507, 64
      %v5570 = vpop.permute.xlu0 %5569
      %5571 = vrot.lane.b32.xlu0 %v5509, 64
      %v5572 = vpop.permute.xlu0 %5571
      %5573 = vrot.lane.b32.xlu0 %v5511, 64
      %v5574 = vpop.permute.xlu0 %5573
      %5575 = vrot.lane.b32.xlu0 %v5513, 64
      %v5576 = vpop.permute.xlu0 %5575
      %5577 = vrot.lane.b32.xlu0 %v5515, 64
      %v5578 = vpop.permute.xlu0 %5577
      %5579 = vrot.lane.b32.xlu0 %v5517, 64
      %v5580 = vpop.permute.xlu0 %5579
      %5599 = vrot.lane.b32.xlu0 %v5537, 64
      %v5600 = vpop.permute.xlu0 %5599
      %5601 = vrot.lane.b32.xlu0 %v5539, 64
      %v5602 = vpop.permute.xlu0 %5601
      %5603 = vrot.lane.b32.xlu0 %v5541, 64
      %v5604 = vpop.permute.xlu0 %5603
      %5605 = vrot.lane.b32.xlu0 %v5543, 64
      %v5606 = vpop.permute.xlu0 %5605
      %5607 = vrot.lane.b32.xlu0 %v5545, 64
      %v5608 = vpop.permute.xlu0 %5607
      %5609 = vrot.lane.b32.xlu0 %v5547, 64
      %v5610 = vpop.permute.xlu0 %5609
      %5611 = vrot.lane.b32.xlu0 %v5549, 64
      %v5612 = vpop.permute.xlu0 %5611
      %5613 = vrot.lane.b32.xlu0 %v5551, 64
      %v5614 = vpop.permute.xlu0 %5613
      %5615 = vrot.lane.b32.xlu0 %v5553, 64
      %v5616 = vpop.permute.xlu0 %5615
      %v5626 = vsel %vm3323, %v5483, %v5564
      %v5627 = vsel %vm3323, %v5485, %v5566
      %v5628 = vsel %vm3323, %v5487, %v5568
      %v5629 = vsel %vm3323, %v5489, %v5570
      %v5630 = vsel %vm3323, %v5491, %v5572
      %v5631 = vsel %vm3323, %v5493, %v5574
      %v5632 = vsel %vm3323, %v5495, %v5576
      %v5633 = vsel %vm3323, %v5497, %v5578
      %v5634 = vsel %vm3323, %v5499, %v5580
      %v5635 = vsel %vm3323, %v5519, %v5600
      %v5636 = vsel %vm3323, %v5521, %v5602
      %v5637 = vsel %vm3323, %v5523, %v5604
      %v5638 = vsel %vm3323, %v5525, %v5606
      %v5639 = vsel %vm3323, %v5527, %v5608
      %v5640 = vsel %vm3323, %v5529, %v5610
      %v5641 = vsel %vm3323, %v5531, %v5612
      %v5642 = vsel %vm3323, %v5533, %v5614
      %v5643 = vsel %vm3323, %v5535, %v5616
      %v5662 = vrot.slane %v5626, 1
      %v5663 = vrot.slane %v5627, 1
      %v5664 = vsel %vm3424, %v5662, %v5663
      %v5665 = vrot.slane %v5635, 1
      %v5666 = vrot.slane %v5636, 1
      %v5667 = vsel %vm3424, %v5665, %v5666
      %v5668 = vrot.slane %v5628, 1
      %v5669 = vsel %vm3424, %v5663, %v5668
      %v5670 = vrot.slane %v5637, 1
      %v5671 = vsel %vm3424, %v5666, %v5670
      %v5672 = vrot.slane %v5629, 1
      %v5673 = vsel %vm3424, %v5668, %v5672
      %v5674 = vrot.slane %v5638, 1
      %v5675 = vsel %vm3424, %v5670, %v5674
      %v5676 = vrot.slane %v5630, 1
      %v5677 = vsel %vm3424, %v5672, %v5676
      %v5678 = vrot.slane %v5639, 1
      %v5679 = vsel %vm3424, %v5674, %v5678
      %v5680 = vrot.slane %v5631, 1
      %v5681 = vsel %vm3424, %v5676, %v5680
      %v5682 = vrot.slane %v5640, 1
      %v5683 = vsel %vm3424, %v5678, %v5682
      %v5684 = vrot.slane %v5632, 1
      %v5685 = vsel %vm3424, %v5680, %v5684
      %v5686 = vrot.slane %v5641, 1
      %v5687 = vsel %vm3424, %v5682, %v5686
      %v5688 = vrot.slane %v5633, 1
      %v5689 = vsel %vm3424, %v5684, %v5688
      %v5690 = vrot.slane %v5642, 1
      %v5691 = vsel %vm3424, %v5686, %v5690
      %v5692 = vrot.slane %v5634, 1
      %v5693 = vsel %vm3424, %v5688, %v5692
      %v5694 = vrot.slane %v5643, 1
      %v5695 = vsel %vm3424, %v5690, %v5694
      %v5712 = vrot.slane %v5626, 2
      %v5713 = vrot.slane %v5627, 2
      %v5714 = vsel %vm1049, %v5712, %v5713
      %v5715 = vrot.slane %v5635, 2
      %v5716 = vrot.slane %v5636, 2
      %v5717 = vsel %vm1049, %v5715, %v5716
      %v5718 = vrot.slane %v5628, 2
      %v5719 = vsel %vm1049, %v5713, %v5718
      %v5720 = vrot.slane %v5637, 2
      %v5721 = vsel %vm1049, %v5716, %v5720
      %v5722 = vrot.slane %v5629, 2
      %v5723 = vsel %vm1049, %v5718, %v5722
      %v5724 = vrot.slane %v5638, 2
      %v5725 = vsel %vm1049, %v5720, %v5724
      %v5726 = vrot.slane %v5630, 2
      %v5727 = vsel %vm1049, %v5722, %v5726
      %v5728 = vrot.slane %v5639, 2
      %v5729 = vsel %vm1049, %v5724, %v5728
      %v5730 = vrot.slane %v5631, 2
      %v5731 = vsel %vm1049, %v5726, %v5730
      %v5732 = vrot.slane %v5640, 2
      %v5733 = vsel %vm1049, %v5728, %v5732
      %v5734 = vrot.slane %v5632, 2
      %v5735 = vsel %vm1049, %v5730, %v5734
      %v5736 = vrot.slane %v5641, 2
      %v5737 = vsel %vm1049, %v5732, %v5736
      %v5738 = vrot.slane %v5633, 2
      %v5739 = vsel %vm1049, %v5734, %v5738
      %v5740 = vrot.slane %v5642, 2
      %v5741 = vsel %vm1049, %v5736, %v5740
      %v5742 = vrot.slane %v5634, 2
      %v5743 = vsel %vm1049, %v5738, %v5742
      %v5744 = vrot.slane %v5643, 2
      %v5745 = vsel %vm1049, %v5740, %v5744
      %v5762 = vrot.slane %v5626, 3
      %v5763 = vrot.slane %v5627, 3
      %v5764 = vsel %vm3619, %v5762, %v5763
      %v5765 = vrot.slane %v5635, 3
      %v5766 = vrot.slane %v5636, 3
      %v5767 = vsel %vm3619, %v5765, %v5766
      %v5768 = vrot.slane %v5628, 3
      %v5769 = vsel %vm3619, %v5763, %v5768
      %v5770 = vrot.slane %v5637, 3
      %v5771 = vsel %vm3619, %v5766, %v5770
      %v5772 = vrot.slane %v5629, 3
      %v5773 = vsel %vm3619, %v5768, %v5772
      %v5774 = vrot.slane %v5638, 3
      %v5775 = vsel %vm3619, %v5770, %v5774
      %v5776 = vrot.slane %v5630, 3
      %v5777 = vsel %vm3619, %v5772, %v5776
      %v5778 = vrot.slane %v5639, 3
      %v5779 = vsel %vm3619, %v5774, %v5778
      %v5780 = vrot.slane %v5631, 3
      %v5781 = vsel %vm3619, %v5776, %v5780
      %v5782 = vrot.slane %v5640, 3
      %v5783 = vsel %vm3619, %v5778, %v5782
      %v5784 = vrot.slane %v5632, 3
      %v5785 = vsel %vm3619, %v5780, %v5784
      %v5786 = vrot.slane %v5641, 3
      %v5787 = vsel %vm3619, %v5782, %v5786
      %v5788 = vrot.slane %v5633, 3
      %v5789 = vsel %vm3619, %v5784, %v5788
      %v5790 = vrot.slane %v5642, 3
      %v5791 = vsel %vm3619, %v5786, %v5790
      %v5792 = vrot.slane %v5634, 3
      %v5793 = vsel %vm3619, %v5788, %v5792
      %v5794 = vrot.slane %v5643, 3
      %v5795 = vsel %vm3619, %v5790, %v5794
      %v5812 = vrot.slane %v5626, 4
      %v5813 = vrot.slane %v5627, 4
      %v5814 = vsel %vm2112, %v5812, %v5813
      %v5815 = vrot.slane %v5635, 4
      %v5816 = vrot.slane %v5636, 4
      %v5817 = vsel %vm2112, %v5815, %v5816
      %v5818 = vrot.slane %v5628, 4
      %v5819 = vsel %vm2112, %v5813, %v5818
      %v5820 = vrot.slane %v5637, 4
      %v5821 = vsel %vm2112, %v5816, %v5820
      %v5822 = vrot.slane %v5629, 4
      %v5823 = vsel %vm2112, %v5818, %v5822
      %v5824 = vrot.slane %v5638, 4
      %v5825 = vsel %vm2112, %v5820, %v5824
      %v5826 = vrot.slane %v5630, 4
      %v5827 = vsel %vm2112, %v5822, %v5826
      %v5828 = vrot.slane %v5639, 4
      %v5829 = vsel %vm2112, %v5824, %v5828
      %v5830 = vrot.slane %v5631, 4
      %v5831 = vsel %vm2112, %v5826, %v5830
      %v5832 = vrot.slane %v5640, 4
      %v5833 = vsel %vm2112, %v5828, %v5832
      %v5834 = vrot.slane %v5632, 4
      %v5835 = vsel %vm2112, %v5830, %v5834
      %v5836 = vrot.slane %v5641, 4
      %v5837 = vsel %vm2112, %v5832, %v5836
      %v5838 = vrot.slane %v5633, 4
      %v5839 = vsel %vm2112, %v5834, %v5838
      %v5840 = vrot.slane %v5642, 4
      %v5841 = vsel %vm2112, %v5836, %v5840
      %v5842 = vrot.slane %v5634, 4
      %v5843 = vsel %vm2112, %v5838, %v5842
      %v5844 = vrot.slane %v5643, 4
      %v5845 = vsel %vm2112, %v5840, %v5844
      %v5862 = vrot.slane %v5626, 5
      %v5863 = vrot.slane %v5627, 5
      %v5864 = vsel %vm2495, %v5862, %v5863
      %v5865 = vrot.slane %v5635, 5
      %v5866 = vrot.slane %v5636, 5
      %v5867 = vsel %vm2495, %v5865, %v5866
      %v5868 = vrot.slane %v5628, 5
      %v5869 = vsel %vm2495, %v5863, %v5868
      %v5870 = vrot.slane %v5637, 5
      %v5871 = vsel %vm2495, %v5866, %v5870
      %v5872 = vrot.slane %v5629, 5
      %v5873 = vsel %vm2495, %v5868, %v5872
      %v5874 = vrot.slane %v5638, 5
      %v5875 = vsel %vm2495, %v5870, %v5874
      %v5876 = vrot.slane %v5630, 5
      %v5877 = vsel %vm2495, %v5872, %v5876
      %v5878 = vrot.slane %v5639, 5
      %v5879 = vsel %vm2495, %v5874, %v5878
      %v5880 = vrot.slane %v5631, 5
      %v5881 = vsel %vm2495, %v5876, %v5880
      %v5882 = vrot.slane %v5640, 5
      %v5883 = vsel %vm2495, %v5878, %v5882
      %v5884 = vrot.slane %v5632, 5
      %v5885 = vsel %vm2495, %v5880, %v5884
      %v5886 = vrot.slane %v5641, 5
      %v5887 = vsel %vm2495, %v5882, %v5886
      %v5888 = vrot.slane %v5633, 5
      %v5889 = vsel %vm2495, %v5884, %v5888
      %v5890 = vrot.slane %v5642, 5
      %v5891 = vsel %vm2495, %v5886, %v5890
      %v5892 = vrot.slane %v5634, 5
      %v5893 = vsel %vm2495, %v5888, %v5892
      %v5894 = vrot.slane %v5643, 5
      %v5895 = vsel %vm2495, %v5890, %v5894
      %v5912 = vrot.slane %v5626, 6
      %v5913 = vrot.slane %v5627, 6
      %v5914 = vsel %vm3911, %v5912, %v5913
      %v5915 = vrot.slane %v5635, 6
      %v5916 = vrot.slane %v5636, 6
      %v5917 = vsel %vm3911, %v5915, %v5916
      %v5918 = vrot.slane %v5628, 6
      %v5919 = vsel %vm3911, %v5913, %v5918
      %v5920 = vrot.slane %v5637, 6
      %v5921 = vsel %vm3911, %v5916, %v5920
      %v5922 = vrot.slane %v5629, 6
      %v5923 = vsel %vm3911, %v5918, %v5922
      %v5924 = vrot.slane %v5638, 6
      %v5925 = vsel %vm3911, %v5920, %v5924
      %v5926 = vrot.slane %v5630, 6
      %v5927 = vsel %vm3911, %v5922, %v5926
      %v5928 = vrot.slane %v5639, 6
      %v5929 = vsel %vm3911, %v5924, %v5928
      %v5930 = vrot.slane %v5631, 6
      %v5931 = vsel %vm3911, %v5926, %v5930
      %v5932 = vrot.slane %v5640, 6
      %v5933 = vsel %vm3911, %v5928, %v5932
      %v5934 = vrot.slane %v5632, 6
      %v5935 = vsel %vm3911, %v5930, %v5934
      %v5936 = vrot.slane %v5641, 6
      %v5937 = vsel %vm3911, %v5932, %v5936
      %v5938 = vrot.slane %v5633, 6
      %v5939 = vsel %vm3911, %v5934, %v5938
      %v5940 = vrot.slane %v5642, 6
      %v5941 = vsel %vm3911, %v5936, %v5940
      %v5942 = vrot.slane %v5634, 6
      %v5943 = vsel %vm3911, %v5938, %v5942
      %v5944 = vrot.slane %v5643, 6
      %v5945 = vsel %vm3911, %v5940, %v5944
      %v5962 = vpack.c.bf16 %v5627, %v5626
      %v5963 = vpack.c.bf16 %v5636, %v5635
      %v5964 = vpack.c.bf16 %v5669, %v5664
      %v5965 = vpack.c.bf16 %v5671, %v5667
      %v5966 = vpack.c.bf16 %v5719, %v5714
      %v5967 = vpack.c.bf16 %v5721, %v5717
      %v5968 = vpack.c.bf16 %v5769, %v5764
      %v5969 = vpack.c.bf16 %v5771, %v5767
      %v5970 = vpack.c.bf16 %v5819, %v5814
      %v5971 = vpack.c.bf16 %v5821, %v5817
      %v5972 = vpack.c.bf16 %v5869, %v5864
      %v5973 = vpack.c.bf16 %v5871, %v5867
      %v5974 = vpack.c.bf16 %v5919, %v5914
      %v5975 = vpack.c.bf16 %v5921, %v5917
      %v5976 = vpack.c.bf16 %v5629, %v5628
      %v5977 = vpack.c.bf16 %v5638, %v5637
      %v5978 = vpack.c.bf16 %v5677, %v5673
      %v5979 = vpack.c.bf16 %v5679, %v5675
      %v5980 = vpack.c.bf16 %v5727, %v5723
      %v5981 = vpack.c.bf16 %v5729, %v5725
      %v5982 = vpack.c.bf16 %v5777, %v5773
      %v5983 = vpack.c.bf16 %v5779, %v5775
      %v5984 = vpack.c.bf16 %v5827, %v5823
      %v5985 = vpack.c.bf16 %v5829, %v5825
      %v5986 = vpack.c.bf16 %v5877, %v5873
      %v5987 = vpack.c.bf16 %v5879, %v5875
      %v5988 = vpack.c.bf16 %v5927, %v5923
      %v5989 = vpack.c.bf16 %v5929, %v5925
      %v5990 = vpack.c.bf16 %v5631, %v5630
      %v5991 = vpack.c.bf16 %v5640, %v5639
      %v5992 = vpack.c.bf16 %v5685, %v5681
      %v5993 = vpack.c.bf16 %v5687, %v5683
      %v5994 = vpack.c.bf16 %v5735, %v5731
      %v5995 = vpack.c.bf16 %v5737, %v5733
      %v5996 = vpack.c.bf16 %v5785, %v5781
      %v5997 = vpack.c.bf16 %v5787, %v5783
      %v5998 = vpack.c.bf16 %v5835, %v5831
      %v5999 = vpack.c.bf16 %v5837, %v5833
      %v6000 = vpack.c.bf16 %v5885, %v5881
      %v6001 = vpack.c.bf16 %v5887, %v5883
      %v6002 = vpack.c.bf16 %v5935, %v5931
      %v6003 = vpack.c.bf16 %v5937, %v5933
      %v6004 = vpack.c.bf16 %v5633, %v5632
      %v6005 = vpack.c.bf16 %v5642, %v5641
      %v6006 = vpack.c.bf16 %v5693, %v5689
      %v6007 = vpack.c.bf16 %v5695, %v5691
      %v6008 = vpack.c.bf16 %v5743, %v5739
      %v6009 = vpack.c.bf16 %v5745, %v5741
      %v6010 = vpack.c.bf16 %v5793, %v5789
      %v6011 = vpack.c.bf16 %v5795, %v5791
      %v6012 = vpack.c.bf16 %v5843, %v5839
      %v6013 = vpack.c.bf16 %v5845, %v5841
      %v6014 = vpack.c.bf16 %v5893, %v5889
      %v6015 = vpack.c.bf16 %v5895, %v5891
      %v6016 = vpack.c.bf16 %v5943, %v5939
      %v6017 = vpack.c.bf16 %v5945, %v5941
      %v6018 = vld [vmem:[%s5] sm:$0xf]
      %v6019 = vld [vmem:[%s5 + $0x4] sm:$0xf]
      %v6020 = vld [vmem:[%s5 + $0x8] sm:$0xf]
      %v6021 = vld [vmem:[%s5 + $0xc] sm:$0xf]
      %v6022 = vld [vmem:[%s5 + $0x10] sm:$0xf]
      %v6023 = vld [vmem:[%s5 + $0x14] sm:$0xf]
      %v6024 = vld [vmem:[%s5 + $0x18] sm:$0xf]
      %v6025 = vld [vmem:[%s5 + $0x1c] sm:$0xf]
      %v6026 = vld [vmem:[%s5 + $0x20] sm:$0xf]
      %v6027 = vld [vmem:[%s5 + $0x24] sm:$0xf]
      %v6028 = vld [vmem:[%s5 + $0x28] sm:$0xf]
      %v6029 = vld [vmem:[%s5 + $0x2c] sm:$0xf]
      %v6030 = vld [vmem:[%s5 + $0x30] sm:$0xf]
      %v6031 = vld [vmem:[%s5 + $0x34] sm:$0xf]
      %v6032 = vld [vmem:[%s5 + $0x38] sm:$0xf]
      %v6033 = vld [vmem:[%s5 + $0x3c] sm:$0xf]
      %v6034 = vld [vmem:[%s5 + $0x40] sm:$0xf]
      %v6035 = vld [vmem:[%s5 + $0x44] sm:$0xf]
      %v6036 = vld [vmem:[%s5 + $0x48] sm:$0xf]
      %v6037 = vld [vmem:[%s5 + $0x4c] sm:$0xf]
      %v6038 = vld [vmem:[%s5 + $0x50] sm:$0xf]
      %v6039 = vld [vmem:[%s5 + $0x54] sm:$0xf]
      %v6040 = vld [vmem:[%s5 + $0x58] sm:$0xf]
      %v6041 = vld [vmem:[%s5 + $0x5c] sm:$0xf]
      %v6042 = vld [vmem:[%s5 + $0x60] sm:$0xf]
      %v6043 = vld [vmem:[%s5 + $0x64] sm:$0xf]
      %v6044 = vld [vmem:[%s5 + $0x68] sm:$0xf]
      %v6045 = vld [vmem:[%s5 + $0x6c] sm:$0xf]
      %v6046 = vld [vmem:[%s5 + $0x70] sm:$0xf]
      %v6047 = vld [vmem:[%s5 + $0x74] sm:$0xf]
      %v6048 = vld [vmem:[%s5 + $0x78] sm:$0xf]
      %v6049 = vld [vmem:[%s5 + $0x7c] sm:$0xf]
      %v6050 = vld [vmem:[%s5 + $0x80] sm:$0xf]
      %v6051 = vld [vmem:[%s5 + $0x84] sm:$0xf]
      %v6052 = vld [vmem:[%s5 + $0x88] sm:$0xf]
      %v6053 = vld [vmem:[%s5 + $0x8c] sm:$0xf]
      %v6054 = vld [vmem:[%s5 + $0x90] sm:$0xf]
      %v6055 = vld [vmem:[%s5 + $0x94] sm:$0xf]
      %v6056 = vld [vmem:[%s5 + $0x98] sm:$0xf]
      %v6057 = vld [vmem:[%s5 + $0x9c] sm:$0xf]
      %v6058 = vld [vmem:[%s5 + $0xa0] sm:$0xf]
      %v6059 = vld [vmem:[%s5 + $0xa4] sm:$0xf]
      %v6060 = vld [vmem:[%s5 + $0xa8] sm:$0xf]
      %v6061 = vld [vmem:[%s5 + $0xac] sm:$0xf]
      %v6062 = vld [vmem:[%s5 + $0xb0] sm:$0xf]
      %v6063 = vld [vmem:[%s5 + $0xb4] sm:$0xf]
      %v6064 = vld [vmem:[%s5 + $0xb8] sm:$0xf]
      %v6065 = vld [vmem:[%s5 + $0xbc] sm:$0xf]
      %v6066 = vld [vmem:[%s5 + $0xc0] sm:$0xf]
      %v6067 = vld [vmem:[%s5 + $0xc4] sm:$0xf]
      %v6068 = vld [vmem:[%s5 + $0xc8] sm:$0xf]
      %v6069 = vld [vmem:[%s5 + $0xcc] sm:$0xf]
      %v6070 = vld [vmem:[%s5 + $0xd0] sm:$0xf]
      %v6071 = vld [vmem:[%s5 + $0xd4] sm:$0xf]
      %v6072 = vld [vmem:[%s5 + $0xd8] sm:$0xf]
      %v6073 = vld [vmem:[%s5 + $0xdc] sm:$0xf]
      %v6074 = vld [vmem:[%s5 + $0xe0] sm:$0xf]
      %v6075 = vld [vmem:[%s5 + $0xe4] sm:$0xf]
      %v6076 = vld [vmem:[%s5 + $0xe8] sm:$0xf]
      %v6077 = vld [vmem:[%s5 + $0xec] sm:$0xf]
      %v6078 = vld [vmem:[%s5 + $0xf0] sm:$0xf]
      %v6079 = vld [vmem:[%s5 + $0xf4] sm:$0xf]
      %v6080 = vld [vmem:[%s5 + $0xf8] sm:$0xf]
      %v6081 = vld [vmem:[%s5 + $0xfc] sm:$0xf]
      %v6082 = vld [vmem:[%s5 + $0x100] sm:$0xf]
      %v6083 = vld [vmem:[%s5 + $0x104] sm:$0xf]
      %v6084 = vld [vmem:[%s5 + $0x108] sm:$0xf]
      %v6085 = vld [vmem:[%s5 + $0x10c] sm:$0xf]
      %v6086 = vld [vmem:[%s5 + $0x110] sm:$0xf]
      %v6087 = vld [vmem:[%s5 + $0x114] sm:$0xf]
      %v6088 = vld [vmem:[%s5 + $0x118] sm:$0xf]
      %v6089 = vld [vmem:[%s5 + $0x11c] sm:$0xf]
      %v6090 = vld [vmem:[%s5 + $0x120] sm:$0xf]
      %v6091 = vld [vmem:[%s5 + $0x124] sm:$0xf]
      %v6092 = vld [vmem:[%s5 + $0x128] sm:$0xf]
      %v6093 = vld [vmem:[%s5 + $0x12c] sm:$0xf]
      %v6094 = vld [vmem:[%s5 + $0x130] sm:$0xf]
      %v6095 = vld [vmem:[%s5 + $0x134] sm:$0xf]
      %v6096 = vld [vmem:[%s5 + $0x138] sm:$0xf]
      %v6097 = vld [vmem:[%s5 + $0x13c] sm:$0xf]
      %v6098 = vld [vmem:[%s5 + $0x140] sm:$0xf]
      %v6099 = vld [vmem:[%s5 + $0x144] sm:$0xf]
      %v6100 = vld [vmem:[%s5 + $0x148] sm:$0xf]
      %v6101 = vld [vmem:[%s5 + $0x14c] sm:$0xf]
      %v6102 = vld [vmem:[%s5 + $0x150] sm:$0xf]
      %v6103 = vld [vmem:[%s5 + $0x154] sm:$0xf]
      %v6104 = vld [vmem:[%s5 + $0x158] sm:$0xf]
      %v6105 = vld [vmem:[%s5 + $0x15c] sm:$0xf]
      %v6106 = vld [vmem:[%s5 + $0x160] sm:$0xf]
      %v6107 = vld [vmem:[%s5 + $0x164] sm:$0xf]
      %v6108 = vld [vmem:[%s5 + $0x168] sm:$0xf]
      %v6109 = vld [vmem:[%s5 + $0x16c] sm:$0xf]
      %v6110 = vld [vmem:[%s5 + $0x170] sm:$0xf]
      %v6111 = vld [vmem:[%s5 + $0x174] sm:$0xf]
      %v6112 = vld [vmem:[%s5 + $0x178] sm:$0xf]
      %v6113 = vld [vmem:[%s5 + $0x17c] sm:$0xf]
      %v6114 = vld [vmem:[%s5 + $0x180] sm:$0xf]
      %v6115 = vld [vmem:[%s5 + $0x184] sm:$0xf]
      %v6116 = vld [vmem:[%s5 + $0x188] sm:$0xf]
      %v6117 = vld [vmem:[%s5 + $0x18c] sm:$0xf]
      %v6118 = vld [vmem:[%s5 + $0x190] sm:$0xf]
      %v6119 = vld [vmem:[%s5 + $0x194] sm:$0xf]
      %v6120 = vld [vmem:[%s5 + $0x198] sm:$0xf]
      %v6121 = vld [vmem:[%s5 + $0x19c] sm:$0xf]
      %v6122 = vld [vmem:[%s5 + $0x1a0] sm:$0xf]
      %v6123 = vld [vmem:[%s5 + $0x1a4] sm:$0xf]
      %v6124 = vld [vmem:[%s5 + $0x1a8] sm:$0xf]
      %v6125 = vld [vmem:[%s5 + $0x1ac] sm:$0xf]
      %v6126 = vld [vmem:[%s5 + $0x1b0] sm:$0xf]
      %v6127 = vld [vmem:[%s5 + $0x1b4] sm:$0xf]
      %v6128 = vld [vmem:[%s5 + $0x1b8] sm:$0xf]
      %v6129 = vld [vmem:[%s5 + $0x1bc] sm:$0xf]
      %v6130 = vld [vmem:[%s5 + $0x1c0] sm:$0xf]
      %v6131 = vld [vmem:[%s5 + $0x1c4] sm:$0xf]
      %v6132 = vld [vmem:[%s5 + $0x1c8] sm:$0xf]
      %v6133 = vld [vmem:[%s5 + $0x1cc] sm:$0xf]
      %v6134 = vld [vmem:[%s5 + $0x1d0] sm:$0xf]
      %v6135 = vld [vmem:[%s5 + $0x1d4] sm:$0xf]
      %v6136 = vld [vmem:[%s5 + $0x1d8] sm:$0xf]
      %v6137 = vld [vmem:[%s5 + $0x1dc] sm:$0xf]
      %v6138 = vld [vmem:[%s5 + $0x1e0] sm:$0xf]
      %v6139 = vld [vmem:[%s5 + $0x1e4] sm:$0xf]
      %v6140 = vld [vmem:[%s5 + $0x1e8] sm:$0xf]
      %v6141 = vld [vmem:[%s5 + $0x1ec] sm:$0xf]
      %v6142 = vld [vmem:[%s5 + $0x1f0] sm:$0xf]
      %v6143 = vld [vmem:[%s5 + $0x1f4] sm:$0xf]
      %v6144 = vld [vmem:[%s5 + $0x1f8] sm:$0xf]
      %v6145 = vld [vmem:[%s5 + $0x1fc] sm:$0xf]
      %v6146 = vld [vmem:[%s5 + $0x200] sm:$0xf]
      %v6147 = vld [vmem:[%s5 + $0x204] sm:$0xf]
      %v6148 = vld [vmem:[%s5 + $0x208] sm:$0xf]
      %v6149 = vld [vmem:[%s5 + $0x20c] sm:$0xf]
      %v6150 = vld [vmem:[%s5 + $0x210] sm:$0xf]
      %v6151 = vld [vmem:[%s5 + $0x214] sm:$0xf]
      %v6152 = vld [vmem:[%s5 + $0x218] sm:$0xf]
      %v6153 = vld [vmem:[%s5 + $0x21c] sm:$0xf]
      %v6154 = vld [vmem:[%s5 + $0x220] sm:$0xf]
      %v6155 = vld [vmem:[%s5 + $0x224] sm:$0xf]
      %v6156 = vld [vmem:[%s5 + $0x228] sm:$0xf]
      %v6157 = vld [vmem:[%s5 + $0x22c] sm:$0xf]
      %v6158 = vld [vmem:[%s5 + $0x230] sm:$0xf]
      %v6159 = vld [vmem:[%s5 + $0x234] sm:$0xf]
      %v6160 = vld [vmem:[%s5 + $0x238] sm:$0xf]
      %v6161 = vld [vmem:[%s5 + $0x23c] sm:$0xf]
      %v6162 = vld [vmem:[%s5 + $0x240] sm:$0xf]
      %v6163 = vld [vmem:[%s5 + $0x244] sm:$0xf]
      %v6164 = vld [vmem:[%s5 + $0x248] sm:$0xf]
      %v6165 = vld [vmem:[%s5 + $0x24c] sm:$0xf]
      %v6166 = vld [vmem:[%s5 + $0x250] sm:$0xf]
      %v6167 = vld [vmem:[%s5 + $0x254] sm:$0xf]
      %v6168 = vld [vmem:[%s5 + $0x258] sm:$0xf]
      %v6169 = vld [vmem:[%s5 + $0x25c] sm:$0xf]
      %v6170 = vld [vmem:[%s5 + $0x260] sm:$0xf]
      %v6171 = vld [vmem:[%s5 + $0x264] sm:$0xf]
      %v6172 = vld [vmem:[%s5 + $0x268] sm:$0xf]
      %v6173 = vld [vmem:[%s5 + $0x26c] sm:$0xf]
      %v6174 = vld [vmem:[%s5 + $0x270] sm:$0xf]
      %v6175 = vld [vmem:[%s5 + $0x274] sm:$0xf]
      %v6176 = vld [vmem:[%s5 + $0x278] sm:$0xf]
      %v6177 = vld [vmem:[%s5 + $0x27c] sm:$0xf]
      %v6178 = vld [vmem:[%s5 + $0x280] sm:$0xf]
      %v6179 = vld [vmem:[%s5 + $0x284] sm:$0xf]
      %v6180 = vld [vmem:[%s5 + $0x288] sm:$0xf]
      %v6181 = vld [vmem:[%s5 + $0x28c] sm:$0xf]
      %v6182 = vld [vmem:[%s5 + $0x290] sm:$0xf]
      %v6183 = vld [vmem:[%s5 + $0x294] sm:$0xf]
      %v6184 = vld [vmem:[%s5 + $0x298] sm:$0xf]
      %v6185 = vld [vmem:[%s5 + $0x29c] sm:$0xf]
      %v6186 = vld [vmem:[%s5 + $0x2a0] sm:$0xf]
      %v6187 = vld [vmem:[%s5 + $0x2a4] sm:$0xf]
      %v6188 = vld [vmem:[%s5 + $0x2a8] sm:$0xf]
      %v6189 = vld [vmem:[%s5 + $0x2ac] sm:$0xf]
      %v6190 = vld [vmem:[%s5 + $0x2b0] sm:$0xf]
      %v6191 = vld [vmem:[%s5 + $0x2b4] sm:$0xf]
      %v6192 = vld [vmem:[%s5 + $0x2b8] sm:$0xf]
      %v6193 = vld [vmem:[%s5 + $0x2bc] sm:$0xf]
      %v6194 = vld [vmem:[%s5 + $0x2c0] sm:$0xf]
      %v6195 = vld [vmem:[%s5 + $0x2c4] sm:$0xf]
      %v6196 = vld [vmem:[%s5 + $0x2c8] sm:$0xf]
      %v6197 = vld [vmem:[%s5 + $0x2cc] sm:$0xf]
      %v6198 = vld [vmem:[%s5 + $0x2d0] sm:$0xf]
      %v6199 = vld [vmem:[%s5 + $0x2d4] sm:$0xf]
      %v6200 = vld [vmem:[%s5 + $0x2d8] sm:$0xf]
      %v6201 = vld [vmem:[%s5 + $0x2dc] sm:$0xf]
      %v6202 = vld [vmem:[%s5 + $0x2e0] sm:$0xf]
      %v6203 = vld [vmem:[%s5 + $0x2e4] sm:$0xf]
      %v6204 = vld [vmem:[%s5 + $0x2e8] sm:$0xf]
      %v6205 = vld [vmem:[%s5 + $0x2ec] sm:$0xf]
      %v6206 = vld [vmem:[%s5 + $0x2f0] sm:$0xf]
      %v6207 = vld [vmem:[%s5 + $0x2f4] sm:$0xf]
      %v6208 = vld [vmem:[%s5 + $0x2f8] sm:$0xf]
      %v6209 = vld [vmem:[%s5 + $0x2fc] sm:$0xf]
      %v6210 = vld [vmem:[%s5 + $0x300] sm:$0xf]
      %v6211 = vld [vmem:[%s5 + $0x304] sm:$0xf]
      %v6212 = vld [vmem:[%s5 + $0x308] sm:$0xf]
      %v6213 = vld [vmem:[%s5 + $0x30c] sm:$0xf]
      %v6214 = vld [vmem:[%s5 + $0x310] sm:$0xf]
      %v6215 = vld [vmem:[%s5 + $0x314] sm:$0xf]
      %v6216 = vld [vmem:[%s5 + $0x318] sm:$0xf]
      %v6217 = vld [vmem:[%s5 + $0x31c] sm:$0xf]
      %v6218 = vld [vmem:[%s5 + $0x320] sm:$0xf]
      %v6219 = vld [vmem:[%s5 + $0x324] sm:$0xf]
      %v6220 = vld [vmem:[%s5 + $0x328] sm:$0xf]
      %v6221 = vld [vmem:[%s5 + $0x32c] sm:$0xf]
      %v6222 = vld [vmem:[%s5 + $0x330] sm:$0xf]
      %v6223 = vld [vmem:[%s5 + $0x334] sm:$0xf]
      %v6224 = vld [vmem:[%s5 + $0x338] sm:$0xf]
      %v6225 = vld [vmem:[%s5 + $0x33c] sm:$0xf]
      %v6226 = vld [vmem:[%s5 + $0x340] sm:$0xf]
      %v6227 = vld [vmem:[%s5 + $0x344] sm:$0xf]
      %v6228 = vld [vmem:[%s5 + $0x348] sm:$0xf]
      %v6229 = vld [vmem:[%s5 + $0x34c] sm:$0xf]
      %v6230 = vld [vmem:[%s5 + $0x350] sm:$0xf]
      %v6231 = vld [vmem:[%s5 + $0x354] sm:$0xf]
      %v6232 = vld [vmem:[%s5 + $0x358] sm:$0xf]
      %v6233 = vld [vmem:[%s5 + $0x35c] sm:$0xf]
      %v6234 = vld [vmem:[%s5 + $0x360] sm:$0xf]
      %v6235 = vld [vmem:[%s5 + $0x364] sm:$0xf]
      %v6236 = vld [vmem:[%s5 + $0x368] sm:$0xf]
      %v6237 = vld [vmem:[%s5 + $0x36c] sm:$0xf]
      %v6238 = vld [vmem:[%s5 + $0x370] sm:$0xf]
      %v6239 = vld [vmem:[%s5 + $0x374] sm:$0xf]
      %v6240 = vld [vmem:[%s5 + $0x378] sm:$0xf]
      %v6241 = vld [vmem:[%s5 + $0x37c] sm:$0xf]
      %v6242 = vld [vmem:[%s6] sm:$0x1]
      %v6244 = vlaneseq
      %v6245 = vshrl.u32 %v6244, 7
      %v6246 = vsub.s32 0, %v6245
      %v6247 = vrot.slane %v6242, %v6246
      %v6473 = vunpack.c.l.b16 %v6018
      %v6474 = vunpack.c.l.b16 %v6019
      %v6475 = vunpack.c.l.b16 %v6020
      %v6476 = vunpack.c.l.b16 %v6021
      %v6477 = vunpack.c.l.b16 %v6022
      %v6478 = vunpack.c.l.b16 %v6023
      %v6479 = vunpack.c.l.b16 %v6024
      %v6480 = vunpack.c.l.b16 %v6025
      %v6481 = vunpack.c.l.b16 %v6026
      %v6482 = vunpack.c.l.b16 %v6027
      %v6483 = vunpack.c.l.b16 %v6028
      %v6484 = vunpack.c.l.b16 %v6029
      %v6485 = vunpack.c.l.b16 %v6030
      %v6486 = vunpack.c.l.b16 %v6031
      %v6487 = vunpack.c.l.b16 %v6032
      %v6488 = vunpack.c.l.b16 %v6033
      %v6489 = vunpack.c.l.b16 %v6034
      %v6490 = vunpack.c.l.b16 %v6035
      %v6491 = vunpack.c.l.b16 %v6036
      %v6492 = vunpack.c.l.b16 %v6037
      %v6493 = vunpack.c.l.b16 %v6038
      %v6494 = vunpack.c.l.b16 %v6039
      %v6495 = vunpack.c.l.b16 %v6040
      %v6496 = vunpack.c.l.b16 %v6041
      %v6497 = vunpack.c.l.b16 %v6042
      %v6498 = vunpack.c.l.b16 %v6043
      %v6499 = vunpack.c.l.b16 %v6044
      %v6500 = vunpack.c.l.b16 %v6045
      %v6501 = vunpack.c.l.b16 %v6046
      %v6502 = vunpack.c.l.b16 %v6047
      %v6503 = vunpack.c.l.b16 %v6048
      %v6504 = vunpack.c.l.b16 %v6049
      %v6505 = vunpack.c.l.b16 %v6050
      %v6506 = vunpack.c.l.b16 %v6051
      %v6507 = vunpack.c.l.b16 %v6052
      %v6508 = vunpack.c.l.b16 %v6053
      %v6509 = vunpack.c.l.b16 %v6054
      %v6510 = vunpack.c.l.b16 %v6055
      %v6511 = vunpack.c.l.b16 %v6056
      %v6512 = vunpack.c.l.b16 %v6057
      %v6513 = vunpack.c.l.b16 %v6058
      %v6514 = vunpack.c.l.b16 %v6059
      %v6515 = vunpack.c.l.b16 %v6060
      %v6516 = vunpack.c.l.b16 %v6061
      %v6517 = vunpack.c.l.b16 %v6062
      %v6518 = vunpack.c.l.b16 %v6063
      %v6519 = vunpack.c.l.b16 %v6064
      %v6520 = vunpack.c.l.b16 %v6065
      %v6521 = vunpack.c.l.b16 %v6066
      %v6522 = vunpack.c.l.b16 %v6067
      %v6523 = vunpack.c.l.b16 %v6068
      %v6524 = vunpack.c.l.b16 %v6069
      %v6525 = vunpack.c.l.b16 %v6070
      %v6526 = vunpack.c.l.b16 %v6071
      %v6527 = vunpack.c.l.b16 %v6072
      %v6528 = vunpack.c.l.b16 %v6073
      %v6529 = vunpack.c.l.b16 %v6074
      %v6530 = vunpack.c.l.b16 %v6075
      %v6531 = vunpack.c.l.b16 %v6076
      %v6532 = vunpack.c.l.b16 %v6077
      %v6533 = vunpack.c.l.b16 %v6078
      %v6534 = vunpack.c.l.b16 %v6079
      %v6535 = vunpack.c.l.b16 %v6080
      %v6536 = vunpack.c.l.b16 %v6081
      %v6537 = vunpack.c.l.b16 %v6082
      %v6538 = vunpack.c.l.b16 %v6083
      %v6539 = vunpack.c.l.b16 %v6084
      %v6540 = vunpack.c.l.b16 %v6085
      %v6541 = vunpack.c.l.b16 %v6086
      %v6542 = vunpack.c.l.b16 %v6087
      %v6543 = vunpack.c.l.b16 %v6088
      %v6544 = vunpack.c.l.b16 %v6089
      %v6545 = vunpack.c.l.b16 %v6090
      %v6546 = vunpack.c.l.b16 %v6091
      %v6547 = vunpack.c.l.b16 %v6092
      %v6548 = vunpack.c.l.b16 %v6093
      %v6549 = vunpack.c.l.b16 %v6094
      %v6550 = vunpack.c.l.b16 %v6095
      %v6551 = vunpack.c.l.b16 %v6096
      %v6552 = vunpack.c.l.b16 %v6097
      %v6553 = vunpack.c.l.b16 %v6098
      %v6554 = vunpack.c.l.b16 %v6099
      %v6555 = vunpack.c.l.b16 %v6100
      %v6556 = vunpack.c.l.b16 %v6101
      %v6557 = vunpack.c.l.b16 %v6102
      %v6558 = vunpack.c.l.b16 %v6103
      %v6559 = vunpack.c.l.b16 %v6104
      %v6560 = vunpack.c.l.b16 %v6105
      %v6561 = vunpack.c.l.b16 %v6106
      %v6562 = vunpack.c.l.b16 %v6107
      %v6563 = vunpack.c.l.b16 %v6108
      %v6564 = vunpack.c.l.b16 %v6109
      %v6565 = vunpack.c.l.b16 %v6110
      %v6566 = vunpack.c.l.b16 %v6111
      %v6567 = vunpack.c.l.b16 %v6112
      %v6568 = vunpack.c.l.b16 %v6113
      %v6569 = vunpack.c.l.b16 %v6114
      %v6570 = vunpack.c.l.b16 %v6115
      %v6571 = vunpack.c.l.b16 %v6116
      %v6572 = vunpack.c.l.b16 %v6117
      %v6573 = vunpack.c.l.b16 %v6118
      %v6574 = vunpack.c.l.b16 %v6119
      %v6575 = vunpack.c.l.b16 %v6120
      %v6576 = vunpack.c.l.b16 %v6121
      %v6577 = vunpack.c.l.b16 %v6122
      %v6578 = vunpack.c.l.b16 %v6123
      %v6579 = vunpack.c.l.b16 %v6124
      %v6580 = vunpack.c.l.b16 %v6125
      %v6581 = vunpack.c.l.b16 %v6126
      %v6582 = vunpack.c.l.b16 %v6127
      %v6583 = vunpack.c.l.b16 %v6128
      %v6584 = vunpack.c.l.b16 %v6129
      %v6585 = vunpack.c.l.b16 %v6130
      %v6586 = vunpack.c.l.b16 %v6131
      %v6587 = vunpack.c.l.b16 %v6132
      %v6588 = vunpack.c.l.b16 %v6133
      %v6589 = vunpack.c.l.b16 %v6134
      %v6590 = vunpack.c.l.b16 %v6135
      %v6591 = vunpack.c.l.b16 %v6136
      %v6592 = vunpack.c.l.b16 %v6137
      %v6593 = vunpack.c.l.b16 %v6138
      %v6594 = vunpack.c.l.b16 %v6139
      %v6595 = vunpack.c.l.b16 %v6140
      %v6596 = vunpack.c.l.b16 %v6141
      %v6597 = vunpack.c.l.b16 %v6142
      %v6598 = vunpack.c.l.b16 %v6143
      %v6599 = vunpack.c.l.b16 %v6144
      %v6600 = vunpack.c.l.b16 %v6145
      %v6601 = vunpack.c.l.b16 %v6146
      %v6602 = vunpack.c.l.b16 %v6147
      %v6603 = vunpack.c.l.b16 %v6148
      %v6604 = vunpack.c.l.b16 %v6149
      %v6605 = vunpack.c.l.b16 %v6150
      %v6606 = vunpack.c.l.b16 %v6151
      %v6607 = vunpack.c.l.b16 %v6152
      %v6608 = vunpack.c.l.b16 %v6153
      %v6609 = vunpack.c.l.b16 %v6154
      %v6610 = vunpack.c.l.b16 %v6155
      %v6611 = vunpack.c.l.b16 %v6156
      %v6612 = vunpack.c.l.b16 %v6157
      %v6613 = vunpack.c.l.b16 %v6158
      %v6614 = vunpack.c.l.b16 %v6159
      %v6615 = vunpack.c.l.b16 %v6160
      %v6616 = vunpack.c.l.b16 %v6161
      %v6617 = vunpack.c.l.b16 %v6162
      %v6618 = vunpack.c.l.b16 %v6163
      %v6619 = vunpack.c.l.b16 %v6164
      %v6620 = vunpack.c.l.b16 %v6165
      %v6621 = vunpack.c.l.b16 %v6166
      %v6622 = vunpack.c.l.b16 %v6167
      %v6623 = vunpack.c.l.b16 %v6168
      %v6624 = vunpack.c.l.b16 %v6169
      %v6625 = vunpack.c.l.b16 %v6170
      %v6626 = vunpack.c.l.b16 %v6171
      %v6627 = vunpack.c.l.b16 %v6172
      %v6628 = vunpack.c.l.b16 %v6173
      %v6629 = vunpack.c.l.b16 %v6174
      %v6630 = vunpack.c.l.b16 %v6175
      %v6631 = vunpack.c.l.b16 %v6176
      %v6632 = vunpack.c.l.b16 %v6177
      %v6633 = vunpack.c.l.b16 %v6178
      %v6634 = vunpack.c.l.b16 %v6179
      %v6635 = vunpack.c.l.b16 %v6180
      %v6636 = vunpack.c.l.b16 %v6181
      %v6637 = vunpack.c.l.b16 %v6182
      %v6638 = vunpack.c.l.b16 %v6183
      %v6639 = vunpack.c.l.b16 %v6184
      %v6640 = vunpack.c.l.b16 %v6185
      %v6641 = vunpack.c.l.b16 %v6186
      %v6642 = vunpack.c.l.b16 %v6187
      %v6643 = vunpack.c.l.b16 %v6188
      %v6644 = vunpack.c.l.b16 %v6189
      %v6645 = vunpack.c.l.b16 %v6190
      %v6646 = vunpack.c.l.b16 %v6191
      %v6647 = vunpack.c.l.b16 %v6192
      %v6648 = vunpack.c.l.b16 %v6193
      %v6649 = vunpack.c.l.b16 %v6194
      %v6650 = vunpack.c.l.b16 %v6195
      %v6651 = vunpack.c.l.b16 %v6196
      %v6652 = vunpack.c.l.b16 %v6197
      %v6653 = vunpack.c.l.b16 %v6198
      %v6654 = vunpack.c.l.b16 %v6199
      %v6655 = vunpack.c.l.b16 %v6200
      %v6656 = vunpack.c.l.b16 %v6201
      %v6657 = vunpack.c.l.b16 %v6202
      %v6658 = vunpack.c.l.b16 %v6203
      %v6659 = vunpack.c.l.b16 %v6204
      %v6660 = vunpack.c.l.b16 %v6205
      %v6661 = vunpack.c.l.b16 %v6206
      %v6662 = vunpack.c.l.b16 %v6207
      %v6663 = vunpack.c.l.b16 %v6208
      %v6664 = vunpack.c.l.b16 %v6209
      %v6665 = vunpack.c.l.b16 %v6210
      %v6666 = vunpack.c.l.b16 %v6211
      %v6667 = vunpack.c.l.b16 %v6212
      %v6668 = vunpack.c.l.b16 %v6213
      %v6669 = vunpack.c.l.b16 %v6214
      %v6670 = vunpack.c.l.b16 %v6215
      %v6671 = vunpack.c.l.b16 %v6216
      %v6672 = vunpack.c.l.b16 %v6217
      %v6673 = vunpack.c.l.b16 %v6218
      %v6674 = vunpack.c.l.b16 %v6219
      %v6675 = vunpack.c.l.b16 %v6220
      %v6676 = vunpack.c.l.b16 %v6221
      %v6677 = vunpack.c.l.b16 %v6222
      %v6678 = vunpack.c.l.b16 %v6223
      %v6679 = vunpack.c.l.b16 %v6224
      %v6680 = vunpack.c.l.b16 %v6225
      %v6681 = vunpack.c.l.b16 %v6226
      %v6682 = vunpack.c.l.b16 %v6227
      %v6683 = vunpack.c.l.b16 %v6228
      %v6684 = vunpack.c.l.b16 %v6229
      %v6685 = vunpack.c.l.b16 %v6230
      %v6686 = vunpack.c.l.b16 %v6231
      %v6687 = vunpack.c.l.b16 %v6232
      %v6688 = vunpack.c.l.b16 %v6233
      %v6689 = vunpack.c.l.b16 %v6234
      %v6690 = vunpack.c.l.b16 %v6235
      %v6691 = vunpack.c.l.b16 %v6236
      %v6692 = vunpack.c.l.b16 %v6237
      %v6693 = vunpack.c.l.b16 %v6238
      %v6694 = vunpack.c.l.b16 %v6239
      %v6695 = vunpack.c.l.b16 %v6240
      %v6696 = vunpack.c.l.b16 %v6241
      %v6697 = vpack.c.b16 %v6474, %v6473
      %v6698 = vpack.c.b16 %v6476, %v6475
      %v6699 = vpack.c.b16 %v6478, %v6477
      %v6700 = vpack.c.b16 %v6480, %v6479
      %v6701 = vpack.c.b16 %v6482, %v6481
      %v6702 = vpack.c.b16 %v6484, %v6483
      %v6703 = vpack.c.b16 %v6486, %v6485
      %v6704 = vpack.c.b16 %v6488, %v6487
      %v6705 = vpack.c.b16 %v6490, %v6489
      %v6706 = vpack.c.b16 %v6492, %v6491
      %v6707 = vpack.c.b16 %v6494, %v6493
      %v6708 = vpack.c.b16 %v6496, %v6495
      %v6709 = vpack.c.b16 %v6498, %v6497
      %v6710 = vpack.c.b16 %v6500, %v6499
      %v6711 = vpack.c.b16 %v6502, %v6501
      %v6712 = vpack.c.b16 %v6504, %v6503
      %v6713 = vpack.c.b16 %v6506, %v6505
      %v6714 = vpack.c.b16 %v6508, %v6507
      %v6715 = vpack.c.b16 %v6510, %v6509
      %v6716 = vpack.c.b16 %v6512, %v6511
      %v6717 = vpack.c.b16 %v6514, %v6513
      %v6718 = vpack.c.b16 %v6516, %v6515
      %v6719 = vpack.c.b16 %v6518, %v6517
      %v6720 = vpack.c.b16 %v6520, %v6519
      %v6721 = vpack.c.b16 %v6522, %v6521
      %v6722 = vpack.c.b16 %v6524, %v6523
      %v6723 = vpack.c.b16 %v6526, %v6525
      %v6724 = vpack.c.b16 %v6528, %v6527
      %v6725 = vpack.c.b16 %v6530, %v6529
      %v6726 = vpack.c.b16 %v6532, %v6531
      %v6727 = vpack.c.b16 %v6534, %v6533
      %v6728 = vpack.c.b16 %v6536, %v6535
      %v6729 = vpack.c.b16 %v6538, %v6537
      %v6730 = vpack.c.b16 %v6540, %v6539
      %v6731 = vpack.c.b16 %v6542, %v6541
      %v6732 = vpack.c.b16 %v6544, %v6543
      %v6733 = vpack.c.b16 %v6546, %v6545
      %v6734 = vpack.c.b16 %v6548, %v6547
      %v6735 = vpack.c.b16 %v6550, %v6549
      %v6736 = vpack.c.b16 %v6552, %v6551
      %v6737 = vpack.c.b16 %v6554, %v6553
      %v6738 = vpack.c.b16 %v6556, %v6555
      %v6739 = vpack.c.b16 %v6558, %v6557
      %v6740 = vpack.c.b16 %v6560, %v6559
      %v6741 = vpack.c.b16 %v6562, %v6561
      %v6742 = vpack.c.b16 %v6564, %v6563
      %v6743 = vpack.c.b16 %v6566, %v6565
      %v6744 = vpack.c.b16 %v6568, %v6567
      %v6745 = vpack.c.b16 %v6570, %v6569
      %v6746 = vpack.c.b16 %v6572, %v6571
      %v6747 = vpack.c.b16 %v6574, %v6573
      %v6748 = vpack.c.b16 %v6576, %v6575
      %v6749 = vpack.c.b16 %v6578, %v6577
      %v6750 = vpack.c.b16 %v6580, %v6579
      %v6751 = vpack.c.b16 %v6582, %v6581
      %v6752 = vpack.c.b16 %v6584, %v6583
      %v6753 = vpack.c.b16 %v6586, %v6585
      %v6754 = vpack.c.b16 %v6588, %v6587
      %v6755 = vpack.c.b16 %v6590, %v6589
      %v6756 = vpack.c.b16 %v6592, %v6591
      %v6757 = vpack.c.b16 %v6594, %v6593
      %v6758 = vpack.c.b16 %v6596, %v6595
      %v6759 = vpack.c.b16 %v6598, %v6597
      %v6760 = vpack.c.b16 %v6600, %v6599
      %v6761 = vpack.c.b16 %v6602, %v6601
      %v6762 = vpack.c.b16 %v6604, %v6603
      %v6763 = vpack.c.b16 %v6606, %v6605
      %v6764 = vpack.c.b16 %v6608, %v6607
      %v6765 = vpack.c.b16 %v6610, %v6609
      %v6766 = vpack.c.b16 %v6612, %v6611
      %v6767 = vpack.c.b16 %v6614, %v6613
      %v6768 = vpack.c.b16 %v6616, %v6615
      %v6769 = vpack.c.b16 %v6618, %v6617
      %v6770 = vpack.c.b16 %v6620, %v6619
      %v6771 = vpack.c.b16 %v6622, %v6621
      %v6772 = vpack.c.b16 %v6624, %v6623
      %v6773 = vpack.c.b16 %v6626, %v6625
      %v6774 = vpack.c.b16 %v6628, %v6627
      %v6775 = vpack.c.b16 %v6630, %v6629
      %v6776 = vpack.c.b16 %v6632, %v6631
      %v6777 = vpack.c.b16 %v6634, %v6633
      %v6778 = vpack.c.b16 %v6636, %v6635
      %v6779 = vpack.c.b16 %v6638, %v6637
      %v6780 = vpack.c.b16 %v6640, %v6639
      %v6781 = vpack.c.b16 %v6642, %v6641
      %v6782 = vpack.c.b16 %v6644, %v6643
      %v6783 = vpack.c.b16 %v6646, %v6645
      %v6784 = vpack.c.b16 %v6648, %v6647
      %v6785 = vpack.c.b16 %v6650, %v6649
      %v6786 = vpack.c.b16 %v6652, %v6651
      %v6787 = vpack.c.b16 %v6654, %v6653
      %v6788 = vpack.c.b16 %v6656, %v6655
      %v6789 = vpack.c.b16 %v6658, %v6657
      %v6790 = vpack.c.b16 %v6660, %v6659
      %v6791 = vpack.c.b16 %v6662, %v6661
      %v6792 = vpack.c.b16 %v6664, %v6663
      %v6793 = vpack.c.b16 %v6666, %v6665
      %v6794 = vpack.c.b16 %v6668, %v6667
      %v6795 = vpack.c.b16 %v6670, %v6669
      %v6796 = vpack.c.b16 %v6672, %v6671
      %v6797 = vpack.c.b16 %v6674, %v6673
      %v6798 = vpack.c.b16 %v6676, %v6675
      %v6799 = vpack.c.b16 %v6678, %v6677
      %v6800 = vpack.c.b16 %v6680, %v6679
      %v6801 = vpack.c.b16 %v6682, %v6681
      %v6802 = vpack.c.b16 %v6684, %v6683
      %v6803 = vpack.c.b16 %v6686, %v6685
      %v6804 = vpack.c.b16 %v6688, %v6687
      %v6805 = vpack.c.b16 %v6690, %v6689
      %v6806 = vpack.c.b16 %v6692, %v6691
      %v6807 = vpack.c.b16 %v6694, %v6693
      %v6808 = vpack.c.b16 %v6696, %v6695
      %6921 = vmatprep.subr.bf16.mxu0 0
      %6922 = vmatpush1.bf16.msra.mxu0 %v6704
      %6923 = vmatprep.subr.bf16.mxu0 0
      %6924 = vmatpush1.bf16.msra.mxu0 %v6703
      %6925 = vmatprep.subr.bf16.mxu0 0
      %6926 = vmatpush1.bf16.msra.mxu0 %v6702
      %6927 = vmatprep.subr.bf16.mxu0 0
      %6928 = vmatpush1.bf16.msra.mxu0 %v6701
      %6929 = vmatprep.subr.bf16.mxu0 0
      %6930 = vmatpush1.bf16.msra.mxu0 %v6700
      %6931 = vmatprep.subr.bf16.mxu0 0
      %6932 = vmatpush1.bf16.msra.mxu0 %v6699
      %6933 = vmatprep.subr.bf16.mxu0 0
      %6934 = vmatpush1.bf16.msra.mxu0 %v6698
      %6935 = vmatprep.subr.bf16.mxu0 0
      %6936 = vmatpush1.bf16.msra.mxu0 %v6697
      %6937 = vmatprep.subr.bf16.mxu0 0
      %6938 = vmatpush2.bf16.msra.mxu0 %v6712
      %6939 = vmatprep.subr.bf16.mxu0 0
      %6940 = vmatpush2.bf16.msra.mxu0 %v6711
      %6941 = vmatprep.subr.bf16.mxu0 0
      %6942 = vmatpush2.bf16.msra.mxu0 %v6710
      %6943 = vmatprep.subr.bf16.mxu0 0
      %6944 = vmatpush2.bf16.msra.mxu0 %v6709
      %6945 = vmatprep.subr.bf16.mxu0 0
      %6946 = vmatpush2.bf16.msra.mxu0 %v6708
      %6947 = vmatprep.subr.bf16.mxu0 0
      %6948 = vmatpush2.bf16.msra.mxu0 %v6707
      %6949 = vmatprep.subr.bf16.mxu0 0
      %6950 = vmatpush2.bf16.msra.mxu0 %v6706
      %6951 = vmatprep.subr.bf16.mxu0 0
      %6952 = vmatpush2.bf16.msra.mxu0 %v6705
      %6953 = vmatprep.mubr.bf16.mxu0 %v5963
      %6954 = vmatmul.mubr.bf16.gmra.mxu0 %v5962
      %v6955 = vpop.f32.mrf.mxu0
      %v6956 = vadd.f32 %v6247, %v6955
      %v6957 = vpop.f32.mrf.mxu0
      %v6958 = vpop.f32.mrf.mxu0
      %v6959 = vadd.f32 %v6247, %v6958
      %v6960 = vpop.f32.mrf.mxu0
      %6961 = vmatprep.mubr.bf16.mxu0 %v5977
      %6962 = vmatmul.mubr.bf16.gmra.mxu0 %v5976
      %v6963 = vpop.f32.mrf.mxu0
      %v6964 = vadd.f32 %v6247, %v6963
      %v6965 = vpop.f32.mrf.mxu0
      %v6966 = vpop.f32.mrf.mxu0
      %v6967 = vadd.f32 %v6247, %v6966
      %v6968 = vpop.f32.mrf.mxu0
      %6969 = vmatprep.mubr.bf16.mxu0 %v5991
      %6970 = vmatmul.mubr.bf16.gmra.mxu0 %v5990
      %v6971 = vpop.f32.mrf.mxu0
      %v6972 = vadd.f32 %v6247, %v6971
      %v6973 = vpop.f32.mrf.mxu0
      %v6974 = vpop.f32.mrf.mxu0
      %v6975 = vadd.f32 %v6247, %v6974
      %v6976 = vpop.f32.mrf.mxu0
      %6977 = vmatprep.mubr.bf16.mxu0 %v6005
      %6978 = vmatmul.mubr.bf16.gmra.mxu0 %v6004
      %v6979 = vpop.f32.mrf.mxu0
      %v6980 = vadd.f32 %v6247, %v6979
      %v6981 = vpop.f32.mrf.mxu0
      %v6982 = vpop.f32.mrf.mxu0
      %v6983 = vadd.f32 %v6247, %v6982
      %v6984 = vpop.f32.mrf.mxu0
      %6985 = vdwg.mxu0
      %6986 = vmatprep.subr.bf16.mxu0 0
      %6987 = vmatpush1.bf16.msra.mxu0 %v6720
      %6988 = vmatprep.subr.bf16.mxu0 0
      %6989 = vmatpush1.bf16.msra.mxu0 %v6719
      %6990 = vmatprep.subr.bf16.mxu0 0
      %6991 = vmatpush1.bf16.msra.mxu0 %v6718
      %6992 = vmatprep.subr.bf16.mxu0 0
      %6993 = vmatpush1.bf16.msra.mxu0 %v6717
      %6994 = vmatprep.subr.bf16.mxu0 0
      %6995 = vmatpush1.bf16.msra.mxu0 %v6716
      %6996 = vmatprep.subr.bf16.mxu0 0
      %6997 = vmatpush1.bf16.msra.mxu0 %v6715
      %6998 = vmatprep.subr.bf16.mxu0 0
      %6999 = vmatpush1.bf16.msra.mxu0 %v6714
      %7000 = vmatprep.subr.bf16.mxu0 0
      %7001 = vmatpush1.bf16.msra.mxu0 %v6713
      %7002 = vmatprep.subr.bf16.mxu0 0
      %7003 = vmatpush2.bf16.msra.mxu0 %v6728
      %7004 = vmatprep.subr.bf16.mxu0 0
      %7005 = vmatpush2.bf16.msra.mxu0 %v6727
      %7006 = vmatprep.subr.bf16.mxu0 0
      %7007 = vmatpush2.bf16.msra.mxu0 %v6726
      %7008 = vmatprep.subr.bf16.mxu0 0
      %7009 = vmatpush2.bf16.msra.mxu0 %v6725
      %7010 = vmatprep.subr.bf16.mxu0 0
      %7011 = vmatpush2.bf16.msra.mxu0 %v6724
      %7012 = vmatprep.subr.bf16.mxu0 0
      %7013 = vmatpush2.bf16.msra.mxu0 %v6723
      %7014 = vmatprep.subr.bf16.mxu0 0
      %7015 = vmatpush2.bf16.msra.mxu0 %v6722
      %7016 = vmatprep.subr.bf16.mxu0 0
      %7017 = vmatpush2.bf16.msra.mxu0 %v6721
      %7018 = vmatprep.mubr.bf16.mxu0 %v5965
      %7019 = vmatmul.mubr.bf16.gmra.mxu0 %v5964
      %v7020 = vpop.f32.mrf.mxu0
      %v7021 = vadd.f32 %v6956, %v7020
      %v7022 = vpop.f32.mrf.mxu0
      %v7023 = vpop.f32.mrf.mxu0
      %v7024 = vadd.f32 %v6959, %v7023
      %v7025 = vpop.f32.mrf.mxu0
      %7026 = vmatprep.mubr.bf16.mxu0 %v5979
      %7027 = vmatmul.mubr.bf16.gmra.mxu0 %v5978
      %v7028 = vpop.f32.mrf.mxu0
      %v7029 = vadd.f32 %v6964, %v7028
      %v7030 = vpop.f32.mrf.mxu0
      %v7031 = vpop.f32.mrf.mxu0
      %v7032 = vadd.f32 %v6967, %v7031
      %v7033 = vpop.f32.mrf.mxu0
      %7034 = vmatprep.mubr.bf16.mxu0 %v5993
      %7035 = vmatmul.mubr.bf16.gmra.mxu0 %v5992
      %v7036 = vpop.f32.mrf.mxu0
      %v7037 = vadd.f32 %v6972, %v7036
      %v7038 = vpop.f32.mrf.mxu0
      %v7039 = vpop.f32.mrf.mxu0
      %v7040 = vadd.f32 %v6975, %v7039
      %v7041 = vpop.f32.mrf.mxu0
      %7042 = vmatprep.mubr.bf16.mxu0 %v6007
      %7043 = vmatmul.mubr.bf16.gmra.mxu0 %v6006
      %v7044 = vpop.f32.mrf.mxu0
      %v7045 = vadd.f32 %v6980, %v7044
      %v7046 = vpop.f32.mrf.mxu0
      %v7047 = vpop.f32.mrf.mxu0
      %v7048 = vadd.f32 %v6983, %v7047
      %v7049 = vpop.f32.mrf.mxu0
      %7050 = vdwg.mxu0
      %7051 = vmatprep.subr.bf16.mxu0 0
      %7052 = vmatpush1.bf16.msra.mxu0 %v6736
      %7053 = vmatprep.subr.bf16.mxu0 0
      %7054 = vmatpush1.bf16.msra.mxu0 %v6735
      %7055 = vmatprep.subr.bf16.mxu0 0
      %7056 = vmatpush1.bf16.msra.mxu0 %v6734
      %7057 = vmatprep.subr.bf16.mxu0 0
      %7058 = vmatpush1.bf16.msra.mxu0 %v6733
      %7059 = vmatprep.subr.bf16.mxu0 0
      %7060 = vmatpush1.bf16.msra.mxu0 %v6732
      %7061 = vmatprep.subr.bf16.mxu0 0
      %7062 = vmatpush1.bf16.msra.mxu0 %v6731
      %7063 = vmatprep.subr.bf16.mxu0 0
      %7064 = vmatpush1.bf16.msra.mxu0 %v6730
      %7065 = vmatprep.subr.bf16.mxu0 0
      %7066 = vmatpush1.bf16.msra.mxu0 %v6729
      %7067 = vmatprep.subr.bf16.mxu0 0
      %7068 = vmatpush2.bf16.msra.mxu0 %v6744
      %7069 = vmatprep.subr.bf16.mxu0 0
      %7070 = vmatpush2.bf16.msra.mxu0 %v6743
      %7071 = vmatprep.subr.bf16.mxu0 0
      %7072 = vmatpush2.bf16.msra.mxu0 %v6742
      %7073 = vmatprep.subr.bf16.mxu0 0
      %7074 = vmatpush2.bf16.msra.mxu0 %v6741
      %7075 = vmatprep.subr.bf16.mxu0 0
      %7076 = vmatpush2.bf16.msra.mxu0 %v6740
      %7077 = vmatprep.subr.bf16.mxu0 0
      %7078 = vmatpush2.bf16.msra.mxu0 %v6739
      %7079 = vmatprep.subr.bf16.mxu0 0
      %7080 = vmatpush2.bf16.msra.mxu0 %v6738
      %7081 = vmatprep.subr.bf16.mxu0 0
      %7082 = vmatpush2.bf16.msra.mxu0 %v6737
      %7083 = vmatprep.mubr.bf16.mxu0 %v5967
      %7084 = vmatmul.mubr.bf16.gmra.mxu0 %v5966
      %v7085 = vpop.f32.mrf.mxu0
      %v7086 = vadd.f32 %v7021, %v7085
      %v7087 = vpop.f32.mrf.mxu0
      %v7088 = vpop.f32.mrf.mxu0
      %v7089 = vadd.f32 %v7024, %v7088
      %v7090 = vpop.f32.mrf.mxu0
      %7091 = vmatprep.mubr.bf16.mxu0 %v5981
      %7092 = vmatmul.mubr.bf16.gmra.mxu0 %v5980
      %v7093 = vpop.f32.mrf.mxu0
      %v7094 = vadd.f32 %v7029, %v7093
      %v7095 = vpop.f32.mrf.mxu0
      %v7096 = vpop.f32.mrf.mxu0
      %v7097 = vadd.f32 %v7032, %v7096
      %v7098 = vpop.f32.mrf.mxu0
      %7099 = vmatprep.mubr.bf16.mxu0 %v5995
      %7100 = vmatmul.mubr.bf16.gmra.mxu0 %v5994
      %v7101 = vpop.f32.mrf.mxu0
      %v7102 = vadd.f32 %v7037, %v7101
      %v7103 = vpop.f32.mrf.mxu0
      %v7104 = vpop.f32.mrf.mxu0
      %v7105 = vadd.f32 %v7040, %v7104
      %v7106 = vpop.f32.mrf.mxu0
      %7107 = vmatprep.mubr.bf16.mxu0 %v6009
      %7108 = vmatmul.mubr.bf16.gmra.mxu0 %v6008
      %v7109 = vpop.f32.mrf.mxu0
      %v7110 = vadd.f32 %v7045, %v7109
      %v7111 = vpop.f32.mrf.mxu0
      %v7112 = vpop.f32.mrf.mxu0
      %v7113 = vadd.f32 %v7048, %v7112
      %v7114 = vpop.f32.mrf.mxu0
      %7115 = vdwg.mxu0
      %7116 = vmatprep.subr.bf16.mxu0 0
      %7117 = vmatpush1.bf16.msra.mxu0 %v6752
      %7118 = vmatprep.subr.bf16.mxu0 0
      %7119 = vmatpush1.bf16.msra.mxu0 %v6751
      %7120 = vmatprep.subr.bf16.mxu0 0
      %7121 = vmatpush1.bf16.msra.mxu0 %v6750
      %7122 = vmatprep.subr.bf16.mxu0 0
      %7123 = vmatpush1.bf16.msra.mxu0 %v6749
      %7124 = vmatprep.subr.bf16.mxu0 0
      %7125 = vmatpush1.bf16.msra.mxu0 %v6748
      %7126 = vmatprep.subr.bf16.mxu0 0
      %7127 = vmatpush1.bf16.msra.mxu0 %v6747
      %7128 = vmatprep.subr.bf16.mxu0 0
      %7129 = vmatpush1.bf16.msra.mxu0 %v6746
      %7130 = vmatprep.subr.bf16.mxu0 0
      %7131 = vmatpush1.bf16.msra.mxu0 %v6745
      %7132 = vmatprep.subr.bf16.mxu0 0
      %7133 = vmatpush2.bf16.msra.mxu0 %v6760
      %7134 = vmatprep.subr.bf16.mxu0 0
      %7135 = vmatpush2.bf16.msra.mxu0 %v6759
      %7136 = vmatprep.subr.bf16.mxu0 0
      %7137 = vmatpush2.bf16.msra.mxu0 %v6758
      %7138 = vmatprep.subr.bf16.mxu0 0
      %7139 = vmatpush2.bf16.msra.mxu0 %v6757
      %7140 = vmatprep.subr.bf16.mxu0 0
      %7141 = vmatpush2.bf16.msra.mxu0 %v6756
      %7142 = vmatprep.subr.bf16.mxu0 0
      %7143 = vmatpush2.bf16.msra.mxu0 %v6755
      %7144 = vmatprep.subr.bf16.mxu0 0
      %7145 = vmatpush2.bf16.msra.mxu0 %v6754
      %7146 = vmatprep.subr.bf16.mxu0 0
      %7147 = vmatpush2.bf16.msra.mxu0 %v6753
      %7148 = vmatprep.mubr.bf16.mxu0 %v5969
      %7149 = vmatmul.mubr.bf16.gmra.mxu0 %v5968
      %v7150 = vpop.f32.mrf.mxu0
      %v7151 = vadd.f32 %v7086, %v7150
      %v7152 = vpop.f32.mrf.mxu0
      %v7153 = vpop.f32.mrf.mxu0
      %v7154 = vadd.f32 %v7089, %v7153
      %v7155 = vpop.f32.mrf.mxu0
      %7156 = vmatprep.mubr.bf16.mxu0 %v5983
      %7157 = vmatmul.mubr.bf16.gmra.mxu0 %v5982
      %v7158 = vpop.f32.mrf.mxu0
      %v7159 = vadd.f32 %v7094, %v7158
      %v7160 = vpop.f32.mrf.mxu0
      %v7161 = vpop.f32.mrf.mxu0
      %v7162 = vadd.f32 %v7097, %v7161
      %v7163 = vpop.f32.mrf.mxu0
      %7164 = vmatprep.mubr.bf16.mxu0 %v5997
      %7165 = vmatmul.mubr.bf16.gmra.mxu0 %v5996
      %v7166 = vpop.f32.mrf.mxu0
      %v7167 = vadd.f32 %v7102, %v7166
      %v7168 = vpop.f32.mrf.mxu0
      %v7169 = vpop.f32.mrf.mxu0
      %v7170 = vadd.f32 %v7105, %v7169
      %v7171 = vpop.f32.mrf.mxu0
      %7172 = vmatprep.mubr.bf16.mxu0 %v6011
      %7173 = vmatmul.mubr.bf16.gmra.mxu0 %v6010
      %v7174 = vpop.f32.mrf.mxu0
      %v7175 = vadd.f32 %v7110, %v7174
      %v7176 = vpop.f32.mrf.mxu0
      %v7177 = vpop.f32.mrf.mxu0
      %v7178 = vadd.f32 %v7113, %v7177
      %v7179 = vpop.f32.mrf.mxu0
      %7180 = vdwg.mxu0
      %7181 = vmatprep.subr.bf16.mxu0 0
      %7182 = vmatpush1.bf16.msra.mxu0 %v6768
      %7183 = vmatprep.subr.bf16.mxu0 0
      %7184 = vmatpush1.bf16.msra.mxu0 %v6767
      %7185 = vmatprep.subr.bf16.mxu0 0
      %7186 = vmatpush1.bf16.msra.mxu0 %v6766
      %7187 = vmatprep.subr.bf16.mxu0 0
      %7188 = vmatpush1.bf16.msra.mxu0 %v6765
      %7189 = vmatprep.subr.bf16.mxu0 0
      %7190 = vmatpush1.bf16.msra.mxu0 %v6764
      %7191 = vmatprep.subr.bf16.mxu0 0
      %7192 = vmatpush1.bf16.msra.mxu0 %v6763
      %7193 = vmatprep.subr.bf16.mxu0 0
      %7194 = vmatpush1.bf16.msra.mxu0 %v6762
      %7195 = vmatprep.subr.bf16.mxu0 0
      %7196 = vmatpush1.bf16.msra.mxu0 %v6761
      %7197 = vmatprep.subr.bf16.mxu0 0
      %7198 = vmatpush2.bf16.msra.mxu0 %v6776
      %7199 = vmatprep.subr.bf16.mxu0 0
      %7200 = vmatpush2.bf16.msra.mxu0 %v6775
      %7201 = vmatprep.subr.bf16.mxu0 0
      %7202 = vmatpush2.bf16.msra.mxu0 %v6774
      %7203 = vmatprep.subr.bf16.mxu0 0
      %7204 = vmatpush2.bf16.msra.mxu0 %v6773
      %7205 = vmatprep.subr.bf16.mxu0 0
      %7206 = vmatpush2.bf16.msra.mxu0 %v6772
      %7207 = vmatprep.subr.bf16.mxu0 0
      %7208 = vmatpush2.bf16.msra.mxu0 %v6771
      %7209 = vmatprep.subr.bf16.mxu0 0
      %7210 = vmatpush2.bf16.msra.mxu0 %v6770
      %7211 = vmatprep.subr.bf16.mxu0 0
      %7212 = vmatpush2.bf16.msra.mxu0 %v6769
      %7213 = vmatprep.mubr.bf16.mxu0 %v5971
      %7214 = vmatmul.mubr.bf16.gmra.mxu0 %v5970
      %v7215 = vpop.f32.mrf.mxu0
      %v7216 = vadd.f32 %v7151, %v7215
      %v7217 = vpop.f32.mrf.mxu0
      %v7218 = vpop.f32.mrf.mxu0
      %v7219 = vadd.f32 %v7154, %v7218
      %v7220 = vpop.f32.mrf.mxu0
      %7221 = vmatprep.mubr.bf16.mxu0 %v5985
      %7222 = vmatmul.mubr.bf16.gmra.mxu0 %v5984
      %v7223 = vpop.f32.mrf.mxu0
      %v7224 = vadd.f32 %v7159, %v7223
      %v7225 = vpop.f32.mrf.mxu0
      %v7226 = vpop.f32.mrf.mxu0
      %v7227 = vadd.f32 %v7162, %v7226
      %v7228 = vpop.f32.mrf.mxu0
      %7229 = vmatprep.mubr.bf16.mxu0 %v5999
      %7230 = vmatmul.mubr.bf16.gmra.mxu0 %v5998
      %v7231 = vpop.f32.mrf.mxu0
      %v7232 = vadd.f32 %v7167, %v7231
      %v7233 = vpop.f32.mrf.mxu0
      %v7234 = vpop.f32.mrf.mxu0
      %v7235 = vadd.f32 %v7170, %v7234
      %v7236 = vpop.f32.mrf.mxu0
      %7237 = vmatprep.mubr.bf16.mxu0 %v6013
      %7238 = vmatmul.mubr.bf16.gmra.mxu0 %v6012
      %v7239 = vpop.f32.mrf.mxu0
      %v7240 = vadd.f32 %v7175, %v7239
      %v7241 = vpop.f32.mrf.mxu0
      %v7242 = vpop.f32.mrf.mxu0
      %v7243 = vadd.f32 %v7178, %v7242
      %v7244 = vpop.f32.mrf.mxu0
      %7245 = vdwg.mxu0
      %7246 = vmatprep.subr.bf16.mxu0 0
      %7247 = vmatpush1.bf16.msra.mxu0 %v6784
      %7248 = vmatprep.subr.bf16.mxu0 0
      %7249 = vmatpush1.bf16.msra.mxu0 %v6783
      %7250 = vmatprep.subr.bf16.mxu0 0
      %7251 = vmatpush1.bf16.msra.mxu0 %v6782
      %7252 = vmatprep.subr.bf16.mxu0 0
      %7253 = vmatpush1.bf16.msra.mxu0 %v6781
      %7254 = vmatprep.subr.bf16.mxu0 0
      %7255 = vmatpush1.bf16.msra.mxu0 %v6780
      %7256 = vmatprep.subr.bf16.mxu0 0
      %7257 = vmatpush1.bf16.msra.mxu0 %v6779
      %7258 = vmatprep.subr.bf16.mxu0 0
      %7259 = vmatpush1.bf16.msra.mxu0 %v6778
      %7260 = vmatprep.subr.bf16.mxu0 0
      %7261 = vmatpush1.bf16.msra.mxu0 %v6777
      %7262 = vmatprep.subr.bf16.mxu0 0
      %7263 = vmatpush2.bf16.msra.mxu0 %v6792
      %7264 = vmatprep.subr.bf16.mxu0 0
      %7265 = vmatpush2.bf16.msra.mxu0 %v6791
      %7266 = vmatprep.subr.bf16.mxu0 0
      %7267 = vmatpush2.bf16.msra.mxu0 %v6790
      %7268 = vmatprep.subr.bf16.mxu0 0
      %7269 = vmatpush2.bf16.msra.mxu0 %v6789
      %7270 = vmatprep.subr.bf16.mxu0 0
      %7271 = vmatpush2.bf16.msra.mxu0 %v6788
      %7272 = vmatprep.subr.bf16.mxu0 0
      %7273 = vmatpush2.bf16.msra.mxu0 %v6787
      %7274 = vmatprep.subr.bf16.mxu0 0
      %7275 = vmatpush2.bf16.msra.mxu0 %v6786
      %7276 = vmatprep.subr.bf16.mxu0 0
      %7277 = vmatpush2.bf16.msra.mxu0 %v6785
      %7278 = vmatprep.mubr.bf16.mxu0 %v5973
      %7279 = vmatmul.mubr.bf16.gmra.mxu0 %v5972
      %v7280 = vpop.f32.mrf.mxu0
      %v7281 = vadd.f32 %v7216, %v7280
      %v7282 = vpop.f32.mrf.mxu0
      %v7283 = vpop.f32.mrf.mxu0
      %v7284 = vadd.f32 %v7219, %v7283
      %v7285 = vpop.f32.mrf.mxu0
      %7286 = vmatprep.mubr.bf16.mxu0 %v5987
      %7287 = vmatmul.mubr.bf16.gmra.mxu0 %v5986
      %v7288 = vpop.f32.mrf.mxu0
      %v7289 = vadd.f32 %v7224, %v7288
      %v7290 = vpop.f32.mrf.mxu0
      %v7291 = vpop.f32.mrf.mxu0
      %v7292 = vadd.f32 %v7227, %v7291
      %v7293 = vpop.f32.mrf.mxu0
      %7294 = vmatprep.mubr.bf16.mxu0 %v6001
      %7295 = vmatmul.mubr.bf16.gmra.mxu0 %v6000
      %v7296 = vpop.f32.mrf.mxu0
      %v7297 = vadd.f32 %v7232, %v7296
      %v7298 = vpop.f32.mrf.mxu0
      %v7299 = vpop.f32.mrf.mxu0
      %v7300 = vadd.f32 %v7235, %v7299
      %v7301 = vpop.f32.mrf.mxu0
      %7302 = vmatprep.mubr.bf16.mxu0 %v6015
      %7303 = vmatmul.mubr.bf16.gmra.mxu0 %v6014
      %v7304 = vpop.f32.mrf.mxu0
      %v7305 = vadd.f32 %v7240, %v7304
      %v7306 = vpop.f32.mrf.mxu0
      %v7307 = vpop.f32.mrf.mxu0
      %v7308 = vadd.f32 %v7243, %v7307
      %v7309 = vpop.f32.mrf.mxu0
      %7310 = vdwg.mxu0
      %7311 = vmatprep.subr.bf16.mxu0 0
      %7312 = vmatpush1.bf16.msra.mxu0 %v6800
      %7313 = vmatprep.subr.bf16.mxu0 0
      %7314 = vmatpush1.bf16.msra.mxu0 %v6799
      %7315 = vmatprep.subr.bf16.mxu0 0
      %7316 = vmatpush1.bf16.msra.mxu0 %v6798
      %7317 = vmatprep.subr.bf16.mxu0 0
      %7318 = vmatpush1.bf16.msra.mxu0 %v6797
      %7319 = vmatprep.subr.bf16.mxu0 0
      %7320 = vmatpush1.bf16.msra.mxu0 %v6796
      %7321 = vmatprep.subr.bf16.mxu0 0
      %7322 = vmatpush1.bf16.msra.mxu0 %v6795
      %7323 = vmatprep.subr.bf16.mxu0 0
      %7324 = vmatpush1.bf16.msra.mxu0 %v6794
      %7325 = vmatprep.subr.bf16.mxu0 0
      %7326 = vmatpush1.bf16.msra.mxu0 %v6793
      %7327 = vmatprep.subr.bf16.mxu0 0
      %7328 = vmatpush2.bf16.msra.mxu0 %v6808
      %7329 = vmatprep.subr.bf16.mxu0 0
      %7330 = vmatpush2.bf16.msra.mxu0 %v6807
      %7331 = vmatprep.subr.bf16.mxu0 0
      %7332 = vmatpush2.bf16.msra.mxu0 %v6806
      %7333 = vmatprep.subr.bf16.mxu0 0
      %7334 = vmatpush2.bf16.msra.mxu0 %v6805
      %7335 = vmatprep.subr.bf16.mxu0 0
      %7336 = vmatpush2.bf16.msra.mxu0 %v6804
      %7337 = vmatprep.subr.bf16.mxu0 0
      %7338 = vmatpush2.bf16.msra.mxu0 %v6803
      %7339 = vmatprep.subr.bf16.mxu0 0
      %7340 = vmatpush2.bf16.msra.mxu0 %v6802
      %7341 = vmatprep.subr.bf16.mxu0 0
      %7342 = vmatpush2.bf16.msra.mxu0 %v6801
      %7343 = vmatprep.mubr.bf16.mxu0 %v5975
      %7344 = vmatmul.mubr.bf16.gmra.mxu0 %v5974
      %v7345 = vpop.f32.mrf.mxu0
      %v7346 = vadd.f32 %v7281, %v7345
      %v7347 = vpop.f32.mrf.mxu0
      %v7348 = vpop.f32.mrf.mxu0
      %v7349 = vadd.f32 %v7284, %v7348
      %v7350 = vpop.f32.mrf.mxu0
      %7351 = vmatprep.mubr.bf16.mxu0 %v5989
      %7352 = vmatmul.mubr.bf16.gmra.mxu0 %v5988
      %v7353 = vpop.f32.mrf.mxu0
      %v7354 = vadd.f32 %v7289, %v7353
      %v7355 = vpop.f32.mrf.mxu0
      %v7356 = vpop.f32.mrf.mxu0
      %v7357 = vadd.f32 %v7292, %v7356
      %v7358 = vpop.f32.mrf.mxu0
      %7359 = vmatprep.mubr.bf16.mxu0 %v6003
      %7360 = vmatmul.mubr.bf16.gmra.mxu0 %v6002
      %v7361 = vpop.f32.mrf.mxu0
      %v7362 = vadd.f32 %v7297, %v7361
      %v7363 = vpop.f32.mrf.mxu0
      %v7364 = vpop.f32.mrf.mxu0
      %v7365 = vadd.f32 %v7300, %v7364
      %v7366 = vpop.f32.mrf.mxu0
      %7367 = vmatprep.mubr.bf16.mxu0 %v6017
      %7368 = vmatmul.mubr.bf16.gmra.mxu0 %v6016
      %v7369 = vpop.f32.mrf.mxu0
      %v7370 = vadd.f32 %v7305, %v7369
      %v7371 = vpop.f32.mrf.mxu0
      %v7372 = vpop.f32.mrf.mxu0
      %v7373 = vadd.f32 %v7308, %v7372
      %v7374 = vpop.f32.mrf.mxu0
      %7375 = vdwg.mxu0
      %vm7376 = vcmp.ge.f32.partialorder %v7346, 0.0
      %vm7377 = vcmp.ge.f32.partialorder %v7349, 0.0
      %vm7378 = vcmp.ge.f32.partialorder %v7354, 0.0
      %vm7379 = vcmp.ge.f32.partialorder %v7357, 0.0
      %vm7380 = vcmp.ge.f32.partialorder %v7362, 0.0
      %vm7381 = vcmp.ge.f32.partialorder %v7365, 0.0
      %vm7382 = vcmp.ge.f32.partialorder %v7370, 0.0
      %vm7383 = vcmp.ge.f32.partialorder %v7373, 0.0
      %v7384 = vmul.f32 %v7346, 0.2
      %v7385 = vmul.f32 %v7349, 0.2
      %v7386 = vmul.f32 %v7354, 0.2
      %v7387 = vmul.f32 %v7357, 0.2
      %v7388 = vmul.f32 %v7362, 0.2
      %v7389 = vmul.f32 %v7365, 0.2
      %v7390 = vmul.f32 %v7370, 0.2
      %v7391 = vmul.f32 %v7373, 0.2
      %v7392 = vsel %vm7376, %v7346, %v7384
      %v7393 = vsel %vm7377, %v7349, %v7385
      %v7394 = vsel %vm7378, %v7354, %v7386
      %v7395 = vsel %vm7379, %v7357, %v7387
      %v7396 = vsel %vm7380, %v7362, %v7388
      %v7397 = vsel %vm7381, %v7365, %v7389
      %v7398 = vsel %vm7382, %v7370, %v7390
      %v7399 = vsel %vm7383, %v7373, %v7391
      %v7408 = vrot.slane %v7392, 5
      %v7409 = vrot.slane %v7393, 5
      %v7410 = vsel %vm2495, %v7408, %v7409
      %v7411 = vrot.slane %v7394, 5
      %v7412 = vsel %vm2495, %v7409, %v7411
      %v7413 = vrot.slane %v7395, 5
      %v7414 = vsel %vm2495, %v7411, %v7413
      %v7415 = vrot.slane %v7396, 5
      %v7416 = vsel %vm2495, %v7413, %v7415
      %v7417 = vrot.slane %v7397, 5
      %v7418 = vsel %vm2495, %v7415, %v7417
      %v7419 = vrot.slane %v7398, 5
      %v7420 = vsel %vm2495, %v7417, %v7419
      %v7421 = vrot.slane %v7399, 5
      %v7422 = vsel %vm2495, %v7419, %v7421
      %v7432 = vsel %vm2495, 0.0, %v7408
      %v7433 = vsel %vm2495, %v7421, 0.0
      %7434 = vst [vmem:[#allocation4] sm:$0xff] 0.0
      %7435 = vst [vmem:[#allocation4 + $0x8] sm:$0xff] %v7432
      %7436 = vst [vmem:[#allocation4 + $0x10] sm:$0xff] %v7410
      %7437 = vst [vmem:[#allocation4 + $0x18] sm:$0xff] %v7412
      %7438 = vst [vmem:[#allocation4 + $0x20] sm:$0xff] %v7414
      %7439 = vst [vmem:[#allocation4 + $0x28] sm:$0xff] %v7416
      %7440 = vst [vmem:[#allocation4 + $0x30] sm:$0xff] %v7418
      %7441 = vst [vmem:[#allocation4 + $0x38] sm:$0xff] %v7420
      %7442 = vst [vmem:[#allocation4 + $0x40] sm:$0xff] %v7422
      %7443 = vst [vmem:[#allocation4 + $0x48] sm:$0xff] %v7433
      %7444 = vst [vmem:[#allocation4 + $0x50] sm:$0xff] 0.0
      %v7445 = vld [vmem:[#allocation4] ss:$4 sm:$0xff]
      %s7446 = scalar_lea.vmem [#allocation4], 32
      %v7447 = vld [vmem:[%s7446] ss:$4 sm:$0xff]
      %s7448 = scalar_lea.vmem [#allocation4], 64
      %v7449 = vld [vmem:[%s7448] ss:$4 sm:$0x3f]
      %s7450 = scalar_lea.vmem [#allocation4], 1
      %v7451 = vld [vmem:[%s7450] ss:$4 sm:$0xff]
      %s7452 = scalar_lea.vmem [#allocation4], 33
      %v7453 = vld [vmem:[%s7452] ss:$4 sm:$0xff]
      %s7454 = scalar_lea.vmem [#allocation4], 65
      %v7455 = vld [vmem:[%s7454] ss:$4 sm:$0x3f]
      %s7456 = scalar_lea.vmem [#allocation4], 2
      %v7457 = vld [vmem:[%s7456] ss:$4 sm:$0xff]
      %s7458 = scalar_lea.vmem [#allocation4], 34
      %v7459 = vld [vmem:[%s7458] ss:$4 sm:$0xff]
      %s7460 = scalar_lea.vmem [#allocation4], 66
      %v7461 = vld [vmem:[%s7460] ss:$4 sm:$0x3f]
      %s7462 = scalar_lea.vmem [#allocation4], 3
      %v7463 = vld [vmem:[%s7462] ss:$4 sm:$0xff]
      %s7464 = scalar_lea.vmem [#allocation4], 35
      %v7465 = vld [vmem:[%s7464] ss:$4 sm:$0xff]
      %s7466 = scalar_lea.vmem [#allocation4], 67
      %v7467 = vld [vmem:[%s7466] ss:$4 sm:$0x3f]
      %v7480 = vrot.slane %v7445, 1
      %v7481 = vrot.slane %v7447, 1
      %v7482 = vsel %vm3424, %v7480, %v7481
      %v7483 = vrot.slane %v7451, 1
      %v7484 = vrot.slane %v7453, 1
      %v7485 = vsel %vm3424, %v7483, %v7484
      %v7486 = vrot.slane %v7457, 1
      %v7487 = vrot.slane %v7459, 1
      %v7488 = vsel %vm3424, %v7486, %v7487
      %v7489 = vrot.slane %v7463, 1
      %v7490 = vrot.slane %v7465, 1
      %v7491 = vsel %vm3424, %v7489, %v7490
      %v7492 = vrot.slane %v7449, 1
      %v7493 = vsel %vm3424, %v7481, %v7492
      %v7494 = vrot.slane %v7455, 1
      %v7495 = vsel %vm3424, %v7484, %v7494
      %v7496 = vrot.slane %v7461, 1
      %v7497 = vsel %vm3424, %v7487, %v7496
      %v7498 = vrot.slane %v7467, 1
      %v7499 = vsel %vm3424, %v7490, %v7498
      %v7508 = vrot.slane %v7445, 2
      %v7509 = vrot.slane %v7447, 2
      %v7510 = vsel %vm1049, %v7508, %v7509
      %v7511 = vrot.slane %v7451, 2
      %v7512 = vrot.slane %v7453, 2
      %v7513 = vsel %vm1049, %v7511, %v7512
      %v7514 = vrot.slane %v7457, 2
      %v7515 = vrot.slane %v7459, 2
      %v7516 = vsel %vm1049, %v7514, %v7515
      %v7517 = vrot.slane %v7463, 2
      %v7518 = vrot.slane %v7465, 2
      %v7519 = vsel %vm1049, %v7517, %v7518
      %v7520 = vrot.slane %v7449, 2
      %v7521 = vsel %vm1049, %v7509, %v7520
      %v7522 = vrot.slane %v7455, 2
      %v7523 = vsel %vm1049, %v7512, %v7522
      %v7524 = vrot.slane %v7461, 2
      %v7525 = vsel %vm1049, %v7515, %v7524
      %v7526 = vrot.slane %v7467, 2
      %v7527 = vsel %vm1049, %v7518, %v7526
      %v7536 = vrot.slane %v7445, 3
      %v7537 = vrot.slane %v7447, 3
      %v7538 = vsel %vm3619, %v7536, %v7537
      %v7539 = vrot.slane %v7451, 3
      %v7540 = vrot.slane %v7453, 3
      %v7541 = vsel %vm3619, %v7539, %v7540
      %v7542 = vrot.slane %v7457, 3
      %v7543 = vrot.slane %v7459, 3
      %v7544 = vsel %vm3619, %v7542, %v7543
      %v7545 = vrot.slane %v7463, 3
      %v7546 = vrot.slane %v7465, 3
      %v7547 = vsel %vm3619, %v7545, %v7546
      %v7548 = vrot.slane %v7449, 3
      %v7549 = vsel %vm3619, %v7537, %v7548
      %v7550 = vrot.slane %v7455, 3
      %v7551 = vsel %vm3619, %v7540, %v7550
      %v7552 = vrot.slane %v7461, 3
      %v7553 = vsel %vm3619, %v7543, %v7552
      %v7554 = vrot.slane %v7467, 3
      %v7555 = vsel %vm3619, %v7546, %v7554
      %v7564 = vrot.slane %v7445, 4
      %v7565 = vrot.slane %v7447, 4
      %v7566 = vsel %vm2112, %v7564, %v7565
      %v7567 = vrot.slane %v7451, 4
      %v7568 = vrot.slane %v7453, 4
      %v7569 = vsel %vm2112, %v7567, %v7568
      %v7570 = vrot.slane %v7457, 4
      %v7571 = vrot.slane %v7459, 4
      %v7572 = vsel %vm2112, %v7570, %v7571
      %v7573 = vrot.slane %v7463, 4
      %v7574 = vrot.slane %v7465, 4
      %v7575 = vsel %vm2112, %v7573, %v7574
      %v7576 = vrot.slane %v7449, 4
      %v7577 = vsel %vm2112, %v7565, %v7576
      %v7578 = vrot.slane %v7455, 4
      %v7579 = vsel %vm2112, %v7568, %v7578
      %v7580 = vrot.slane %v7461, 4
      %v7581 = vsel %vm2112, %v7571, %v7580
      %v7582 = vrot.slane %v7467, 4
      %v7583 = vsel %vm2112, %v7574, %v7582
      %v7592 = vrot.slane %v7445, 5
      %v7593 = vrot.slane %v7447, 5
      %v7594 = vsel %vm2495, %v7592, %v7593
      %v7595 = vrot.slane %v7451, 5
      %v7596 = vrot.slane %v7453, 5
      %v7597 = vsel %vm2495, %v7595, %v7596
      %v7598 = vrot.slane %v7457, 5
      %v7599 = vrot.slane %v7459, 5
      %v7600 = vsel %vm2495, %v7598, %v7599
      %v7601 = vrot.slane %v7463, 5
      %v7602 = vrot.slane %v7465, 5
      %v7603 = vsel %vm2495, %v7601, %v7602
      %v7604 = vrot.slane %v7449, 5
      %v7605 = vsel %vm2495, %v7593, %v7604
      %v7606 = vrot.slane %v7455, 5
      %v7607 = vsel %vm2495, %v7596, %v7606
      %v7608 = vrot.slane %v7461, 5
      %v7609 = vsel %vm2495, %v7599, %v7608
      %v7610 = vrot.slane %v7467, 5
      %v7611 = vsel %vm2495, %v7602, %v7610
      %v7620 = vrot.slane %v7445, 6
      %v7621 = vrot.slane %v7447, 6
      %v7622 = vsel %vm3911, %v7620, %v7621
      %v7623 = vrot.slane %v7451, 6
      %v7624 = vrot.slane %v7453, 6
      %v7625 = vsel %vm3911, %v7623, %v7624
      %v7626 = vrot.slane %v7457, 6
      %v7627 = vrot.slane %v7459, 6
      %v7628 = vsel %vm3911, %v7626, %v7627
      %v7629 = vrot.slane %v7463, 6
      %v7630 = vrot.slane %v7465, 6
      %v7631 = vsel %vm3911, %v7629, %v7630
      %v7632 = vrot.slane %v7449, 6
      %v7633 = vsel %vm3911, %v7621, %v7632
      %v7634 = vrot.slane %v7455, 6
      %v7635 = vsel %vm3911, %v7624, %v7634
      %v7636 = vrot.slane %v7461, 6
      %v7637 = vsel %vm3911, %v7627, %v7636
      %v7638 = vrot.slane %v7467, 6
      %v7639 = vsel %vm3911, %v7630, %v7638
      %v7648 = vpack.c.bf16 %v7447, %v7445
      %v7649 = vpack.c.bf16 %v7453, %v7451
      %v7650 = vpack.c.bf16 %v7459, %v7457
      %v7651 = vpack.c.bf16 %v7465, %v7463
      %v7652 = vpack.c.bf16 %v7493, %v7482
      %v7653 = vpack.c.bf16 %v7495, %v7485
      %v7654 = vpack.c.bf16 %v7497, %v7488
      %v7655 = vpack.c.bf16 %v7499, %v7491
      %v7656 = vpack.c.bf16 %v7521, %v7510
      %v7657 = vpack.c.bf16 %v7523, %v7513
      %v7658 = vpack.c.bf16 %v7525, %v7516
      %v7659 = vpack.c.bf16 %v7527, %v7519
      %v7660 = vpack.c.bf16 %v7549, %v7538
      %v7661 = vpack.c.bf16 %v7551, %v7541
      %v7662 = vpack.c.bf16 %v7553, %v7544
      %v7663 = vpack.c.bf16 %v7555, %v7547
      %v7664 = vpack.c.bf16 %v7577, %v7566
      %v7665 = vpack.c.bf16 %v7579, %v7569
      %v7666 = vpack.c.bf16 %v7581, %v7572
      %v7667 = vpack.c.bf16 %v7583, %v7575
      %v7668 = vpack.c.bf16 %v7605, %v7594
      %v7669 = vpack.c.bf16 %v7607, %v7597
      %v7670 = vpack.c.bf16 %v7609, %v7600
      %v7671 = vpack.c.bf16 %v7611, %v7603
      %v7672 = vpack.c.bf16 %v7633, %v7622
      %v7673 = vpack.c.bf16 %v7635, %v7625
      %v7674 = vpack.c.bf16 %v7637, %v7628
      %v7675 = vpack.c.bf16 %v7639, %v7631
      %v7676 = vld [vmem:[%s7] sm:$0xff]
      %v7677 = vld [vmem:[%s7 + $0x8] sm:$0xff]
      %v7678 = vld [vmem:[%s7 + $0x10] sm:$0xff]
      %v7679 = vld [vmem:[%s7 + $0x18] sm:$0xff]
      %v7680 = vld [vmem:[%s7 + $0x20] sm:$0xff]
      %v7681 = vld [vmem:[%s7 + $0x28] sm:$0xff]
      %v7682 = vld [vmem:[%s7 + $0x30] sm:$0xff]
      %v7683 = vld [vmem:[%s7 + $0x38] sm:$0xff]
      %v7684 = vld [vmem:[%s7 + $0x40] sm:$0xff]
      %v7685 = vld [vmem:[%s7 + $0x48] sm:$0xff]
      %v7686 = vld [vmem:[%s7 + $0x50] sm:$0xff]
      %v7687 = vld [vmem:[%s7 + $0x58] sm:$0xff]
      %v7688 = vld [vmem:[%s7 + $0x60] sm:$0xff]
      %v7689 = vld [vmem:[%s7 + $0x68] sm:$0xff]
      %v7690 = vld [vmem:[%s7 + $0x70] sm:$0xff]
      %v7691 = vld [vmem:[%s7 + $0x78] sm:$0xff]
      %v7692 = vld [vmem:[%s7 + $0x80] sm:$0xff]
      %v7693 = vld [vmem:[%s7 + $0x88] sm:$0xff]
      %v7694 = vld [vmem:[%s7 + $0x90] sm:$0xff]
      %v7695 = vld [vmem:[%s7 + $0x98] sm:$0xff]
      %v7696 = vld [vmem:[%s7 + $0xa0] sm:$0xff]
      %v7697 = vld [vmem:[%s7 + $0xa8] sm:$0xff]
      %v7698 = vld [vmem:[%s7 + $0xb0] sm:$0xff]
      %v7699 = vld [vmem:[%s7 + $0xb8] sm:$0xff]
      %v7700 = vld [vmem:[%s7 + $0xc0] sm:$0xff]
      %v7701 = vld [vmem:[%s7 + $0xc8] sm:$0xff]
      %v7702 = vld [vmem:[%s7 + $0xd0] sm:$0xff]
      %v7703 = vld [vmem:[%s7 + $0xd8] sm:$0xff]
      %v7704 = vld [vmem:[%s7 + $0xe0] sm:$0xff]
      %v7705 = vld [vmem:[%s7 + $0xe8] sm:$0xff]
      %v7706 = vld [vmem:[%s7 + $0xf0] sm:$0xff]
      %v7707 = vld [vmem:[%s7 + $0xf8] sm:$0xff]
      %v7708 = vld [vmem:[%s7 + $0x100] sm:$0xff]
      %v7709 = vld [vmem:[%s7 + $0x108] sm:$0xff]
      %v7710 = vld [vmem:[%s7 + $0x110] sm:$0xff]
      %v7711 = vld [vmem:[%s7 + $0x118] sm:$0xff]
      %v7712 = vld [vmem:[%s7 + $0x120] sm:$0xff]
      %v7713 = vld [vmem:[%s7 + $0x128] sm:$0xff]
      %v7714 = vld [vmem:[%s7 + $0x130] sm:$0xff]
      %v7715 = vld [vmem:[%s7 + $0x138] sm:$0xff]
      %v7716 = vld [vmem:[%s7 + $0x140] sm:$0xff]
      %v7717 = vld [vmem:[%s7 + $0x148] sm:$0xff]
      %v7718 = vld [vmem:[%s7 + $0x150] sm:$0xff]
      %v7719 = vld [vmem:[%s7 + $0x158] sm:$0xff]
      %v7720 = vld [vmem:[%s7 + $0x160] sm:$0xff]
      %v7721 = vld [vmem:[%s7 + $0x168] sm:$0xff]
      %v7722 = vld [vmem:[%s7 + $0x170] sm:$0xff]
      %v7723 = vld [vmem:[%s7 + $0x178] sm:$0xff]
      %v7724 = vld [vmem:[%s7 + $0x180] sm:$0xff]
      %v7725 = vld [vmem:[%s7 + $0x188] sm:$0xff]
      %v7726 = vld [vmem:[%s7 + $0x190] sm:$0xff]
      %v7727 = vld [vmem:[%s7 + $0x198] sm:$0xff]
      %v7728 = vld [vmem:[%s7 + $0x1a0] sm:$0xff]
      %v7729 = vld [vmem:[%s7 + $0x1a8] sm:$0xff]
      %v7730 = vld [vmem:[%s7 + $0x1b0] sm:$0xff]
      %v7731 = vld [vmem:[%s7 + $0x1b8] sm:$0xff]
      %v7732 = vld [vmem:[%s7 + $0x1c0] sm:$0xff]
      %v7733 = vld [vmem:[%s7 + $0x1c8] sm:$0xff]
      %v7734 = vld [vmem:[%s7 + $0x1d0] sm:$0xff]
      %v7735 = vld [vmem:[%s7 + $0x1d8] sm:$0xff]
      %v7736 = vld [vmem:[%s7 + $0x1e0] sm:$0xff]
      %v7737 = vld [vmem:[%s7 + $0x1e8] sm:$0xff]
      %v7738 = vld [vmem:[%s7 + $0x1f0] sm:$0xff]
      %v7739 = vld [vmem:[%s7 + $0x1f8] sm:$0xff]
      %v7740 = vld [vmem:[%s7 + $0x200] sm:$0xff]
      %v7741 = vld [vmem:[%s7 + $0x208] sm:$0xff]
      %v7742 = vld [vmem:[%s7 + $0x210] sm:$0xff]
      %v7743 = vld [vmem:[%s7 + $0x218] sm:$0xff]
      %v7744 = vld [vmem:[%s7 + $0x220] sm:$0xff]
      %v7745 = vld [vmem:[%s7 + $0x228] sm:$0xff]
      %v7746 = vld [vmem:[%s7 + $0x230] sm:$0xff]
      %v7747 = vld [vmem:[%s7 + $0x238] sm:$0xff]
      %v7748 = vld [vmem:[%s7 + $0x240] sm:$0xff]
      %v7749 = vld [vmem:[%s7 + $0x248] sm:$0xff]
      %v7750 = vld [vmem:[%s7 + $0x250] sm:$0xff]
      %v7751 = vld [vmem:[%s7 + $0x258] sm:$0xff]
      %v7752 = vld [vmem:[%s7 + $0x260] sm:$0xff]
      %v7753 = vld [vmem:[%s7 + $0x268] sm:$0xff]
      %v7754 = vld [vmem:[%s7 + $0x270] sm:$0xff]
      %v7755 = vld [vmem:[%s7 + $0x278] sm:$0xff]
      %v7756 = vld [vmem:[%s7 + $0x280] sm:$0xff]
      %v7757 = vld [vmem:[%s7 + $0x288] sm:$0xff]
      %v7758 = vld [vmem:[%s7 + $0x290] sm:$0xff]
      %v7759 = vld [vmem:[%s7 + $0x298] sm:$0xff]
      %v7760 = vld [vmem:[%s7 + $0x2a0] sm:$0xff]
      %v7761 = vld [vmem:[%s7 + $0x2a8] sm:$0xff]
      %v7762 = vld [vmem:[%s7 + $0x2b0] sm:$0xff]
      %v7763 = vld [vmem:[%s7 + $0x2b8] sm:$0xff]
      %v7764 = vld [vmem:[%s7 + $0x2c0] sm:$0xff]
      %v7765 = vld [vmem:[%s7 + $0x2c8] sm:$0xff]
      %v7766 = vld [vmem:[%s7 + $0x2d0] sm:$0xff]
      %v7767 = vld [vmem:[%s7 + $0x2d8] sm:$0xff]
      %v7768 = vld [vmem:[%s7 + $0x2e0] sm:$0xff]
      %v7769 = vld [vmem:[%s7 + $0x2e8] sm:$0xff]
      %v7770 = vld [vmem:[%s7 + $0x2f0] sm:$0xff]
      %v7771 = vld [vmem:[%s7 + $0x2f8] sm:$0xff]
      %v7772 = vld [vmem:[%s7 + $0x300] sm:$0xff]
      %v7773 = vld [vmem:[%s7 + $0x308] sm:$0xff]
      %v7774 = vld [vmem:[%s7 + $0x310] sm:$0xff]
      %v7775 = vld [vmem:[%s7 + $0x318] sm:$0xff]
      %v7776 = vld [vmem:[%s7 + $0x320] sm:$0xff]
      %v7777 = vld [vmem:[%s7 + $0x328] sm:$0xff]
      %v7778 = vld [vmem:[%s7 + $0x330] sm:$0xff]
      %v7779 = vld [vmem:[%s7 + $0x338] sm:$0xff]
      %v7780 = vld [vmem:[%s7 + $0x340] sm:$0xff]
      %v7781 = vld [vmem:[%s7 + $0x348] sm:$0xff]
      %v7782 = vld [vmem:[%s7 + $0x350] sm:$0xff]
      %v7783 = vld [vmem:[%s7 + $0x358] sm:$0xff]
      %v7784 = vld [vmem:[%s7 + $0x360] sm:$0xff]
      %v7785 = vld [vmem:[%s7 + $0x368] sm:$0xff]
      %v7786 = vld [vmem:[%s7 + $0x370] sm:$0xff]
      %v7787 = vld [vmem:[%s7 + $0x378] sm:$0xff]
      %v7788 = vld [vmem:[%s7 + $0x380] sm:$0xff]
      %v7789 = vld [vmem:[%s7 + $0x388] sm:$0xff]
      %v7790 = vld [vmem:[%s7 + $0x390] sm:$0xff]
      %v7791 = vld [vmem:[%s7 + $0x398] sm:$0xff]
      %v7792 = vld [vmem:[%s7 + $0x3a0] sm:$0xff]
      %v7793 = vld [vmem:[%s7 + $0x3a8] sm:$0xff]
      %v7794 = vld [vmem:[%s7 + $0x3b0] sm:$0xff]
      %v7795 = vld [vmem:[%s7 + $0x3b8] sm:$0xff]
      %v7796 = vld [vmem:[%s7 + $0x3c0] sm:$0xff]
      %v7797 = vld [vmem:[%s7 + $0x3c8] sm:$0xff]
      %v7798 = vld [vmem:[%s7 + $0x3d0] sm:$0xff]
      %v7799 = vld [vmem:[%s7 + $0x3d8] sm:$0xff]
      %v7800 = vld [vmem:[%s7 + $0x3e0] sm:$0xff]
      %v7801 = vld [vmem:[%s7 + $0x3e8] sm:$0xff]
      %v7802 = vld [vmem:[%s7 + $0x3f0] sm:$0xff]
      %v7803 = vld [vmem:[%s7 + $0x3f8] sm:$0xff]
      %v7804 = vld [vmem:[%s7 + $0x400] sm:$0xff]
      %v7805 = vld [vmem:[%s7 + $0x408] sm:$0xff]
      %v7806 = vld [vmem:[%s7 + $0x410] sm:$0xff]
      %v7807 = vld [vmem:[%s7 + $0x418] sm:$0xff]
      %v7808 = vld [vmem:[%s7 + $0x420] sm:$0xff]
      %v7809 = vld [vmem:[%s7 + $0x428] sm:$0xff]
      %v7810 = vld [vmem:[%s7 + $0x430] sm:$0xff]
      %v7811 = vld [vmem:[%s7 + $0x438] sm:$0xff]
      %v7812 = vld [vmem:[%s7 + $0x440] sm:$0xff]
      %v7813 = vld [vmem:[%s7 + $0x448] sm:$0xff]
      %v7814 = vld [vmem:[%s7 + $0x450] sm:$0xff]
      %v7815 = vld [vmem:[%s7 + $0x458] sm:$0xff]
      %v7816 = vld [vmem:[%s7 + $0x460] sm:$0xff]
      %v7817 = vld [vmem:[%s7 + $0x468] sm:$0xff]
      %v7818 = vld [vmem:[%s7 + $0x470] sm:$0xff]
      %v7819 = vld [vmem:[%s7 + $0x478] sm:$0xff]
      %v7820 = vld [vmem:[%s7 + $0x480] sm:$0xff]
      %v7821 = vld [vmem:[%s7 + $0x488] sm:$0xff]
      %v7822 = vld [vmem:[%s7 + $0x490] sm:$0xff]
      %v7823 = vld [vmem:[%s7 + $0x498] sm:$0xff]
      %v7824 = vld [vmem:[%s7 + $0x4a0] sm:$0xff]
      %v7825 = vld [vmem:[%s7 + $0x4a8] sm:$0xff]
      %v7826 = vld [vmem:[%s7 + $0x4b0] sm:$0xff]
      %v7827 = vld [vmem:[%s7 + $0x4b8] sm:$0xff]
      %v7828 = vld [vmem:[%s7 + $0x4c0] sm:$0xff]
      %v7829 = vld [vmem:[%s7 + $0x4c8] sm:$0xff]
      %v7830 = vld [vmem:[%s7 + $0x4d0] sm:$0xff]
      %v7831 = vld [vmem:[%s7 + $0x4d8] sm:$0xff]
      %v7832 = vld [vmem:[%s7 + $0x4e0] sm:$0xff]
      %v7833 = vld [vmem:[%s7 + $0x4e8] sm:$0xff]
      %v7834 = vld [vmem:[%s7 + $0x4f0] sm:$0xff]
      %v7835 = vld [vmem:[%s7 + $0x4f8] sm:$0xff]
      %v7836 = vld [vmem:[%s7 + $0x500] sm:$0xff]
      %v7837 = vld [vmem:[%s7 + $0x508] sm:$0xff]
      %v7838 = vld [vmem:[%s7 + $0x510] sm:$0xff]
      %v7839 = vld [vmem:[%s7 + $0x518] sm:$0xff]
      %v7840 = vld [vmem:[%s7 + $0x520] sm:$0xff]
      %v7841 = vld [vmem:[%s7 + $0x528] sm:$0xff]
      %v7842 = vld [vmem:[%s7 + $0x530] sm:$0xff]
      %v7843 = vld [vmem:[%s7 + $0x538] sm:$0xff]
      %v7844 = vld [vmem:[%s7 + $0x540] sm:$0xff]
      %v7845 = vld [vmem:[%s7 + $0x548] sm:$0xff]
      %v7846 = vld [vmem:[%s7 + $0x550] sm:$0xff]
      %v7847 = vld [vmem:[%s7 + $0x558] sm:$0xff]
      %v7848 = vld [vmem:[%s7 + $0x560] sm:$0xff]
      %v7849 = vld [vmem:[%s7 + $0x568] sm:$0xff]
      %v7850 = vld [vmem:[%s7 + $0x570] sm:$0xff]
      %v7851 = vld [vmem:[%s7 + $0x578] sm:$0xff]
      %v7852 = vld [vmem:[%s7 + $0x580] sm:$0xff]
      %v7853 = vld [vmem:[%s7 + $0x588] sm:$0xff]
      %v7854 = vld [vmem:[%s7 + $0x590] sm:$0xff]
      %v7855 = vld [vmem:[%s7 + $0x598] sm:$0xff]
      %v7856 = vld [vmem:[%s7 + $0x5a0] sm:$0xff]
      %v7857 = vld [vmem:[%s7 + $0x5a8] sm:$0xff]
      %v7858 = vld [vmem:[%s7 + $0x5b0] sm:$0xff]
      %v7859 = vld [vmem:[%s7 + $0x5b8] sm:$0xff]
      %v7860 = vld [vmem:[%s7 + $0x5c0] sm:$0xff]
      %v7861 = vld [vmem:[%s7 + $0x5c8] sm:$0xff]
      %v7862 = vld [vmem:[%s7 + $0x5d0] sm:$0xff]
      %v7863 = vld [vmem:[%s7 + $0x5d8] sm:$0xff]
      %v7864 = vld [vmem:[%s7 + $0x5e0] sm:$0xff]
      %v7865 = vld [vmem:[%s7 + $0x5e8] sm:$0xff]
      %v7866 = vld [vmem:[%s7 + $0x5f0] sm:$0xff]
      %v7867 = vld [vmem:[%s7 + $0x5f8] sm:$0xff]
      %v7868 = vld [vmem:[%s7 + $0x600] sm:$0xff]
      %v7869 = vld [vmem:[%s7 + $0x608] sm:$0xff]
      %v7870 = vld [vmem:[%s7 + $0x610] sm:$0xff]
      %v7871 = vld [vmem:[%s7 + $0x618] sm:$0xff]
      %v7872 = vld [vmem:[%s7 + $0x620] sm:$0xff]
      %v7873 = vld [vmem:[%s7 + $0x628] sm:$0xff]
      %v7874 = vld [vmem:[%s7 + $0x630] sm:$0xff]
      %v7875 = vld [vmem:[%s7 + $0x638] sm:$0xff]
      %v7876 = vld [vmem:[%s7 + $0x640] sm:$0xff]
      %v7877 = vld [vmem:[%s7 + $0x648] sm:$0xff]
      %v7878 = vld [vmem:[%s7 + $0x650] sm:$0xff]
      %v7879 = vld [vmem:[%s7 + $0x658] sm:$0xff]
      %v7880 = vld [vmem:[%s7 + $0x660] sm:$0xff]
      %v7881 = vld [vmem:[%s7 + $0x668] sm:$0xff]
      %v7882 = vld [vmem:[%s7 + $0x670] sm:$0xff]
      %v7883 = vld [vmem:[%s7 + $0x678] sm:$0xff]
      %v7884 = vld [vmem:[%s7 + $0x680] sm:$0xff]
      %v7885 = vld [vmem:[%s7 + $0x688] sm:$0xff]
      %v7886 = vld [vmem:[%s7 + $0x690] sm:$0xff]
      %v7887 = vld [vmem:[%s7 + $0x698] sm:$0xff]
      %v7888 = vld [vmem:[%s7 + $0x6a0] sm:$0xff]
      %v7889 = vld [vmem:[%s7 + $0x6a8] sm:$0xff]
      %v7890 = vld [vmem:[%s7 + $0x6b0] sm:$0xff]
      %v7891 = vld [vmem:[%s7 + $0x6b8] sm:$0xff]
      %v7892 = vld [vmem:[%s7 + $0x6c0] sm:$0xff]
      %v7893 = vld [vmem:[%s7 + $0x6c8] sm:$0xff]
      %v7894 = vld [vmem:[%s7 + $0x6d0] sm:$0xff]
      %v7895 = vld [vmem:[%s7 + $0x6d8] sm:$0xff]
      %v7896 = vld [vmem:[%s7 + $0x6e0] sm:$0xff]
      %v7897 = vld [vmem:[%s7 + $0x6e8] sm:$0xff]
      %v7898 = vld [vmem:[%s7 + $0x6f0] sm:$0xff]
      %v7899 = vld [vmem:[%s7 + $0x6f8] sm:$0xff]
      %v7900 = vld [vmem:[%s7 + $0x700] sm:$0xff]
      %v7901 = vld [vmem:[%s7 + $0x708] sm:$0xff]
      %v7902 = vld [vmem:[%s7 + $0x710] sm:$0xff]
      %v7903 = vld [vmem:[%s7 + $0x718] sm:$0xff]
      %v7904 = vld [vmem:[%s7 + $0x720] sm:$0xff]
      %v7905 = vld [vmem:[%s7 + $0x728] sm:$0xff]
      %v7906 = vld [vmem:[%s7 + $0x730] sm:$0xff]
      %v7907 = vld [vmem:[%s7 + $0x738] sm:$0xff]
      %v7908 = vld [vmem:[%s7 + $0x740] sm:$0xff]
      %v7909 = vld [vmem:[%s7 + $0x748] sm:$0xff]
      %v7910 = vld [vmem:[%s7 + $0x750] sm:$0xff]
      %v7911 = vld [vmem:[%s7 + $0x758] sm:$0xff]
      %v7912 = vld [vmem:[%s7 + $0x760] sm:$0xff]
      %v7913 = vld [vmem:[%s7 + $0x768] sm:$0xff]
      %v7914 = vld [vmem:[%s7 + $0x770] sm:$0xff]
      %v7915 = vld [vmem:[%s7 + $0x778] sm:$0xff]
      %v7916 = vld [vmem:[%s7 + $0x780] sm:$0xff]
      %v7917 = vld [vmem:[%s7 + $0x788] sm:$0xff]
      %v7918 = vld [vmem:[%s7 + $0x790] sm:$0xff]
      %v7919 = vld [vmem:[%s7 + $0x798] sm:$0xff]
      %v7920 = vld [vmem:[%s7 + $0x7a0] sm:$0xff]
      %v7921 = vld [vmem:[%s7 + $0x7a8] sm:$0xff]
      %v7922 = vld [vmem:[%s7 + $0x7b0] sm:$0xff]
      %v7923 = vld [vmem:[%s7 + $0x7b8] sm:$0xff]
      %v7924 = vld [vmem:[%s7 + $0x7c0] sm:$0xff]
      %v7925 = vld [vmem:[%s7 + $0x7c8] sm:$0xff]
      %v7926 = vld [vmem:[%s7 + $0x7d0] sm:$0xff]
      %v7927 = vld [vmem:[%s7 + $0x7d8] sm:$0xff]
      %v7928 = vld [vmem:[%s7 + $0x7e0] sm:$0xff]
      %v7929 = vld [vmem:[%s7 + $0x7e8] sm:$0xff]
      %v7930 = vld [vmem:[%s7 + $0x7f0] sm:$0xff]
      %v7931 = vld [vmem:[%s7 + $0x7f8] sm:$0xff]
      %v7932 = vld [vmem:[%s7 + $0x800] sm:$0xff]
      %v7933 = vld [vmem:[%s7 + $0x808] sm:$0xff]
      %v7934 = vld [vmem:[%s7 + $0x810] sm:$0xff]
      %v7935 = vld [vmem:[%s7 + $0x818] sm:$0xff]
      %v7936 = vld [vmem:[%s7 + $0x820] sm:$0xff]
      %v7937 = vld [vmem:[%s7 + $0x828] sm:$0xff]
      %v7938 = vld [vmem:[%s7 + $0x830] sm:$0xff]
      %v7939 = vld [vmem:[%s7 + $0x838] sm:$0xff]
      %v7940 = vld [vmem:[%s7 + $0x840] sm:$0xff]
      %v7941 = vld [vmem:[%s7 + $0x848] sm:$0xff]
      %v7942 = vld [vmem:[%s7 + $0x850] sm:$0xff]
      %v7943 = vld [vmem:[%s7 + $0x858] sm:$0xff]
      %v7944 = vld [vmem:[%s7 + $0x860] sm:$0xff]
      %v7945 = vld [vmem:[%s7 + $0x868] sm:$0xff]
      %v7946 = vld [vmem:[%s7 + $0x870] sm:$0xff]
      %v7947 = vld [vmem:[%s7 + $0x878] sm:$0xff]
      %v7948 = vld [vmem:[%s7 + $0x880] sm:$0xff]
      %v7949 = vld [vmem:[%s7 + $0x888] sm:$0xff]
      %v7950 = vld [vmem:[%s7 + $0x890] sm:$0xff]
      %v7951 = vld [vmem:[%s7 + $0x898] sm:$0xff]
      %v7952 = vld [vmem:[%s7 + $0x8a0] sm:$0xff]
      %v7953 = vld [vmem:[%s7 + $0x8a8] sm:$0xff]
      %v7954 = vld [vmem:[%s7 + $0x8b0] sm:$0xff]
      %v7955 = vld [vmem:[%s7 + $0x8b8] sm:$0xff]
      %v7956 = vld [vmem:[%s7 + $0x8c0] sm:$0xff]
      %v7957 = vld [vmem:[%s7 + $0x8c8] sm:$0xff]
      %v7958 = vld [vmem:[%s7 + $0x8d0] sm:$0xff]
      %v7959 = vld [vmem:[%s7 + $0x8d8] sm:$0xff]
      %v7960 = vld [vmem:[%s7 + $0x8e0] sm:$0xff]
      %v7961 = vld [vmem:[%s7 + $0x8e8] sm:$0xff]
      %v7962 = vld [vmem:[%s7 + $0x8f0] sm:$0xff]
      %v7963 = vld [vmem:[%s7 + $0x8f8] sm:$0xff]
      %v7964 = vld [vmem:[%s7 + $0x900] sm:$0xff]
      %v7965 = vld [vmem:[%s7 + $0x908] sm:$0xff]
      %v7966 = vld [vmem:[%s7 + $0x910] sm:$0xff]
      %v7967 = vld [vmem:[%s7 + $0x918] sm:$0xff]
      %v7968 = vld [vmem:[%s7 + $0x920] sm:$0xff]
      %v7969 = vld [vmem:[%s7 + $0x928] sm:$0xff]
      %v7970 = vld [vmem:[%s7 + $0x930] sm:$0xff]
      %v7971 = vld [vmem:[%s7 + $0x938] sm:$0xff]
      %v7972 = vld [vmem:[%s7 + $0x940] sm:$0xff]
      %v7973 = vld [vmem:[%s7 + $0x948] sm:$0xff]
      %v7974 = vld [vmem:[%s7 + $0x950] sm:$0xff]
      %v7975 = vld [vmem:[%s7 + $0x958] sm:$0xff]
      %v7976 = vld [vmem:[%s7 + $0x960] sm:$0xff]
      %v7977 = vld [vmem:[%s7 + $0x968] sm:$0xff]
      %v7978 = vld [vmem:[%s7 + $0x970] sm:$0xff]
      %v7979 = vld [vmem:[%s7 + $0x978] sm:$0xff]
      %v7980 = vld [vmem:[%s7 + $0x980] sm:$0xff]
      %v7981 = vld [vmem:[%s7 + $0x988] sm:$0xff]
      %v7982 = vld [vmem:[%s7 + $0x990] sm:$0xff]
      %v7983 = vld [vmem:[%s7 + $0x998] sm:$0xff]
      %v7984 = vld [vmem:[%s7 + $0x9a0] sm:$0xff]
      %v7985 = vld [vmem:[%s7 + $0x9a8] sm:$0xff]
      %v7986 = vld [vmem:[%s7 + $0x9b0] sm:$0xff]
      %v7987 = vld [vmem:[%s7 + $0x9b8] sm:$0xff]
      %v7988 = vld [vmem:[%s7 + $0x9c0] sm:$0xff]
      %v7989 = vld [vmem:[%s7 + $0x9c8] sm:$0xff]
      %v7990 = vld [vmem:[%s7 + $0x9d0] sm:$0xff]
      %v7991 = vld [vmem:[%s7 + $0x9d8] sm:$0xff]
      %v7992 = vld [vmem:[%s7 + $0x9e0] sm:$0xff]
      %v7993 = vld [vmem:[%s7 + $0x9e8] sm:$0xff]
      %v7994 = vld [vmem:[%s7 + $0x9f0] sm:$0xff]
      %v7995 = vld [vmem:[%s7 + $0x9f8] sm:$0xff]
      %v7996 = vld [vmem:[%s7 + $0xa00] sm:$0xff]
      %v7997 = vld [vmem:[%s7 + $0xa08] sm:$0xff]
      %v7998 = vld [vmem:[%s7 + $0xa10] sm:$0xff]
      %v7999 = vld [vmem:[%s7 + $0xa18] sm:$0xff]
      %v8000 = vld [vmem:[%s7 + $0xa20] sm:$0xff]
      %v8001 = vld [vmem:[%s7 + $0xa28] sm:$0xff]
      %v8002 = vld [vmem:[%s7 + $0xa30] sm:$0xff]
      %v8003 = vld [vmem:[%s7 + $0xa38] sm:$0xff]
      %v8004 = vld [vmem:[%s7 + $0xa40] sm:$0xff]
      %v8005 = vld [vmem:[%s7 + $0xa48] sm:$0xff]
      %v8006 = vld [vmem:[%s7 + $0xa50] sm:$0xff]
      %v8007 = vld [vmem:[%s7 + $0xa58] sm:$0xff]
      %v8008 = vld [vmem:[%s7 + $0xa60] sm:$0xff]
      %v8009 = vld [vmem:[%s7 + $0xa68] sm:$0xff]
      %v8010 = vld [vmem:[%s7 + $0xa70] sm:$0xff]
      %v8011 = vld [vmem:[%s7 + $0xa78] sm:$0xff]
      %v8012 = vld [vmem:[%s7 + $0xa80] sm:$0xff]
      %v8013 = vld [vmem:[%s7 + $0xa88] sm:$0xff]
      %v8014 = vld [vmem:[%s7 + $0xa90] sm:$0xff]
      %v8015 = vld [vmem:[%s7 + $0xa98] sm:$0xff]
      %v8016 = vld [vmem:[%s7 + $0xaa0] sm:$0xff]
      %v8017 = vld [vmem:[%s7 + $0xaa8] sm:$0xff]
      %v8018 = vld [vmem:[%s7 + $0xab0] sm:$0xff]
      %v8019 = vld [vmem:[%s7 + $0xab8] sm:$0xff]
      %v8020 = vld [vmem:[%s7 + $0xac0] sm:$0xff]
      %v8021 = vld [vmem:[%s7 + $0xac8] sm:$0xff]
      %v8022 = vld [vmem:[%s7 + $0xad0] sm:$0xff]
      %v8023 = vld [vmem:[%s7 + $0xad8] sm:$0xff]
      %v8024 = vld [vmem:[%s7 + $0xae0] sm:$0xff]
      %v8025 = vld [vmem:[%s7 + $0xae8] sm:$0xff]
      %v8026 = vld [vmem:[%s7 + $0xaf0] sm:$0xff]
      %v8027 = vld [vmem:[%s7 + $0xaf8] sm:$0xff]
      %v8028 = vld [vmem:[%s7 + $0xb00] sm:$0xff]
      %v8029 = vld [vmem:[%s7 + $0xb08] sm:$0xff]
      %v8030 = vld [vmem:[%s7 + $0xb10] sm:$0xff]
      %v8031 = vld [vmem:[%s7 + $0xb18] sm:$0xff]
      %v8032 = vld [vmem:[%s7 + $0xb20] sm:$0xff]
      %v8033 = vld [vmem:[%s7 + $0xb28] sm:$0xff]
      %v8034 = vld [vmem:[%s7 + $0xb30] sm:$0xff]
      %v8035 = vld [vmem:[%s7 + $0xb38] sm:$0xff]
      %v8036 = vld [vmem:[%s7 + $0xb40] sm:$0xff]
      %v8037 = vld [vmem:[%s7 + $0xb48] sm:$0xff]
      %v8038 = vld [vmem:[%s7 + $0xb50] sm:$0xff]
      %v8039 = vld [vmem:[%s7 + $0xb58] sm:$0xff]
      %v8040 = vld [vmem:[%s7 + $0xb60] sm:$0xff]
      %v8041 = vld [vmem:[%s7 + $0xb68] sm:$0xff]
      %v8042 = vld [vmem:[%s7 + $0xb70] sm:$0xff]
      %v8043 = vld [vmem:[%s7 + $0xb78] sm:$0xff]
      %v8044 = vld [vmem:[%s7 + $0xb80] sm:$0xff]
      %v8045 = vld [vmem:[%s7 + $0xb88] sm:$0xff]
      %v8046 = vld [vmem:[%s7 + $0xb90] sm:$0xff]
      %v8047 = vld [vmem:[%s7 + $0xb98] sm:$0xff]
      %v8048 = vld [vmem:[%s7 + $0xba0] sm:$0xff]
      %v8049 = vld [vmem:[%s7 + $0xba8] sm:$0xff]
      %v8050 = vld [vmem:[%s7 + $0xbb0] sm:$0xff]
      %v8051 = vld [vmem:[%s7 + $0xbb8] sm:$0xff]
      %v8052 = vld [vmem:[%s7 + $0xbc0] sm:$0xff]
      %v8053 = vld [vmem:[%s7 + $0xbc8] sm:$0xff]
      %v8054 = vld [vmem:[%s7 + $0xbd0] sm:$0xff]
      %v8055 = vld [vmem:[%s7 + $0xbd8] sm:$0xff]
      %v8056 = vld [vmem:[%s7 + $0xbe0] sm:$0xff]
      %v8057 = vld [vmem:[%s7 + $0xbe8] sm:$0xff]
      %v8058 = vld [vmem:[%s7 + $0xbf0] sm:$0xff]
      %v8059 = vld [vmem:[%s7 + $0xbf8] sm:$0xff]
      %v8060 = vld [vmem:[%s7 + $0xc00] sm:$0xff]
      %v8061 = vld [vmem:[%s7 + $0xc08] sm:$0xff]
      %v8062 = vld [vmem:[%s7 + $0xc10] sm:$0xff]
      %v8063 = vld [vmem:[%s7 + $0xc18] sm:$0xff]
      %v8064 = vld [vmem:[%s7 + $0xc20] sm:$0xff]
      %v8065 = vld [vmem:[%s7 + $0xc28] sm:$0xff]
      %v8066 = vld [vmem:[%s7 + $0xc30] sm:$0xff]
      %v8067 = vld [vmem:[%s7 + $0xc38] sm:$0xff]
      %v8068 = vld [vmem:[%s7 + $0xc40] sm:$0xff]
      %v8069 = vld [vmem:[%s7 + $0xc48] sm:$0xff]
      %v8070 = vld [vmem:[%s7 + $0xc50] sm:$0xff]
      %v8071 = vld [vmem:[%s7 + $0xc58] sm:$0xff]
      %v8072 = vld [vmem:[%s7 + $0xc60] sm:$0xff]
      %v8073 = vld [vmem:[%s7 + $0xc68] sm:$0xff]
      %v8074 = vld [vmem:[%s7 + $0xc70] sm:$0xff]
      %v8075 = vld [vmem:[%s7 + $0xc78] sm:$0xff]
      %v8076 = vld [vmem:[%s7 + $0xc80] sm:$0xff]
      %v8077 = vld [vmem:[%s7 + $0xc88] sm:$0xff]
      %v8078 = vld [vmem:[%s7 + $0xc90] sm:$0xff]
      %v8079 = vld [vmem:[%s7 + $0xc98] sm:$0xff]
      %v8080 = vld [vmem:[%s7 + $0xca0] sm:$0xff]
      %v8081 = vld [vmem:[%s7 + $0xca8] sm:$0xff]
      %v8082 = vld [vmem:[%s7 + $0xcb0] sm:$0xff]
      %v8083 = vld [vmem:[%s7 + $0xcb8] sm:$0xff]
      %v8084 = vld [vmem:[%s7 + $0xcc0] sm:$0xff]
      %v8085 = vld [vmem:[%s7 + $0xcc8] sm:$0xff]
      %v8086 = vld [vmem:[%s7 + $0xcd0] sm:$0xff]
      %v8087 = vld [vmem:[%s7 + $0xcd8] sm:$0xff]
      %v8088 = vld [vmem:[%s7 + $0xce0] sm:$0xff]
      %v8089 = vld [vmem:[%s7 + $0xce8] sm:$0xff]
      %v8090 = vld [vmem:[%s7 + $0xcf0] sm:$0xff]
      %v8091 = vld [vmem:[%s7 + $0xcf8] sm:$0xff]
      %v8092 = vld [vmem:[%s7 + $0xd00] sm:$0xff]
      %v8093 = vld [vmem:[%s7 + $0xd08] sm:$0xff]
      %v8094 = vld [vmem:[%s7 + $0xd10] sm:$0xff]
      %v8095 = vld [vmem:[%s7 + $0xd18] sm:$0xff]
      %v8096 = vld [vmem:[%s7 + $0xd20] sm:$0xff]
      %v8097 = vld [vmem:[%s7 + $0xd28] sm:$0xff]
      %v8098 = vld [vmem:[%s7 + $0xd30] sm:$0xff]
      %v8099 = vld [vmem:[%s7 + $0xd38] sm:$0xff]
      %v8100 = vld [vmem:[%s7 + $0xd40] sm:$0xff]
      %v8101 = vld [vmem:[%s7 + $0xd48] sm:$0xff]
      %v8102 = vld [vmem:[%s7 + $0xd50] sm:$0xff]
      %v8103 = vld [vmem:[%s7 + $0xd58] sm:$0xff]
      %v8104 = vld [vmem:[%s7 + $0xd60] sm:$0xff]
      %v8105 = vld [vmem:[%s7 + $0xd68] sm:$0xff]
      %v8106 = vld [vmem:[%s7 + $0xd70] sm:$0xff]
      %v8107 = vld [vmem:[%s7 + $0xd78] sm:$0xff]
      %v8108 = vld [vmem:[%s7 + $0xd80] sm:$0xff]
      %v8109 = vld [vmem:[%s7 + $0xd88] sm:$0xff]
      %v8110 = vld [vmem:[%s7 + $0xd90] sm:$0xff]
      %v8111 = vld [vmem:[%s7 + $0xd98] sm:$0xff]
      %v8112 = vld [vmem:[%s7 + $0xda0] sm:$0xff]
      %v8113 = vld [vmem:[%s7 + $0xda8] sm:$0xff]
      %v8114 = vld [vmem:[%s7 + $0xdb0] sm:$0xff]
      %v8115 = vld [vmem:[%s7 + $0xdb8] sm:$0xff]
      %v8116 = vld [vmem:[%s7 + $0xdc0] sm:$0xff]
      %v8117 = vld [vmem:[%s7 + $0xdc8] sm:$0xff]
      %v8118 = vld [vmem:[%s7 + $0xdd0] sm:$0xff]
      %v8119 = vld [vmem:[%s7 + $0xdd8] sm:$0xff]
      %v8120 = vld [vmem:[%s7 + $0xde0] sm:$0xff]
      %v8121 = vld [vmem:[%s7 + $0xde8] sm:$0xff]
      %v8122 = vld [vmem:[%s7 + $0xdf0] sm:$0xff]
      %v8123 = vld [vmem:[%s7 + $0xdf8] sm:$0xff]
      %v8124 = vld [vmem:[%s8] sm:$0x3]
      %v8126 = vlaneseq
      %v8127 = vshrl.u32 %v8126, 7
      %v8128 = vsub.s32 0, %v8127
      %v8129 = vrot.slane %v8124, %v8128
      %v8130 = vlaneseq
      %v8131 = vshrl.u32 %v8130, 7
      %v8132 = vsub.s32 1, %v8131
      %v8133 = vrot.slane %v8124, %v8132
      %v8584 = vunpack.c.l.b16 %v7676
      %v8585 = vunpack.c.h.b16 %v7676
      %v8586 = vunpack.c.l.b16 %v7677
      %v8587 = vunpack.c.h.b16 %v7677
      %v8588 = vunpack.c.l.b16 %v7678
      %v8589 = vunpack.c.h.b16 %v7678
      %v8590 = vunpack.c.l.b16 %v7679
      %v8591 = vunpack.c.h.b16 %v7679
      %v8592 = vunpack.c.l.b16 %v7680
      %v8593 = vunpack.c.h.b16 %v7680
      %v8594 = vunpack.c.l.b16 %v7681
      %v8595 = vunpack.c.h.b16 %v7681
      %v8596 = vunpack.c.l.b16 %v7682
      %v8597 = vunpack.c.h.b16 %v7682
      %v8598 = vunpack.c.l.b16 %v7683
      %v8599 = vunpack.c.h.b16 %v7683
      %v8600 = vunpack.c.l.b16 %v7684
      %v8601 = vunpack.c.h.b16 %v7684
      %v8602 = vunpack.c.l.b16 %v7685
      %v8603 = vunpack.c.h.b16 %v7685
      %v8604 = vunpack.c.l.b16 %v7686
      %v8605 = vunpack.c.h.b16 %v7686
      %v8606 = vunpack.c.l.b16 %v7687
      %v8607 = vunpack.c.h.b16 %v7687
      %v8608 = vunpack.c.l.b16 %v7688
      %v8609 = vunpack.c.h.b16 %v7688
      %v8610 = vunpack.c.l.b16 %v7689
      %v8611 = vunpack.c.h.b16 %v7689
      %v8612 = vunpack.c.l.b16 %v7690
      %v8613 = vunpack.c.h.b16 %v7690
      %v8614 = vunpack.c.l.b16 %v7691
      %v8615 = vunpack.c.h.b16 %v7691
      %v8616 = vunpack.c.l.b16 %v7692
      %v8617 = vunpack.c.h.b16 %v7692
      %v8618 = vunpack.c.l.b16 %v7693
      %v8619 = vunpack.c.h.b16 %v7693
      %v8620 = vunpack.c.l.b16 %v7694
      %v8621 = vunpack.c.h.b16 %v7694
      %v8622 = vunpack.c.l.b16 %v7695
      %v8623 = vunpack.c.h.b16 %v7695
      %v8624 = vunpack.c.l.b16 %v7696
      %v8625 = vunpack.c.h.b16 %v7696
      %v8626 = vunpack.c.l.b16 %v7697
      %v8627 = vunpack.c.h.b16 %v7697
      %v8628 = vunpack.c.l.b16 %v7698
      %v8629 = vunpack.c.h.b16 %v7698
      %v8630 = vunpack.c.l.b16 %v7699
      %v8631 = vunpack.c.h.b16 %v7699
      %v8632 = vunpack.c.l.b16 %v7700
      %v8633 = vunpack.c.h.b16 %v7700
      %v8634 = vunpack.c.l.b16 %v7701
      %v8635 = vunpack.c.h.b16 %v7701
      %v8636 = vunpack.c.l.b16 %v7702
      %v8637 = vunpack.c.h.b16 %v7702
      %v8638 = vunpack.c.l.b16 %v7703
      %v8639 = vunpack.c.h.b16 %v7703
      %v8640 = vunpack.c.l.b16 %v7704
      %v8641 = vunpack.c.h.b16 %v7704
      %v8642 = vunpack.c.l.b16 %v7705
      %v8643 = vunpack.c.h.b16 %v7705
      %v8644 = vunpack.c.l.b16 %v7706
      %v8645 = vunpack.c.h.b16 %v7706
      %v8646 = vunpack.c.l.b16 %v7707
      %v8647 = vunpack.c.h.b16 %v7707
      %v8648 = vunpack.c.l.b16 %v7708
      %v8649 = vunpack.c.h.b16 %v7708
      %v8650 = vunpack.c.l.b16 %v7709
      %v8651 = vunpack.c.h.b16 %v7709
      %v8652 = vunpack.c.l.b16 %v7710
      %v8653 = vunpack.c.h.b16 %v7710
      %v8654 = vunpack.c.l.b16 %v7711
      %v8655 = vunpack.c.h.b16 %v7711
      %v8656 = vunpack.c.l.b16 %v7712
      %v8657 = vunpack.c.h.b16 %v7712
      %v8658 = vunpack.c.l.b16 %v7713
      %v8659 = vunpack.c.h.b16 %v7713
      %v8660 = vunpack.c.l.b16 %v7714
      %v8661 = vunpack.c.h.b16 %v7714
      %v8662 = vunpack.c.l.b16 %v7715
      %v8663 = vunpack.c.h.b16 %v7715
      %v8664 = vunpack.c.l.b16 %v7716
      %v8665 = vunpack.c.h.b16 %v7716
      %v8666 = vunpack.c.l.b16 %v7717
      %v8667 = vunpack.c.h.b16 %v7717
      %v8668 = vunpack.c.l.b16 %v7718
      %v8669 = vunpack.c.h.b16 %v7718
      %v8670 = vunpack.c.l.b16 %v7719
      %v8671 = vunpack.c.h.b16 %v7719
      %v8672 = vunpack.c.l.b16 %v7720
      %v8673 = vunpack.c.h.b16 %v7720
      %v8674 = vunpack.c.l.b16 %v7721
      %v8675 = vunpack.c.h.b16 %v7721
      %v8676 = vunpack.c.l.b16 %v7722
      %v8677 = vunpack.c.h.b16 %v7722
      %v8678 = vunpack.c.l.b16 %v7723
      %v8679 = vunpack.c.h.b16 %v7723
      %v8680 = vunpack.c.l.b16 %v7724
      %v8681 = vunpack.c.h.b16 %v7724
      %v8682 = vunpack.c.l.b16 %v7725
      %v8683 = vunpack.c.h.b16 %v7725
      %v8684 = vunpack.c.l.b16 %v7726
      %v8685 = vunpack.c.h.b16 %v7726
      %v8686 = vunpack.c.l.b16 %v7727
      %v8687 = vunpack.c.h.b16 %v7727
      %v8688 = vunpack.c.l.b16 %v7728
      %v8689 = vunpack.c.h.b16 %v7728
      %v8690 = vunpack.c.l.b16 %v7729
      %v8691 = vunpack.c.h.b16 %v7729
      %v8692 = vunpack.c.l.b16 %v7730
      %v8693 = vunpack.c.h.b16 %v7730
      %v8694 = vunpack.c.l.b16 %v7731
      %v8695 = vunpack.c.h.b16 %v7731
      %v8696 = vunpack.c.l.b16 %v7732
      %v8697 = vunpack.c.h.b16 %v7732
      %v8698 = vunpack.c.l.b16 %v7733
      %v8699 = vunpack.c.h.b16 %v7733
      %v8700 = vunpack.c.l.b16 %v7734
      %v8701 = vunpack.c.h.b16 %v7734
      %v8702 = vunpack.c.l.b16 %v7735
      %v8703 = vunpack.c.h.b16 %v7735
      %v8704 = vunpack.c.l.b16 %v7736
      %v8705 = vunpack.c.h.b16 %v7736
      %v8706 = vunpack.c.l.b16 %v7737
      %v8707 = vunpack.c.h.b16 %v7737
      %v8708 = vunpack.c.l.b16 %v7738
      %v8709 = vunpack.c.h.b16 %v7738
      %v8710 = vunpack.c.l.b16 %v7739
      %v8711 = vunpack.c.h.b16 %v7739
      %v8712 = vunpack.c.l.b16 %v7740
      %v8713 = vunpack.c.h.b16 %v7740
      %v8714 = vunpack.c.l.b16 %v7741
      %v8715 = vunpack.c.h.b16 %v7741
      %v8716 = vunpack.c.l.b16 %v7742
      %v8717 = vunpack.c.h.b16 %v7742
      %v8718 = vunpack.c.l.b16 %v7743
      %v8719 = vunpack.c.h.b16 %v7743
      %v8720 = vunpack.c.l.b16 %v7744
      %v8721 = vunpack.c.h.b16 %v7744
      %v8722 = vunpack.c.l.b16 %v7745
      %v8723 = vunpack.c.h.b16 %v7745
      %v8724 = vunpack.c.l.b16 %v7746
      %v8725 = vunpack.c.h.b16 %v7746
      %v8726 = vunpack.c.l.b16 %v7747
      %v8727 = vunpack.c.h.b16 %v7747
      %v8728 = vunpack.c.l.b16 %v7748
      %v8729 = vunpack.c.h.b16 %v7748
      %v8730 = vunpack.c.l.b16 %v7749
      %v8731 = vunpack.c.h.b16 %v7749
      %v8732 = vunpack.c.l.b16 %v7750
      %v8733 = vunpack.c.h.b16 %v7750
      %v8734 = vunpack.c.l.b16 %v7751
      %v8735 = vunpack.c.h.b16 %v7751
      %v8736 = vunpack.c.l.b16 %v7752
      %v8737 = vunpack.c.h.b16 %v7752
      %v8738 = vunpack.c.l.b16 %v7753
      %v8739 = vunpack.c.h.b16 %v7753
      %v8740 = vunpack.c.l.b16 %v7754
      %v8741 = vunpack.c.h.b16 %v7754
      %v8742 = vunpack.c.l.b16 %v7755
      %v8743 = vunpack.c.h.b16 %v7755
      %v8744 = vunpack.c.l.b16 %v7756
      %v8745 = vunpack.c.h.b16 %v7756
      %v8746 = vunpack.c.l.b16 %v7757
      %v8747 = vunpack.c.h.b16 %v7757
      %v8748 = vunpack.c.l.b16 %v7758
      %v8749 = vunpack.c.h.b16 %v7758
      %v8750 = vunpack.c.l.b16 %v7759
      %v8751 = vunpack.c.h.b16 %v7759
      %v8752 = vunpack.c.l.b16 %v7760
      %v8753 = vunpack.c.h.b16 %v7760
      %v8754 = vunpack.c.l.b16 %v7761
      %v8755 = vunpack.c.h.b16 %v7761
      %v8756 = vunpack.c.l.b16 %v7762
      %v8757 = vunpack.c.h.b16 %v7762
      %v8758 = vunpack.c.l.b16 %v7763
      %v8759 = vunpack.c.h.b16 %v7763
      %v8760 = vunpack.c.l.b16 %v7764
      %v8761 = vunpack.c.h.b16 %v7764
      %v8762 = vunpack.c.l.b16 %v7765
      %v8763 = vunpack.c.h.b16 %v7765
      %v8764 = vunpack.c.l.b16 %v7766
      %v8765 = vunpack.c.h.b16 %v7766
      %v8766 = vunpack.c.l.b16 %v7767
      %v8767 = vunpack.c.h.b16 %v7767
      %v8768 = vunpack.c.l.b16 %v7768
      %v8769 = vunpack.c.h.b16 %v7768
      %v8770 = vunpack.c.l.b16 %v7769
      %v8771 = vunpack.c.h.b16 %v7769
      %v8772 = vunpack.c.l.b16 %v7770
      %v8773 = vunpack.c.h.b16 %v7770
      %v8774 = vunpack.c.l.b16 %v7771
      %v8775 = vunpack.c.h.b16 %v7771
      %v8776 = vunpack.c.l.b16 %v7772
      %v8777 = vunpack.c.h.b16 %v7772
      %v8778 = vunpack.c.l.b16 %v7773
      %v8779 = vunpack.c.h.b16 %v7773
      %v8780 = vunpack.c.l.b16 %v7774
      %v8781 = vunpack.c.h.b16 %v7774
      %v8782 = vunpack.c.l.b16 %v7775
      %v8783 = vunpack.c.h.b16 %v7775
      %v8784 = vunpack.c.l.b16 %v7776
      %v8785 = vunpack.c.h.b16 %v7776
      %v8786 = vunpack.c.l.b16 %v7777
      %v8787 = vunpack.c.h.b16 %v7777
      %v8788 = vunpack.c.l.b16 %v7778
      %v8789 = vunpack.c.h.b16 %v7778
      %v8790 = vunpack.c.l.b16 %v7779
      %v8791 = vunpack.c.h.b16 %v7779
      %v8792 = vunpack.c.l.b16 %v7780
      %v8793 = vunpack.c.h.b16 %v7780
      %v8794 = vunpack.c.l.b16 %v7781
      %v8795 = vunpack.c.h.b16 %v7781
      %v8796 = vunpack.c.l.b16 %v7782
      %v8797 = vunpack.c.h.b16 %v7782
      %v8798 = vunpack.c.l.b16 %v7783
      %v8799 = vunpack.c.h.b16 %v7783
      %v8800 = vunpack.c.l.b16 %v7784
      %v8801 = vunpack.c.h.b16 %v7784
      %v8802 = vunpack.c.l.b16 %v7785
      %v8803 = vunpack.c.h.b16 %v7785
      %v8804 = vunpack.c.l.b16 %v7786
      %v8805 = vunpack.c.h.b16 %v7786
      %v8806 = vunpack.c.l.b16 %v7787
      %v8807 = vunpack.c.h.b16 %v7787
      %v8808 = vunpack.c.l.b16 %v7788
      %v8809 = vunpack.c.h.b16 %v7788
      %v8810 = vunpack.c.l.b16 %v7789
      %v8811 = vunpack.c.h.b16 %v7789
      %v8812 = vunpack.c.l.b16 %v7790
      %v8813 = vunpack.c.h.b16 %v7790
      %v8814 = vunpack.c.l.b16 %v7791
      %v8815 = vunpack.c.h.b16 %v7791
      %v8816 = vunpack.c.l.b16 %v7792
      %v8817 = vunpack.c.h.b16 %v7792
      %v8818 = vunpack.c.l.b16 %v7793
      %v8819 = vunpack.c.h.b16 %v7793
      %v8820 = vunpack.c.l.b16 %v7794
      %v8821 = vunpack.c.h.b16 %v7794
      %v8822 = vunpack.c.l.b16 %v7795
      %v8823 = vunpack.c.h.b16 %v7795
      %v8824 = vunpack.c.l.b16 %v7796
      %v8825 = vunpack.c.h.b16 %v7796
      %v8826 = vunpack.c.l.b16 %v7797
      %v8827 = vunpack.c.h.b16 %v7797
      %v8828 = vunpack.c.l.b16 %v7798
      %v8829 = vunpack.c.h.b16 %v7798
      %v8830 = vunpack.c.l.b16 %v7799
      %v8831 = vunpack.c.h.b16 %v7799
      %v8832 = vunpack.c.l.b16 %v7800
      %v8833 = vunpack.c.h.b16 %v7800
      %v8834 = vunpack.c.l.b16 %v7801
      %v8835 = vunpack.c.h.b16 %v7801
      %v8836 = vunpack.c.l.b16 %v7802
      %v8837 = vunpack.c.h.b16 %v7802
      %v8838 = vunpack.c.l.b16 %v7803
      %v8839 = vunpack.c.h.b16 %v7803
      %v8840 = vunpack.c.l.b16 %v7804
      %v8841 = vunpack.c.h.b16 %v7804
      %v8842 = vunpack.c.l.b16 %v7805
      %v8843 = vunpack.c.h.b16 %v7805
      %v8844 = vunpack.c.l.b16 %v7806
      %v8845 = vunpack.c.h.b16 %v7806
      %v8846 = vunpack.c.l.b16 %v7807
      %v8847 = vunpack.c.h.b16 %v7807
      %v8848 = vunpack.c.l.b16 %v7808
      %v8849 = vunpack.c.h.b16 %v7808
      %v8850 = vunpack.c.l.b16 %v7809
      %v8851 = vunpack.c.h.b16 %v7809
      %v8852 = vunpack.c.l.b16 %v7810
      %v8853 = vunpack.c.h.b16 %v7810
      %v8854 = vunpack.c.l.b16 %v7811
      %v8855 = vunpack.c.h.b16 %v7811
      %v8856 = vunpack.c.l.b16 %v7812
      %v8857 = vunpack.c.h.b16 %v7812
      %v8858 = vunpack.c.l.b16 %v7813
      %v8859 = vunpack.c.h.b16 %v7813
      %v8860 = vunpack.c.l.b16 %v7814
      %v8861 = vunpack.c.h.b16 %v7814
      %v8862 = vunpack.c.l.b16 %v7815
      %v8863 = vunpack.c.h.b16 %v7815
      %v8864 = vunpack.c.l.b16 %v7816
      %v8865 = vunpack.c.h.b16 %v7816
      %v8866 = vunpack.c.l.b16 %v7817
      %v8867 = vunpack.c.h.b16 %v7817
      %v8868 = vunpack.c.l.b16 %v7818
      %v8869 = vunpack.c.h.b16 %v7818
      %v8870 = vunpack.c.l.b16 %v7819
      %v8871 = vunpack.c.h.b16 %v7819
      %v8872 = vunpack.c.l.b16 %v7820
      %v8873 = vunpack.c.h.b16 %v7820
      %v8874 = vunpack.c.l.b16 %v7821
      %v8875 = vunpack.c.h.b16 %v7821
      %v8876 = vunpack.c.l.b16 %v7822
      %v8877 = vunpack.c.h.b16 %v7822
      %v8878 = vunpack.c.l.b16 %v7823
      %v8879 = vunpack.c.h.b16 %v7823
      %v8880 = vunpack.c.l.b16 %v7824
      %v8881 = vunpack.c.h.b16 %v7824
      %v8882 = vunpack.c.l.b16 %v7825
      %v8883 = vunpack.c.h.b16 %v7825
      %v8884 = vunpack.c.l.b16 %v7826
      %v8885 = vunpack.c.h.b16 %v7826
      %v8886 = vunpack.c.l.b16 %v7827
      %v8887 = vunpack.c.h.b16 %v7827
      %v8888 = vunpack.c.l.b16 %v7828
      %v8889 = vunpack.c.h.b16 %v7828
      %v8890 = vunpack.c.l.b16 %v7829
      %v8891 = vunpack.c.h.b16 %v7829
      %v8892 = vunpack.c.l.b16 %v7830
      %v8893 = vunpack.c.h.b16 %v7830
      %v8894 = vunpack.c.l.b16 %v7831
      %v8895 = vunpack.c.h.b16 %v7831
      %v8896 = vunpack.c.l.b16 %v7832
      %v8897 = vunpack.c.h.b16 %v7832
      %v8898 = vunpack.c.l.b16 %v7833
      %v8899 = vunpack.c.h.b16 %v7833
      %v8900 = vunpack.c.l.b16 %v7834
      %v8901 = vunpack.c.h.b16 %v7834
      %v8902 = vunpack.c.l.b16 %v7835
      %v8903 = vunpack.c.h.b16 %v7835
      %v8904 = vunpack.c.l.b16 %v7836
      %v8905 = vunpack.c.h.b16 %v7836
      %v8906 = vunpack.c.l.b16 %v7837
      %v8907 = vunpack.c.h.b16 %v7837
      %v8908 = vunpack.c.l.b16 %v7838
      %v8909 = vunpack.c.h.b16 %v7838
      %v8910 = vunpack.c.l.b16 %v7839
      %v8911 = vunpack.c.h.b16 %v7839
      %v8912 = vunpack.c.l.b16 %v7840
      %v8913 = vunpack.c.h.b16 %v7840
      %v8914 = vunpack.c.l.b16 %v7841
      %v8915 = vunpack.c.h.b16 %v7841
      %v8916 = vunpack.c.l.b16 %v7842
      %v8917 = vunpack.c.h.b16 %v7842
      %v8918 = vunpack.c.l.b16 %v7843
      %v8919 = vunpack.c.h.b16 %v7843
      %v8920 = vunpack.c.l.b16 %v7844
      %v8921 = vunpack.c.h.b16 %v7844
      %v8922 = vunpack.c.l.b16 %v7845
      %v8923 = vunpack.c.h.b16 %v7845
      %v8924 = vunpack.c.l.b16 %v7846
      %v8925 = vunpack.c.h.b16 %v7846
      %v8926 = vunpack.c.l.b16 %v7847
      %v8927 = vunpack.c.h.b16 %v7847
      %v8928 = vunpack.c.l.b16 %v7848
      %v8929 = vunpack.c.h.b16 %v7848
      %v8930 = vunpack.c.l.b16 %v7849
      %v8931 = vunpack.c.h.b16 %v7849
      %v8932 = vunpack.c.l.b16 %v7850
      %v8933 = vunpack.c.h.b16 %v7850
      %v8934 = vunpack.c.l.b16 %v7851
      %v8935 = vunpack.c.h.b16 %v7851
      %v8936 = vunpack.c.l.b16 %v7852
      %v8937 = vunpack.c.h.b16 %v7852
      %v8938 = vunpack.c.l.b16 %v7853
      %v8939 = vunpack.c.h.b16 %v7853
      %v8940 = vunpack.c.l.b16 %v7854
      %v8941 = vunpack.c.h.b16 %v7854
      %v8942 = vunpack.c.l.b16 %v7855
      %v8943 = vunpack.c.h.b16 %v7855
      %v8944 = vunpack.c.l.b16 %v7856
      %v8945 = vunpack.c.h.b16 %v7856
      %v8946 = vunpack.c.l.b16 %v7857
      %v8947 = vunpack.c.h.b16 %v7857
      %v8948 = vunpack.c.l.b16 %v7858
      %v8949 = vunpack.c.h.b16 %v7858
      %v8950 = vunpack.c.l.b16 %v7859
      %v8951 = vunpack.c.h.b16 %v7859
      %v8952 = vunpack.c.l.b16 %v7860
      %v8953 = vunpack.c.h.b16 %v7860
      %v8954 = vunpack.c.l.b16 %v7861
      %v8955 = vunpack.c.h.b16 %v7861
      %v8956 = vunpack.c.l.b16 %v7862
      %v8957 = vunpack.c.h.b16 %v7862
      %v8958 = vunpack.c.l.b16 %v7863
      %v8959 = vunpack.c.h.b16 %v7863
      %v8960 = vunpack.c.l.b16 %v7864
      %v8961 = vunpack.c.h.b16 %v7864
      %v8962 = vunpack.c.l.b16 %v7865
      %v8963 = vunpack.c.h.b16 %v7865
      %v8964 = vunpack.c.l.b16 %v7866
      %v8965 = vunpack.c.h.b16 %v7866
      %v8966 = vunpack.c.l.b16 %v7867
      %v8967 = vunpack.c.h.b16 %v7867
      %v8968 = vunpack.c.l.b16 %v7868
      %v8969 = vunpack.c.h.b16 %v7868
      %v8970 = vunpack.c.l.b16 %v7869
      %v8971 = vunpack.c.h.b16 %v7869
      %v8972 = vunpack.c.l.b16 %v7870
      %v8973 = vunpack.c.h.b16 %v7870
      %v8974 = vunpack.c.l.b16 %v7871
      %v8975 = vunpack.c.h.b16 %v7871
      %v8976 = vunpack.c.l.b16 %v7872
      %v8977 = vunpack.c.h.b16 %v7872
      %v8978 = vunpack.c.l.b16 %v7873
      %v8979 = vunpack.c.h.b16 %v7873
      %v8980 = vunpack.c.l.b16 %v7874
      %v8981 = vunpack.c.h.b16 %v7874
      %v8982 = vunpack.c.l.b16 %v7875
      %v8983 = vunpack.c.h.b16 %v7875
      %v8984 = vunpack.c.l.b16 %v7876
      %v8985 = vunpack.c.h.b16 %v7876
      %v8986 = vunpack.c.l.b16 %v7877
      %v8987 = vunpack.c.h.b16 %v7877
      %v8988 = vunpack.c.l.b16 %v7878
      %v8989 = vunpack.c.h.b16 %v7878
      %v8990 = vunpack.c.l.b16 %v7879
      %v8991 = vunpack.c.h.b16 %v7879
      %v8992 = vunpack.c.l.b16 %v7880
      %v8993 = vunpack.c.h.b16 %v7880
      %v8994 = vunpack.c.l.b16 %v7881
      %v8995 = vunpack.c.h.b16 %v7881
      %v8996 = vunpack.c.l.b16 %v7882
      %v8997 = vunpack.c.h.b16 %v7882
      %v8998 = vunpack.c.l.b16 %v7883
      %v8999 = vunpack.c.h.b16 %v7883
      %v9000 = vunpack.c.l.b16 %v7884
      %v9001 = vunpack.c.h.b16 %v7884
      %v9002 = vunpack.c.l.b16 %v7885
      %v9003 = vunpack.c.h.b16 %v7885
      %v9004 = vunpack.c.l.b16 %v7886
      %v9005 = vunpack.c.h.b16 %v7886
      %v9006 = vunpack.c.l.b16 %v7887
      %v9007 = vunpack.c.h.b16 %v7887
      %v9008 = vunpack.c.l.b16 %v7888
      %v9009 = vunpack.c.h.b16 %v7888
      %v9010 = vunpack.c.l.b16 %v7889
      %v9011 = vunpack.c.h.b16 %v7889
      %v9012 = vunpack.c.l.b16 %v7890
      %v9013 = vunpack.c.h.b16 %v7890
      %v9014 = vunpack.c.l.b16 %v7891
      %v9015 = vunpack.c.h.b16 %v7891
      %v9016 = vunpack.c.l.b16 %v7892
      %v9017 = vunpack.c.h.b16 %v7892
      %v9018 = vunpack.c.l.b16 %v7893
      %v9019 = vunpack.c.h.b16 %v7893
      %v9020 = vunpack.c.l.b16 %v7894
      %v9021 = vunpack.c.h.b16 %v7894
      %v9022 = vunpack.c.l.b16 %v7895
      %v9023 = vunpack.c.h.b16 %v7895
      %v9024 = vunpack.c.l.b16 %v7896
      %v9025 = vunpack.c.h.b16 %v7896
      %v9026 = vunpack.c.l.b16 %v7897
      %v9027 = vunpack.c.h.b16 %v7897
      %v9028 = vunpack.c.l.b16 %v7898
      %v9029 = vunpack.c.h.b16 %v7898
      %v9030 = vunpack.c.l.b16 %v7899
      %v9031 = vunpack.c.h.b16 %v7899
      %v9032 = vunpack.c.l.b16 %v7900
      %v9033 = vunpack.c.h.b16 %v7900
      %v9034 = vunpack.c.l.b16 %v7901
      %v9035 = vunpack.c.h.b16 %v7901
      %v9036 = vunpack.c.l.b16 %v7902
      %v9037 = vunpack.c.h.b16 %v7902
      %v9038 = vunpack.c.l.b16 %v7903
      %v9039 = vunpack.c.h.b16 %v7903
      %v9040 = vunpack.c.l.b16 %v7904
      %v9041 = vunpack.c.h.b16 %v7904
      %v9042 = vunpack.c.l.b16 %v7905
      %v9043 = vunpack.c.h.b16 %v7905
      %v9044 = vunpack.c.l.b16 %v7906
      %v9045 = vunpack.c.h.b16 %v7906
      %v9046 = vunpack.c.l.b16 %v7907
      %v9047 = vunpack.c.h.b16 %v7907
      %v9048 = vunpack.c.l.b16 %v7908
      %v9049 = vunpack.c.h.b16 %v7908
      %v9050 = vunpack.c.l.b16 %v7909
      %v9051 = vunpack.c.h.b16 %v7909
      %v9052 = vunpack.c.l.b16 %v7910
      %v9053 = vunpack.c.h.b16 %v7910
      %v9054 = vunpack.c.l.b16 %v7911
      %v9055 = vunpack.c.h.b16 %v7911
      %v9056 = vunpack.c.l.b16 %v7912
      %v9057 = vunpack.c.h.b16 %v7912
      %v9058 = vunpack.c.l.b16 %v7913
      %v9059 = vunpack.c.h.b16 %v7913
      %v9060 = vunpack.c.l.b16 %v7914
      %v9061 = vunpack.c.h.b16 %v7914
      %v9062 = vunpack.c.l.b16 %v7915
      %v9063 = vunpack.c.h.b16 %v7915
      %v9064 = vunpack.c.l.b16 %v7916
      %v9065 = vunpack.c.h.b16 %v7916
      %v9066 = vunpack.c.l.b16 %v7917
      %v9067 = vunpack.c.h.b16 %v7917
      %v9068 = vunpack.c.l.b16 %v7918
      %v9069 = vunpack.c.h.b16 %v7918
      %v9070 = vunpack.c.l.b16 %v7919
      %v9071 = vunpack.c.h.b16 %v7919
      %v9072 = vunpack.c.l.b16 %v7920
      %v9073 = vunpack.c.h.b16 %v7920
      %v9074 = vunpack.c.l.b16 %v7921
      %v9075 = vunpack.c.h.b16 %v7921
      %v9076 = vunpack.c.l.b16 %v7922
      %v9077 = vunpack.c.h.b16 %v7922
      %v9078 = vunpack.c.l.b16 %v7923
      %v9079 = vunpack.c.h.b16 %v7923
      %v9080 = vunpack.c.l.b16 %v7924
      %v9081 = vunpack.c.h.b16 %v7924
      %v9082 = vunpack.c.l.b16 %v7925
      %v9083 = vunpack.c.h.b16 %v7925
      %v9084 = vunpack.c.l.b16 %v7926
      %v9085 = vunpack.c.h.b16 %v7926
      %v9086 = vunpack.c.l.b16 %v7927
      %v9087 = vunpack.c.h.b16 %v7927
      %v9088 = vunpack.c.l.b16 %v7928
      %v9089 = vunpack.c.h.b16 %v7928
      %v9090 = vunpack.c.l.b16 %v7929
      %v9091 = vunpack.c.h.b16 %v7929
      %v9092 = vunpack.c.l.b16 %v7930
      %v9093 = vunpack.c.h.b16 %v7930
      %v9094 = vunpack.c.l.b16 %v7931
      %v9095 = vunpack.c.h.b16 %v7931
      %v9096 = vunpack.c.l.b16 %v7932
      %v9097 = vunpack.c.h.b16 %v7932
      %v9098 = vunpack.c.l.b16 %v7933
      %v9099 = vunpack.c.h.b16 %v7933
      %v9100 = vunpack.c.l.b16 %v7934
      %v9101 = vunpack.c.h.b16 %v7934
      %v9102 = vunpack.c.l.b16 %v7935
      %v9103 = vunpack.c.h.b16 %v7935
      %v9104 = vunpack.c.l.b16 %v7936
      %v9105 = vunpack.c.h.b16 %v7936
      %v9106 = vunpack.c.l.b16 %v7937
      %v9107 = vunpack.c.h.b16 %v7937
      %v9108 = vunpack.c.l.b16 %v7938
      %v9109 = vunpack.c.h.b16 %v7938
      %v9110 = vunpack.c.l.b16 %v7939
      %v9111 = vunpack.c.h.b16 %v7939
      %v9112 = vunpack.c.l.b16 %v7940
      %v9113 = vunpack.c.h.b16 %v7940
      %v9114 = vunpack.c.l.b16 %v7941
      %v9115 = vunpack.c.h.b16 %v7941
      %v9116 = vunpack.c.l.b16 %v7942
      %v9117 = vunpack.c.h.b16 %v7942
      %v9118 = vunpack.c.l.b16 %v7943
      %v9119 = vunpack.c.h.b16 %v7943
      %v9120 = vunpack.c.l.b16 %v7944
      %v9121 = vunpack.c.h.b16 %v7944
      %v9122 = vunpack.c.l.b16 %v7945
      %v9123 = vunpack.c.h.b16 %v7945
      %v9124 = vunpack.c.l.b16 %v7946
      %v9125 = vunpack.c.h.b16 %v7946
      %v9126 = vunpack.c.l.b16 %v7947
      %v9127 = vunpack.c.h.b16 %v7947
      %v9128 = vunpack.c.l.b16 %v7948
      %v9129 = vunpack.c.h.b16 %v7948
      %v9130 = vunpack.c.l.b16 %v7949
      %v9131 = vunpack.c.h.b16 %v7949
      %v9132 = vunpack.c.l.b16 %v7950
      %v9133 = vunpack.c.h.b16 %v7950
      %v9134 = vunpack.c.l.b16 %v7951
      %v9135 = vunpack.c.h.b16 %v7951
      %v9136 = vunpack.c.l.b16 %v7952
      %v9137 = vunpack.c.h.b16 %v7952
      %v9138 = vunpack.c.l.b16 %v7953
      %v9139 = vunpack.c.h.b16 %v7953
      %v9140 = vunpack.c.l.b16 %v7954
      %v9141 = vunpack.c.h.b16 %v7954
      %v9142 = vunpack.c.l.b16 %v7955
      %v9143 = vunpack.c.h.b16 %v7955
      %v9144 = vunpack.c.l.b16 %v7956
      %v9145 = vunpack.c.h.b16 %v7956
      %v9146 = vunpack.c.l.b16 %v7957
      %v9147 = vunpack.c.h.b16 %v7957
      %v9148 = vunpack.c.l.b16 %v7958
      %v9149 = vunpack.c.h.b16 %v7958
      %v9150 = vunpack.c.l.b16 %v7959
      %v9151 = vunpack.c.h.b16 %v7959
      %v9152 = vunpack.c.l.b16 %v7960
      %v9153 = vunpack.c.h.b16 %v7960
      %v9154 = vunpack.c.l.b16 %v7961
      %v9155 = vunpack.c.h.b16 %v7961
      %v9156 = vunpack.c.l.b16 %v7962
      %v9157 = vunpack.c.h.b16 %v7962
      %v9158 = vunpack.c.l.b16 %v7963
      %v9159 = vunpack.c.h.b16 %v7963
      %v9160 = vunpack.c.l.b16 %v7964
      %v9161 = vunpack.c.h.b16 %v7964
      %v9162 = vunpack.c.l.b16 %v7965
      %v9163 = vunpack.c.h.b16 %v7965
      %v9164 = vunpack.c.l.b16 %v7966
      %v9165 = vunpack.c.h.b16 %v7966
      %v9166 = vunpack.c.l.b16 %v7967
      %v9167 = vunpack.c.h.b16 %v7967
      %v9168 = vunpack.c.l.b16 %v7968
      %v9169 = vunpack.c.h.b16 %v7968
      %v9170 = vunpack.c.l.b16 %v7969
      %v9171 = vunpack.c.h.b16 %v7969
      %v9172 = vunpack.c.l.b16 %v7970
      %v9173 = vunpack.c.h.b16 %v7970
      %v9174 = vunpack.c.l.b16 %v7971
      %v9175 = vunpack.c.h.b16 %v7971
      %v9176 = vunpack.c.l.b16 %v7972
      %v9177 = vunpack.c.h.b16 %v7972
      %v9178 = vunpack.c.l.b16 %v7973
      %v9179 = vunpack.c.h.b16 %v7973
      %v9180 = vunpack.c.l.b16 %v7974
      %v9181 = vunpack.c.h.b16 %v7974
      %v9182 = vunpack.c.l.b16 %v7975
      %v9183 = vunpack.c.h.b16 %v7975
      %v9184 = vunpack.c.l.b16 %v7976
      %v9185 = vunpack.c.h.b16 %v7976
      %v9186 = vunpack.c.l.b16 %v7977
      %v9187 = vunpack.c.h.b16 %v7977
      %v9188 = vunpack.c.l.b16 %v7978
      %v9189 = vunpack.c.h.b16 %v7978
      %v9190 = vunpack.c.l.b16 %v7979
      %v9191 = vunpack.c.h.b16 %v7979
      %v9192 = vunpack.c.l.b16 %v7980
      %v9193 = vunpack.c.h.b16 %v7980
      %v9194 = vunpack.c.l.b16 %v7981
      %v9195 = vunpack.c.h.b16 %v7981
      %v9196 = vunpack.c.l.b16 %v7982
      %v9197 = vunpack.c.h.b16 %v7982
      %v9198 = vunpack.c.l.b16 %v7983
      %v9199 = vunpack.c.h.b16 %v7983
      %v9200 = vunpack.c.l.b16 %v7984
      %v9201 = vunpack.c.h.b16 %v7984
      %v9202 = vunpack.c.l.b16 %v7985
      %v9203 = vunpack.c.h.b16 %v7985
      %v9204 = vunpack.c.l.b16 %v7986
      %v9205 = vunpack.c.h.b16 %v7986
      %v9206 = vunpack.c.l.b16 %v7987
      %v9207 = vunpack.c.h.b16 %v7987
      %v9208 = vunpack.c.l.b16 %v7988
      %v9209 = vunpack.c.h.b16 %v7988
      %v9210 = vunpack.c.l.b16 %v7989
      %v9211 = vunpack.c.h.b16 %v7989
      %v9212 = vunpack.c.l.b16 %v7990
      %v9213 = vunpack.c.h.b16 %v7990
      %v9214 = vunpack.c.l.b16 %v7991
      %v9215 = vunpack.c.h.b16 %v7991
      %v9216 = vunpack.c.l.b16 %v7992
      %v9217 = vunpack.c.h.b16 %v7992
      %v9218 = vunpack.c.l.b16 %v7993
      %v9219 = vunpack.c.h.b16 %v7993
      %v9220 = vunpack.c.l.b16 %v7994
      %v9221 = vunpack.c.h.b16 %v7994
      %v9222 = vunpack.c.l.b16 %v7995
      %v9223 = vunpack.c.h.b16 %v7995
      %v9224 = vunpack.c.l.b16 %v7996
      %v9225 = vunpack.c.h.b16 %v7996
      %v9226 = vunpack.c.l.b16 %v7997
      %v9227 = vunpack.c.h.b16 %v7997
      %v9228 = vunpack.c.l.b16 %v7998
      %v9229 = vunpack.c.h.b16 %v7998
      %v9230 = vunpack.c.l.b16 %v7999
      %v9231 = vunpack.c.h.b16 %v7999
      %v9232 = vunpack.c.l.b16 %v8000
      %v9233 = vunpack.c.h.b16 %v8000
      %v9234 = vunpack.c.l.b16 %v8001
      %v9235 = vunpack.c.h.b16 %v8001
      %v9236 = vunpack.c.l.b16 %v8002
      %v9237 = vunpack.c.h.b16 %v8002
      %v9238 = vunpack.c.l.b16 %v8003
      %v9239 = vunpack.c.h.b16 %v8003
      %v9240 = vunpack.c.l.b16 %v8004
      %v9241 = vunpack.c.h.b16 %v8004
      %v9242 = vunpack.c.l.b16 %v8005
      %v9243 = vunpack.c.h.b16 %v8005
      %v9244 = vunpack.c.l.b16 %v8006
      %v9245 = vunpack.c.h.b16 %v8006
      %v9246 = vunpack.c.l.b16 %v8007
      %v9247 = vunpack.c.h.b16 %v8007
      %v9248 = vunpack.c.l.b16 %v8008
      %v9249 = vunpack.c.h.b16 %v8008
      %v9250 = vunpack.c.l.b16 %v8009
      %v9251 = vunpack.c.h.b16 %v8009
      %v9252 = vunpack.c.l.b16 %v8010
      %v9253 = vunpack.c.h.b16 %v8010
      %v9254 = vunpack.c.l.b16 %v8011
      %v9255 = vunpack.c.h.b16 %v8011
      %v9256 = vunpack.c.l.b16 %v8012
      %v9257 = vunpack.c.h.b16 %v8012
      %v9258 = vunpack.c.l.b16 %v8013
      %v9259 = vunpack.c.h.b16 %v8013
      %v9260 = vunpack.c.l.b16 %v8014
      %v9261 = vunpack.c.h.b16 %v8014
      %v9262 = vunpack.c.l.b16 %v8015
      %v9263 = vunpack.c.h.b16 %v8015
      %v9264 = vunpack.c.l.b16 %v8016
      %v9265 = vunpack.c.h.b16 %v8016
      %v9266 = vunpack.c.l.b16 %v8017
      %v9267 = vunpack.c.h.b16 %v8017
      %v9268 = vunpack.c.l.b16 %v8018
      %v9269 = vunpack.c.h.b16 %v8018
      %v9270 = vunpack.c.l.b16 %v8019
      %v9271 = vunpack.c.h.b16 %v8019
      %v9272 = vunpack.c.l.b16 %v8020
      %v9273 = vunpack.c.h.b16 %v8020
      %v9274 = vunpack.c.l.b16 %v8021
      %v9275 = vunpack.c.h.b16 %v8021
      %v9276 = vunpack.c.l.b16 %v8022
      %v9277 = vunpack.c.h.b16 %v8022
      %v9278 = vunpack.c.l.b16 %v8023
      %v9279 = vunpack.c.h.b16 %v8023
      %v9280 = vunpack.c.l.b16 %v8024
      %v9281 = vunpack.c.h.b16 %v8024
      %v9282 = vunpack.c.l.b16 %v8025
      %v9283 = vunpack.c.h.b16 %v8025
      %v9284 = vunpack.c.l.b16 %v8026
      %v9285 = vunpack.c.h.b16 %v8026
      %v9286 = vunpack.c.l.b16 %v8027
      %v9287 = vunpack.c.h.b16 %v8027
      %v9288 = vunpack.c.l.b16 %v8028
      %v9289 = vunpack.c.h.b16 %v8028
      %v9290 = vunpack.c.l.b16 %v8029
      %v9291 = vunpack.c.h.b16 %v8029
      %v9292 = vunpack.c.l.b16 %v8030
      %v9293 = vunpack.c.h.b16 %v8030
      %v9294 = vunpack.c.l.b16 %v8031
      %v9295 = vunpack.c.h.b16 %v8031
      %v9296 = vunpack.c.l.b16 %v8032
      %v9297 = vunpack.c.h.b16 %v8032
      %v9298 = vunpack.c.l.b16 %v8033
      %v9299 = vunpack.c.h.b16 %v8033
      %v9300 = vunpack.c.l.b16 %v8034
      %v9301 = vunpack.c.h.b16 %v8034
      %v9302 = vunpack.c.l.b16 %v8035
      %v9303 = vunpack.c.h.b16 %v8035
      %v9304 = vunpack.c.l.b16 %v8036
      %v9305 = vunpack.c.h.b16 %v8036
      %v9306 = vunpack.c.l.b16 %v8037
      %v9307 = vunpack.c.h.b16 %v8037
      %v9308 = vunpack.c.l.b16 %v8038
      %v9309 = vunpack.c.h.b16 %v8038
      %v9310 = vunpack.c.l.b16 %v8039
      %v9311 = vunpack.c.h.b16 %v8039
      %v9312 = vunpack.c.l.b16 %v8040
      %v9313 = vunpack.c.h.b16 %v8040
      %v9314 = vunpack.c.l.b16 %v8041
      %v9315 = vunpack.c.h.b16 %v8041
      %v9316 = vunpack.c.l.b16 %v8042
      %v9317 = vunpack.c.h.b16 %v8042
      %v9318 = vunpack.c.l.b16 %v8043
      %v9319 = vunpack.c.h.b16 %v8043
      %v9320 = vunpack.c.l.b16 %v8044
      %v9321 = vunpack.c.h.b16 %v8044
      %v9322 = vunpack.c.l.b16 %v8045
      %v9323 = vunpack.c.h.b16 %v8045
      %v9324 = vunpack.c.l.b16 %v8046
      %v9325 = vunpack.c.h.b16 %v8046
      %v9326 = vunpack.c.l.b16 %v8047
      %v9327 = vunpack.c.h.b16 %v8047
      %v9328 = vunpack.c.l.b16 %v8048
      %v9329 = vunpack.c.h.b16 %v8048
      %v9330 = vunpack.c.l.b16 %v8049
      %v9331 = vunpack.c.h.b16 %v8049
      %v9332 = vunpack.c.l.b16 %v8050
      %v9333 = vunpack.c.h.b16 %v8050
      %v9334 = vunpack.c.l.b16 %v8051
      %v9335 = vunpack.c.h.b16 %v8051
      %v9336 = vunpack.c.l.b16 %v8052
      %v9337 = vunpack.c.h.b16 %v8052
      %v9338 = vunpack.c.l.b16 %v8053
      %v9339 = vunpack.c.h.b16 %v8053
      %v9340 = vunpack.c.l.b16 %v8054
      %v9341 = vunpack.c.h.b16 %v8054
      %v9342 = vunpack.c.l.b16 %v8055
      %v9343 = vunpack.c.h.b16 %v8055
      %v9344 = vunpack.c.l.b16 %v8056
      %v9345 = vunpack.c.h.b16 %v8056
      %v9346 = vunpack.c.l.b16 %v8057
      %v9347 = vunpack.c.h.b16 %v8057
      %v9348 = vunpack.c.l.b16 %v8058
      %v9349 = vunpack.c.h.b16 %v8058
      %v9350 = vunpack.c.l.b16 %v8059
      %v9351 = vunpack.c.h.b16 %v8059
      %v9352 = vunpack.c.l.b16 %v8060
      %v9353 = vunpack.c.h.b16 %v8060
      %v9354 = vunpack.c.l.b16 %v8061
      %v9355 = vunpack.c.h.b16 %v8061
      %v9356 = vunpack.c.l.b16 %v8062
      %v9357 = vunpack.c.h.b16 %v8062
      %v9358 = vunpack.c.l.b16 %v8063
      %v9359 = vunpack.c.h.b16 %v8063
      %v9360 = vunpack.c.l.b16 %v8064
      %v9361 = vunpack.c.h.b16 %v8064
      %v9362 = vunpack.c.l.b16 %v8065
      %v9363 = vunpack.c.h.b16 %v8065
      %v9364 = vunpack.c.l.b16 %v8066
      %v9365 = vunpack.c.h.b16 %v8066
      %v9366 = vunpack.c.l.b16 %v8067
      %v9367 = vunpack.c.h.b16 %v8067
      %v9368 = vunpack.c.l.b16 %v8068
      %v9369 = vunpack.c.h.b16 %v8068
      %v9370 = vunpack.c.l.b16 %v8069
      %v9371 = vunpack.c.h.b16 %v8069
      %v9372 = vunpack.c.l.b16 %v8070
      %v9373 = vunpack.c.h.b16 %v8070
      %v9374 = vunpack.c.l.b16 %v8071
      %v9375 = vunpack.c.h.b16 %v8071
      %v9376 = vunpack.c.l.b16 %v8072
      %v9377 = vunpack.c.h.b16 %v8072
      %v9378 = vunpack.c.l.b16 %v8073
      %v9379 = vunpack.c.h.b16 %v8073
      %v9380 = vunpack.c.l.b16 %v8074
      %v9381 = vunpack.c.h.b16 %v8074
      %v9382 = vunpack.c.l.b16 %v8075
      %v9383 = vunpack.c.h.b16 %v8075
      %v9384 = vunpack.c.l.b16 %v8076
      %v9385 = vunpack.c.h.b16 %v8076
      %v9386 = vunpack.c.l.b16 %v8077
      %v9387 = vunpack.c.h.b16 %v8077
      %v9388 = vunpack.c.l.b16 %v8078
      %v9389 = vunpack.c.h.b16 %v8078
      %v9390 = vunpack.c.l.b16 %v8079
      %v9391 = vunpack.c.h.b16 %v8079
      %v9392 = vunpack.c.l.b16 %v8080
      %v9393 = vunpack.c.h.b16 %v8080
      %v9394 = vunpack.c.l.b16 %v8081
      %v9395 = vunpack.c.h.b16 %v8081
      %v9396 = vunpack.c.l.b16 %v8082
      %v9397 = vunpack.c.h.b16 %v8082
      %v9398 = vunpack.c.l.b16 %v8083
      %v9399 = vunpack.c.h.b16 %v8083
      %v9400 = vunpack.c.l.b16 %v8084
      %v9401 = vunpack.c.h.b16 %v8084
      %v9402 = vunpack.c.l.b16 %v8085
      %v9403 = vunpack.c.h.b16 %v8085
      %v9404 = vunpack.c.l.b16 %v8086
      %v9405 = vunpack.c.h.b16 %v8086
      %v9406 = vunpack.c.l.b16 %v8087
      %v9407 = vunpack.c.h.b16 %v8087
      %v9408 = vunpack.c.l.b16 %v8088
      %v9409 = vunpack.c.h.b16 %v8088
      %v9410 = vunpack.c.l.b16 %v8089
      %v9411 = vunpack.c.h.b16 %v8089
      %v9412 = vunpack.c.l.b16 %v8090
      %v9413 = vunpack.c.h.b16 %v8090
      %v9414 = vunpack.c.l.b16 %v8091
      %v9415 = vunpack.c.h.b16 %v8091
      %v9416 = vunpack.c.l.b16 %v8092
      %v9417 = vunpack.c.h.b16 %v8092
      %v9418 = vunpack.c.l.b16 %v8093
      %v9419 = vunpack.c.h.b16 %v8093
      %v9420 = vunpack.c.l.b16 %v8094
      %v9421 = vunpack.c.h.b16 %v8094
      %v9422 = vunpack.c.l.b16 %v8095
      %v9423 = vunpack.c.h.b16 %v8095
      %v9424 = vunpack.c.l.b16 %v8096
      %v9425 = vunpack.c.h.b16 %v8096
      %v9426 = vunpack.c.l.b16 %v8097
      %v9427 = vunpack.c.h.b16 %v8097
      %v9428 = vunpack.c.l.b16 %v8098
      %v9429 = vunpack.c.h.b16 %v8098
      %v9430 = vunpack.c.l.b16 %v8099
      %v9431 = vunpack.c.h.b16 %v8099
      %v9432 = vunpack.c.l.b16 %v8100
      %v9433 = vunpack.c.h.b16 %v8100
      %v9434 = vunpack.c.l.b16 %v8101
      %v9435 = vunpack.c.h.b16 %v8101
      %v9436 = vunpack.c.l.b16 %v8102
      %v9437 = vunpack.c.h.b16 %v8102
      %v9438 = vunpack.c.l.b16 %v8103
      %v9439 = vunpack.c.h.b16 %v8103
      %v9440 = vunpack.c.l.b16 %v8104
      %v9441 = vunpack.c.h.b16 %v8104
      %v9442 = vunpack.c.l.b16 %v8105
      %v9443 = vunpack.c.h.b16 %v8105
      %v9444 = vunpack.c.l.b16 %v8106
      %v9445 = vunpack.c.h.b16 %v8106
      %v9446 = vunpack.c.l.b16 %v8107
      %v9447 = vunpack.c.h.b16 %v8107
      %v9448 = vunpack.c.l.b16 %v8108
      %v9449 = vunpack.c.h.b16 %v8108
      %v9450 = vunpack.c.l.b16 %v8109
      %v9451 = vunpack.c.h.b16 %v8109
      %v9452 = vunpack.c.l.b16 %v8110
      %v9453 = vunpack.c.h.b16 %v8110
      %v9454 = vunpack.c.l.b16 %v8111
      %v9455 = vunpack.c.h.b16 %v8111
      %v9456 = vunpack.c.l.b16 %v8112
      %v9457 = vunpack.c.h.b16 %v8112
      %v9458 = vunpack.c.l.b16 %v8113
      %v9459 = vunpack.c.h.b16 %v8113
      %v9460 = vunpack.c.l.b16 %v8114
      %v9461 = vunpack.c.h.b16 %v8114
      %v9462 = vunpack.c.l.b16 %v8115
      %v9463 = vunpack.c.h.b16 %v8115
      %v9464 = vunpack.c.l.b16 %v8116
      %v9465 = vunpack.c.h.b16 %v8116
      %v9466 = vunpack.c.l.b16 %v8117
      %v9467 = vunpack.c.h.b16 %v8117
      %v9468 = vunpack.c.l.b16 %v8118
      %v9469 = vunpack.c.h.b16 %v8118
      %v9470 = vunpack.c.l.b16 %v8119
      %v9471 = vunpack.c.h.b16 %v8119
      %v9472 = vunpack.c.l.b16 %v8120
      %v9473 = vunpack.c.h.b16 %v8120
      %v9474 = vunpack.c.l.b16 %v8121
      %v9475 = vunpack.c.h.b16 %v8121
      %v9476 = vunpack.c.l.b16 %v8122
      %v9477 = vunpack.c.h.b16 %v8122
      %v9478 = vunpack.c.l.b16 %v8123
      %v9479 = vunpack.c.h.b16 %v8123
      %v9480 = vpack.c.b16 %v8586, %v8584
      %v9481 = vpack.c.b16 %v8587, %v8585
      %v9482 = vpack.c.b16 %v8590, %v8588
      %v9483 = vpack.c.b16 %v8591, %v8589
      %v9484 = vpack.c.b16 %v8594, %v8592
      %v9485 = vpack.c.b16 %v8595, %v8593
      %v9486 = vpack.c.b16 %v8598, %v8596
      %v9487 = vpack.c.b16 %v8599, %v8597
      %v9488 = vpack.c.b16 %v8602, %v8600
      %v9489 = vpack.c.b16 %v8603, %v8601
      %v9490 = vpack.c.b16 %v8606, %v8604
      %v9491 = vpack.c.b16 %v8607, %v8605
      %v9492 = vpack.c.b16 %v8610, %v8608
      %v9493 = vpack.c.b16 %v8611, %v8609
      %v9494 = vpack.c.b16 %v8614, %v8612
      %v9495 = vpack.c.b16 %v8615, %v8613
      %v9496 = vpack.c.b16 %v8618, %v8616
      %v9497 = vpack.c.b16 %v8619, %v8617
      %v9498 = vpack.c.b16 %v8622, %v8620
      %v9499 = vpack.c.b16 %v8623, %v8621
      %v9500 = vpack.c.b16 %v8626, %v8624
      %v9501 = vpack.c.b16 %v8627, %v8625
      %v9502 = vpack.c.b16 %v8630, %v8628
      %v9503 = vpack.c.b16 %v8631, %v8629
      %v9504 = vpack.c.b16 %v8634, %v8632
      %v9505 = vpack.c.b16 %v8635, %v8633
      %v9506 = vpack.c.b16 %v8638, %v8636
      %v9507 = vpack.c.b16 %v8639, %v8637
      %v9508 = vpack.c.b16 %v8642, %v8640
      %v9509 = vpack.c.b16 %v8643, %v8641
      %v9510 = vpack.c.b16 %v8646, %v8644
      %v9511 = vpack.c.b16 %v8647, %v8645
      %v9512 = vpack.c.b16 %v8650, %v8648
      %v9513 = vpack.c.b16 %v8651, %v8649
      %v9514 = vpack.c.b16 %v8654, %v8652
      %v9515 = vpack.c.b16 %v8655, %v8653
      %v9516 = vpack.c.b16 %v8658, %v8656
      %v9517 = vpack.c.b16 %v8659, %v8657
      %v9518 = vpack.c.b16 %v8662, %v8660
      %v9519 = vpack.c.b16 %v8663, %v8661
      %v9520 = vpack.c.b16 %v8666, %v8664
      %v9521 = vpack.c.b16 %v8667, %v8665
      %v9522 = vpack.c.b16 %v8670, %v8668
      %v9523 = vpack.c.b16 %v8671, %v8669
      %v9524 = vpack.c.b16 %v8674, %v8672
      %v9525 = vpack.c.b16 %v8675, %v8673
      %v9526 = vpack.c.b16 %v8678, %v8676
      %v9527 = vpack.c.b16 %v8679, %v8677
      %v9528 = vpack.c.b16 %v8682, %v8680
      %v9529 = vpack.c.b16 %v8683, %v8681
      %v9530 = vpack.c.b16 %v8686, %v8684
      %v9531 = vpack.c.b16 %v8687, %v8685
      %v9532 = vpack.c.b16 %v8690, %v8688
      %v9533 = vpack.c.b16 %v8691, %v8689
      %v9534 = vpack.c.b16 %v8694, %v8692
      %v9535 = vpack.c.b16 %v8695, %v8693
      %v9536 = vpack.c.b16 %v8698, %v8696
      %v9537 = vpack.c.b16 %v8699, %v8697
      %v9538 = vpack.c.b16 %v8702, %v8700
      %v9539 = vpack.c.b16 %v8703, %v8701
      %v9540 = vpack.c.b16 %v8706, %v8704
      %v9541 = vpack.c.b16 %v8707, %v8705
      %v9542 = vpack.c.b16 %v8710, %v8708
      %v9543 = vpack.c.b16 %v8711, %v8709
      %v9544 = vpack.c.b16 %v8714, %v8712
      %v9545 = vpack.c.b16 %v8715, %v8713
      %v9546 = vpack.c.b16 %v8718, %v8716
      %v9547 = vpack.c.b16 %v8719, %v8717
      %v9548 = vpack.c.b16 %v8722, %v8720
      %v9549 = vpack.c.b16 %v8723, %v8721
      %v9550 = vpack.c.b16 %v8726, %v8724
      %v9551 = vpack.c.b16 %v8727, %v8725
      %v9552 = vpack.c.b16 %v8730, %v8728
      %v9553 = vpack.c.b16 %v8731, %v8729
      %v9554 = vpack.c.b16 %v8734, %v8732
      %v9555 = vpack.c.b16 %v8735, %v8733
      %v9556 = vpack.c.b16 %v8738, %v8736
      %v9557 = vpack.c.b16 %v8739, %v8737
      %v9558 = vpack.c.b16 %v8742, %v8740
      %v9559 = vpack.c.b16 %v8743, %v8741
      %v9560 = vpack.c.b16 %v8746, %v8744
      %v9561 = vpack.c.b16 %v8747, %v8745
      %v9562 = vpack.c.b16 %v8750, %v8748
      %v9563 = vpack.c.b16 %v8751, %v8749
      %v9564 = vpack.c.b16 %v8754, %v8752
      %v9565 = vpack.c.b16 %v8755, %v8753
      %v9566 = vpack.c.b16 %v8758, %v8756
      %v9567 = vpack.c.b16 %v8759, %v8757
      %v9568 = vpack.c.b16 %v8762, %v8760
      %v9569 = vpack.c.b16 %v8763, %v8761
      %v9570 = vpack.c.b16 %v8766, %v8764
      %v9571 = vpack.c.b16 %v8767, %v8765
      %v9572 = vpack.c.b16 %v8770, %v8768
      %v9573 = vpack.c.b16 %v8771, %v8769
      %v9574 = vpack.c.b16 %v8774, %v8772
      %v9575 = vpack.c.b16 %v8775, %v8773
      %v9576 = vpack.c.b16 %v8778, %v8776
      %v9577 = vpack.c.b16 %v8779, %v8777
      %v9578 = vpack.c.b16 %v8782, %v8780
      %v9579 = vpack.c.b16 %v8783, %v8781
      %v9580 = vpack.c.b16 %v8786, %v8784
      %v9581 = vpack.c.b16 %v8787, %v8785
      %v9582 = vpack.c.b16 %v8790, %v8788
      %v9583 = vpack.c.b16 %v8791, %v8789
      %v9584 = vpack.c.b16 %v8794, %v8792
      %v9585 = vpack.c.b16 %v8795, %v8793
      %v9586 = vpack.c.b16 %v8798, %v8796
      %v9587 = vpack.c.b16 %v8799, %v8797
      %v9588 = vpack.c.b16 %v8802, %v8800
      %v9589 = vpack.c.b16 %v8803, %v8801
      %v9590 = vpack.c.b16 %v8806, %v8804
      %v9591 = vpack.c.b16 %v8807, %v8805
      %v9592 = vpack.c.b16 %v8810, %v8808
      %v9593 = vpack.c.b16 %v8811, %v8809
      %v9594 = vpack.c.b16 %v8814, %v8812
      %v9595 = vpack.c.b16 %v8815, %v8813
      %v9596 = vpack.c.b16 %v8818, %v8816
      %v9597 = vpack.c.b16 %v8819, %v8817
      %v9598 = vpack.c.b16 %v8822, %v8820
      %v9599 = vpack.c.b16 %v8823, %v8821
      %v9600 = vpack.c.b16 %v8826, %v8824
      %v9601 = vpack.c.b16 %v8827, %v8825
      %v9602 = vpack.c.b16 %v8830, %v8828
      %v9603 = vpack.c.b16 %v8831, %v8829
      %v9604 = vpack.c.b16 %v8834, %v8832
      %v9605 = vpack.c.b16 %v8835, %v8833
      %v9606 = vpack.c.b16 %v8838, %v8836
      %v9607 = vpack.c.b16 %v8839, %v8837
      %v9608 = vpack.c.b16 %v8842, %v8840
      %v9609 = vpack.c.b16 %v8843, %v8841
      %v9610 = vpack.c.b16 %v8846, %v8844
      %v9611 = vpack.c.b16 %v8847, %v8845
      %v9612 = vpack.c.b16 %v8850, %v8848
      %v9613 = vpack.c.b16 %v8851, %v8849
      %v9614 = vpack.c.b16 %v8854, %v8852
      %v9615 = vpack.c.b16 %v8855, %v8853
      %v9616 = vpack.c.b16 %v8858, %v8856
      %v9617 = vpack.c.b16 %v8859, %v8857
      %v9618 = vpack.c.b16 %v8862, %v8860
      %v9619 = vpack.c.b16 %v8863, %v8861
      %v9620 = vpack.c.b16 %v8866, %v8864
      %v9621 = vpack.c.b16 %v8867, %v8865
      %v9622 = vpack.c.b16 %v8870, %v8868
      %v9623 = vpack.c.b16 %v8871, %v8869
      %v9624 = vpack.c.b16 %v8874, %v8872
      %v9625 = vpack.c.b16 %v8875, %v8873
      %v9626 = vpack.c.b16 %v8878, %v8876
      %v9627 = vpack.c.b16 %v8879, %v8877
      %v9628 = vpack.c.b16 %v8882, %v8880
      %v9629 = vpack.c.b16 %v8883, %v8881
      %v9630 = vpack.c.b16 %v8886, %v8884
      %v9631 = vpack.c.b16 %v8887, %v8885
      %v9632 = vpack.c.b16 %v8890, %v8888
      %v9633 = vpack.c.b16 %v8891, %v8889
      %v9634 = vpack.c.b16 %v8894, %v8892
      %v9635 = vpack.c.b16 %v8895, %v8893
      %v9636 = vpack.c.b16 %v8898, %v8896
      %v9637 = vpack.c.b16 %v8899, %v8897
      %v9638 = vpack.c.b16 %v8902, %v8900
      %v9639 = vpack.c.b16 %v8903, %v8901
      %v9640 = vpack.c.b16 %v8906, %v8904
      %v9641 = vpack.c.b16 %v8907, %v8905
      %v9642 = vpack.c.b16 %v8910, %v8908
      %v9643 = vpack.c.b16 %v8911, %v8909
      %v9644 = vpack.c.b16 %v8914, %v8912
      %v9645 = vpack.c.b16 %v8915, %v8913
      %v9646 = vpack.c.b16 %v8918, %v8916
      %v9647 = vpack.c.b16 %v8919, %v8917
      %v9648 = vpack.c.b16 %v8922, %v8920
      %v9649 = vpack.c.b16 %v8923, %v8921
      %v9650 = vpack.c.b16 %v8926, %v8924
      %v9651 = vpack.c.b16 %v8927, %v8925
      %v9652 = vpack.c.b16 %v8930, %v8928
      %v9653 = vpack.c.b16 %v8931, %v8929
      %v9654 = vpack.c.b16 %v8934, %v8932
      %v9655 = vpack.c.b16 %v8935, %v8933
      %v9656 = vpack.c.b16 %v8938, %v8936
      %v9657 = vpack.c.b16 %v8939, %v8937
      %v9658 = vpack.c.b16 %v8942, %v8940
      %v9659 = vpack.c.b16 %v8943, %v8941
      %v9660 = vpack.c.b16 %v8946, %v8944
      %v9661 = vpack.c.b16 %v8947, %v8945
      %v9662 = vpack.c.b16 %v8950, %v8948
      %v9663 = vpack.c.b16 %v8951, %v8949
      %v9664 = vpack.c.b16 %v8954, %v8952
      %v9665 = vpack.c.b16 %v8955, %v8953
      %v9666 = vpack.c.b16 %v8958, %v8956
      %v9667 = vpack.c.b16 %v8959, %v8957
      %v9668 = vpack.c.b16 %v8962, %v8960
      %v9669 = vpack.c.b16 %v8963, %v8961
      %v9670 = vpack.c.b16 %v8966, %v8964
      %v9671 = vpack.c.b16 %v8967, %v8965
      %v9672 = vpack.c.b16 %v8970, %v8968
      %v9673 = vpack.c.b16 %v8971, %v8969
      %v9674 = vpack.c.b16 %v8974, %v8972
      %v9675 = vpack.c.b16 %v8975, %v8973
      %v9676 = vpack.c.b16 %v8978, %v8976
      %v9677 = vpack.c.b16 %v8979, %v8977
      %v9678 = vpack.c.b16 %v8982, %v8980
      %v9679 = vpack.c.b16 %v8983, %v8981
      %v9680 = vpack.c.b16 %v8986, %v8984
      %v9681 = vpack.c.b16 %v8987, %v8985
      %v9682 = vpack.c.b16 %v8990, %v8988
      %v9683 = vpack.c.b16 %v8991, %v8989
      %v9684 = vpack.c.b16 %v8994, %v8992
      %v9685 = vpack.c.b16 %v8995, %v8993
      %v9686 = vpack.c.b16 %v8998, %v8996
      %v9687 = vpack.c.b16 %v8999, %v8997
      %v9688 = vpack.c.b16 %v9002, %v9000
      %v9689 = vpack.c.b16 %v9003, %v9001
      %v9690 = vpack.c.b16 %v9006, %v9004
      %v9691 = vpack.c.b16 %v9007, %v9005
      %v9692 = vpack.c.b16 %v9010, %v9008
      %v9693 = vpack.c.b16 %v9011, %v9009
      %v9694 = vpack.c.b16 %v9014, %v9012
      %v9695 = vpack.c.b16 %v9015, %v9013
      %v9696 = vpack.c.b16 %v9018, %v9016
      %v9697 = vpack.c.b16 %v9019, %v9017
      %v9698 = vpack.c.b16 %v9022, %v9020
      %v9699 = vpack.c.b16 %v9023, %v9021
      %v9700 = vpack.c.b16 %v9026, %v9024
      %v9701 = vpack.c.b16 %v9027, %v9025
      %v9702 = vpack.c.b16 %v9030, %v9028
      %v9703 = vpack.c.b16 %v9031, %v9029
      %v9704 = vpack.c.b16 %v9034, %v9032
      %v9705 = vpack.c.b16 %v9035, %v9033
      %v9706 = vpack.c.b16 %v9038, %v9036
      %v9707 = vpack.c.b16 %v9039, %v9037
      %v9708 = vpack.c.b16 %v9042, %v9040
      %v9709 = vpack.c.b16 %v9043, %v9041
      %v9710 = vpack.c.b16 %v9046, %v9044
      %v9711 = vpack.c.b16 %v9047, %v9045
      %v9712 = vpack.c.b16 %v9050, %v9048
      %v9713 = vpack.c.b16 %v9051, %v9049
      %v9714 = vpack.c.b16 %v9054, %v9052
      %v9715 = vpack.c.b16 %v9055, %v9053
      %v9716 = vpack.c.b16 %v9058, %v9056
      %v9717 = vpack.c.b16 %v9059, %v9057
      %v9718 = vpack.c.b16 %v9062, %v9060
      %v9719 = vpack.c.b16 %v9063, %v9061
      %v9720 = vpack.c.b16 %v9066, %v9064
      %v9721 = vpack.c.b16 %v9067, %v9065
      %v9722 = vpack.c.b16 %v9070, %v9068
      %v9723 = vpack.c.b16 %v9071, %v9069
      %v9724 = vpack.c.b16 %v9074, %v9072
      %v9725 = vpack.c.b16 %v9075, %v9073
      %v9726 = vpack.c.b16 %v9078, %v9076
      %v9727 = vpack.c.b16 %v9079, %v9077
      %v9728 = vpack.c.b16 %v9082, %v9080
      %v9729 = vpack.c.b16 %v9083, %v9081
      %v9730 = vpack.c.b16 %v9086, %v9084
      %v9731 = vpack.c.b16 %v9087, %v9085
      %v9732 = vpack.c.b16 %v9090, %v9088
      %v9733 = vpack.c.b16 %v9091, %v9089
      %v9734 = vpack.c.b16 %v9094, %v9092
      %v9735 = vpack.c.b16 %v9095, %v9093
      %v9736 = vpack.c.b16 %v9098, %v9096
      %v9737 = vpack.c.b16 %v9099, %v9097
      %v9738 = vpack.c.b16 %v9102, %v9100
      %v9739 = vpack.c.b16 %v9103, %v9101
      %v9740 = vpack.c.b16 %v9106, %v9104
      %v9741 = vpack.c.b16 %v9107, %v9105
      %v9742 = vpack.c.b16 %v9110, %v9108
      %v9743 = vpack.c.b16 %v9111, %v9109
      %v9744 = vpack.c.b16 %v9114, %v9112
      %v9745 = vpack.c.b16 %v9115, %v9113
      %v9746 = vpack.c.b16 %v9118, %v9116
      %v9747 = vpack.c.b16 %v9119, %v9117
      %v9748 = vpack.c.b16 %v9122, %v9120
      %v9749 = vpack.c.b16 %v9123, %v9121
      %v9750 = vpack.c.b16 %v9126, %v9124
      %v9751 = vpack.c.b16 %v9127, %v9125
      %v9752 = vpack.c.b16 %v9130, %v9128
      %v9753 = vpack.c.b16 %v9131, %v9129
      %v9754 = vpack.c.b16 %v9134, %v9132
      %v9755 = vpack.c.b16 %v9135, %v9133
      %v9756 = vpack.c.b16 %v9138, %v9136
      %v9757 = vpack.c.b16 %v9139, %v9137
      %v9758 = vpack.c.b16 %v9142, %v9140
      %v9759 = vpack.c.b16 %v9143, %v9141
      %v9760 = vpack.c.b16 %v9146, %v9144
      %v9761 = vpack.c.b16 %v9147, %v9145
      %v9762 = vpack.c.b16 %v9150, %v9148
      %v9763 = vpack.c.b16 %v9151, %v9149
      %v9764 = vpack.c.b16 %v9154, %v9152
      %v9765 = vpack.c.b16 %v9155, %v9153
      %v9766 = vpack.c.b16 %v9158, %v9156
      %v9767 = vpack.c.b16 %v9159, %v9157
      %v9768 = vpack.c.b16 %v9162, %v9160
      %v9769 = vpack.c.b16 %v9163, %v9161
      %v9770 = vpack.c.b16 %v9166, %v9164
      %v9771 = vpack.c.b16 %v9167, %v9165
      %v9772 = vpack.c.b16 %v9170, %v9168
      %v9773 = vpack.c.b16 %v9171, %v9169
      %v9774 = vpack.c.b16 %v9174, %v9172
      %v9775 = vpack.c.b16 %v9175, %v9173
      %v9776 = vpack.c.b16 %v9178, %v9176
      %v9777 = vpack.c.b16 %v9179, %v9177
      %v9778 = vpack.c.b16 %v9182, %v9180
      %v9779 = vpack.c.b16 %v9183, %v9181
      %v9780 = vpack.c.b16 %v9186, %v9184
      %v9781 = vpack.c.b16 %v9187, %v9185
      %v9782 = vpack.c.b16 %v9190, %v9188
      %v9783 = vpack.c.b16 %v9191, %v9189
      %v9784 = vpack.c.b16 %v9194, %v9192
      %v9785 = vpack.c.b16 %v9195, %v9193
      %v9786 = vpack.c.b16 %v9198, %v9196
      %v9787 = vpack.c.b16 %v9199, %v9197
      %v9788 = vpack.c.b16 %v9202, %v9200
      %v9789 = vpack.c.b16 %v9203, %v9201
      %v9790 = vpack.c.b16 %v9206, %v9204
      %v9791 = vpack.c.b16 %v9207, %v9205
      %v9792 = vpack.c.b16 %v9210, %v9208
      %v9793 = vpack.c.b16 %v9211, %v9209
      %v9794 = vpack.c.b16 %v9214, %v9212
      %v9795 = vpack.c.b16 %v9215, %v9213
      %v9796 = vpack.c.b16 %v9218, %v9216
      %v9797 = vpack.c.b16 %v9219, %v9217
      %v9798 = vpack.c.b16 %v9222, %v9220
      %v9799 = vpack.c.b16 %v9223, %v9221
      %v9800 = vpack.c.b16 %v9226, %v9224
      %v9801 = vpack.c.b16 %v9227, %v9225
      %v9802 = vpack.c.b16 %v9230, %v9228
      %v9803 = vpack.c.b16 %v9231, %v9229
      %v9804 = vpack.c.b16 %v9234, %v9232
      %v9805 = vpack.c.b16 %v9235, %v9233
      %v9806 = vpack.c.b16 %v9238, %v9236
      %v9807 = vpack.c.b16 %v9239, %v9237
      %v9808 = vpack.c.b16 %v9242, %v9240
      %v9809 = vpack.c.b16 %v9243, %v9241
      %v9810 = vpack.c.b16 %v9246, %v9244
      %v9811 = vpack.c.b16 %v9247, %v9245
      %v9812 = vpack.c.b16 %v9250, %v9248
      %v9813 = vpack.c.b16 %v9251, %v9249
      %v9814 = vpack.c.b16 %v9254, %v9252
      %v9815 = vpack.c.b16 %v9255, %v9253
      %v9816 = vpack.c.b16 %v9258, %v9256
      %v9817 = vpack.c.b16 %v9259, %v9257
      %v9818 = vpack.c.b16 %v9262, %v9260
      %v9819 = vpack.c.b16 %v9263, %v9261
      %v9820 = vpack.c.b16 %v9266, %v9264
      %v9821 = vpack.c.b16 %v9267, %v9265
      %v9822 = vpack.c.b16 %v9270, %v9268
      %v9823 = vpack.c.b16 %v9271, %v9269
      %v9824 = vpack.c.b16 %v9274, %v9272
      %v9825 = vpack.c.b16 %v9275, %v9273
      %v9826 = vpack.c.b16 %v9278, %v9276
      %v9827 = vpack.c.b16 %v9279, %v9277
      %v9828 = vpack.c.b16 %v9282, %v9280
      %v9829 = vpack.c.b16 %v9283, %v9281
      %v9830 = vpack.c.b16 %v9286, %v9284
      %v9831 = vpack.c.b16 %v9287, %v9285
      %v9832 = vpack.c.b16 %v9290, %v9288
      %v9833 = vpack.c.b16 %v9291, %v9289
      %v9834 = vpack.c.b16 %v9294, %v9292
      %v9835 = vpack.c.b16 %v9295, %v9293
      %v9836 = vpack.c.b16 %v9298, %v9296
      %v9837 = vpack.c.b16 %v9299, %v9297
      %v9838 = vpack.c.b16 %v9302, %v9300
      %v9839 = vpack.c.b16 %v9303, %v9301
      %v9840 = vpack.c.b16 %v9306, %v9304
      %v9841 = vpack.c.b16 %v9307, %v9305
      %v9842 = vpack.c.b16 %v9310, %v9308
      %v9843 = vpack.c.b16 %v9311, %v9309
      %v9844 = vpack.c.b16 %v9314, %v9312
      %v9845 = vpack.c.b16 %v9315, %v9313
      %v9846 = vpack.c.b16 %v9318, %v9316
      %v9847 = vpack.c.b16 %v9319, %v9317
      %v9848 = vpack.c.b16 %v9322, %v9320
      %v9849 = vpack.c.b16 %v9323, %v9321
      %v9850 = vpack.c.b16 %v9326, %v9324
      %v9851 = vpack.c.b16 %v9327, %v9325
      %v9852 = vpack.c.b16 %v9330, %v9328
      %v9853 = vpack.c.b16 %v9331, %v9329
      %v9854 = vpack.c.b16 %v9334, %v9332
      %v9855 = vpack.c.b16 %v9335, %v9333
      %v9856 = vpack.c.b16 %v9338, %v9336
      %v9857 = vpack.c.b16 %v9339, %v9337
      %v9858 = vpack.c.b16 %v9342, %v9340
      %v9859 = vpack.c.b16 %v9343, %v9341
      %v9860 = vpack.c.b16 %v9346, %v9344
      %v9861 = vpack.c.b16 %v9347, %v9345
      %v9862 = vpack.c.b16 %v9350, %v9348
      %v9863 = vpack.c.b16 %v9351, %v9349
      %v9864 = vpack.c.b16 %v9354, %v9352
      %v9865 = vpack.c.b16 %v9355, %v9353
      %v9866 = vpack.c.b16 %v9358, %v9356
      %v9867 = vpack.c.b16 %v9359, %v9357
      %v9868 = vpack.c.b16 %v9362, %v9360
      %v9869 = vpack.c.b16 %v9363, %v9361
      %v9870 = vpack.c.b16 %v9366, %v9364
      %v9871 = vpack.c.b16 %v9367, %v9365
      %v9872 = vpack.c.b16 %v9370, %v9368
      %v9873 = vpack.c.b16 %v9371, %v9369
      %v9874 = vpack.c.b16 %v9374, %v9372
      %v9875 = vpack.c.b16 %v9375, %v9373
      %v9876 = vpack.c.b16 %v9378, %v9376
      %v9877 = vpack.c.b16 %v9379, %v9377
      %v9878 = vpack.c.b16 %v9382, %v9380
      %v9879 = vpack.c.b16 %v9383, %v9381
      %v9880 = vpack.c.b16 %v9386, %v9384
      %v9881 = vpack.c.b16 %v9387, %v9385
      %v9882 = vpack.c.b16 %v9390, %v9388
      %v9883 = vpack.c.b16 %v9391, %v9389
      %v9884 = vpack.c.b16 %v9394, %v9392
      %v9885 = vpack.c.b16 %v9395, %v9393
      %v9886 = vpack.c.b16 %v9398, %v9396
      %v9887 = vpack.c.b16 %v9399, %v9397
      %v9888 = vpack.c.b16 %v9402, %v9400
      %v9889 = vpack.c.b16 %v9403, %v9401
      %v9890 = vpack.c.b16 %v9406, %v9404
      %v9891 = vpack.c.b16 %v9407, %v9405
      %v9892 = vpack.c.b16 %v9410, %v9408
      %v9893 = vpack.c.b16 %v9411, %v9409
      %v9894 = vpack.c.b16 %v9414, %v9412
      %v9895 = vpack.c.b16 %v9415, %v9413
      %v9896 = vpack.c.b16 %v9418, %v9416
      %v9897 = vpack.c.b16 %v9419, %v9417
      %v9898 = vpack.c.b16 %v9422, %v9420
      %v9899 = vpack.c.b16 %v9423, %v9421
      %v9900 = vpack.c.b16 %v9426, %v9424
      %v9901 = vpack.c.b16 %v9427, %v9425
      %v9902 = vpack.c.b16 %v9430, %v9428
      %v9903 = vpack.c.b16 %v9431, %v9429
      %v9904 = vpack.c.b16 %v9434, %v9432
      %v9905 = vpack.c.b16 %v9435, %v9433
      %v9906 = vpack.c.b16 %v9438, %v9436
      %v9907 = vpack.c.b16 %v9439, %v9437
      %v9908 = vpack.c.b16 %v9442, %v9440
      %v9909 = vpack.c.b16 %v9443, %v9441
      %v9910 = vpack.c.b16 %v9446, %v9444
      %v9911 = vpack.c.b16 %v9447, %v9445
      %v9912 = vpack.c.b16 %v9450, %v9448
      %v9913 = vpack.c.b16 %v9451, %v9449
      %v9914 = vpack.c.b16 %v9454, %v9452
      %v9915 = vpack.c.b16 %v9455, %v9453
      %v9916 = vpack.c.b16 %v9458, %v9456
      %v9917 = vpack.c.b16 %v9459, %v9457
      %v9918 = vpack.c.b16 %v9462, %v9460
      %v9919 = vpack.c.b16 %v9463, %v9461
      %v9920 = vpack.c.b16 %v9466, %v9464
      %v9921 = vpack.c.b16 %v9467, %v9465
      %v9922 = vpack.c.b16 %v9470, %v9468
      %v9923 = vpack.c.b16 %v9471, %v9469
      %v9924 = vpack.c.b16 %v9474, %v9472
      %v9925 = vpack.c.b16 %v9475, %v9473
      %v9926 = vpack.c.b16 %v9478, %v9476
      %v9927 = vpack.c.b16 %v9479, %v9477
      %10376 = vmatprep.subr.bf16.mxu0 %v9495
      %10377 = vmatpush1.bf16.msra.mxu0 %v9494
      %10378 = vmatprep.subr.bf16.mxu0 %v9493
      %10379 = vmatpush1.bf16.msra.mxu0 %v9492
      %10380 = vmatprep.subr.bf16.mxu0 %v9491
      %10381 = vmatpush1.bf16.msra.mxu0 %v9490
      %10382 = vmatprep.subr.bf16.mxu0 %v9489
      %10383 = vmatpush1.bf16.msra.mxu0 %v9488
      %10384 = vmatprep.subr.bf16.mxu0 %v9487
      %10385 = vmatpush1.bf16.msra.mxu0 %v9486
      %10386 = vmatprep.subr.bf16.mxu0 %v9485
      %10387 = vmatpush1.bf16.msra.mxu0 %v9484
      %10388 = vmatprep.subr.bf16.mxu0 %v9483
      %10389 = vmatpush1.bf16.msra.mxu0 %v9482
      %10390 = vmatprep.subr.bf16.mxu0 %v9481
      %10391 = vmatpush1.bf16.msra.mxu0 %v9480
      %10392 = vmatprep.subr.bf16.mxu0 %v9511
      %10393 = vmatpush2.bf16.msra.mxu0 %v9510
      %10394 = vmatprep.subr.bf16.mxu0 %v9509
      %10395 = vmatpush2.bf16.msra.mxu0 %v9508
      %10396 = vmatprep.subr.bf16.mxu0 %v9507
      %10397 = vmatpush2.bf16.msra.mxu0 %v9506
      %10398 = vmatprep.subr.bf16.mxu0 %v9505
      %10399 = vmatpush2.bf16.msra.mxu0 %v9504
      %10400 = vmatprep.subr.bf16.mxu0 %v9503
      %10401 = vmatpush2.bf16.msra.mxu0 %v9502
      %10402 = vmatprep.subr.bf16.mxu0 %v9501
      %10403 = vmatpush2.bf16.msra.mxu0 %v9500
      %10404 = vmatprep.subr.bf16.mxu0 %v9499
      %10405 = vmatpush2.bf16.msra.mxu0 %v9498
      %10406 = vmatprep.subr.bf16.mxu0 %v9497
      %10407 = vmatpush2.bf16.msra.mxu0 %v9496
      %10408 = vmatprep.mubr.bf16.mxu0 %v7649
      %10409 = vmatmul.mubr.bf16.gmra.mxu0 %v7648
      %v10410 = vpop.f32.mrf.mxu0
      %v10411 = vadd.f32 %v8129, %v10410
      %v10412 = vpop.f32.mrf.mxu0
      %v10413 = vadd.f32 %v8133, %v10412
      %v10414 = vpop.f32.mrf.mxu0
      %v10415 = vadd.f32 %v8129, %v10414
      %v10416 = vpop.f32.mrf.mxu0
      %v10417 = vadd.f32 %v8133, %v10416
      %10418 = vdwg.mxu0
      %10419 = vmatprep.subr.bf16.mxu0 %v9527
      %10420 = vmatpush1.bf16.msra.mxu0 %v9526
      %10421 = vmatprep.subr.bf16.mxu0 %v9525
      %10422 = vmatpush1.bf16.msra.mxu0 %v9524
      %10423 = vmatprep.subr.bf16.mxu0 %v9523
      %10424 = vmatpush1.bf16.msra.mxu0 %v9522
      %10425 = vmatprep.subr.bf16.mxu0 %v9521
      %10426 = vmatpush1.bf16.msra.mxu0 %v9520
      %10427 = vmatprep.subr.bf16.mxu0 %v9519
      %10428 = vmatpush1.bf16.msra.mxu0 %v9518
      %10429 = vmatprep.subr.bf16.mxu0 %v9517
      %10430 = vmatpush1.bf16.msra.mxu0 %v9516
      %10431 = vmatprep.subr.bf16.mxu0 %v9515
      %10432 = vmatpush1.bf16.msra.mxu0 %v9514
      %10433 = vmatprep.subr.bf16.mxu0 %v9513
      %10434 = vmatpush1.bf16.msra.mxu0 %v9512
      %10435 = vmatprep.subr.bf16.mxu0 %v9543
      %10436 = vmatpush2.bf16.msra.mxu0 %v9542
      %10437 = vmatprep.subr.bf16.mxu0 %v9541
      %10438 = vmatpush2.bf16.msra.mxu0 %v9540
      %10439 = vmatprep.subr.bf16.mxu0 %v9539
      %10440 = vmatpush2.bf16.msra.mxu0 %v9538
      %10441 = vmatprep.subr.bf16.mxu0 %v9537
      %10442 = vmatpush2.bf16.msra.mxu0 %v9536
      %10443 = vmatprep.subr.bf16.mxu0 %v9535
      %10444 = vmatpush2.bf16.msra.mxu0 %v9534
      %10445 = vmatprep.subr.bf16.mxu0 %v9533
      %10446 = vmatpush2.bf16.msra.mxu0 %v9532
      %10447 = vmatprep.subr.bf16.mxu0 %v9531
      %10448 = vmatpush2.bf16.msra.mxu0 %v9530
      %10449 = vmatprep.subr.bf16.mxu0 %v9529
      %10450 = vmatpush2.bf16.msra.mxu0 %v9528
      %10451 = vmatprep.mubr.bf16.mxu0 %v7651
      %10452 = vmatmul.mubr.bf16.gmra.mxu0 %v7650
      %v10453 = vpop.f32.mrf.mxu0
      %v10454 = vadd.f32 %v10411, %v10453
      %v10455 = vpop.f32.mrf.mxu0
      %v10456 = vadd.f32 %v10413, %v10455
      %v10457 = vpop.f32.mrf.mxu0
      %v10458 = vadd.f32 %v10415, %v10457
      %v10459 = vpop.f32.mrf.mxu0
      %v10460 = vadd.f32 %v10417, %v10459
      %10461 = vdwg.mxu0
      %10462 = vmatprep.subr.bf16.mxu0 %v9559
      %10463 = vmatpush1.bf16.msra.mxu0 %v9558
      %10464 = vmatprep.subr.bf16.mxu0 %v9557
      %10465 = vmatpush1.bf16.msra.mxu0 %v9556
      %10466 = vmatprep.subr.bf16.mxu0 %v9555
      %10467 = vmatpush1.bf16.msra.mxu0 %v9554
      %10468 = vmatprep.subr.bf16.mxu0 %v9553
      %10469 = vmatpush1.bf16.msra.mxu0 %v9552
      %10470 = vmatprep.subr.bf16.mxu0 %v9551
      %10471 = vmatpush1.bf16.msra.mxu0 %v9550
      %10472 = vmatprep.subr.bf16.mxu0 %v9549
      %10473 = vmatpush1.bf16.msra.mxu0 %v9548
      %10474 = vmatprep.subr.bf16.mxu0 %v9547
      %10475 = vmatpush1.bf16.msra.mxu0 %v9546
      %10476 = vmatprep.subr.bf16.mxu0 %v9545
      %10477 = vmatpush1.bf16.msra.mxu0 %v9544
      %10478 = vmatprep.subr.bf16.mxu0 %v9575
      %10479 = vmatpush2.bf16.msra.mxu0 %v9574
      %10480 = vmatprep.subr.bf16.mxu0 %v9573
      %10481 = vmatpush2.bf16.msra.mxu0 %v9572
      %10482 = vmatprep.subr.bf16.mxu0 %v9571
      %10483 = vmatpush2.bf16.msra.mxu0 %v9570
      %10484 = vmatprep.subr.bf16.mxu0 %v9569
      %10485 = vmatpush2.bf16.msra.mxu0 %v9568
      %10486 = vmatprep.subr.bf16.mxu0 %v9567
      %10487 = vmatpush2.bf16.msra.mxu0 %v9566
      %10488 = vmatprep.subr.bf16.mxu0 %v9565
      %10489 = vmatpush2.bf16.msra.mxu0 %v9564
      %10490 = vmatprep.subr.bf16.mxu0 %v9563
      %10491 = vmatpush2.bf16.msra.mxu0 %v9562
      %10492 = vmatprep.subr.bf16.mxu0 %v9561
      %10493 = vmatpush2.bf16.msra.mxu0 %v9560
      %10494 = vmatprep.mubr.bf16.mxu0 %v7653
      %10495 = vmatmul.mubr.bf16.gmra.mxu0 %v7652
      %v10496 = vpop.f32.mrf.mxu0
      %v10497 = vadd.f32 %v10454, %v10496
      %v10498 = vpop.f32.mrf.mxu0
      %v10499 = vadd.f32 %v10456, %v10498
      %v10500 = vpop.f32.mrf.mxu0
      %v10501 = vadd.f32 %v10458, %v10500
      %v10502 = vpop.f32.mrf.mxu0
      %v10503 = vadd.f32 %v10460, %v10502
      %10504 = vdwg.mxu0
      %10505 = vmatprep.subr.bf16.mxu0 %v9591
      %10506 = vmatpush1.bf16.msra.mxu0 %v9590
      %10507 = vmatprep.subr.bf16.mxu0 %v9589
      %10508 = vmatpush1.bf16.msra.mxu0 %v9588
      %10509 = vmatprep.subr.bf16.mxu0 %v9587
      %10510 = vmatpush1.bf16.msra.mxu0 %v9586
      %10511 = vmatprep.subr.bf16.mxu0 %v9585
      %10512 = vmatpush1.bf16.msra.mxu0 %v9584
      %10513 = vmatprep.subr.bf16.mxu0 %v9583
      %10514 = vmatpush1.bf16.msra.mxu0 %v9582
      %10515 = vmatprep.subr.bf16.mxu0 %v9581
      %10516 = vmatpush1.bf16.msra.mxu0 %v9580
      %10517 = vmatprep.subr.bf16.mxu0 %v9579
      %10518 = vmatpush1.bf16.msra.mxu0 %v9578
      %10519 = vmatprep.subr.bf16.mxu0 %v9577
      %10520 = vmatpush1.bf16.msra.mxu0 %v9576
      %10521 = vmatprep.subr.bf16.mxu0 %v9607
      %10522 = vmatpush2.bf16.msra.mxu0 %v9606
      %10523 = vmatprep.subr.bf16.mxu0 %v9605
      %10524 = vmatpush2.bf16.msra.mxu0 %v9604
      %10525 = vmatprep.subr.bf16.mxu0 %v9603
      %10526 = vmatpush2.bf16.msra.mxu0 %v9602
      %10527 = vmatprep.subr.bf16.mxu0 %v9601
      %10528 = vmatpush2.bf16.msra.mxu0 %v9600
      %10529 = vmatprep.subr.bf16.mxu0 %v9599
      %10530 = vmatpush2.bf16.msra.mxu0 %v9598
      %10531 = vmatprep.subr.bf16.mxu0 %v9597
      %10532 = vmatpush2.bf16.msra.mxu0 %v9596
      %10533 = vmatprep.subr.bf16.mxu0 %v9595
      %10534 = vmatpush2.bf16.msra.mxu0 %v9594
      %10535 = vmatprep.subr.bf16.mxu0 %v9593
      %10536 = vmatpush2.bf16.msra.mxu0 %v9592
      %10537 = vmatprep.mubr.bf16.mxu0 %v7655
      %10538 = vmatmul.mubr.bf16.gmra.mxu0 %v7654
      %v10539 = vpop.f32.mrf.mxu0
      %v10540 = vadd.f32 %v10497, %v10539
      %v10541 = vpop.f32.mrf.mxu0
      %v10542 = vadd.f32 %v10499, %v10541
      %v10543 = vpop.f32.mrf.mxu0
      %v10544 = vadd.f32 %v10501, %v10543
      %v10545 = vpop.f32.mrf.mxu0
      %v10546 = vadd.f32 %v10503, %v10545
      %10547 = vdwg.mxu0
      %10548 = vmatprep.subr.bf16.mxu0 %v9623
      %10549 = vmatpush1.bf16.msra.mxu0 %v9622
      %10550 = vmatprep.subr.bf16.mxu0 %v9621
      %10551 = vmatpush1.bf16.msra.mxu0 %v9620
      %10552 = vmatprep.subr.bf16.mxu0 %v9619
      %10553 = vmatpush1.bf16.msra.mxu0 %v9618
      %10554 = vmatprep.subr.bf16.mxu0 %v9617
      %10555 = vmatpush1.bf16.msra.mxu0 %v9616
      %10556 = vmatprep.subr.bf16.mxu0 %v9615
      %10557 = vmatpush1.bf16.msra.mxu0 %v9614
      %10558 = vmatprep.subr.bf16.mxu0 %v9613
      %10559 = vmatpush1.bf16.msra.mxu0 %v9612
      %10560 = vmatprep.subr.bf16.mxu0 %v9611
      %10561 = vmatpush1.bf16.msra.mxu0 %v9610
      %10562 = vmatprep.subr.bf16.mxu0 %v9609
      %10563 = vmatpush1.bf16.msra.mxu0 %v9608
      %10564 = vmatprep.subr.bf16.mxu0 %v9639
      %10565 = vmatpush2.bf16.msra.mxu0 %v9638
      %10566 = vmatprep.subr.bf16.mxu0 %v9637
      %10567 = vmatpush2.bf16.msra.mxu0 %v9636
      %10568 = vmatprep.subr.bf16.mxu0 %v9635
      %10569 = vmatpush2.bf16.msra.mxu0 %v9634
      %10570 = vmatprep.subr.bf16.mxu0 %v9633
      %10571 = vmatpush2.bf16.msra.mxu0 %v9632
      %10572 = vmatprep.subr.bf16.mxu0 %v9631
      %10573 = vmatpush2.bf16.msra.mxu0 %v9630
      %10574 = vmatprep.subr.bf16.mxu0 %v9629
      %10575 = vmatpush2.bf16.msra.mxu0 %v9628
      %10576 = vmatprep.subr.bf16.mxu0 %v9627
      %10577 = vmatpush2.bf16.msra.mxu0 %v9626
      %10578 = vmatprep.subr.bf16.mxu0 %v9625
      %10579 = vmatpush2.bf16.msra.mxu0 %v9624
      %10580 = vmatprep.mubr.bf16.mxu0 %v7657
      %10581 = vmatmul.mubr.bf16.gmra.mxu0 %v7656
      %v10582 = vpop.f32.mrf.mxu0
      %v10583 = vadd.f32 %v10540, %v10582
      %v10584 = vpop.f32.mrf.mxu0
      %v10585 = vadd.f32 %v10542, %v10584
      %v10586 = vpop.f32.mrf.mxu0
      %v10587 = vadd.f32 %v10544, %v10586
      %v10588 = vpop.f32.mrf.mxu0
      %v10589 = vadd.f32 %v10546, %v10588
      %10590 = vdwg.mxu0
      %10591 = vmatprep.subr.bf16.mxu0 %v9655
      %10592 = vmatpush1.bf16.msra.mxu0 %v9654
      %10593 = vmatprep.subr.bf16.mxu0 %v9653
      %10594 = vmatpush1.bf16.msra.mxu0 %v9652
      %10595 = vmatprep.subr.bf16.mxu0 %v9651
      %10596 = vmatpush1.bf16.msra.mxu0 %v9650
      %10597 = vmatprep.subr.bf16.mxu0 %v9649
      %10598 = vmatpush1.bf16.msra.mxu0 %v9648
      %10599 = vmatprep.subr.bf16.mxu0 %v9647
      %10600 = vmatpush1.bf16.msra.mxu0 %v9646
      %10601 = vmatprep.subr.bf16.mxu0 %v9645
      %10602 = vmatpush1.bf16.msra.mxu0 %v9644
      %10603 = vmatprep.subr.bf16.mxu0 %v9643
      %10604 = vmatpush1.bf16.msra.mxu0 %v9642
      %10605 = vmatprep.subr.bf16.mxu0 %v9641
      %10606 = vmatpush1.bf16.msra.mxu0 %v9640
      %10607 = vmatprep.subr.bf16.mxu0 %v9671
      %10608 = vmatpush2.bf16.msra.mxu0 %v9670
      %10609 = vmatprep.subr.bf16.mxu0 %v9669
      %10610 = vmatpush2.bf16.msra.mxu0 %v9668
      %10611 = vmatprep.subr.bf16.mxu0 %v9667
      %10612 = vmatpush2.bf16.msra.mxu0 %v9666
      %10613 = vmatprep.subr.bf16.mxu0 %v9665
      %10614 = vmatpush2.bf16.msra.mxu0 %v9664
      %10615 = vmatprep.subr.bf16.mxu0 %v9663
      %10616 = vmatpush2.bf16.msra.mxu0 %v9662
      %10617 = vmatprep.subr.bf16.mxu0 %v9661
      %10618 = vmatpush2.bf16.msra.mxu0 %v9660
      %10619 = vmatprep.subr.bf16.mxu0 %v9659
      %10620 = vmatpush2.bf16.msra.mxu0 %v9658
      %10621 = vmatprep.subr.bf16.mxu0 %v9657
      %10622 = vmatpush2.bf16.msra.mxu0 %v9656
      %10623 = vmatprep.mubr.bf16.mxu0 %v7659
      %10624 = vmatmul.mubr.bf16.gmra.mxu0 %v7658
      %v10625 = vpop.f32.mrf.mxu0
      %v10626 = vadd.f32 %v10583, %v10625
      %v10627 = vpop.f32.mrf.mxu0
      %v10628 = vadd.f32 %v10585, %v10627
      %v10629 = vpop.f32.mrf.mxu0
      %v10630 = vadd.f32 %v10587, %v10629
      %v10631 = vpop.f32.mrf.mxu0
      %v10632 = vadd.f32 %v10589, %v10631
      %10633 = vdwg.mxu0
      %10634 = vmatprep.subr.bf16.mxu0 %v9687
      %10635 = vmatpush1.bf16.msra.mxu0 %v9686
      %10636 = vmatprep.subr.bf16.mxu0 %v9685
      %10637 = vmatpush1.bf16.msra.mxu0 %v9684
      %10638 = vmatprep.subr.bf16.mxu0 %v9683
      %10639 = vmatpush1.bf16.msra.mxu0 %v9682
      %10640 = vmatprep.subr.bf16.mxu0 %v9681
      %10641 = vmatpush1.bf16.msra.mxu0 %v9680
      %10642 = vmatprep.subr.bf16.mxu0 %v9679
      %10643 = vmatpush1.bf16.msra.mxu0 %v9678
      %10644 = vmatprep.subr.bf16.mxu0 %v9677
      %10645 = vmatpush1.bf16.msra.mxu0 %v9676
      %10646 = vmatprep.subr.bf16.mxu0 %v9675
      %10647 = vmatpush1.bf16.msra.mxu0 %v9674
      %10648 = vmatprep.subr.bf16.mxu0 %v9673
      %10649 = vmatpush1.bf16.msra.mxu0 %v9672
      %10650 = vmatprep.subr.bf16.mxu0 %v9703
      %10651 = vmatpush2.bf16.msra.mxu0 %v9702
      %10652 = vmatprep.subr.bf16.mxu0 %v9701
      %10653 = vmatpush2.bf16.msra.mxu0 %v9700
      %10654 = vmatprep.subr.bf16.mxu0 %v9699
      %10655 = vmatpush2.bf16.msra.mxu0 %v9698
      %10656 = vmatprep.subr.bf16.mxu0 %v9697
      %10657 = vmatpush2.bf16.msra.mxu0 %v9696
      %10658 = vmatprep.subr.bf16.mxu0 %v9695
      %10659 = vmatpush2.bf16.msra.mxu0 %v9694
      %10660 = vmatprep.subr.bf16.mxu0 %v9693
      %10661 = vmatpush2.bf16.msra.mxu0 %v9692
      %10662 = vmatprep.subr.bf16.mxu0 %v9691
      %10663 = vmatpush2.bf16.msra.mxu0 %v9690
      %10664 = vmatprep.subr.bf16.mxu0 %v9689
      %10665 = vmatpush2.bf16.msra.mxu0 %v9688
      %10666 = vmatprep.mubr.bf16.mxu0 %v7661
      %10667 = vmatmul.mubr.bf16.gmra.mxu0 %v7660
      %v10668 = vpop.f32.mrf.mxu0
      %v10669 = vadd.f32 %v10626, %v10668
      %v10670 = vpop.f32.mrf.mxu0
      %v10671 = vadd.f32 %v10628, %v10670
      %v10672 = vpop.f32.mrf.mxu0
      %v10673 = vadd.f32 %v10630, %v10672
      %v10674 = vpop.f32.mrf.mxu0
      %v10675 = vadd.f32 %v10632, %v10674
      %10676 = vdwg.mxu0
      %10677 = vmatprep.subr.bf16.mxu0 %v9719
      %10678 = vmatpush1.bf16.msra.mxu0 %v9718
      %10679 = vmatprep.subr.bf16.mxu0 %v9717
      %10680 = vmatpush1.bf16.msra.mxu0 %v9716
      %10681 = vmatprep.subr.bf16.mxu0 %v9715
      %10682 = vmatpush1.bf16.msra.mxu0 %v9714
      %10683 = vmatprep.subr.bf16.mxu0 %v9713
      %10684 = vmatpush1.bf16.msra.mxu0 %v9712
      %10685 = vmatprep.subr.bf16.mxu0 %v9711
      %10686 = vmatpush1.bf16.msra.mxu0 %v9710
      %10687 = vmatprep.subr.bf16.mxu0 %v9709
      %10688 = vmatpush1.bf16.msra.mxu0 %v9708
      %10689 = vmatprep.subr.bf16.mxu0 %v9707
      %10690 = vmatpush1.bf16.msra.mxu0 %v9706
      %10691 = vmatprep.subr.bf16.mxu0 %v9705
      %10692 = vmatpush1.bf16.msra.mxu0 %v9704
      %10693 = vmatprep.subr.bf16.mxu0 %v9735
      %10694 = vmatpush2.bf16.msra.mxu0 %v9734
      %10695 = vmatprep.subr.bf16.mxu0 %v9733
      %10696 = vmatpush2.bf16.msra.mxu0 %v9732
      %10697 = vmatprep.subr.bf16.mxu0 %v9731
      %10698 = vmatpush2.bf16.msra.mxu0 %v9730
      %10699 = vmatprep.subr.bf16.mxu0 %v9729
      %10700 = vmatpush2.bf16.msra.mxu0 %v9728
      %10701 = vmatprep.subr.bf16.mxu0 %v9727
      %10702 = vmatpush2.bf16.msra.mxu0 %v9726
      %10703 = vmatprep.subr.bf16.mxu0 %v9725
      %10704 = vmatpush2.bf16.msra.mxu0 %v9724
      %10705 = vmatprep.subr.bf16.mxu0 %v9723
      %10706 = vmatpush2.bf16.msra.mxu0 %v9722
      %10707 = vmatprep.subr.bf16.mxu0 %v9721
      %10708 = vmatpush2.bf16.msra.mxu0 %v9720
      %10709 = vmatprep.mubr.bf16.mxu0 %v7663
      %10710 = vmatmul.mubr.bf16.gmra.mxu0 %v7662
      %v10711 = vpop.f32.mrf.mxu0
      %v10712 = vadd.f32 %v10669, %v10711
      %v10713 = vpop.f32.mrf.mxu0
      %v10714 = vadd.f32 %v10671, %v10713
      %v10715 = vpop.f32.mrf.mxu0
      %v10716 = vadd.f32 %v10673, %v10715
      %v10717 = vpop.f32.mrf.mxu0
      %v10718 = vadd.f32 %v10675, %v10717
      %10719 = vdwg.mxu0
      %10720 = vmatprep.subr.bf16.mxu0 %v9751
      %10721 = vmatpush1.bf16.msra.mxu0 %v9750
      %10722 = vmatprep.subr.bf16.mxu0 %v9749
      %10723 = vmatpush1.bf16.msra.mxu0 %v9748
      %10724 = vmatprep.subr.bf16.mxu0 %v9747
      %10725 = vmatpush1.bf16.msra.mxu0 %v9746
      %10726 = vmatprep.subr.bf16.mxu0 %v9745
      %10727 = vmatpush1.bf16.msra.mxu0 %v9744
      %10728 = vmatprep.subr.bf16.mxu0 %v9743
      %10729 = vmatpush1.bf16.msra.mxu0 %v9742
      %10730 = vmatprep.subr.bf16.mxu0 %v9741
      %10731 = vmatpush1.bf16.msra.mxu0 %v9740
      %10732 = vmatprep.subr.bf16.mxu0 %v9739
      %10733 = vmatpush1.bf16.msra.mxu0 %v9738
      %10734 = vmatprep.subr.bf16.mxu0 %v9737
      %10735 = vmatpush1.bf16.msra.mxu0 %v9736
      %10736 = vmatprep.subr.bf16.mxu0 %v9767
      %10737 = vmatpush2.bf16.msra.mxu0 %v9766
      %10738 = vmatprep.subr.bf16.mxu0 %v9765
      %10739 = vmatpush2.bf16.msra.mxu0 %v9764
      %10740 = vmatprep.subr.bf16.mxu0 %v9763
      %10741 = vmatpush2.bf16.msra.mxu0 %v9762
      %10742 = vmatprep.subr.bf16.mxu0 %v9761
      %10743 = vmatpush2.bf16.msra.mxu0 %v9760
      %10744 = vmatprep.subr.bf16.mxu0 %v9759
      %10745 = vmatpush2.bf16.msra.mxu0 %v9758
      %10746 = vmatprep.subr.bf16.mxu0 %v9757
      %10747 = vmatpush2.bf16.msra.mxu0 %v9756
      %10748 = vmatprep.subr.bf16.mxu0 %v9755
      %10749 = vmatpush2.bf16.msra.mxu0 %v9754
      %10750 = vmatprep.subr.bf16.mxu0 %v9753
      %10751 = vmatpush2.bf16.msra.mxu0 %v9752
      %10752 = vmatprep.mubr.bf16.mxu0 %v7665
      %10753 = vmatmul.mubr.bf16.gmra.mxu0 %v7664
      %v10754 = vpop.f32.mrf.mxu0
      %v10755 = vadd.f32 %v10712, %v10754
      %v10756 = vpop.f32.mrf.mxu0
      %v10757 = vadd.f32 %v10714, %v10756
      %v10758 = vpop.f32.mrf.mxu0
      %v10759 = vadd.f32 %v10716, %v10758
      %v10760 = vpop.f32.mrf.mxu0
      %v10761 = vadd.f32 %v10718, %v10760
      %10762 = vdwg.mxu0
      %10763 = vmatprep.subr.bf16.mxu0 %v9783
      %10764 = vmatpush1.bf16.msra.mxu0 %v9782
      %10765 = vmatprep.subr.bf16.mxu0 %v9781
      %10766 = vmatpush1.bf16.msra.mxu0 %v9780
      %10767 = vmatprep.subr.bf16.mxu0 %v9779
      %10768 = vmatpush1.bf16.msra.mxu0 %v9778
      %10769 = vmatprep.subr.bf16.mxu0 %v9777
      %10770 = vmatpush1.bf16.msra.mxu0 %v9776
      %10771 = vmatprep.subr.bf16.mxu0 %v9775
      %10772 = vmatpush1.bf16.msra.mxu0 %v9774
      %10773 = vmatprep.subr.bf16.mxu0 %v9773
      %10774 = vmatpush1.bf16.msra.mxu0 %v9772
      %10775 = vmatprep.subr.bf16.mxu0 %v9771
      %10776 = vmatpush1.bf16.msra.mxu0 %v9770
      %10777 = vmatprep.subr.bf16.mxu0 %v9769
      %10778 = vmatpush1.bf16.msra.mxu0 %v9768
      %10779 = vmatprep.subr.bf16.mxu0 %v9799
      %10780 = vmatpush2.bf16.msra.mxu0 %v9798
      %10781 = vmatprep.subr.bf16.mxu0 %v9797
      %10782 = vmatpush2.bf16.msra.mxu0 %v9796
      %10783 = vmatprep.subr.bf16.mxu0 %v9795
      %10784 = vmatpush2.bf16.msra.mxu0 %v9794
      %10785 = vmatprep.subr.bf16.mxu0 %v9793
      %10786 = vmatpush2.bf16.msra.mxu0 %v9792
      %10787 = vmatprep.subr.bf16.mxu0 %v9791
      %10788 = vmatpush2.bf16.msra.mxu0 %v9790
      %10789 = vmatprep.subr.bf16.mxu0 %v9789
      %10790 = vmatpush2.bf16.msra.mxu0 %v9788
      %10791 = vmatprep.subr.bf16.mxu0 %v9787
      %10792 = vmatpush2.bf16.msra.mxu0 %v9786
      %10793 = vmatprep.subr.bf16.mxu0 %v9785
      %10794 = vmatpush2.bf16.msra.mxu0 %v9784
      %10795 = vmatprep.mubr.bf16.mxu0 %v7667
      %10796 = vmatmul.mubr.bf16.gmra.mxu0 %v7666
      %v10797 = vpop.f32.mrf.mxu0
      %v10798 = vadd.f32 %v10755, %v10797
      %v10799 = vpop.f32.mrf.mxu0
      %v10800 = vadd.f32 %v10757, %v10799
      %v10801 = vpop.f32.mrf.mxu0
      %v10802 = vadd.f32 %v10759, %v10801
      %v10803 = vpop.f32.mrf.mxu0
      %v10804 = vadd.f32 %v10761, %v10803
      %10805 = vdwg.mxu0
      %10806 = vmatprep.subr.bf16.mxu0 %v9815
      %10807 = vmatpush1.bf16.msra.mxu0 %v9814
      %10808 = vmatprep.subr.bf16.mxu0 %v9813
      %10809 = vmatpush1.bf16.msra.mxu0 %v9812
      %10810 = vmatprep.subr.bf16.mxu0 %v9811
      %10811 = vmatpush1.bf16.msra.mxu0 %v9810
      %10812 = vmatprep.subr.bf16.mxu0 %v9809
      %10813 = vmatpush1.bf16.msra.mxu0 %v9808
      %10814 = vmatprep.subr.bf16.mxu0 %v9807
      %10815 = vmatpush1.bf16.msra.mxu0 %v9806
      %10816 = vmatprep.subr.bf16.mxu0 %v9805
      %10817 = vmatpush1.bf16.msra.mxu0 %v9804
      %10818 = vmatprep.subr.bf16.mxu0 %v9803
      %10819 = vmatpush1.bf16.msra.mxu0 %v9802
      %10820 = vmatprep.subr.bf16.mxu0 %v9801
      %10821 = vmatpush1.bf16.msra.mxu0 %v9800
      %10822 = vmatprep.subr.bf16.mxu0 %v9831
      %10823 = vmatpush2.bf16.msra.mxu0 %v9830
      %10824 = vmatprep.subr.bf16.mxu0 %v9829
      %10825 = vmatpush2.bf16.msra.mxu0 %v9828
      %10826 = vmatprep.subr.bf16.mxu0 %v9827
      %10827 = vmatpush2.bf16.msra.mxu0 %v9826
      %10828 = vmatprep.subr.bf16.mxu0 %v9825
      %10829 = vmatpush2.bf16.msra.mxu0 %v9824
      %10830 = vmatprep.subr.bf16.mxu0 %v9823
      %10831 = vmatpush2.bf16.msra.mxu0 %v9822
      %10832 = vmatprep.subr.bf16.mxu0 %v9821
      %10833 = vmatpush2.bf16.msra.mxu0 %v9820
      %10834 = vmatprep.subr.bf16.mxu0 %v9819
      %10835 = vmatpush2.bf16.msra.mxu0 %v9818
      %10836 = vmatprep.subr.bf16.mxu0 %v9817
      %10837 = vmatpush2.bf16.msra.mxu0 %v9816
      %10838 = vmatprep.mubr.bf16.mxu0 %v7669
      %10839 = vmatmul.mubr.bf16.gmra.mxu0 %v7668
      %v10840 = vpop.f32.mrf.mxu0
      %v10841 = vadd.f32 %v10798, %v10840
      %v10842 = vpop.f32.mrf.mxu0
      %v10843 = vadd.f32 %v10800, %v10842
      %v10844 = vpop.f32.mrf.mxu0
      %v10845 = vadd.f32 %v10802, %v10844
      %v10846 = vpop.f32.mrf.mxu0
      %v10847 = vadd.f32 %v10804, %v10846
      %10848 = vdwg.mxu0
      %10849 = vmatprep.subr.bf16.mxu0 %v9847
      %10850 = vmatpush1.bf16.msra.mxu0 %v9846
      %10851 = vmatprep.subr.bf16.mxu0 %v9845
      %10852 = vmatpush1.bf16.msra.mxu0 %v9844
      %10853 = vmatprep.subr.bf16.mxu0 %v9843
      %10854 = vmatpush1.bf16.msra.mxu0 %v9842
      %10855 = vmatprep.subr.bf16.mxu0 %v9841
      %10856 = vmatpush1.bf16.msra.mxu0 %v9840
      %10857 = vmatprep.subr.bf16.mxu0 %v9839
      %10858 = vmatpush1.bf16.msra.mxu0 %v9838
      %10859 = vmatprep.subr.bf16.mxu0 %v9837
      %10860 = vmatpush1.bf16.msra.mxu0 %v9836
      %10861 = vmatprep.subr.bf16.mxu0 %v9835
      %10862 = vmatpush1.bf16.msra.mxu0 %v9834
      %10863 = vmatprep.subr.bf16.mxu0 %v9833
      %10864 = vmatpush1.bf16.msra.mxu0 %v9832
      %10865 = vmatprep.subr.bf16.mxu0 %v9863
      %10866 = vmatpush2.bf16.msra.mxu0 %v9862
      %10867 = vmatprep.subr.bf16.mxu0 %v9861
      %10868 = vmatpush2.bf16.msra.mxu0 %v9860
      %10869 = vmatprep.subr.bf16.mxu0 %v9859
      %10870 = vmatpush2.bf16.msra.mxu0 %v9858
      %10871 = vmatprep.subr.bf16.mxu0 %v9857
      %10872 = vmatpush2.bf16.msra.mxu0 %v9856
      %10873 = vmatprep.subr.bf16.mxu0 %v9855
      %10874 = vmatpush2.bf16.msra.mxu0 %v9854
      %10875 = vmatprep.subr.bf16.mxu0 %v9853
      %10876 = vmatpush2.bf16.msra.mxu0 %v9852
      %10877 = vmatprep.subr.bf16.mxu0 %v9851
      %10878 = vmatpush2.bf16.msra.mxu0 %v9850
      %10879 = vmatprep.subr.bf16.mxu0 %v9849
      %10880 = vmatpush2.bf16.msra.mxu0 %v9848
      %10881 = vmatprep.mubr.bf16.mxu0 %v7671
      %10882 = vmatmul.mubr.bf16.gmra.mxu0 %v7670
      %v10883 = vpop.f32.mrf.mxu0
      %v10884 = vadd.f32 %v10841, %v10883
      %v10885 = vpop.f32.mrf.mxu0
      %v10886 = vadd.f32 %v10843, %v10885
      %v10887 = vpop.f32.mrf.mxu0
      %v10888 = vadd.f32 %v10845, %v10887
      %v10889 = vpop.f32.mrf.mxu0
      %v10890 = vadd.f32 %v10847, %v10889
      %10891 = vdwg.mxu0
      %10892 = vmatprep.subr.bf16.mxu0 %v9879
      %10893 = vmatpush1.bf16.msra.mxu0 %v9878
      %10894 = vmatprep.subr.bf16.mxu0 %v9877
      %10895 = vmatpush1.bf16.msra.mxu0 %v9876
      %10896 = vmatprep.subr.bf16.mxu0 %v9875
      %10897 = vmatpush1.bf16.msra.mxu0 %v9874
      %10898 = vmatprep.subr.bf16.mxu0 %v9873
      %10899 = vmatpush1.bf16.msra.mxu0 %v9872
      %10900 = vmatprep.subr.bf16.mxu0 %v9871
      %10901 = vmatpush1.bf16.msra.mxu0 %v9870
      %10902 = vmatprep.subr.bf16.mxu0 %v9869
      %10903 = vmatpush1.bf16.msra.mxu0 %v9868
      %10904 = vmatprep.subr.bf16.mxu0 %v9867
      %10905 = vmatpush1.bf16.msra.mxu0 %v9866
      %10906 = vmatprep.subr.bf16.mxu0 %v9865
      %10907 = vmatpush1.bf16.msra.mxu0 %v9864
      %10908 = vmatprep.subr.bf16.mxu0 %v9895
      %10909 = vmatpush2.bf16.msra.mxu0 %v9894
      %10910 = vmatprep.subr.bf16.mxu0 %v9893
      %10911 = vmatpush2.bf16.msra.mxu0 %v9892
      %10912 = vmatprep.subr.bf16.mxu0 %v9891
      %10913 = vmatpush2.bf16.msra.mxu0 %v9890
      %10914 = vmatprep.subr.bf16.mxu0 %v9889
      %10915 = vmatpush2.bf16.msra.mxu0 %v9888
      %10916 = vmatprep.subr.bf16.mxu0 %v9887
      %10917 = vmatpush2.bf16.msra.mxu0 %v9886
      %10918 = vmatprep.subr.bf16.mxu0 %v9885
      %10919 = vmatpush2.bf16.msra.mxu0 %v9884
      %10920 = vmatprep.subr.bf16.mxu0 %v9883
      %10921 = vmatpush2.bf16.msra.mxu0 %v9882
      %10922 = vmatprep.subr.bf16.mxu0 %v9881
      %10923 = vmatpush2.bf16.msra.mxu0 %v9880
      %10924 = vmatprep.mubr.bf16.mxu0 %v7673
      %10925 = vmatmul.mubr.bf16.gmra.mxu0 %v7672
      %v10926 = vpop.f32.mrf.mxu0
      %v10927 = vadd.f32 %v10884, %v10926
      %v10928 = vpop.f32.mrf.mxu0
      %v10929 = vadd.f32 %v10886, %v10928
      %v10930 = vpop.f32.mrf.mxu0
      %v10931 = vadd.f32 %v10888, %v10930
      %v10932 = vpop.f32.mrf.mxu0
      %v10933 = vadd.f32 %v10890, %v10932
      %10934 = vdwg.mxu0
      %10935 = vmatprep.subr.bf16.mxu0 %v9911
      %10936 = vmatpush1.bf16.msra.mxu0 %v9910
      %10937 = vmatprep.subr.bf16.mxu0 %v9909
      %10938 = vmatpush1.bf16.msra.mxu0 %v9908
      %10939 = vmatprep.subr.bf16.mxu0 %v9907
      %10940 = vmatpush1.bf16.msra.mxu0 %v9906
      %10941 = vmatprep.subr.bf16.mxu0 %v9905
      %10942 = vmatpush1.bf16.msra.mxu0 %v9904
      %10943 = vmatprep.subr.bf16.mxu0 %v9903
      %10944 = vmatpush1.bf16.msra.mxu0 %v9902
      %10945 = vmatprep.subr.bf16.mxu0 %v9901
      %10946 = vmatpush1.bf16.msra.mxu0 %v9900
      %10947 = vmatprep.subr.bf16.mxu0 %v9899
      %10948 = vmatpush1.bf16.msra.mxu0 %v9898
      %10949 = vmatprep.subr.bf16.mxu0 %v9897
      %10950 = vmatpush1.bf16.msra.mxu0 %v9896
      %10951 = vmatprep.subr.bf16.mxu0 %v9927
      %10952 = vmatpush2.bf16.msra.mxu0 %v9926
      %10953 = vmatprep.subr.bf16.mxu0 %v9925
      %10954 = vmatpush2.bf16.msra.mxu0 %v9924
      %10955 = vmatprep.subr.bf16.mxu0 %v9923
      %10956 = vmatpush2.bf16.msra.mxu0 %v9922
      %10957 = vmatprep.subr.bf16.mxu0 %v9921
      %10958 = vmatpush2.bf16.msra.mxu0 %v9920
      %10959 = vmatprep.subr.bf16.mxu0 %v9919
      %10960 = vmatpush2.bf16.msra.mxu0 %v9918
      %10961 = vmatprep.subr.bf16.mxu0 %v9917
      %10962 = vmatpush2.bf16.msra.mxu0 %v9916
      %10963 = vmatprep.subr.bf16.mxu0 %v9915
      %10964 = vmatpush2.bf16.msra.mxu0 %v9914
      %10965 = vmatprep.subr.bf16.mxu0 %v9913
      %10966 = vmatpush2.bf16.msra.mxu0 %v9912
      %10967 = vmatprep.mubr.bf16.mxu0 %v7675
      %10968 = vmatmul.mubr.bf16.gmra.mxu0 %v7674
      %v10969 = vpop.f32.mrf.mxu0
      %v10970 = vadd.f32 %v10927, %v10969
      %v10971 = vpop.f32.mrf.mxu0
      %v10972 = vadd.f32 %v10929, %v10971
      %v10973 = vpop.f32.mrf.mxu0
      %v10974 = vadd.f32 %v10931, %v10973
      %v10975 = vpop.f32.mrf.mxu0
      %v10976 = vadd.f32 %v10933, %v10975
      %10977 = vdwg.mxu0
      %vm10978 = vcmp.ge.f32.partialorder %v10970, 0.0
      %vm10979 = vcmp.ge.f32.partialorder %v10972, 0.0
      %vm10980 = vcmp.ge.f32.partialorder %v10974, 0.0
      %vm10981 = vcmp.ge.f32.partialorder %v10976, 0.0
      %v10982 = vmul.f32 %v10970, 0.2
      %v10983 = vmul.f32 %v10972, 0.2
      %v10984 = vmul.f32 %v10974, 0.2
      %v10985 = vmul.f32 %v10976, 0.2
      %v10986 = vsel %vm10978, %v10970, %v10982
      %v10987 = vsel %vm10979, %v10972, %v10983
      %v10988 = vsel %vm10980, %v10974, %v10984
      %v10989 = vsel %vm10981, %v10976, %v10985
      %v10990 = vld [vmem:[%s9] sm:$0xff]
      %v10991 = vld [vmem:[%s9 + $0x8] sm:$0xff]
      %v10992 = vld [vmem:[%s9 + $0x10] sm:$0xff]
      %v10993 = vld [vmem:[%s9 + $0x18] sm:$0xff]
      %v10994 = vmul.f32 %v10986, %v10990
      %v10995 = vmul.f32 %v10987, %v10991
      %v10996 = vmul.f32 %v10988, %v10992
      %v10997 = vmul.f32 %v10989, %v10993
      %v10998 = vadd.f32 %v10994, %v10996
      %v10999 = vrot.slane %v10998, 4
      %v11000 = vadd.f32 %v10998, %v10999
      %v11001 = vrot.slane %v11000, 2
      %v11002 = vadd.f32 %v11000, %v11001
      %v11003 = vrot.slane %v11002, 1
      %v11004 = vadd.f32 %v11002, %v11003
      %v11005 = vadd.f32 %v10995, %v10997
      %v11006 = vrot.slane %v11005, 4
      %v11007 = vadd.f32 %v11005, %v11006
      %v11008 = vrot.slane %v11007, 2
      %v11009 = vadd.f32 %v11007, %v11008
      %v11010 = vrot.slane %v11009, 1
      %v11011 = vadd.f32 %v11009, %v11010
      %v11012 = vadd.f32 %v11004, %v11011
      %11013 = vadd.xlane.f32.xlu0 %v11012
      %v11014 = vpop.xlane.xlu0 %11013
      %v11015 = vld [vmem:[#allocation5] sm:$0x1]
      %v11016 = vadd.f32 %v11014, %v11015
      %vm11017 = vcmask 0
      %11018 = vst.msk [vmem:[%s384] sm:$0x1] %vm11017, %v11016
      %p11019 = scmp.lt.s32.totalorder %s24, 1
      %s11020 = scalar_select %p11019, %s24, 1
      %s11021 = scalar_lea.vmem %s11, %s11020
      // Predicated region
      $region65: #{discriminator_forward.1} parent=63 // pred_check
        %p11022 = pneg %p278
      $region66: #{discriminator_forward.1} parent=63 // pred_check_branch
        %11024 = sbr.rel (%p11022) target = $region68
      $region67: #{discriminator_forward.1} parent=63 // pred_region
        _
      $region68: #{discriminator_forward.1} parent=63 // pred_fallthru
        _
    $region64: #{discriminator_forward.1} parent=5 // pred_fallthru
      _
    %p11025 = scmp.le.s32.totalorder 2, %s19
    // Predicated region
    $region69: #{discriminator_forward.1} parent=5 // pred_check
      %p11026 = pneg %p11025
    $region70: #{discriminator_forward.1} parent=5 // pred_check_branch
      %11028 = sbr.rel (%p11026) target = $region72
    $region71: #{discriminator_forward.1} parent=5 // pred_region
      %s11029 = ssub.s32 %s19, 2
      // Predicated region
      $region73: #{discriminator_forward.1} parent=71 // pred_check
        %p11030 = pneg %p284
      $region74: #{discriminator_forward.1} parent=71 // pred_check_branch
        %11032 = sbr.rel (%p11030) target = $region76
      $region75: #{discriminator_forward.1} parent=71 // pred_region
        %p11033 = scmp.lt.s32.totalorder %s25, 1
        %s11034 = scalar_select %p11033, %s25, 1
        %s11035 = scalar_lea.vmem %s11, %s11034
      $region76: #{discriminator_forward.1} parent=71 // pred_fallthru
        _
    $region72: #{discriminator_forward.1} parent=5 // pred_fallthru
      _
  $region6: #{discriminator_forward.1} parent=0 // loop_footer
    %s23 = sadd.s32 1, %s19
  $region7: #{discriminator_forward.1} parent=0 // loop_footer_branch
    %18 = sbr.rel target = $region3
  $region8: #{discriminator_forward.1} parent=0 // loop_exit
    _

</llo_original>
